<compile_context>
chip_gen: v7x
topology: tpu7x:2x2x1
jax: 0.10.0
libtpu: 0.0.40
codegen_flags: <defaults>
</compile_context>

<pallas_src>
from functools import partial

import jax
import jax.numpy as jnp
from jax.experimental import pallas as pl
from jax.experimental.pallas import tpu as pltpu

EPS = 1e-5


# --------------------------------------------------------------------------
# Kernels
# --------------------------------------------------------------------------
def _conv1x1_stats_kernel(x_ref, w_ref, y_ref, ps_ref):
    """y = x @ w (bf16 MXU, f32 acc); BN partial sums from the f32 accumulator."""
    y = jnp.dot(x_ref[...].astype(jnp.bfloat16), w_ref[...],
                preferred_element_type=jnp.float32)
    y_ref[...] = y.astype(y_ref.dtype)
    ps_ref[0:1, :] = jnp.sum(y, axis=0, keepdims=True)
    ps_ref[1:2, :] = jnp.sum(y * y, axis=0, keepdims=True)


def _bn_relu_conv1x1_stats_kernel(x_ref, s_ref, b_ref, w_ref, y_ref, ps_ref):
    """a = relu(x*scale+bias) (f32) -> bf16; y = a @ w; BN partial sums of y."""
    a = jnp.maximum(x_ref[...].astype(jnp.float32) * s_ref[...] + b_ref[...], 0.0)
    y = jnp.dot(a.astype(jnp.bfloat16), w_ref[...],
                preferred_element_type=jnp.float32)
    y_ref[...] = y.astype(y_ref.dtype)
    ps_ref[0:1, :] = jnp.sum(y, axis=0, keepdims=True)
    ps_ref[1:2, :] = jnp.sum(y * y, axis=0, keepdims=True)


def _bn_relu_conv3x3_stats_kernel(y1_ref, s_ref, b_ref, w2_ref, y2_ref, ps_ref,
                                  g_ref, *, H, W):
    """Per image: BN1-apply + ReLU, 3x3 'same' conv, BN2 partial sums.

    The activation is staged once into a flat, dx-fused bf16 scratch g of shape
    ((H+2)*(W+2), 3*Pp) with g[m, dx*Pp:(dx+1)*Pp] == padded_activation_flat[m+dx].
    The conv is then 3 matmuls (one per kernel row dy) with K = 3*Pp whose
    operands are contiguous row slices g[dy*(W+2) : dy*(W+2)+H*(W+2), :] against
    the (3*Pp, Pp) weight slab w2_ref[dy].  Result rows at flat positions
    y*(W+2)+x with x >= W use wrap-around data and are simply never read back.
    """
    Pp = y1_ref.shape[-1]
    Wp2 = W + 2

    # BN1 apply + ReLU in f32 (scale/bias bound once), single cast to bf16.
    a1 = jnp.maximum(y1_ref[...].astype(jnp.float32) * s_ref[...] + b_ref[...],
                     0.0)
    a1b = a1.astype(jnp.bfloat16)                                  # (H*W, Pp)

    # --- stage the dx-fused padded activation ------------------------------
    # Zero only what valid outputs read: top/bottom padded row groups, plus per
    # interior row the left halo of the dx=0 block and right halo of dx=2.
    zrow = jnp.zeros((Wp2, 3 * Pp), jnp.bfloat16)
    zcol = jnp.zeros((1, Pp), jnp.bfloat16)
    g_ref[0:Wp2, :] = zrow
    g_ref[(H + 1) * Wp2:(H + 2) * Wp2, :] = zrow
    for ys in range(H):
        base = (ys + 1) * Wp2
        row = a1b[ys * W:(ys + 1) * W, :]                          # (W, Pp)
        g_ref[base + 1:base + 1 + W, 0:Pp] = row                   # dx = 0
        g_ref[base:base + W, Pp:2 * Pp] = row                      # dx = 1
        g_ref[base - 1:base - 1 + W, 2 * Pp:3 * Pp] = row          # dx = 2
        g_ref[base:base + 1, 0:Pp] = zcol                          # left halo
        g_ref[base + W - 1:base + W, 2 * Pp:3 * Pp] = zcol         # right halo

    # --- 3 over-wide matmuls (K = 3*Pp), accumulated in a local f32 value --
    acc = jnp.zeros((H * Wp2, Pp), jnp.float32)
    for dy in range(3):
        op = g_ref[dy * Wp2:dy * Wp2 + H * Wp2, :]                 # contiguous
        acc = acc + jnp.dot(op, w2_ref[dy],
                            preferred_element_type=jnp.float32)

    # --- extract valid columns, write y2 once, BN2 partial sums ------------
    s_acc = jnp.zeros((1, Pp), jnp.float32)
    q_acc = jnp.zeros((1, Pp), jnp.float32)
    for y in range(H):
        r = acc[y * Wp2:y * Wp2 + W, :]                            # (W, Pp)
        y2_ref[y * W:(y + 1) * W, :] = r.astype(y2_ref.dtype)
        s_acc = s_acc + jnp.sum(r, axis=0, keepdims=True)
        q_acc = q_acc + jnp.sum(r * r, axis=0, keepdims=True)
    ps_ref[0:1, :] = s_acc
    ps_ref[1:2, :] = q_acc


def _bn_residual_relu_kernel(y_ref, s_ref, b_ref, x_ref, o_ref):
    """out = relu(y*scale + bias + identity)."""
    out = (y_ref[...].astype(jnp.float32) * s_ref[...] + b_ref[...]
           + x_ref[...].astype(jnp.float32))
    o_ref[...] = jnp.maximum(out, 0.0).astype(o_ref.dtype)


# --------------------------------------------------------------------------
# Host-side helpers
# --------------------------------------------------------------------------
def _round_up(v, m):
    return ((v + m - 1) // m) * m


def _pick_tile(npix, cmax):
    """Largest row tile (dividing npix) whose working set is VMEM-friendly on
    all generations (v7x included) while giving >= 8 grid steps when possible."""
    budget = 6 * 1024 * 1024                       # conservative per-stage target
    cap = max(8, budget // (16 * cmax))            # ~in+out, double-buffered, f32
    fallback = None
    for tm in (1024, 512, 256, 128, 64, 32, 16, 8):
        if tm > cap or npix % tm:
            continue
        if fallback is None:
            fallback = tm
        if npix // tm >= 8:
            return tm
    return fallback if fallback is not None else 8


def _bn_fold(psums, gamma, beta, count):
    """Fold per-tile (sum, sumsq) into per-channel BN scale / bias (batch stats)."""
    s = jnp.sum(psums[:, 0, :], axis=0)
    ss = jnp.sum(psums[:, 1, :], axis=0)
    mean = s / count
    var = ss / count - mean * mean                 # biased var, PyTorch norm
    scale = (gamma * jax.lax.rsqrt(var + EPS)).astype(jnp.float32)   # (1, C)
    bias = (beta - mean * scale).astype(jnp.float32)                 # (1, C)
    return scale, bias


def _parallel(n_axes=1):
    return pltpu.CompilerParams(dimension_semantics=("parallel",) * n_axes)


# --------------------------------------------------------------------------
# Forward pass (NHWC hot path + NCHW wrapper)
# --------------------------------------------------------------------------
def bottleneck_forward_nhwc(x_nhwc, params):
    w1, g1, b1, w2, g2, b2, w3, g3, b3 = params
    N, H, W, Cin = x_nhwc.shape
    P = w1.shape[1]
    C3 = w3.shape[1]
    assert Cin == C3, "project=None requires inplanes == expansion * planes"
    Npix = N * H * W
    HW = H * W
    assert Npix % 8 == 0

    # Pad the 'planes' channel dim to a lane-dense multiple of 128.  Padded
    # gamma/beta are zero, so padded channels stay exactly zero end-to-end.
    Pp = _round_up(P, 128)
    if Pp != P:
        dp = Pp - P
        w1 = jnp.pad(w1, ((0, 0), (0, dp)))
        w2 = jnp.pad(w2, ((0, 0), (0, 0), (0, dp), (0, dp)))
        w3 = jnp.pad(w3, ((0, dp), (0, 0)))
        g1 = jnp.pad(g1, ((0, 0), (0, dp)))
        b1 = jnp.pad(b1, ((0, 0), (0, dp)))
        g2 = jnp.pad(g2, ((0, 0), (0, dp)))
        b2 = jnp.pad(b2, ((0, 0), (0, dp)))

    xf = x_nhwc.reshape(Npix, Cin)
    w1b = w1.astype(jnp.bfloat16)                                 # (Cin, Pp)
    # (3, 3*Pp, Pp): row dy is [w2[dy,0]; w2[dy,1]; w2[dy,2]] stacked along K.
    w2slab = w2.reshape(3, 3 * Pp, Pp).astype(jnp.bfloat16)
    w3b = w3.astype(jnp.bfloat16)                                 # (Pp, C3)

    TM = _pick_tile(Npix, max(Cin, Pp, C3))
    nt = Npix // TM

    # ---- stage 1: conv1 (1x1, Cin -> Pp) + BN1 partial sums ---------------
    y1, ps1 = pl.pallas_call(
        _conv1x1_stats_kernel,
        out_shape=(jax.ShapeDtypeStruct((Npix, Pp), jnp.bfloat16),
                   jax.ShapeDtypeStruct((nt, 2, Pp), jnp.float32)),
        grid=(nt,),
        in_specs=[pl.BlockSpec((TM, Cin), lambda i: (i, 0)),
                  pl.BlockSpec((Cin, Pp), lambda i: (0, 0))],
        out_specs=[pl.BlockSpec((TM, Pp), lambda i: (i, 0)),
                   pl.BlockSpec((None, 2, Pp), lambda i: (i, 0, 0))],
        compiler_params=_parallel(),
        cost_estimate=pl.CostEstimate(
            flops=int(2 * Npix * Cin * Pp), transcendentals=0,
            bytes_accessed=int(4 * Npix * Cin + 2 * Npix * Pp + 2 * Cin * Pp)),
    )(xf, w1b)
    s1, o1 = _bn_fold(ps1, g1, b1, Npix)

    # ---- stage 2: BN1 + ReLU + conv2 (3x3 same) + BN2 partial sums --------
    y2, ps2 = pl.pallas_call(
        partial(_bn_relu_conv3x3_stats_kernel, H=H, W=W),
        out_shape=(jax.ShapeDtypeStruct((N, HW, Pp), jnp.bfloat16),
                   jax.ShapeDtypeStruct((N, 2, Pp), jnp.float32)),
        grid=(N,),
        in_specs=[pl.BlockSpec((None, HW, Pp), lambda n: (n, 0, 0)),
                  pl.BlockSpec((1, Pp), lambda n: (0, 0)),
                  pl.BlockSpec((1, Pp), lambda n: (0, 0)),
                  pl.BlockSpec((3, 3 * Pp, Pp), lambda n: (0, 0, 0))],
        out_specs=[pl.BlockSpec((None, HW, Pp), lambda n: (n, 0, 0)),
                   pl.BlockSpec((None, 2, Pp), lambda n: (n, 0, 0))],
        scratch_shapes=[pltpu.VMEM(((H + 2) * (W + 2), 3 * Pp), jnp.bfloat16)],
        compiler_params=_parallel(),
        cost_estimate=pl.CostEstimate(
            flops=int(18 * N * H * (W + 2) * Pp * Pp), transcendentals=0,
            bytes_accessed=int(4 * Npix * Pp + 18 * Pp * Pp)),
    )(y1.reshape(N, HW, Pp), s1, o1, w2slab)
    s2, o2 = _bn_fold(ps2, g2, b2, Npix)

    # ---- stage 3: BN2 + ReLU + conv3 (1x1, Pp -> C3) + BN3 partial sums ---
    y3, ps3 = pl.pallas_call(
        _bn_relu_conv1x1_stats_kernel,
        out_shape=(jax.ShapeDtypeStruct((Npix, C3), jnp.bfloat16),
                   jax.ShapeDtypeStruct((nt, 2, C3), jnp.float32)),
        grid=(nt,),
        in_specs=[pl.BlockSpec((TM, Pp), lambda i: (i, 0)),
                  pl.BlockSpec((1, Pp), lambda i: (0, 0)),
                  pl.BlockSpec((1, Pp), lambda i: (0, 0)),
                  pl.BlockSpec((Pp, C3), lambda i: (0, 0))],
        out_specs=[pl.BlockSpec((TM, C3), lambda i: (i, 0)),
                   pl.BlockSpec((None, 2, C3), lambda i: (i, 0, 0))],
        compiler_params=_parallel(),
        cost_estimate=pl.CostEstimate(
            flops=int(2 * Npix * Pp * C3), transcendentals=0,
            bytes_accessed=int(2 * Npix * (Pp + C3) + 2 * Pp * C3)),
    )(y2.reshape(Npix, Pp), s2, o2, w3b)
    s3, o3 = _bn_fold(ps3, g3, b3, Npix)

    # ---- stage 4: BN3 + residual add + ReLU --------------------------------
    out_f = pl.pallas_call(
        _bn_residual_relu_kernel,
        out_shape=jax.ShapeDtypeStruct((Npix, C3), x_nhwc.dtype),
        grid=(nt,),
        in_specs=[pl.BlockSpec((TM, C3), lambda i: (i, 0)),
                  pl.BlockSpec((1, C3), lambda i: (0, 0)),
                  pl.BlockSpec((1, C3), lambda i: (0, 0)),
                  pl.BlockSpec((TM, Cin), lambda i: (i, 0))],
        out_specs=pl.BlockSpec((TM, C3), lambda i: (i, 0)),
        compiler_params=_parallel(),
        cost_estimate=pl.CostEstimate(
            flops=int(3 * Npix * C3), transcendentals=0,
            bytes_accessed=int(2 * Npix * C3 + 8 * Npix * C3)),
    )(y3, s3, o3, xf)

    return out_f.reshape(N, H, W, C3)


def bottleneck_forward(x_nchw, params):
    """PyTorch-compatible interface: x_nchw (N, Cin, H, W), Cin == 4*planes."""
    x = jnp.transpose(x_nchw, (0, 2, 3, 1))          # NCHW -> NHWC (interface only)
    out = bottleneck_forward_nhwc(x, params)
    return jnp.transpose(out, (0, 3, 1, 2))          # NHWC -> NCHW


# --------------------------------------------------------------------------
# Parameters & pure-JAX reference (mirrors the kernel numerics: bf16 MXU
# inputs + bf16 inter-stage storage, all BN statistics / math in f32).
# --------------------------------------------------------------------------
def make_params(key, inplanes, planes):
    ks = jax.random.split(key, 9)
    expansion = 4
    # Channels-last weight layout:
    #   w1: (Cin, P), w2: (3, 3, P, P) [ky, kx, cin, cout], w3: (P, 4P)
    w1 = 0.1 * jax.random.normal(ks[0], (inplanes, planes), jnp.float32)
    w2 = 0.1 * jax.random.normal(ks[1], (3, 3, planes, planes), jnp.float32)
    w3 = 0.1 * jax.random.normal(ks[2], (planes, expansion * planes), jnp.float32)
    g1 = 1.0 + 0.1 * jax.random.normal(ks[3], (1, planes), jnp.float32)
    b1 = 0.1 * jax.random.normal(ks[4], (1, planes), jnp.float32)
    g2 = 1.0 + 0.1 * jax.random.normal(ks[5], (1, planes), jnp.float32)
    b2 = 0.1 * jax.random.normal(ks[6], (1, planes), jnp.float32)
    g3 = 1.0 + 0.1 * jax.random.normal(ks[7], (1, expansion * planes), jnp.float32)
    b3 = 0.1 * jax.random.normal(ks[8], (1, expansion * planes), jnp.float32)
    return (w1, g1, b1, w2, g2, b2, w3, g3, b3)


def reference_forward(x_nchw, params):
    w1, g1, b1, w2, g2, b2, w3, g3, b3 = params
    N, Cin, H, W = x_nchw.shape
    P = w1.shape[1]
    bf16 = jnp.bfloat16
    x = jnp.transpose(x_nchw, (0, 2, 3, 1)).astype(jnp.float32)
    xf = x.reshape(-1, Cin)

    def fold(y, gamma, beta):
        mean = jnp.mean(y, axis=0)
        var = jnp.mean(y * y, axis=0) - mean * mean
        scale = gamma * jax.lax.rsqrt(var + EPS)
        bias = beta - mean * scale
        return scale, bias

    y1 = jnp.dot(xf.astype(bf16), w1.astype(bf16), preferred_element_type=jnp.float32)
    s1, o1 = fold(y1, g1, b1)
    y1 = y1.astype(bf16).astype(jnp.float32)          # mirror bf16 inter-stage store
    a1 = jnp.maximum(y1 * s1 + o1, 0.0).reshape(N, H, W, P)

    padded = jnp.pad(a1, ((0, 0), (1, 1), (1, 1), (0, 0))).astype(bf16)
    w2b = w2.astype(bf16)
    acc = jnp.zeros((N * H * W, P), jnp.float32)
    for dy in range(3):
        for dx in range(3):
            tap = padded[:, dy:dy + H, dx:dx + W, :].reshape(-1, P)
            acc = acc + jnp.dot(tap, w2b[dy, dx], preferred_element_type=jnp.float32)
    s2, o2 = fold(acc, g2, b2)
    acc = acc.astype(bf16).astype(jnp.float32)        # mirror bf16 inter-stage store
    a2 = jnp.maximum(acc * s2 + o2, 0.0)

    y3 = jnp.dot(a2.astype(bf16), w3.astype(bf16), preferred_element_type=jnp.float32)
    s3, o3 = fold(y3, g3, b3)
    y3 = y3.astype(bf16).astype(jnp.float32)          # mirror bf16 inter-stage store
    out = jnp.maximum(y3 * s3 + o3 + xf, 0.0).reshape(N, H, W, Cin)
    return jnp.transpose(out, (0, 3, 1, 2))


# --------------------------------------------------------------------------
if __name__ == "__main__":
    planes = 32
    inplanes = 4 * planes          # project=None requires inplanes == expansion*planes
    N, H, W = 2, 16, 16

    key = jax.random.PRNGKey(0)
    kx, kp = jax.random.split(key)
    x = jax.random.normal(kx, (N, inplanes, H, W), jnp.float32)
    params = make_params(kp, inplanes, planes)

    fwd = jax.jit(bottleneck_forward)
    out = jax.block_until_ready(fwd(x, params))

    ref = reference_forward(x, params)
    assert out.shape == (N, inplanes, H, W)
    max_err = float(jnp.max(jnp.abs(out - ref)))
    assert jnp.allclose(out, ref, rtol=2e-2, atol=2e-2), f"max abs err {max_err}"
    print("KERNEL_OK")
</pallas_src>

<mosaic_0001>
module attributes {stable_mosaic.version = 11 : i64} {
  func.func @_conv1x1_stats_kernel(%arg0: i32, %arg1: memref<64x128xf32, #tpu.memory_space<vmem>>, %arg2: memref<128x128xbf16, #tpu.memory_space<vmem>>, %arg3: memref<64x128xbf16, #tpu.memory_space<vmem>>, %arg4: memref<1x2x128xf32, #tpu.memory_space<vmem>>) attributes {dimension_semantics = [#tpu.dimension_semantics<parallel>], iteration_bounds = array<i64: 8>, scalar_prefetch = 0 : i64, scratch_operands = 0 : i64, tpu.core_type = #tpu.core_type<tc>, window_params = [{transform_indices = @transform_0, window_bounds = array<i64: 64, 128>}, {pipeline_mode = #tpu.pipeline_mode<synchronous>, transform_indices = @transform_1, window_bounds = array<i64: 128, 128>}, {transform_indices = @transform_2, window_bounds = array<i64: 64, 128>}, {transform_indices = @transform_3, window_bounds = array<i64: 1, 2, 128>}]} {
    %c0 = arith.constant 0 : index
    %c0_0 = arith.constant 0 : index
    %0 = vector.load %arg1[%c0, %c0_0] : memref<64x128xf32, #tpu.memory_space<vmem>>, vector<64x128xf32>
    %1 = arith.truncf %0 : vector<64x128xf32> to vector<64x128xbf16>
    %c0_1 = arith.constant 0 : index
    %c0_2 = arith.constant 0 : index
    %2 = vector.load %arg2[%c0_1, %c0_2] : memref<128x128xbf16, #tpu.memory_space<vmem>>, vector<128x128xbf16>
    %cst = arith.constant dense<0.000000e+00> : vector<64x128xf32>
    %3 = tpu.matmul %1, %2, %cst {dimension_numbers = #tpu.dot_dimension_numbers<[1], [0], [0], [1], [0, 0, 1, 1], [], []>} : vector<64x128xbf16>, vector<128x128xbf16>, vector<64x128xf32> -> vector<64x128xf32>
    %4 = arith.truncf %3 : vector<64x128xf32> to vector<64x128xbf16>
    %c0_3 = arith.constant 0 : index
    %c0_4 = arith.constant 0 : index
    %5 = vector.load %arg3[%c0_3, %c0_4] : memref<64x128xbf16, #tpu.memory_space<vmem>>, vector<64x128xbf16>
    tpu.vector_store %arg3[%c0_3, %c0_4], %4 {strides = array<i32>} : memref<64x128xbf16, #tpu.memory_space<vmem>>, vector<64x128xbf16>,
    %cst_5 = arith.constant dense<0.000000e+00> : vector<128xf32>
    %6 = vector.multi_reduction <add>, %3, %cst_5 [0] : vector<64x128xf32> to vector<128xf32>
    %7 = vector.shape_cast %6 : vector<128xf32> to vector<1x128xf32>
    %c0_6 = arith.constant 0 : index
    %c0_7 = arith.constant 0 : index
    %c0_8 = arith.constant 0 : index
    %8 = vector.load %arg4[%c0_6, %c0_7, %c0_8] : memref<1x2x128xf32, #tpu.memory_space<vmem>>, vector<1x1x128xf32>
    %9 = vector.shape_cast %8 : vector<1x1x128xf32> to vector<1x128xf32>
    %10 = vector.shape_cast %7 : vector<1x128xf32> to vector<1x1x128xf32>
    tpu.vector_store %arg4[%c0_6, %c0_7, %c0_8], %10 {strides = array<i32>} : memref<1x2x128xf32, #tpu.memory_space<vmem>>, vector<1x1x128xf32>,
    %11 = arith.mulf %3, %3 : vector<64x128xf32>
    %cst_9 = arith.constant dense<0.000000e+00> : vector<128xf32>
    %12 = vector.multi_reduction <add>, %11, %cst_9 [0] : vector<64x128xf32> to vector<128xf32>
    %13 = vector.shape_cast %12 : vector<128xf32> to vector<1x128xf32>
    %c0_10 = arith.constant 0 : index
    %c1 = arith.constant 1 : index
    %c0_11 = arith.constant 0 : index
    %14 = vector.load %arg4[%c0_10, %c1, %c0_11] : memref<1x2x128xf32, #tpu.memory_space<vmem>>, vector<1x1x128xf32>
    %15 = vector.shape_cast %14 : vector<1x1x128xf32> to vector<1x128xf32>
    %16 = vector.shape_cast %13 : vector<1x128xf32> to vector<1x1x128xf32>
    tpu.vector_store %arg4[%c0_10, %c1, %c0_11], %16 {strides = array<i32>} : memref<1x2x128xf32, #tpu.memory_space<vmem>>, vector<1x1x128xf32>,
    return
  }
  func.func @transform_0(%arg0: i32) -> (i32, i32) {
    %c0_i32 = arith.constant 0 : i32
    %c0_i32_0 = arith.constant 0 : i32
    return %arg0, %c0_i32 : i32, i32
  }
  func.func @transform_1(%arg0: i32) -> (i32, i32) {
    %c0_i32 = arith.constant 0 : i32
    %c0_i32_0 = arith.constant 0 : i32
    %c0_i32_1 = arith.constant 0 : i32
    return %c0_i32, %c0_i32_0 : i32, i32
  }
  func.func @transform_2(%arg0: i32) -> (i32, i32) {
    %c0_i32 = arith.constant 0 : i32
    %c0_i32_0 = arith.constant 0 : i32
    return %arg0, %c0_i32 : i32, i32
  }
  func.func @transform_3(%arg0: i32) -> (i32, i32, i32) {
    %c0_i32 = arith.constant 0 : i32
    %c0_i32_0 = arith.constant 0 : i32
    %c0_i32_1 = arith.constant 0 : i32
    return %arg0, %c0_i32, %c0_i32_0 : i32, i32, i32
  }
}

module attributes {stable_mosaic.version = 11 : i64} {
  func.func @_bn_relu_conv3x3_stats_kernel(%arg0: i32, %arg1: memref<1x256x128xbf16, #tpu.memory_space<vmem>>, %arg2: memref<1x128xf32, #tpu.memory_space<vmem>>, %arg3: memref<1x128xf32, #tpu.memory_space<vmem>>, %arg4: memref<3x384x128xbf16, #tpu.memory_space<vmem>>, %arg5: memref<1x256x128xbf16, #tpu.memory_space<vmem>>, %arg6: memref<1x2x128xf32, #tpu.memory_space<vmem>>, %arg7: memref<324x384xbf16, #tpu.memory_space<vmem>>) attributes {dimension_semantics = [#tpu.dimension_semantics<parallel>], iteration_bounds = array<i64: 2>, scalar_prefetch = 0 : i64, scratch_operands = 1 : i64, tpu.core_type = #tpu.core_type<tc>, window_params = [{transform_indices = @transform_0, window_bounds = array<i64: 1, 256, 128>}, {pipeline_mode = #tpu.pipeline_mode<synchronous>, transform_indices = @transform_1, window_bounds = array<i64: 1, 128>}, {pipeline_mode = #tpu.pipeline_mode<synchronous>, transform_indices = @transform_2, window_bounds = array<i64: 1, 128>}, {pipeline_mode = #tpu.pipeline_mode<synchronous>, transform_indices = @transform_3, window_bounds = array<i64: 3, 384, 128>}, {transform_indices = @transform_4, window_bounds = array<i64: 1, 256, 128>}, {transform_indices = @transform_5, window_bounds = array<i64: 1, 2, 128>}]} {
    %c0 = arith.constant 0 : index
    %c0_0 = arith.constant 0 : index
    %c0_1 = arith.constant 0 : index
    %0 = vector.load %arg1[%c0, %c0_0, %c0_1] : memref<1x256x128xbf16, #tpu.memory_space<vmem>>, vector<1x256x128xbf16>
    %1 = vector.shape_cast %0 : vector<1x256x128xbf16> to vector<256x128xbf16>
    %2 = arith.extf %1 : vector<256x128xbf16> to vector<256x128xf32>
    %c0_2 = arith.constant 0 : index
    %c0_3 = arith.constant 0 : index
    %3 = vector.load %arg2[%c0_2, %c0_3] : memref<1x128xf32, #tpu.memory_space<vmem>>, vector<1x128xf32>
    %4 = vector.broadcast %3 : vector<1x128xf32> to vector<256x128xf32>
    %5 = arith.mulf %2, %4 : vector<256x128xf32>
    %c0_4 = arith.constant 0 : index
    %c0_5 = arith.constant 0 : index
    %6 = vector.load %arg3[%c0_4, %c0_5] : memref<1x128xf32, #tpu.memory_space<vmem>>, vector<1x128xf32>
    %7 = vector.broadcast %6 : vector<1x128xf32> to vector<256x128xf32>
    %8 = arith.addf %5, %7 : vector<256x128xf32>
    %cst = arith.constant 0.000000e+00 : f32
    %9 = vector.broadcast %cst : f32 to vector<256x128xf32>
    %10 = arith.maximumf %8, %9 : vector<256x128xf32>
    %11 = arith.truncf %10 : vector<256x128xf32> to vector<256x128xbf16>
    %cst_6 = arith.constant 0.000000e+00 : bf16
    %12 = vector.broadcast %cst_6 : bf16 to vector<18x384xbf16>
    %cst_7 = arith.constant 0.000000e+00 : bf16
    %13 = vector.broadcast %cst_7 : bf16 to vector<1x128xbf16>
    %c0_8 = arith.constant 0 : index
    %c0_9 = arith.constant 0 : index
    %14 = vector.load %arg7[%c0_8, %c0_9] : memref<324x384xbf16, #tpu.memory_space<vmem>>, vector<18x384xbf16>
    tpu.vector_store %arg7[%c0_8, %c0_9], %12 {strides = array<i32>} : memref<324x384xbf16, #tpu.memory_space<vmem>>, vector<18x384xbf16>,
    %c306 = arith.constant 306 : index
    %c0_10 = arith.constant 0 : index
    %15 = vector.load %arg7[%c306, %c0_10] : memref<324x384xbf16, #tpu.memory_space<vmem>>, vector<18x384xbf16>
    tpu.vector_store %arg7[%c306, %c0_10], %12 {strides = array<i32>} : memref<324x384xbf16, #tpu.memory_space<vmem>>, vector<18x384xbf16>,
    %16 = vector.extract_strided_slice %11 {offsets = [0, 0], sizes = [16, 128], strides = [1, 1]} : vector<256x128xbf16> to vector<16x128xbf16>
    %c19 = arith.constant 19 : index
    %c0_11 = arith.constant 0 : index
    %17 = vector.load %arg7[%c19, %c0_11] : memref<324x384xbf16, #tpu.memory_space<vmem>>, vector<16x128xbf16>
    tpu.vector_store %arg7[%c19, %c0_11], %16 {strides = array<i32>} : memref<324x384xbf16, #tpu.memory_space<vmem>>, vector<16x128xbf16>,
    %c18 = arith.constant 18 : index
    %c128 = arith.constant 128 : index
    %18 = vector.load %arg7[%c18, %c128] : memref<324x384xbf16, #tpu.memory_space<vmem>>, vector<16x128xbf16>
    tpu.vector_store %arg7[%c18, %c128], %16 {strides = array<i32>} : memref<324x384xbf16, #tpu.memory_space<vmem>>, vector<16x128xbf16>,
    %c17 = arith.constant 17 : index
    %c256 = arith.constant 256 : index
    %19 = vector.load %arg7[%c17, %c256] : memref<324x384xbf16, #tpu.memory_space<vmem>>, vector<16x128xbf16>
    tpu.vector_store %arg7[%c17, %c256], %16 {strides = array<i32>} : memref<324x384xbf16, #tpu.memory_space<vmem>>, vector<16x128xbf16>,
    %c18_12 = arith.constant 18 : index
    %c0_13 = arith.constant 0 : index
    %20 = vector.load %arg7[%c18_12, %c0_13] : memref<324x384xbf16, #tpu.memory_space<vmem>>, vector<1x128xbf16>
    tpu.vector_store %arg7[%c18_12, %c0_13], %13 {strides = array<i32>} : memref<324x384xbf16, #tpu.memory_space<vmem>>, vector<1x128xbf16>,
    %c33 = arith.constant 33 : index
    %c256_14 = arith.constant 256 : index
    %21 = vector.load %arg7[%c33, %c256_14] : memref<324x384xbf16, #tpu.memory_space<vmem>>, vector<1x128xbf16>
    tpu.vector_store %arg7[%c33, %c256_14], %13 {strides = array<i32>} : memref<324x384xbf16, #tpu.memory_space<vmem>>, vector<1x128xbf16>,
    %22 = vector.extract_strided_slice %11 {offsets = [16, 0], sizes = [16, 128], strides = [1, 1]} : vector<256x128xbf16> to vector<16x128xbf16>
    %c37 = arith.constant 37 : index
    %c0_15 = arith.constant 0 : index
    %23 = vector.load %arg7[%c37, %c0_15] : memref<324x384xbf16, #tpu.memory_space<vmem>>, vector<16x128xbf16>
    tpu.vector_store %arg7[%c37, %c0_15], %22 {strides = array<i32>} : memref<324x384xbf16, #tpu.memory_space<vmem>>, vector<16x128xbf16>,
    %c36 = arith.constant 36 : index
    %c128_16 = arith.constant 128 : index
    %24 = vector.load %arg7[%c36, %c128_16] : memref<324x384xbf16, #tpu.memory_space<vmem>>, vector<16x128xbf16>
    tpu.vector_store %arg7[%c36, %c128_16], %22 {strides = array<i32>} : memref<324x384xbf16, #tpu.memory_space<vmem>>, vector<16x128xbf16>,
    %c35 = arith.constant 35 : index
    %c256_17 = arith.constant 256 : index
    %25 = vector.load %arg7[%c35, %c256_17] : memref<324x384xbf16, #tpu.memory_space<vmem>>, vector<16x128xbf16>
    tpu.vector_store %arg7[%c35, %c256_17], %22 {strides = array<i32>} : memref<324x384xbf16, #tpu.memory_space<vmem>>, vector<16x128xbf16>,
    %c36_18 = arith.constant 36 : index
    %c0_19 = arith.constant 0 : index
    %26 = vector.load %arg7[%c36_18, %c0_19] : memref<324x384xbf16, #tpu.memory_space<vmem>>, vector<1x128xbf16>
    tpu.vector_store %arg7[%c36_18, %c0_19], %13 {strides = array<i32>} : memref<324x384xbf16, #tpu.memory_space<vmem>>, vector<1x128xbf16>,
    %c51 = arith.constant 51 : index
    %c256_20 = arith.constant 256 : index
    %27 = vector.load %arg7[%c51, %c256_20] : memref<324x384xbf16, #tpu.memory_space<vmem>>, vector<1x128xbf16>
    tpu.vector_store %arg7[%c51, %c256_20], %13 {strides = array<i32>} : memref<324x384xbf16, #tpu.memory_space<vmem>>, vector<1x128xbf16>,
    %28 = vector.extract_strided_slice %11 {offsets = [32, 0], sizes = [16, 128], strides = [1, 1]} : vector<256x128xbf16> to vector<16x128xbf16>
    %c55 = arith.constant 55 : index
    %c0_21 = arith.constant 0 : index
    %29 = vector.load %arg7[%c55, %c0_21] : memref<324x384xbf16, #tpu.memory_space<vmem>>, vector<16x128xbf16>
    tpu.vector_store %arg7[%c55, %c0_21], %28 {strides = array<i32>} : memref<324x384xbf16, #tpu.memory_space<vmem>>, vector<16x128xbf16>,
    %c54 = arith.constant 54 : index
    %c128_22 = arith.constant 128 : index
    %30 = vector.load %arg7[%c54, %c128_22] : memref<324x384xbf16, #tpu.memory_space<vmem>>, vector<16x128xbf16>
    tpu.vector_store %arg7[%c54, %c128_22], %28 {strides = array<i32>} : memref<324x384xbf16, #tpu.memory_space<vmem>>, vector<16x128xbf16>,
    %c53 = arith.constant 53 : index
    %c256_23 = arith.constant 256 : index
    %31 = vector.load %arg7[%c53, %c256_23] : memref<324x384xbf16, #tpu.memory_space<vmem>>, vector<16x128xbf16>
    tpu.vector_store %arg7[%c53, %c256_23], %28 {strides = array<i32>} : memref<324x384xbf16, #tpu.memory_space<vmem>>, vector<16x128xbf16>,
    %c54_24 = arith.constant 54 : index
    %c0_25 = arith.constant 0 : index
    %32 = vector.load %arg7[%c54_24, %c0_25] : memref<324x384xbf16, #tpu.memory_space<vmem>>, vector<1x128xbf16>
    tpu.vector_store %arg7[%c54_24, %c0_25], %13 {strides = array<i32>} : memref<324x384xbf16, #tpu.memory_space<vmem>>, vector<1x128xbf16>,
    %c69 = arith.constant 69 : index
    %c256_26 = arith.constant 256 : index
    %33 = vector.load %arg7[%c69, %c256_26] : memref<324x384xbf16, #tpu.memory_space<vmem>>, vector<1x128xbf16>
    tpu.vector_store %arg7[%c69, %c256_26], %13 {strides = array<i32>} : memref<324x384xbf16, #tpu.memory_space<vmem>>, vector<1x128xbf16>,
    %34 = vector.extract_strided_slice %11 {offsets = [48, 0], sizes = [16, 128], strides = [1, 1]} : vector<256x128xbf16> to vector<16x128xbf16>
    %c73 = arith.constant 73 : index
    %c0_27 = arith.constant 0 : index
    %35 = vector.load %arg7[%c73, %c0_27] : memref<324x384xbf16, #tpu.memory_space<vmem>>, vector<16x128xbf16>
    tpu.vector_store %arg7[%c73, %c0_27], %34 {strides = array<i32>} : memref<324x384xbf16, #tpu.memory_space<vmem>>, vector<16x128xbf16>,
    %c72 = arith.constant 72 : index
    %c128_28 = arith.constant 128 : index
    %36 = vector.load %arg7[%c72, %c128_28] : memref<324x384xbf16, #tpu.memory_space<vmem>>, vector<16x128xbf16>
    tpu.vector_store %arg7[%c72, %c128_28], %34 {strides = array<i32>} : memref<324x384xbf16, #tpu.memory_space<vmem>>, vector<16x128xbf16>,
    %c71 = arith.constant 71 : index
    %c256_29 = arith.constant 256 : index
    %37 = vector.load %arg7[%c71, %c256_29] : memref<324x384xbf16, #tpu.memory_space<vmem>>, vector<16x128xbf16>
    tpu.vector_store %arg7[%c71, %c256_29], %34 {strides = array<i32>} : memref<324x384xbf16, #tpu.memory_space<vmem>>, vector<16x128xbf16>,
    %c72_30 = arith.constant 72 : index
    %c0_31 = arith.constant 0 : index
    %38 = vector.load %arg7[%c72_30, %c0_31] : memref<324x384xbf16, #tpu.memory_space<vmem>>, vector<1x128xbf16>
    tpu.vector_store %arg7[%c72_30, %c0_31], %13 {strides = array<i32>} : memref<324x384xbf16, #tpu.memory_space<vmem>>, vector<1x128xbf16>,
    %c87 = arith.constant 87 : index
    %c256_32 = arith.constant 256 : index
    %39 = vector.load %arg7[%c87, %c256_32] : memref<324x384xbf16, #tpu.memory_space<vmem>>, vector<1x128xbf16>
    tpu.vector_store %arg7[%c87, %c256_32], %13 {strides = array<i32>} : memref<324x384xbf16, #tpu.memory_space<vmem>>, vector<1x128xbf16>,
    %40 = vector.extract_strided_slice %11 {offsets = [64, 0], sizes = [16, 128], strides = [1, 1]} : vector<256x128xbf16> to vector<16x128xbf16>
    %c91 = arith.constant 91 : index
    %c0_33 = arith.constant 0 : index
    %41 = vector.load %arg7[%c91, %c0_33] : memref<324x384xbf16, #tpu.memory_space<vmem>>, vector<16x128xbf16>
    tpu.vector_store %arg7[%c91, %c0_33], %40 {strides = array<i32>} : memref<324x384xbf16, #tpu.memory_space<vmem>>, vector<16x128xbf16>,
    %c90 = arith.constant 90 : index
    %c128_34 = arith.constant 128 : index
    %42 = vector.load %arg7[%c90, %c128_34] : memref<324x384xbf16, #tpu.memory_space<vmem>>, vector<16x128xbf16>
    tpu.vector_store %arg7[%c90, %c128_34], %40 {strides = array<i32>} : memref<324x384xbf16, #tpu.memory_space<vmem>>, vector<16x128xbf16>,
    %c89 = arith.constant 89 : index
    %c256_35 = arith.constant 256 : index
    %43 = vector.load %arg7[%c89, %c256_35] : memref<324x384xbf16, #tpu.memory_space<vmem>>, vector<16x128xbf16>
    tpu.vector_store %arg7[%c89, %c256_35], %40 {strides = array<i32>} : memref<324x384xbf16, #tpu.memory_space<vmem>>, vector<16x128xbf16>,
    %c90_36 = arith.constant 90 : index
    %c0_37 = arith.constant 0 : index
    %44 = vector.load %arg7[%c90_36, %c0_37] : memref<324x384xbf16, #tpu.memory_space<vmem>>, vector<1x128xbf16>
    tpu.vector_store %arg7[%c90_36, %c0_37], %13 {strides = array<i32>} : memref<324x384xbf16, #tpu.memory_space<vmem>>, vector<1x128xbf16>,
    %c105 = arith.constant 105 : index
    %c256_38 = arith.constant 256 : index
    %45 = vector.load %arg7[%c105, %c256_38] : memref<324x384xbf16, #tpu.memory_space<vmem>>, vector<1x128xbf16>
    tpu.vector_store %arg7[%c105, %c256_38], %13 {strides = array<i32>} : memref<324x384xbf16, #tpu.memory_space<vmem>>, vector<1x128xbf16>,
    %46 = vector.extract_strided_slice %11 {offsets = [80, 0], sizes = [16, 128], strides = [1, 1]} : vector<256x128xbf16> to vector<16x128xbf16>
    %c109 = arith.constant 109 : index
    %c0_39 = arith.constant 0 : index
    %47 = vector.load %arg7[%c109, %c0_39] : memref<324x384xbf16, #tpu.memory_space<vmem>>, vector<16x128xbf16>
    tpu.vector_store %arg7[%c109, %c0_39], %46 {strides = array<i32>} : memref<324x384xbf16, #tpu.memory_space<vmem>>, vector<16x128xbf16>,
    %c108 = arith.constant 108 : index
    %c128_40 = arith.constant 128 : index
    %48 = vector.load %arg7[%c108, %c128_40] : memref<324x384xbf16, #tpu.memory_space<vmem>>, vector<16x128xbf16>
    tpu.vector_store %arg7[%c108, %c128_40], %46 {strides = array<i32>} : memref<324x384xbf16, #tpu.memory_space<vmem>>, vector<16x128xbf16>,
    %c107 = arith.constant 107 : index
    %c256_41 = arith.constant 256 : index
    %49 = vector.load %arg7[%c107, %c256_41] : memref<324x384xbf16, #tpu.memory_space<vmem>>, vector<16x128xbf16>
    tpu.vector_store %arg7[%c107, %c256_41], %46 {strides = array<i32>} : memref<324x384xbf16, #tpu.memory_space<vmem>>, vector<16x128xbf16>,
    %c108_42 = arith.constant 108 : index
    %c0_43 = arith.constant 0 : index
    %50 = vector.load %arg7[%c108_42, %c0_43] : memref<324x384xbf16, #tpu.memory_space<vmem>>, vector<1x128xbf16>
    tpu.vector_store %arg7[%c108_42, %c0_43], %13 {strides = array<i32>} : memref<324x384xbf16, #tpu.memory_space<vmem>>, vector<1x128xbf16>,
    %c123 = arith.constant 123 : index
    %c256_44 = arith.constant 256 : index
    %51 = vector.load %arg7[%c123, %c256_44] : memref<324x384xbf16, #tpu.memory_space<vmem>>, vector<1x128xbf16>
    tpu.vector_store %arg7[%c123, %c256_44], %13 {strides = array<i32>} : memref<324x384xbf16, #tpu.memory_space<vmem>>, vector<1x128xbf16>,
    %52 = vector.extract_strided_slice %11 {offsets = [96, 0], sizes = [16, 128], strides = [1, 1]} : vector<256x128xbf16> to vector<16x128xbf16>
    %c127 = arith.constant 127 : index
    %c0_45 = arith.constant 0 : index
    %53 = vector.load %arg7[%c127, %c0_45] : memref<324x384xbf16, #tpu.memory_space<vmem>>, vector<16x128xbf16>
    tpu.vector_store %arg7[%c127, %c0_45], %52 {strides = array<i32>} : memref<324x384xbf16, #tpu.memory_space<vmem>>, vector<16x128xbf16>,
    %c126 = arith.constant 126 : index
    %c128_46 = arith.constant 128 : index
    %54 = vector.load %arg7[%c126, %c128_46] : memref<324x384xbf16, #tpu.memory_space<vmem>>, vector<16x128xbf16>
    tpu.vector_store %arg7[%c126, %c128_46], %52 {strides = array<i32>} : memref<324x384xbf16, #tpu.memory_space<vmem>>, vector<16x128xbf16>,
    %c125 = arith.constant 125 : index
    %c256_47 = arith.constant 256 : index
    %55 = vector.load %arg7[%c125, %c256_47] : memref<324x384xbf16, #tpu.memory_space<vmem>>, vector<16x128xbf16>
    tpu.vector_store %arg7[%c125, %c256_47], %52 {strides = array<i32>} : memref<324x384xbf16, #tpu.memory_space<vmem>>, vector<16x128xbf16>,
    %c126_48 = arith.constant 126 : index
    %c0_49 = arith.constant 0 : index
    %56 = vector.load %arg7[%c126_48, %c0_49] : memref<324x384xbf16, #tpu.memory_space<vmem>>, vector<1x128xbf16>
    tpu.vector_store %arg7[%c126_48, %c0_49], %13 {strides = array<i32>} : memref<324x384xbf16, #tpu.memory_space<vmem>>, vector<1x128xbf16>,
    %c141 = arith.constant 141 : index
    %c256_50 = arith.constant 256 : index
    %57 = vector.load %arg7[%c141, %c256_50] : memref<324x384xbf16, #tpu.memory_space<vmem>>, vector<1x128xbf16>
    tpu.vector_store %arg7[%c141, %c256_50], %13 {strides = array<i32>} : memref<324x384xbf16, #tpu.memory_space<vmem>>, vector<1x128xbf16>,
    %58 = vector.extract_strided_slice %11 {offsets = [112, 0], sizes = [16, 128], strides = [1, 1]} : vector<256x128xbf16> to vector<16x128xbf16>
    %c145 = arith.constant 145 : index
    %c0_51 = arith.constant 0 : index
    %59 = vector.load %arg7[%c145, %c0_51] : memref<324x384xbf16, #tpu.memory_space<vmem>>, vector<16x128xbf16>
    tpu.vector_store %arg7[%c145, %c0_51], %58 {strides = array<i32>} : memref<324x384xbf16, #tpu.memory_space<vmem>>, vector<16x128xbf16>,
    %c144 = arith.constant 144 : index
    %c128_52 = arith.constant 128 : index
    %60 = vector.load %arg7[%c144, %c128_52] : memref<324x384xbf16, #tpu.memory_space<vmem>>, vector<16x128xbf16>
    tpu.vector_store %arg7[%c144, %c128_52], %58 {strides = array<i32>} : memref<324x384xbf16, #tpu.memory_space<vmem>>, vector<16x128xbf16>,
    %c143 = arith.constant 143 : index
    %c256_53 = arith.constant 256 : index
    %61 = vector.load %arg7[%c143, %c256_53] : memref<324x384xbf16, #tpu.memory_space<vmem>>, vector<16x128xbf16>
    tpu.vector_store %arg7[%c143, %c256_53], %58 {strides = array<i32>} : memref<324x384xbf16, #tpu.memory_space<vmem>>, vector<16x128xbf16>,
    %c144_54 = arith.constant 144 : index
    %c0_55 = arith.constant 0 : index
    %62 = vector.load %arg7[%c144_54, %c0_55] : memref<324x384xbf16, #tpu.memory_space<vmem>>, vector<1x128xbf16>
    tpu.vector_store %arg7[%c144_54, %c0_55], %13 {strides = array<i32>} : memref<324x384xbf16, #tpu.memory_space<vmem>>, vector<1x128xbf16>,
    %c159 = arith.constant 159 : index
    %c256_56 = arith.constant 256 : index
    %63 = vector.load %arg7[%c159, %c256_56] : memref<324x384xbf16, #tpu.memory_space<vmem>>, vector<1x128xbf16>
    tpu.vector_store %arg7[%c159, %c256_56], %13 {strides = array<i32>} : memref<324x384xbf16, #tpu.memory_space<vmem>>, vector<1x128xbf16>,
    %64 = vector.extract_strided_slice %11 {offsets = [128, 0], sizes = [16, 128], strides = [1, 1]} : vector<256x128xbf16> to vector<16x128xbf16>
    %c163 = arith.constant 163 : index
    %c0_57 = arith.constant 0 : index
    %65 = vector.load %arg7[%c163, %c0_57] : memref<324x384xbf16, #tpu.memory_space<vmem>>, vector<16x128xbf16>
    tpu.vector_store %arg7[%c163, %c0_57], %64 {strides = array<i32>} : memref<324x384xbf16, #tpu.memory_space<vmem>>, vector<16x128xbf16>,
    %c162 = arith.constant 162 : index
    %c128_58 = arith.constant 128 : index
    %66 = vector.load %arg7[%c162, %c128_58] : memref<324x384xbf16, #tpu.memory_space<vmem>>, vector<16x128xbf16>
    tpu.vector_store %arg7[%c162, %c128_58], %64 {strides = array<i32>} : memref<324x384xbf16, #tpu.memory_space<vmem>>, vector<16x128xbf16>,
    %c161 = arith.constant 161 : index
    %c256_59 = arith.constant 256 : index
    %67 = vector.load %arg7[%c161, %c256_59] : memref<324x384xbf16, #tpu.memory_space<vmem>>, vector<16x128xbf16>
    tpu.vector_store %arg7[%c161, %c256_59], %64 {strides = array<i32>} : memref<324x384xbf16, #tpu.memory_space<vmem>>, vector<16x128xbf16>,
    %c162_60 = arith.constant 162 : index
    %c0_61 = arith.constant 0 : index
    %68 = vector.load %arg7[%c162_60, %c0_61] : memref<324x384xbf16, #tpu.memory_space<vmem>>, vector<1x128xbf16>
    tpu.vector_store %arg7[%c162_60, %c0_61], %13 {strides = array<i32>} : memref<324x384xbf16, #tpu.memory_space<vmem>>, vector<1x128xbf16>,
    %c177 = arith.constant 177 : index
    %c256_62 = arith.constant 256 : index
    %69 = vector.load %arg7[%c177, %c256_62] : memref<324x384xbf16, #tpu.memory_space<vmem>>, vector<1x128xbf16>
    tpu.vector_store %arg7[%c177, %c256_62], %13 {strides = array<i32>} : memref<324x384xbf16, #tpu.memory_space<vmem>>, vector<1x128xbf16>,
    %70 = vector.extract_strided_slice %11 {offsets = [144, 0], sizes = [16, 128], strides = [1, 1]} : vector<256x128xbf16> to vector<16x128xbf16>
    %c181 = arith.constant 181 : index
    %c0_63 = arith.constant 0 : index
    %71 = vector.load %arg7[%c181, %c0_63] : memref<324x384xbf16, #tpu.memory_space<vmem>>, vector<16x128xbf16>
    tpu.vector_store %arg7[%c181, %c0_63], %70 {strides = array<i32>} : memref<324x384xbf16, #tpu.memory_space<vmem>>, vector<16x128xbf16>,
    %c180 = arith.constant 180 : index
    %c128_64 = arith.constant 128 : index
    %72 = vector.load %arg7[%c180, %c128_64] : memref<324x384xbf16, #tpu.memory_space<vmem>>, vector<16x128xbf16>
    tpu.vector_store %arg7[%c180, %c128_64], %70 {strides = array<i32>} : memref<324x384xbf16, #tpu.memory_space<vmem>>, vector<16x128xbf16>,
    %c179 = arith.constant 179 : index
    %c256_65 = arith.constant 256 : index
    %73 = vector.load %arg7[%c179, %c256_65] : memref<324x384xbf16, #tpu.memory_space<vmem>>, vector<16x128xbf16>
    tpu.vector_store %arg7[%c179, %c256_65], %70 {strides = array<i32>} : memref<324x384xbf16, #tpu.memory_space<vmem>>, vector<16x128xbf16>,
    %c180_66 = arith.constant 180 : index
    %c0_67 = arith.constant 0 : index
    %74 = vector.load %arg7[%c180_66, %c0_67] : memref<324x384xbf16, #tpu.memory_space<vmem>>, vector<1x128xbf16>
    tpu.vector_store %arg7[%c180_66, %c0_67], %13 {strides = array<i32>} : memref<324x384xbf16, #tpu.memory_space<vmem>>, vector<1x128xbf16>,
    %c195 = arith.constant 195 : index
    %c256_68 = arith.constant 256 : index
    %75 = vector.load %arg7[%c195, %c256_68] : memref<324x384xbf16, #tpu.memory_space<vmem>>, vector<1x128xbf16>
    tpu.vector_store %arg7[%c195, %c256_68], %13 {strides = array<i32>} : memref<324x384xbf16, #tpu.memory_space<vmem>>, vector<1x128xbf16>,
    %76 = vector.extract_strided_slice %11 {offsets = [160, 0], sizes = [16, 128], strides = [1, 1]} : vector<256x128xbf16> to vector<16x128xbf16>
    %c199 = arith.constant 199 : index
    %c0_69 = arith.constant 0 : index
    %77 = vector.load %arg7[%c199, %c0_69] : memref<324x384xbf16, #tpu.memory_space<vmem>>, vector<16x128xbf16>
    tpu.vector_store %arg7[%c199, %c0_69], %76 {strides = array<i32>} : memref<324x384xbf16, #tpu.memory_space<vmem>>, vector<16x128xbf16>,
    %c198 = arith.constant 198 : index
    %c128_70 = arith.constant 128 : index
    %78 = vector.load %arg7[%c198, %c128_70] : memref<324x384xbf16, #tpu.memory_space<vmem>>, vector<16x128xbf16>
    tpu.vector_store %arg7[%c198, %c128_70], %76 {strides = array<i32>} : memref<324x384xbf16, #tpu.memory_space<vmem>>, vector<16x128xbf16>,
    %c197 = arith.constant 197 : index
    %c256_71 = arith.constant 256 : index
    %79 = vector.load %arg7[%c197, %c256_71] : memref<324x384xbf16, #tpu.memory_space<vmem>>, vector<16x128xbf16>
    tpu.vector_store %arg7[%c197, %c256_71], %76 {strides = array<i32>} : memref<324x384xbf16, #tpu.memory_space<vmem>>, vector<16x128xbf16>,
    %c198_72 = arith.constant 198 : index
    %c0_73 = arith.constant 0 : index
    %80 = vector.load %arg7[%c198_72, %c0_73] : memref<324x384xbf16, #tpu.memory_space<vmem>>, vector<1x128xbf16>
    tpu.vector_store %arg7[%c198_72, %c0_73], %13 {strides = array<i32>} : memref<324x384xbf16, #tpu.memory_space<vmem>>, vector<1x128xbf16>,
    %c213 = arith.constant 213 : index
    %c256_74 = arith.constant 256 : index
    %81 = vector.load %arg7[%c213, %c256_74] : memref<324x384xbf16, #tpu.memory_space<vmem>>, vector<1x128xbf16>
    tpu.vector_store %arg7[%c213, %c256_74], %13 {strides = array<i32>} : memref<324x384xbf16, #tpu.memory_space<vmem>>, vector<1x128xbf16>,
    %82 = vector.extract_strided_slice %11 {offsets = [176, 0], sizes = [16, 128], strides = [1, 1]} : vector<256x128xbf16> to vector<16x128xbf16>
    %c217 = arith.constant 217 : index
    %c0_75 = arith.constant 0 : index
    %83 = vector.load %arg7[%c217, %c0_75] : memref<324x384xbf16, #tpu.memory_space<vmem>>, vector<16x128xbf16>
    tpu.vector_store %arg7[%c217, %c0_75], %82 {strides = array<i32>} : memref<324x384xbf16, #tpu.memory_space<vmem>>, vector<16x128xbf16>,
    %c216 = arith.constant 216 : index
    %c128_76 = arith.constant 128 : index
    %84 = vector.load %arg7[%c216, %c128_76] : memref<324x384xbf16, #tpu.memory_space<vmem>>, vector<16x128xbf16>
    tpu.vector_store %arg7[%c216, %c128_76], %82 {strides = array<i32>} : memref<324x384xbf16, #tpu.memory_space<vmem>>, vector<16x128xbf16>,
    %c215 = arith.constant 215 : index
    %c256_77 = arith.constant 256 : index
    %85 = vector.load %arg7[%c215, %c256_77] : memref<324x384xbf16, #tpu.memory_space<vmem>>, vector<16x128xbf16>
    tpu.vector_store %arg7[%c215, %c256_77], %82 {strides = array<i32>} : memref<324x384xbf16, #tpu.memory_space<vmem>>, vector<16x128xbf16>,
    %c216_78 = arith.constant 216 : index
    %c0_79 = arith.constant 0 : index
    %86 = vector.load %arg7[%c216_78, %c0_79] : memref<324x384xbf16, #tpu.memory_space<vmem>>, vector<1x128xbf16>
    tpu.vector_store %arg7[%c216_78, %c0_79], %13 {strides = array<i32>} : memref<324x384xbf16, #tpu.memory_space<vmem>>, vector<1x128xbf16>,
    %c231 = arith.constant 231 : index
    %c256_80 = arith.constant 256 : index
    %87 = vector.load %arg7[%c231, %c256_80] : memref<324x384xbf16, #tpu.memory_space<vmem>>, vector<1x128xbf16>
    tpu.vector_store %arg7[%c231, %c256_80], %13 {strides = array<i32>} : memref<324x384xbf16, #tpu.memory_space<vmem>>, vector<1x128xbf16>,
    %88 = vector.extract_strided_slice %11 {offsets = [192, 0], sizes = [16, 128], strides = [1, 1]} : vector<256x128xbf16> to vector<16x128xbf16>
    %c235 = arith.constant 235 : index
    %c0_81 = arith.constant 0 : index
    %89 = vector.load %arg7[%c235, %c0_81] : memref<324x384xbf16, #tpu.memory_space<vmem>>, vector<16x128xbf16>
    tpu.vector_store %arg7[%c235, %c0_81], %88 {strides = array<i32>} : memref<324x384xbf16, #tpu.memory_space<vmem>>, vector<16x128xbf16>,
    %c234 = arith.constant 234 : index
    %c128_82 = arith.constant 128 : index
    %90 = vector.load %arg7[%c234, %c128_82] : memref<324x384xbf16, #tpu.memory_space<vmem>>, vector<16x128xbf16>
    tpu.vector_store %arg7[%c234, %c128_82], %88 {strides = array<i32>} : memref<324x384xbf16, #tpu.memory_space<vmem>>, vector<16x128xbf16>,
    %c233 = arith.constant 233 : index
    %c256_83 = arith.constant 256 : index
    %91 = vector.load %arg7[%c233, %c256_83] : memref<324x384xbf16, #tpu.memory_space<vmem>>, vector<16x128xbf16>
    tpu.vector_store %arg7[%c233, %c256_83], %88 {strides = array<i32>} : memref<324x384xbf16, #tpu.memory_space<vmem>>, vector<16x128xbf16>,
    %c234_84 = arith.constant 234 : index
    %c0_85 = arith.constant 0 : index
    %92 = vector.load %arg7[%c234_84, %c0_85] : memref<324x384xbf16, #tpu.memory_space<vmem>>, vector<1x128xbf16>
    tpu.vector_store %arg7[%c234_84, %c0_85], %13 {strides = array<i32>} : memref<324x384xbf16, #tpu.memory_space<vmem>>, vector<1x128xbf16>,
    %c249 = arith.constant 249 : index
    %c256_86 = arith.constant 256 : index
    %93 = vector.load %arg7[%c249, %c256_86] : memref<324x384xbf16, #tpu.memory_space<vmem>>, vector<1x128xbf16>
    tpu.vector_store %arg7[%c249, %c256_86], %13 {strides = array<i32>} : memref<324x384xbf16, #tpu.memory_space<vmem>>, vector<1x128xbf16>,
    %94 = vector.extract_strided_slice %11 {offsets = [208, 0], sizes = [16, 128], strides = [1, 1]} : vector<256x128xbf16> to vector<16x128xbf16>
    %c253 = arith.constant 253 : index
    %c0_87 = arith.constant 0 : index
    %95 = vector.load %arg7[%c253, %c0_87] : memref<324x384xbf16, #tpu.memory_space<vmem>>, vector<16x128xbf16>
    tpu.vector_store %arg7[%c253, %c0_87], %94 {strides = array<i32>} : memref<324x384xbf16, #tpu.memory_space<vmem>>, vector<16x128xbf16>,
    %c252 = arith.constant 252 : index
    %c128_88 = arith.constant 128 : index
    %96 = vector.load %arg7[%c252, %c128_88] : memref<324x384xbf16, #tpu.memory_space<vmem>>, vector<16x128xbf16>
    tpu.vector_store %arg7[%c252, %c128_88], %94 {strides = array<i32>} : memref<324x384xbf16, #tpu.memory_space<vmem>>, vector<16x128xbf16>,
    %c251 = arith.constant 251 : index
    %c256_89 = arith.constant 256 : index
    %97 = vector.load %arg7[%c251, %c256_89] : memref<324x384xbf16, #tpu.memory_space<vmem>>, vector<16x128xbf16>
    tpu.vector_store %arg7[%c251, %c256_89], %94 {strides = array<i32>} : memref<324x384xbf16, #tpu.memory_space<vmem>>, vector<16x128xbf16>,
    %c252_90 = arith.constant 252 : index
    %c0_91 = arith.constant 0 : index
    %98 = vector.load %arg7[%c252_90, %c0_91] : memref<324x384xbf16, #tpu.memory_space<vmem>>, vector<1x128xbf16>
    tpu.vector_store %arg7[%c252_90, %c0_91], %13 {strides = array<i32>} : memref<324x384xbf16, #tpu.memory_space<vmem>>, vector<1x128xbf16>,
    %c267 = arith.constant 267 : index
    %c256_92 = arith.constant 256 : index
    %99 = vector.load %arg7[%c267, %c256_92] : memref<324x384xbf16, #tpu.memory_space<vmem>>, vector<1x128xbf16>
    tpu.vector_store %arg7[%c267, %c256_92], %13 {strides = array<i32>} : memref<324x384xbf16, #tpu.memory_space<vmem>>, vector<1x128xbf16>,
    %100 = vector.extract_strided_slice %11 {offsets = [224, 0], sizes = [16, 128], strides = [1, 1]} : vector<256x128xbf16> to vector<16x128xbf16>
    %c271 = arith.constant 271 : index
    %c0_93 = arith.constant 0 : index
    %101 = vector.load %arg7[%c271, %c0_93] : memref<324x384xbf16, #tpu.memory_space<vmem>>, vector<16x128xbf16>
    tpu.vector_store %arg7[%c271, %c0_93], %100 {strides = array<i32>} : memref<324x384xbf16, #tpu.memory_space<vmem>>, vector<16x128xbf16>,
    %c270 = arith.constant 270 : index
    %c128_94 = arith.constant 128 : index
    %102 = vector.load %arg7[%c270, %c128_94] : memref<324x384xbf16, #tpu.memory_space<vmem>>, vector<16x128xbf16>
    tpu.vector_store %arg7[%c270, %c128_94], %100 {strides = array<i32>} : memref<324x384xbf16, #tpu.memory_space<vmem>>, vector<16x128xbf16>,
    %c269 = arith.constant 269 : index
    %c256_95 = arith.constant 256 : index
    %103 = vector.load %arg7[%c269, %c256_95] : memref<324x384xbf16, #tpu.memory_space<vmem>>, vector<16x128xbf16>
    tpu.vector_store %arg7[%c269, %c256_95], %100 {strides = array<i32>} : memref<324x384xbf16, #tpu.memory_space<vmem>>, vector<16x128xbf16>,
    %c270_96 = arith.constant 270 : index
    %c0_97 = arith.constant 0 : index
    %104 = vector.load %arg7[%c270_96, %c0_97] : memref<324x384xbf16, #tpu.memory_space<vmem>>, vector<1x128xbf16>
    tpu.vector_store %arg7[%c270_96, %c0_97], %13 {strides = array<i32>} : memref<324x384xbf16, #tpu.memory_space<vmem>>, vector<1x128xbf16>,
    %c285 = arith.constant 285 : index
    %c256_98 = arith.constant 256 : index
    %105 = vector.load %arg7[%c285, %c256_98] : memref<324x384xbf16, #tpu.memory_space<vmem>>, vector<1x128xbf16>
    tpu.vector_store %arg7[%c285, %c256_98], %13 {strides = array<i32>} : memref<324x384xbf16, #tpu.memory_space<vmem>>, vector<1x128xbf16>,
    %106 = vector.extract_strided_slice %11 {offsets = [240, 0], sizes = [16, 128], strides = [1, 1]} : vector<256x128xbf16> to vector<16x128xbf16>
    %c289 = arith.constant 289 : index
    %c0_99 = arith.constant 0 : index
    %107 = vector.load %arg7[%c289, %c0_99] : memref<324x384xbf16, #tpu.memory_space<vmem>>, vector<16x128xbf16>
    tpu.vector_store %arg7[%c289, %c0_99], %106 {strides = array<i32>} : memref<324x384xbf16, #tpu.memory_space<vmem>>, vector<16x128xbf16>,
    %c288 = arith.constant 288 : index
    %c128_100 = arith.constant 128 : index
    %108 = vector.load %arg7[%c288, %c128_100] : memref<324x384xbf16, #tpu.memory_space<vmem>>, vector<16x128xbf16>
    tpu.vector_store %arg7[%c288, %c128_100], %106 {strides = array<i32>} : memref<324x384xbf16, #tpu.memory_space<vmem>>, vector<16x128xbf16>,
    %c287 = arith.constant 287 : index
    %c256_101 = arith.constant 256 : index
    %109 = vector.load %arg7[%c287, %c256_101] : memref<324x384xbf16, #tpu.memory_space<vmem>>, vector<16x128xbf16>
    tpu.vector_store %arg7[%c287, %c256_101], %106 {strides = array<i32>} : memref<324x384xbf16, #tpu.memory_space<vmem>>, vector<16x128xbf16>,
    %c288_102 = arith.constant 288 : index
    %c0_103 = arith.constant 0 : index
    %110 = vector.load %arg7[%c288_102, %c0_103] : memref<324x384xbf16, #tpu.memory_space<vmem>>, vector<1x128xbf16>
    tpu.vector_store %arg7[%c288_102, %c0_103], %13 {strides = array<i32>} : memref<324x384xbf16, #tpu.memory_space<vmem>>, vector<1x128xbf16>,
    %c303 = arith.constant 303 : index
    %c256_104 = arith.constant 256 : index
    %111 = vector.load %arg7[%c303, %c256_104] : memref<324x384xbf16, #tpu.memory_space<vmem>>, vector<1x128xbf16>
    tpu.vector_store %arg7[%c303, %c256_104], %13 {strides = array<i32>} : memref<324x384xbf16, #tpu.memory_space<vmem>>, vector<1x128xbf16>,
    %cst_105 = arith.constant 0.000000e+00 : f32
    %112 = vector.broadcast %cst_105 : f32 to vector<288x128xf32>
    %c0_106 = arith.constant 0 : index
    %c0_107 = arith.constant 0 : index
    %113 = vector.load %arg7[%c0_106, %c0_107] : memref<324x384xbf16, #tpu.memory_space<vmem>>, vector<288x384xbf16>
    %c0_108 = arith.constant 0 : index
    %c0_109 = arith.constant 0 : index
    %c0_110 = arith.constant 0 : index
    %114 = vector.load %arg4[%c0_108, %c0_109, %c0_110] : memref<3x384x128xbf16, #tpu.memory_space<vmem>>, vector<1x384x128xbf16>
    %115 = vector.shape_cast %114 : vector<1x384x128xbf16> to vector<384x128xbf16>
    %cst_111 = arith.constant dense<0.000000e+00> : vector<288x128xf32>
    %116 = tpu.matmul %113, %115, %cst_111 {dimension_numbers = #tpu.dot_dimension_numbers<[1], [0], [0], [1], [0, 0, 1, 1], [], []>} : vector<288x384xbf16>, vector<384x128xbf16>, vector<288x128xf32> -> vector<288x128xf32>
    %117 = arith.addf %112, %116 : vector<288x128xf32>
    %c18_112 = arith.constant 18 : index
    %c0_113 = arith.constant 0 : index
    %118 = vector.load %arg7[%c18_112, %c0_113] : memref<324x384xbf16, #tpu.memory_space<vmem>>, vector<288x384xbf16>
    %c1 = arith.constant 1 : index
    %c0_114 = arith.constant 0 : index
    %c0_115 = arith.constant 0 : index
    %119 = vector.load %arg4[%c1, %c0_114, %c0_115] : memref<3x384x128xbf16, #tpu.memory_space<vmem>>, vector<1x384x128xbf16>
    %120 = vector.shape_cast %119 : vector<1x384x128xbf16> to vector<384x128xbf16>
    %cst_116 = arith.constant dense<0.000000e+00> : vector<288x128xf32>
    %121 = tpu.matmul %118, %120, %cst_116 {dimension_numbers = #tpu.dot_dimension_numbers<[1], [0], [0], [1], [0, 0, 1, 1], [], []>} : vector<288x384xbf16>, vector<384x128xbf16>, vector<288x128xf32> -> vector<288x128xf32>
    %122 = arith.addf %117, %121 : vector<288x128xf32>
    %c36_117 = arith.constant 36 : index
    %c0_118 = arith.constant 0 : index
    %123 = vector.load %arg7[%c36_117, %c0_118] : memref<324x384xbf16, #tpu.memory_space<vmem>>, vector<288x384xbf16>
    %c2 = arith.constant 2 : index
    %c0_119 = arith.constant 0 : index
    %c0_120 = arith.constant 0 : index
    %124 = vector.load %arg4[%c2, %c0_119, %c0_120] : memref<3x384x128xbf16, #tpu.memory_space<vmem>>, vector<1x384x128xbf16>
    %125 = vector.shape_cast %124 : vector<1x384x128xbf16> to vector<384x128xbf16>
    %cst_121 = arith.constant dense<0.000000e+00> : vector<288x128xf32>
    %126 = tpu.matmul %123, %125, %cst_121 {dimension_numbers = #tpu.dot_dimension_numbers<[1], [0], [0], [1], [0, 0, 1, 1], [], []>} : vector<288x384xbf16>, vector<384x128xbf16>, vector<288x128xf32> -> vector<288x128xf32>
    %127 = arith.addf %122, %126 : vector<288x128xf32>
    %cst_122 = arith.constant 0.000000e+00 : f32
    %128 = vector.broadcast %cst_122 : f32 to vector<1x128xf32>
    %cst_123 = arith.constant 0.000000e+00 : f32
    %129 = vector.broadcast %cst_123 : f32 to vector<1x128xf32>
    %130 = vector.extract_strided_slice %127 {offsets = [0, 0], sizes = [16, 128], strides = [1, 1]} : vector<288x128xf32> to vector<16x128xf32>
    %131 = arith.truncf %130 : vector<16x128xf32> to vector<16x128xbf16>
    %c0_124 = arith.constant 0 : index
    %c0_125 = arith.constant 0 : index
    %c0_126 = arith.constant 0 : index
    %132 = vector.load %arg5[%c0_124, %c0_125, %c0_126] : memref<1x256x128xbf16, #tpu.memory_space<vmem>>, vector<1x16x128xbf16>
    %133 = vector.shape_cast %132 : vector<1x16x128xbf16> to vector<16x128xbf16>
    %134 = vector.shape_cast %131 : vector<16x128xbf16> to vector<1x16x128xbf16>
    tpu.vector_store %arg5[%c0_124, %c0_125, %c0_126], %134 {strides = array<i32>} : memref<1x256x128xbf16, #tpu.memory_space<vmem>>, vector<1x16x128xbf16>,
    %cst_127 = arith.constant dense<0.000000e+00> : vector<128xf32>
    %135 = vector.multi_reduction <add>, %130, %cst_127 [0] : vector<16x128xf32> to vector<128xf32>
    %136 = vector.shape_cast %135 : vector<128xf32> to vector<1x128xf32>
    %137 = arith.addf %128, %136 : vector<1x128xf32>
    %138 = arith.mulf %130, %130 : vector<16x128xf32>
    %cst_128 = arith.constant dense<0.000000e+00> : vector<128xf32>
    %139 = vector.multi_reduction <add>, %138, %cst_128 [0] : vector<16x128xf32> to vector<128xf32>
    %140 = vector.shape_cast %139 : vector<128xf32> to vector<1x128xf32>
    %141 = arith.addf %129, %140 : vector<1x128xf32>
    %142 = vector.extract_strided_slice %127 {offsets = [18, 0], sizes = [16, 128], strides = [1, 1]} : vector<288x128xf32> to vector<16x128xf32>
    %143 = arith.truncf %142 : vector<16x128xf32> to vector<16x128xbf16>
    %c0_129 = arith.constant 0 : index
    %c16 = arith.constant 16 : index
    %c0_130 = arith.constant 0 : index
    %144 = vector.load %arg5[%c0_129, %c16, %c0_130] : memref<1x256x128xbf16, #tpu.memory_space<vmem>>, vector<1x16x128xbf16>
    %145 = vector.shape_cast %144 : vector<1x16x128xbf16> to vector<16x128xbf16>
    %146 = vector.shape_cast %143 : vector<16x128xbf16> to vector<1x16x128xbf16>
    tpu.vector_store %arg5[%c0_129, %c16, %c0_130], %146 {strides = array<i32>} : memref<1x256x128xbf16, #tpu.memory_space<vmem>>, vector<1x16x128xbf16>,
    %cst_131 = arith.constant dense<0.000000e+00> : vector<128xf32>
    %147 = vector.multi_reduction <add>, %142, %cst_131 [0] : vector<16x128xf32> to vector<128xf32>
    %148 = vector.shape_cast %147 : vector<128xf32> to vector<1x128xf32>
    %149 = arith.addf %137, %148 : vector<1x128xf32>
    %150 = arith.mulf %142, %142 : vector<16x128xf32>
    %cst_132 = arith.constant dense<0.000000e+00> : vector<128xf32>
    %151 = vector.multi_reduction <add>, %150, %cst_132 [0] : vector<16x128xf32> to vector<128xf32>
    %152 = vector.shape_cast %151 : vector<128xf32> to vector<1x128xf32>
    %153 = arith.addf %141, %152 : vector<1x128xf32>
    %154 = vector.extract_strided_slice %127 {offsets = [36, 0], sizes = [16, 128], strides = [1, 1]} : vector<288x128xf32> to vector<16x128xf32>
    %155 = arith.truncf %154 : vector<16x128xf32> to vector<16x128xbf16>
    %c0_133 = arith.constant 0 : index
    %c32 = arith.constant 32 : index
    %c0_134 = arith.constant 0 : index
    %156 = vector.load %arg5[%c0_133, %c32, %c0_134] : memref<1x256x128xbf16, #tpu.memory_space<vmem>>, vector<1x16x128xbf16>
    %157 = vector.shape_cast %156 : vector<1x16x128xbf16> to vector<16x128xbf16>
    %158 = vector.shape_cast %155 : vector<16x128xbf16> to vector<1x16x128xbf16>
    tpu.vector_store %arg5[%c0_133, %c32, %c0_134], %158 {strides = array<i32>} : memref<1x256x128xbf16, #tpu.memory_space<vmem>>, vector<1x16x128xbf16>,
    %cst_135 = arith.constant dense<0.000000e+00> : vector<128xf32>
    %159 = vector.multi_reduction <add>, %154, %cst_135 [0] : vector<16x128xf32> to vector<128xf32>
    %160 = vector.shape_cast %159 : vector<128xf32> to vector<1x128xf32>
    %161 = arith.addf %149, %160 : vector<1x128xf32>
    %162 = arith.mulf %154, %154 : vector<16x128xf32>
    %cst_136 = arith.constant dense<0.000000e+00> : vector<128xf32>
    %163 = vector.multi_reduction <add>, %162, %cst_136 [0] : vector<16x128xf32> to vector<128xf32>
    %164 = vector.shape_cast %163 : vector<128xf32> to vector<1x128xf32>
    %165 = arith.addf %153, %164 : vector<1x128xf32>
    %166 = vector.extract_strided_slice %127 {offsets = [54, 0], sizes = [16, 128], strides = [1, 1]} : vector<288x128xf32> to vector<16x128xf32>
    %167 = arith.truncf %166 : vector<16x128xf32> to vector<16x128xbf16>
    %c0_137 = arith.constant 0 : index
    %c48 = arith.constant 48 : index
    %c0_138 = arith.constant 0 : index
    %168 = vector.load %arg5[%c0_137, %c48, %c0_138] : memref<1x256x128xbf16, #tpu.memory_space<vmem>>, vector<1x16x128xbf16>
    %169 = vector.shape_cast %168 : vector<1x16x128xbf16> to vector<16x128xbf16>
    %170 = vector.shape_cast %167 : vector<16x128xbf16> to vector<1x16x128xbf16>
    tpu.vector_store %arg5[%c0_137, %c48, %c0_138], %170 {strides = array<i32>} : memref<1x256x128xbf16, #tpu.memory_space<vmem>>, vector<1x16x128xbf16>,
    %cst_139 = arith.constant dense<0.000000e+00> : vector<128xf32>
    %171 = vector.multi_reduction <add>, %166, %cst_139 [0] : vector<16x128xf32> to vector<128xf32>
    %172 = vector.shape_cast %171 : vector<128xf32> to vector<1x128xf32>
    %173 = arith.addf %161, %172 : vector<1x128xf32>
    %174 = arith.mulf %166, %166 : vector<16x128xf32>
    %cst_140 = arith.constant dense<0.000000e+00> : vector<128xf32>
    %175 = vector.multi_reduction <add>, %174, %cst_140 [0] : vector<16x128xf32> to vector<128xf32>
    %176 = vector.shape_cast %175 : vector<128xf32> to vector<1x128xf32>
    %177 = arith.addf %165, %176 : vector<1x128xf32>
    %178 = vector.extract_strided_slice %127 {offsets = [72, 0], sizes = [16, 128], strides = [1, 1]} : vector<288x128xf32> to vector<16x128xf32>
    %179 = arith.truncf %178 : vector<16x128xf32> to vector<16x128xbf16>
    %c0_141 = arith.constant 0 : index
    %c64 = arith.constant 64 : index
    %c0_142 = arith.constant 0 : index
    %180 = vector.load %arg5[%c0_141, %c64, %c0_142] : memref<1x256x128xbf16, #tpu.memory_space<vmem>>, vector<1x16x128xbf16>
    %181 = vector.shape_cast %180 : vector<1x16x128xbf16> to vector<16x128xbf16>
    %182 = vector.shape_cast %179 : vector<16x128xbf16> to vector<1x16x128xbf16>
    tpu.vector_store %arg5[%c0_141, %c64, %c0_142], %182 {strides = array<i32>} : memref<1x256x128xbf16, #tpu.memory_space<vmem>>, vector<1x16x128xbf16>,
    %cst_143 = arith.constant dense<0.000000e+00> : vector<128xf32>
    %183 = vector.multi_reduction <add>, %178, %cst_143 [0] : vector<16x128xf32> to vector<128xf32>
    %184 = vector.shape_cast %183 : vector<128xf32> to vector<1x128xf32>
    %185 = arith.addf %173, %184 : vector<1x128xf32>
    %186 = arith.mulf %178, %178 : vector<16x128xf32>
    %cst_144 = arith.constant dense<0.000000e+00> : vector<128xf32>
    %187 = vector.multi_reduction <add>, %186, %cst_144 [0] : vector<16x128xf32> to vector<128xf32>
    %188 = vector.shape_cast %187 : vector<128xf32> to vector<1x128xf32>
    %189 = arith.addf %177, %188 : vector<1x128xf32>
    %190 = vector.extract_strided_slice %127 {offsets = [90, 0], sizes = [16, 128], strides = [1, 1]} : vector<288x128xf32> to vector<16x128xf32>
    %191 = arith.truncf %190 : vector<16x128xf32> to vector<16x128xbf16>
    %c0_145 = arith.constant 0 : index
    %c80 = arith.constant 80 : index
    %c0_146 = arith.constant 0 : index
    %192 = vector.load %arg5[%c0_145, %c80, %c0_146] : memref<1x256x128xbf16, #tpu.memory_space<vmem>>, vector<1x16x128xbf16>
    %193 = vector.shape_cast %192 : vector<1x16x128xbf16> to vector<16x128xbf16>
    %194 = vector.shape_cast %191 : vector<16x128xbf16> to vector<1x16x128xbf16>
    tpu.vector_store %arg5[%c0_145, %c80, %c0_146], %194 {strides = array<i32>} : memref<1x256x128xbf16, #tpu.memory_space<vmem>>, vector<1x16x128xbf16>,
    %cst_147 = arith.constant dense<0.000000e+00> : vector<128xf32>
    %195 = vector.multi_reduction <add>, %190, %cst_147 [0] : vector<16x128xf32> to vector<128xf32>
    %196 = vector.shape_cast %195 : vector<128xf32> to vector<1x128xf32>
    %197 = arith.addf %185, %196 : vector<1x128xf32>
    %198 = arith.mulf %190, %190 : vector<16x128xf32>
    %cst_148 = arith.constant dense<0.000000e+00> : vector<128xf32>
    %199 = vector.multi_reduction <add>, %198, %cst_148 [0] : vector<16x128xf32> to vector<128xf32>
    %200 = vector.shape_cast %199 : vector<128xf32> to vector<1x128xf32>
    %201 = arith.addf %189, %200 : vector<1x128xf32>
    %202 = vector.extract_strided_slice %127 {offsets = [108, 0], sizes = [16, 128], strides = [1, 1]} : vector<288x128xf32> to vector<16x128xf32>
    %203 = arith.truncf %202 : vector<16x128xf32> to vector<16x128xbf16>
    %c0_149 = arith.constant 0 : index
    %c96 = arith.constant 96 : index
    %c0_150 = arith.constant 0 : index
    %204 = vector.load %arg5[%c0_149, %c96, %c0_150] : memref<1x256x128xbf16, #tpu.memory_space<vmem>>, vector<1x16x128xbf16>
    %205 = vector.shape_cast %204 : vector<1x16x128xbf16> to vector<16x128xbf16>
    %206 = vector.shape_cast %203 : vector<16x128xbf16> to vector<1x16x128xbf16>
    tpu.vector_store %arg5[%c0_149, %c96, %c0_150], %206 {strides = array<i32>} : memref<1x256x128xbf16, #tpu.memory_space<vmem>>, vector<1x16x128xbf16>,
    %cst_151 = arith.constant dense<0.000000e+00> : vector<128xf32>
    %207 = vector.multi_reduction <add>, %202, %cst_151 [0] : vector<16x128xf32> to vector<128xf32>
    %208 = vector.shape_cast %207 : vector<128xf32> to vector<1x128xf32>
    %209 = arith.addf %197, %208 : vector<1x128xf32>
    %210 = arith.mulf %202, %202 : vector<16x128xf32>
    %cst_152 = arith.constant dense<0.000000e+00> : vector<128xf32>
    %211 = vector.multi_reduction <add>, %210, %cst_152 [0] : vector<16x128xf32> to vector<128xf32>
    %212 = vector.shape_cast %211 : vector<128xf32> to vector<1x128xf32>
    %213 = arith.addf %201, %212 : vector<1x128xf32>
    %214 = vector.extract_strided_slice %127 {offsets = [126, 0], sizes = [16, 128], strides = [1, 1]} : vector<288x128xf32> to vector<16x128xf32>
    %215 = arith.truncf %214 : vector<16x128xf32> to vector<16x128xbf16>
    %c0_153 = arith.constant 0 : index
    %c112 = arith.constant 112 : index
    %c0_154 = arith.constant 0 : index
    %216 = vector.load %arg5[%c0_153, %c112, %c0_154] : memref<1x256x128xbf16, #tpu.memory_space<vmem>>, vector<1x16x128xbf16>
    %217 = vector.shape_cast %216 : vector<1x16x128xbf16> to vector<16x128xbf16>
    %218 = vector.shape_cast %215 : vector<16x128xbf16> to vector<1x16x128xbf16>
    tpu.vector_store %arg5[%c0_153, %c112, %c0_154], %218 {strides = array<i32>} : memref<1x256x128xbf16, #tpu.memory_space<vmem>>, vector<1x16x128xbf16>,
    %cst_155 = arith.constant dense<0.000000e+00> : vector<128xf32>
    %219 = vector.multi_reduction <add>, %214, %cst_155 [0] : vector<16x128xf32> to vector<128xf32>
    %220 = vector.shape_cast %219 : vector<128xf32> to vector<1x128xf32>
    %221 = arith.addf %209, %220 : vector<1x128xf32>
    %222 = arith.mulf %214, %214 : vector<16x128xf32>
    %cst_156 = arith.constant dense<0.000000e+00> : vector<128xf32>
    %223 = vector.multi_reduction <add>, %222, %cst_156 [0] : vector<16x128xf32> to vector<128xf32>
    %224 = vector.shape_cast %223 : vector<128xf32> to vector<1x128xf32>
    %225 = arith.addf %213, %224 : vector<1x128xf32>
    %226 = vector.extract_strided_slice %127 {offsets = [144, 0], sizes = [16, 128], strides = [1, 1]} : vector<288x128xf32> to vector<16x128xf32>
    %227 = arith.truncf %226 : vector<16x128xf32> to vector<16x128xbf16>
    %c0_157 = arith.constant 0 : index
    %c128_158 = arith.constant 128 : index
    %c0_159 = arith.constant 0 : index
    %228 = vector.load %arg5[%c0_157, %c128_158, %c0_159] : memref<1x256x128xbf16, #tpu.memory_space<vmem>>, vector<1x16x128xbf16>
    %229 = vector.shape_cast %228 : vector<1x16x128xbf16> to vector<16x128xbf16>
    %230 = vector.shape_cast %227 : vector<16x128xbf16> to vector<1x16x128xbf16>
    tpu.vector_store %arg5[%c0_157, %c128_158, %c0_159], %230 {strides = array<i32>} : memref<1x256x128xbf16, #tpu.memory_space<vmem>>, vector<1x16x128xbf16>,
    %cst_160 = arith.constant dense<0.000000e+00> : vector<128xf32>
    %231 = vector.multi_reduction <add>, %226, %cst_160 [0] : vector<16x128xf32> to vector<128xf32>
    %232 = vector.shape_cast %231 : vector<128xf32> to vector<1x128xf32>
    %233 = arith.addf %221, %232 : vector<1x128xf32>
    %234 = arith.mulf %226, %226 : vector<16x128xf32>
    %cst_161 = arith.constant dense<0.000000e+00> : vector<128xf32>
    %235 = vector.multi_reduction <add>, %234, %cst_161 [0] : vector<16x128xf32> to vector<128xf32>
    %236 = vector.shape_cast %235 : vector<128xf32> to vector<1x128xf32>
    %237 = arith.addf %225, %236 : vector<1x128xf32>
    %238 = vector.extract_strided_slice %127 {offsets = [162, 0], sizes = [16, 128], strides = [1, 1]} : vector<288x128xf32> to vector<16x128xf32>
    %239 = arith.truncf %238 : vector<16x128xf32> to vector<16x128xbf16>
    %c0_162 = arith.constant 0 : index
    %c144_163 = arith.constant 144 : index
    %c0_164 = arith.constant 0 : index
    %240 = vector.load %arg5[%c0_162, %c144_163, %c0_164] : memref<1x256x128xbf16, #tpu.memory_space<vmem>>, vector<1x16x128xbf16>
    %241 = vector.shape_cast %240 : vector<1x16x128xbf16> to vector<16x128xbf16>
    %242 = vector.shape_cast %239 : vector<16x128xbf16> to vector<1x16x128xbf16>
    tpu.vector_store %arg5[%c0_162, %c144_163, %c0_164], %242 {strides = array<i32>} : memref<1x256x128xbf16, #tpu.memory_space<vmem>>, vector<1x16x128xbf16>,
    %cst_165 = arith.constant dense<0.000000e+00> : vector<128xf32>
    %243 = vector.multi_reduction <add>, %238, %cst_165 [0] : vector<16x128xf32> to vector<128xf32>
    %244 = vector.shape_cast %243 : vector<128xf32> to vector<1x128xf32>
    %245 = arith.addf %233, %244 : vector<1x128xf32>
    %246 = arith.mulf %238, %238 : vector<16x128xf32>
    %cst_166 = arith.constant dense<0.000000e+00> : vector<128xf32>
    %247 = vector.multi_reduction <add>, %246, %cst_166 [0] : vector<16x128xf32> to vector<128xf32>
    %248 = vector.shape_cast %247 : vector<128xf32> to vector<1x128xf32>
    %249 = arith.addf %237, %248 : vector<1x128xf32>
    %250 = vector.extract_strided_slice %127 {offsets = [180, 0], sizes = [16, 128], strides = [1, 1]} : vector<288x128xf32> to vector<16x128xf32>
    %251 = arith.truncf %250 : vector<16x128xf32> to vector<16x128xbf16>
    %c0_167 = arith.constant 0 : index
    %c160 = arith.constant 160 : index
    %c0_168 = arith.constant 0 : index
    %252 = vector.load %arg5[%c0_167, %c160, %c0_168] : memref<1x256x128xbf16, #tpu.memory_space<vmem>>, vector<1x16x128xbf16>
    %253 = vector.shape_cast %252 : vector<1x16x128xbf16> to vector<16x128xbf16>
    %254 = vector.shape_cast %251 : vector<16x128xbf16> to vector<1x16x128xbf16>
    tpu.vector_store %arg5[%c0_167, %c160, %c0_168], %254 {strides = array<i32>} : memref<1x256x128xbf16, #tpu.memory_space<vmem>>, vector<1x16x128xbf16>,
    %cst_169 = arith.constant dense<0.000000e+00> : vector<128xf32>
    %255 = vector.multi_reduction <add>, %250, %cst_169 [0] : vector<16x128xf32> to vector<128xf32>
    %256 = vector.shape_cast %255 : vector<128xf32> to vector<1x128xf32>
    %257 = arith.addf %245, %256 : vector<1x128xf32>
    %258 = arith.mulf %250, %250 : vector<16x128xf32>
    %cst_170 = arith.constant dense<0.000000e+00> : vector<128xf32>
    %259 = vector.multi_reduction <add>, %258, %cst_170 [0] : vector<16x128xf32> to vector<128xf32>
    %260 = vector.shape_cast %259 : vector<128xf32> to vector<1x128xf32>
    %261 = arith.addf %249, %260 : vector<1x128xf32>
    %262 = vector.extract_strided_slice %127 {offsets = [198, 0], sizes = [16, 128], strides = [1, 1]} : vector<288x128xf32> to vector<16x128xf32>
    %263 = arith.truncf %262 : vector<16x128xf32> to vector<16x128xbf16>
    %c0_171 = arith.constant 0 : index
    %c176 = arith.constant 176 : index
    %c0_172 = arith.constant 0 : index
    %264 = vector.load %arg5[%c0_171, %c176, %c0_172] : memref<1x256x128xbf16, #tpu.memory_space<vmem>>, vector<1x16x128xbf16>
    %265 = vector.shape_cast %264 : vector<1x16x128xbf16> to vector<16x128xbf16>
    %266 = vector.shape_cast %263 : vector<16x128xbf16> to vector<1x16x128xbf16>
    tpu.vector_store %arg5[%c0_171, %c176, %c0_172], %266 {strides = array<i32>} : memref<1x256x128xbf16, #tpu.memory_space<vmem>>, vector<1x16x128xbf16>,
    %cst_173 = arith.constant dense<0.000000e+00> : vector<128xf32>
    %267 = vector.multi_reduction <add>, %262, %cst_173 [0] : vector<16x128xf32> to vector<128xf32>
    %268 = vector.shape_cast %267 : vector<128xf32> to vector<1x128xf32>
    %269 = arith.addf %257, %268 : vector<1x128xf32>
    %270 = arith.mulf %262, %262 : vector<16x128xf32>
    %cst_174 = arith.constant dense<0.000000e+00> : vector<128xf32>
    %271 = vector.multi_reduction <add>, %270, %cst_174 [0] : vector<16x128xf32> to vector<128xf32>
    %272 = vector.shape_cast %271 : vector<128xf32> to vector<1x128xf32>
    %273 = arith.addf %261, %272 : vector<1x128xf32>
    %274 = vector.extract_strided_slice %127 {offsets = [216, 0], sizes = [16, 128], strides = [1, 1]} : vector<288x128xf32> to vector<16x128xf32>
    %275 = arith.truncf %274 : vector<16x128xf32> to vector<16x128xbf16>
    %c0_175 = arith.constant 0 : index
    %c192 = arith.constant 192 : index
    %c0_176 = arith.constant 0 : index
    %276 = vector.load %arg5[%c0_175, %c192, %c0_176] : memref<1x256x128xbf16, #tpu.memory_space<vmem>>, vector<1x16x128xbf16>
    %277 = vector.shape_cast %276 : vector<1x16x128xbf16> to vector<16x128xbf16>
    %278 = vector.shape_cast %275 : vector<16x128xbf16> to vector<1x16x128xbf16>
    tpu.vector_store %arg5[%c0_175, %c192, %c0_176], %278 {strides = array<i32>} : memref<1x256x128xbf16, #tpu.memory_space<vmem>>, vector<1x16x128xbf16>,
    %cst_177 = arith.constant dense<0.000000e+00> : vector<128xf32>
    %279 = vector.multi_reduction <add>, %274, %cst_177 [0] : vector<16x128xf32> to vector<128xf32>
    %280 = vector.shape_cast %279 : vector<128xf32> to vector<1x128xf32>
    %281 = arith.addf %269, %280 : vector<1x128xf32>
    %282 = arith.mulf %274, %274 : vector<16x128xf32>
    %cst_178 = arith.constant dense<0.000000e+00> : vector<128xf32>
    %283 = vector.multi_reduction <add>, %282, %cst_178 [0] : vector<16x128xf32> to vector<128xf32>
    %284 = vector.shape_cast %283 : vector<128xf32> to vector<1x128xf32>
    %285 = arith.addf %273, %284 : vector<1x128xf32>
    %286 = vector.extract_strided_slice %127 {offsets = [234, 0], sizes = [16, 128], strides = [1, 1]} : vector<288x128xf32> to vector<16x128xf32>
    %287 = arith.truncf %286 : vector<16x128xf32> to vector<16x128xbf16>
    %c0_179 = arith.constant 0 : index
    %c208 = arith.constant 208 : index
    %c0_180 = arith.constant 0 : index
    %288 = vector.load %arg5[%c0_179, %c208, %c0_180] : memref<1x256x128xbf16, #tpu.memory_space<vmem>>, vector<1x16x128xbf16>
    %289 = vector.shape_cast %288 : vector<1x16x128xbf16> to vector<16x128xbf16>
    %290 = vector.shape_cast %287 : vector<16x128xbf16> to vector<1x16x128xbf16>
    tpu.vector_store %arg5[%c0_179, %c208, %c0_180], %290 {strides = array<i32>} : memref<1x256x128xbf16, #tpu.memory_space<vmem>>, vector<1x16x128xbf16>,
    %cst_181 = arith.constant dense<0.000000e+00> : vector<128xf32>
    %291 = vector.multi_reduction <add>, %286, %cst_181 [0] : vector<16x128xf32> to vector<128xf32>
    %292 = vector.shape_cast %291 : vector<128xf32> to vector<1x128xf32>
    %293 = arith.addf %281, %292 : vector<1x128xf32>
    %294 = arith.mulf %286, %286 : vector<16x128xf32>
    %cst_182 = arith.constant dense<0.000000e+00> : vector<128xf32>
    %295 = vector.multi_reduction <add>, %294, %cst_182 [0] : vector<16x128xf32> to vector<128xf32>
    %296 = vector.shape_cast %295 : vector<128xf32> to vector<1x128xf32>
    %297 = arith.addf %285, %296 : vector<1x128xf32>
    %298 = vector.extract_strided_slice %127 {offsets = [252, 0], sizes = [16, 128], strides = [1, 1]} : vector<288x128xf32> to vector<16x128xf32>
    %299 = arith.truncf %298 : vector<16x128xf32> to vector<16x128xbf16>
    %c0_183 = arith.constant 0 : index
    %c224 = arith.constant 224 : index
    %c0_184 = arith.constant 0 : index
    %300 = vector.load %arg5[%c0_183, %c224, %c0_184] : memref<1x256x128xbf16, #tpu.memory_space<vmem>>, vector<1x16x128xbf16>
    %301 = vector.shape_cast %300 : vector<1x16x128xbf16> to vector<16x128xbf16>
    %302 = vector.shape_cast %299 : vector<16x128xbf16> to vector<1x16x128xbf16>
    tpu.vector_store %arg5[%c0_183, %c224, %c0_184], %302 {strides = array<i32>} : memref<1x256x128xbf16, #tpu.memory_space<vmem>>, vector<1x16x128xbf16>,
    %cst_185 = arith.constant dense<0.000000e+00> : vector<128xf32>
    %303 = vector.multi_reduction <add>, %298, %cst_185 [0] : vector<16x128xf32> to vector<128xf32>
    %304 = vector.shape_cast %303 : vector<128xf32> to vector<1x128xf32>
    %305 = arith.addf %293, %304 : vector<1x128xf32>
    %306 = arith.mulf %298, %298 : vector<16x128xf32>
    %cst_186 = arith.constant dense<0.000000e+00> : vector<128xf32>
    %307 = vector.multi_reduction <add>, %306, %cst_186 [0] : vector<16x128xf32> to vector<128xf32>
    %308 = vector.shape_cast %307 : vector<128xf32> to vector<1x128xf32>
    %309 = arith.addf %297, %308 : vector<1x128xf32>
    %310 = vector.extract_strided_slice %127 {offsets = [270, 0], sizes = [16, 128], strides = [1, 1]} : vector<288x128xf32> to vector<16x128xf32>
    %311 = arith.truncf %310 : vector<16x128xf32> to vector<16x128xbf16>
    %c0_187 = arith.constant 0 : index
    %c240 = arith.constant 240 : index
    %c0_188 = arith.constant 0 : index
    %312 = vector.load %arg5[%c0_187, %c240, %c0_188] : memref<1x256x128xbf16, #tpu.memory_space<vmem>>, vector<1x16x128xbf16>
    %313 = vector.shape_cast %312 : vector<1x16x128xbf16> to vector<16x128xbf16>
    %314 = vector.shape_cast %311 : vector<16x128xbf16> to vector<1x16x128xbf16>
    tpu.vector_store %arg5[%c0_187, %c240, %c0_188], %314 {strides = array<i32>} : memref<1x256x128xbf16, #tpu.memory_space<vmem>>, vector<1x16x128xbf16>,
    %cst_189 = arith.constant dense<0.000000e+00> : vector<128xf32>
    %315 = vector.multi_reduction <add>, %310, %cst_189 [0] : vector<16x128xf32> to vector<128xf32>
    %316 = vector.shape_cast %315 : vector<128xf32> to vector<1x128xf32>
    %317 = arith.addf %305, %316 : vector<1x128xf32>
    %318 = arith.mulf %310, %310 : vector<16x128xf32>
    %cst_190 = arith.constant dense<0.000000e+00> : vector<128xf32>
    %319 = vector.multi_reduction <add>, %318, %cst_190 [0] : vector<16x128xf32> to vector<128xf32>
    %320 = vector.shape_cast %319 : vector<128xf32> to vector<1x128xf32>
    %321 = arith.addf %309, %320 : vector<1x128xf32>
    %c0_191 = arith.constant 0 : index
    %c0_192 = arith.constant 0 : index
    %c0_193 = arith.constant 0 : index
    %322 = vector.load %arg6[%c0_191, %c0_192, %c0_193] : memref<1x2x128xf32, #tpu.memory_space<vmem>>, vector<1x1x128xf32>
    %323 = vector.shape_cast %322 : vector<1x1x128xf32> to vector<1x128xf32>
    %324 = vector.shape_cast %317 : vector<1x128xf32> to vector<1x1x128xf32>
    tpu.vector_store %arg6[%c0_191, %c0_192, %c0_193], %324 {strides = array<i32>} : memref<1x2x128xf32, #tpu.memory_space<vmem>>, vector<1x1x128xf32>,
    %c0_194 = arith.constant 0 : index
    %c1_195 = arith.constant 1 : index
    %c0_196 = arith.constant 0 : index
    %325 = vector.load %arg6[%c0_194, %c1_195, %c0_196] : memref<1x2x128xf32, #tpu.memory_space<vmem>>, vector<1x1x128xf32>
    %326 = vector.shape_cast %325 : vector<1x1x128xf32> to vector<1x128xf32>
    %327 = vector.shape_cast %321 : vector<1x128xf32> to vector<1x1x128xf32>
    tpu.vector_store %arg6[%c0_194, %c1_195, %c0_196], %327 {strides = array<i32>} : memref<1x2x128xf32, #tpu.memory_space<vmem>>, vector<1x1x128xf32>,
    return
  }
  func.func @transform_0(%arg0: i32) -> (i32, i32, i32) {
    %c0_i32 = arith.constant 0 : i32
    %c0_i32_0 = arith.constant 0 : i32
    %c0_i32_1 = arith.constant 0 : i32
    return %arg0, %c0_i32, %c0_i32_0 : i32, i32, i32
  }
  func.func @transform_1(%arg0: i32) -> (i32, i32) {
    %c0_i32 = arith.constant 0 : i32
    %c0_i32_0 = arith.constant 0 : i32
    %c0_i32_1 = arith.constant 0 : i32
    return %c0_i32, %c0_i32_0 : i32, i32
  }
  func.func @transform_2(%arg0: i32) -> (i32, i32) {
    %c0_i32 = arith.constant 0 : i32
    %c0_i32_0 = arith.constant 0 : i32
    %c0_i32_1 = arith.constant 0 : i32
    return %c0_i32, %c0_i32_0 : i32, i32
  }
  func.func @transform_3(%arg0: i32) -> (i32, i32, i32) {
    %c0_i32 = arith.constant 0 : i32
    %c0_i32_0 = arith.constant 0 : i32
    %c0_i32_1 = arith.constant 0 : i32
    %c0_i32_2 = arith.constant 0 : i32
    return %c0_i32, %c0_i32_0, %c0_i32_1 : i32, i32, i32
  }
  func.func @transform_4(%arg0: i32) -> (i32, i32, i32) {
    %c0_i32 = arith.constant 0 : i32
    %c0_i32_0 = arith.constant 0 : i32
    %c0_i32_1 = arith.constant 0 : i32
    return %arg0, %c0_i32, %c0_i32_0 : i32, i32, i32
  }
  func.func @transform_5(%arg0: i32) -> (i32, i32, i32) {
    %c0_i32 = arith.constant 0 : i32
    %c0_i32_0 = arith.constant 0 : i32
    %c0_i32_1 = arith.constant 0 : i32
    return %arg0, %c0_i32, %c0_i32_0 : i32, i32, i32
  }
}

module attributes {stable_mosaic.version = 11 : i64} {
  func.func @_bn_relu_conv1x1_stats_kernel(%arg0: i32, %arg1: memref<64x128xbf16, #tpu.memory_space<vmem>>, %arg2: memref<1x128xf32, #tpu.memory_space<vmem>>, %arg3: memref<1x128xf32, #tpu.memory_space<vmem>>, %arg4: memref<128x128xbf16, #tpu.memory_space<vmem>>, %arg5: memref<64x128xbf16, #tpu.memory_space<vmem>>, %arg6: memref<1x2x128xf32, #tpu.memory_space<vmem>>) attributes {dimension_semantics = [#tpu.dimension_semantics<parallel>], iteration_bounds = array<i64: 8>, scalar_prefetch = 0 : i64, scratch_operands = 0 : i64, tpu.core_type = #tpu.core_type<tc>, window_params = [{transform_indices = @transform_0, window_bounds = array<i64: 64, 128>}, {pipeline_mode = #tpu.pipeline_mode<synchronous>, transform_indices = @transform_1, window_bounds = array<i64: 1, 128>}, {pipeline_mode = #tpu.pipeline_mode<synchronous>, transform_indices = @transform_2, window_bounds = array<i64: 1, 128>}, {pipeline_mode = #tpu.pipeline_mode<synchronous>, transform_indices = @transform_3, window_bounds = array<i64: 128, 128>}, {transform_indices = @transform_4, window_bounds = array<i64: 64, 128>}, {transform_indices = @transform_5, window_bounds = array<i64: 1, 2, 128>}]} {
    %c0 = arith.constant 0 : index
    %c0_0 = arith.constant 0 : index
    %0 = vector.load %arg1[%c0, %c0_0] : memref<64x128xbf16, #tpu.memory_space<vmem>>, vector<64x128xbf16>
    %1 = arith.extf %0 : vector<64x128xbf16> to vector<64x128xf32>
    %c0_1 = arith.constant 0 : index
    %c0_2 = arith.constant 0 : index
    %2 = vector.load %arg2[%c0_1, %c0_2] : memref<1x128xf32, #tpu.memory_space<vmem>>, vector<1x128xf32>
    %3 = vector.broadcast %2 : vector<1x128xf32> to vector<64x128xf32>
    %4 = arith.mulf %1, %3 : vector<64x128xf32>
    %c0_3 = arith.constant 0 : index
    %c0_4 = arith.constant 0 : index
    %5 = vector.load %arg3[%c0_3, %c0_4] : memref<1x128xf32, #tpu.memory_space<vmem>>, vector<1x128xf32>
    %6 = vector.broadcast %5 : vector<1x128xf32> to vector<64x128xf32>
    %7 = arith.addf %4, %6 : vector<64x128xf32>
    %cst = arith.constant 0.000000e+00 : f32
    %8 = vector.broadcast %cst : f32 to vector<64x128xf32>
    %9 = arith.maximumf %7, %8 : vector<64x128xf32>
    %10 = arith.truncf %9 : vector<64x128xf32> to vector<64x128xbf16>
    %c0_5 = arith.constant 0 : index
    %c0_6 = arith.constant 0 : index
    %11 = vector.load %arg4[%c0_5, %c0_6] : memref<128x128xbf16, #tpu.memory_space<vmem>>, vector<128x128xbf16>
    %cst_7 = arith.constant dense<0.000000e+00> : vector<64x128xf32>
    %12 = tpu.matmul %10, %11, %cst_7 {dimension_numbers = #tpu.dot_dimension_numbers<[1], [0], [0], [1], [0, 0, 1, 1], [], []>} : vector<64x128xbf16>, vector<128x128xbf16>, vector<64x128xf32> -> vector<64x128xf32>
    %13 = arith.truncf %12 : vector<64x128xf32> to vector<64x128xbf16>
    %c0_8 = arith.constant 0 : index
    %c0_9 = arith.constant 0 : index
    %14 = vector.load %arg5[%c0_8, %c0_9] : memref<64x128xbf16, #tpu.memory_space<vmem>>, vector<64x128xbf16>
    tpu.vector_store %arg5[%c0_8, %c0_9], %13 {strides = array<i32>} : memref<64x128xbf16, #tpu.memory_space<vmem>>, vector<64x128xbf16>,
    %cst_10 = arith.constant dense<0.000000e+00> : vector<128xf32>
    %15 = vector.multi_reduction <add>, %12, %cst_10 [0] : vector<64x128xf32> to vector<128xf32>
    %16 = vector.shape_cast %15 : vector<128xf32> to vector<1x128xf32>
    %c0_11 = arith.constant 0 : index
    %c0_12 = arith.constant 0 : index
    %c0_13 = arith.constant 0 : index
    %17 = vector.load %arg6[%c0_11, %c0_12, %c0_13] : memref<1x2x128xf32, #tpu.memory_space<vmem>>, vector<1x1x128xf32>
    %18 = vector.shape_cast %17 : vector<1x1x128xf32> to vector<1x128xf32>
    %19 = vector.shape_cast %16 : vector<1x128xf32> to vector<1x1x128xf32>
    tpu.vector_store %arg6[%c0_11, %c0_12, %c0_13], %19 {strides = array<i32>} : memref<1x2x128xf32, #tpu.memory_space<vmem>>, vector<1x1x128xf32>,
    %20 = arith.mulf %12, %12 : vector<64x128xf32>
    %cst_14 = arith.constant dense<0.000000e+00> : vector<128xf32>
    %21 = vector.multi_reduction <add>, %20, %cst_14 [0] : vector<64x128xf32> to vector<128xf32>
    %22 = vector.shape_cast %21 : vector<128xf32> to vector<1x128xf32>
    %c0_15 = arith.constant 0 : index
    %c1 = arith.constant 1 : index
    %c0_16 = arith.constant 0 : index
    %23 = vector.load %arg6[%c0_15, %c1, %c0_16] : memref<1x2x128xf32, #tpu.memory_space<vmem>>, vector<1x1x128xf32>
    %24 = vector.shape_cast %23 : vector<1x1x128xf32> to vector<1x128xf32>
    %25 = vector.shape_cast %22 : vector<1x128xf32> to vector<1x1x128xf32>
    tpu.vector_store %arg6[%c0_15, %c1, %c0_16], %25 {strides = array<i32>} : memref<1x2x128xf32, #tpu.memory_space<vmem>>, vector<1x1x128xf32>,
    return
  }
  func.func @transform_0(%arg0: i32) -> (i32, i32) {
    %c0_i32 = arith.constant 0 : i32
    %c0_i32_0 = arith.constant 0 : i32
    return %arg0, %c0_i32 : i32, i32
  }
  func.func @transform_1(%arg0: i32) -> (i32, i32) {
    %c0_i32 = arith.constant 0 : i32
    %c0_i32_0 = arith.constant 0 : i32
    %c0_i32_1 = arith.constant 0 : i32
    return %c0_i32, %c0_i32_0 : i32, i32
  }
  func.func @transform_2(%arg0: i32) -> (i32, i32) {
    %c0_i32 = arith.constant 0 : i32
    %c0_i32_0 = arith.constant 0 : i32
    %c0_i32_1 = arith.constant 0 : i32
    return %c0_i32, %c0_i32_0 : i32, i32
  }
  func.func @transform_3(%arg0: i32) -> (i32, i32) {
    %c0_i32 = arith.constant 0 : i32
    %c0_i32_0 = arith.constant 0 : i32
    %c0_i32_1 = arith.constant 0 : i32
    return %c0_i32, %c0_i32_0 : i32, i32
  }
  func.func @transform_4(%arg0: i32) -> (i32, i32) {
    %c0_i32 = arith.constant 0 : i32
    %c0_i32_0 = arith.constant 0 : i32
    return %arg0, %c0_i32 : i32, i32
  }
  func.func @transform_5(%arg0: i32) -> (i32, i32, i32) {
    %c0_i32 = arith.constant 0 : i32
    %c0_i32_0 = arith.constant 0 : i32
    %c0_i32_1 = arith.constant 0 : i32
    return %arg0, %c0_i32, %c0_i32_0 : i32, i32, i32
  }
}

module attributes {stable_mosaic.version = 11 : i64} {
  func.func @_bn_residual_relu_kernel(%arg0: i32, %arg1: memref<64x128xbf16, #tpu.memory_space<vmem>>, %arg2: memref<1x128xf32, #tpu.memory_space<vmem>>, %arg3: memref<1x128xf32, #tpu.memory_space<vmem>>, %arg4: memref<64x128xf32, #tpu.memory_space<vmem>>, %arg5: memref<64x128xf32, #tpu.memory_space<vmem>>) attributes {dimension_semantics = [#tpu.dimension_semantics<parallel>], iteration_bounds = array<i64: 8>, scalar_prefetch = 0 : i64, scratch_operands = 0 : i64, tpu.core_type = #tpu.core_type<tc>, window_params = [{transform_indices = @transform_0, window_bounds = array<i64: 64, 128>}, {pipeline_mode = #tpu.pipeline_mode<synchronous>, transform_indices = @transform_1, window_bounds = array<i64: 1, 128>}, {pipeline_mode = #tpu.pipeline_mode<synchronous>, transform_indices = @transform_2, window_bounds = array<i64: 1, 128>}, {transform_indices = @transform_3, window_bounds = array<i64: 64, 128>}, {transform_indices = @transform_4, window_bounds = array<i64: 64, 128>}]} {
    %c0 = arith.constant 0 : index
    %c0_0 = arith.constant 0 : index
    %0 = vector.load %arg1[%c0, %c0_0] : memref<64x128xbf16, #tpu.memory_space<vmem>>, vector<64x128xbf16>
    %1 = arith.extf %0 : vector<64x128xbf16> to vector<64x128xf32>
    %c0_1 = arith.constant 0 : index
    %c0_2 = arith.constant 0 : index
    %2 = vector.load %arg2[%c0_1, %c0_2] : memref<1x128xf32, #tpu.memory_space<vmem>>, vector<1x128xf32>
    %3 = vector.broadcast %2 : vector<1x128xf32> to vector<64x128xf32>
    %4 = arith.mulf %1, %3 : vector<64x128xf32>
    %c0_3 = arith.constant 0 : index
    %c0_4 = arith.constant 0 : index
    %5 = vector.load %arg3[%c0_3, %c0_4] : memref<1x128xf32, #tpu.memory_space<vmem>>, vector<1x128xf32>
    %6 = vector.broadcast %5 : vector<1x128xf32> to vector<64x128xf32>
    %7 = arith.addf %4, %6 : vector<64x128xf32>
    %c0_5 = arith.constant 0 : index
    %c0_6 = arith.constant 0 : index
    %8 = vector.load %arg4[%c0_5, %c0_6] : memref<64x128xf32, #tpu.memory_space<vmem>>, vector<64x128xf32>
    %9 = arith.addf %7, %8 : vector<64x128xf32>
    %cst = arith.constant 0.000000e+00 : f32
    %10 = vector.broadcast %cst : f32 to vector<64x128xf32>
    %11 = arith.maximumf %9, %10 : vector<64x128xf32>
    %c0_7 = arith.constant 0 : index
    %c0_8 = arith.constant 0 : index
    %12 = vector.load %arg5[%c0_7, %c0_8] : memref<64x128xf32, #tpu.memory_space<vmem>>, vector<64x128xf32>
    tpu.vector_store %arg5[%c0_7, %c0_8], %11 {strides = array<i32>} : memref<64x128xf32, #tpu.memory_space<vmem>>, vector<64x128xf32>,
    return
  }
  func.func @transform_0(%arg0: i32) -> (i32, i32) {
    %c0_i32 = arith.constant 0 : i32
    %c0_i32_0 = arith.constant 0 : i32
    return %arg0, %c0_i32 : i32, i32
  }
  func.func @transform_1(%arg0: i32) -> (i32, i32) {
    %c0_i32 = arith.constant 0 : i32
    %c0_i32_0 = arith.constant 0 : i32
    %c0_i32_1 = arith.constant 0 : i32
    return %c0_i32, %c0_i32_0 : i32, i32
  }
  func.func @transform_2(%arg0: i32) -> (i32, i32) {
    %c0_i32 = arith.constant 0 : i32
    %c0_i32_0 = arith.constant 0 : i32
    %c0_i32_1 = arith.constant 0 : i32
    return %c0_i32, %c0_i32_0 : i32, i32
  }
  func.func @transform_3(%arg0: i32) -> (i32, i32) {
    %c0_i32 = arith.constant 0 : i32
    %c0_i32_0 = arith.constant 0 : i32
    return %arg0, %c0_i32 : i32, i32
  }
  func.func @transform_4(%arg0: i32) -> (i32, i32) {
    %c0_i32 = arith.constant 0 : i32
    %c0_i32_0 = arith.constant 0 : i32
    return %arg0, %c0_i32 : i32, i32
  }
}

</mosaic_0001>

<llo_original>
// kernel: bottleneck_forward.4
$region0: #{bottleneck_forward.4}
  #allocation0 [shape = 'u32[]', space=smem, size = 0x4, offset = 0x4, fixed_abs, tag = 'smem constant byte address 0x4 - core index']
  #allocation1 [shape = 'u32[144,128]{1,0:T(1,128)}', space=vmem, size = 0x12000, scoped, tag = 'internal scratch']
  %s0 = inlined_call_operand.hbm [shape: f32[512,128], index: 0, kind: input, shape index: {}]
  %s1 = inlined_call_operand.vmem [shape: bf16[128,128], index: 1, kind: input, shape index: {}]
  %s2 = inlined_call_operand.vmem [shape: bf16[512,128], index: 2, kind: output, shape index: {0}]
  %s3 = inlined_call_operand.vmem [shape: f32[8,2,128], index: 3, kind: output, shape index: {1}]
  %4 = xla_tuple %s2, %s3
  %s5 = sld [smem:[#allocation0]]
  $region53: #{bottleneck_forward.4} parent=0
    _
  %s7 = ssub.s32 1, %s5
  %s8 = scalar_select 0, %s7, %s5
  $region1: #{bottleneck_forward.4} parent=0
    #allocation2 [shape = 'u8[65536]{0}', space=vmem, size = 0x10000, scoped, tag = 'input window, operand 0']
    #allocation3 [shape = 's32[2]{0}', space=sflag, size = 0x8, scoped, tag = 'scoped memory for bottleneck_forward.4']
    %9 = vsyncpa [#allocation3], 0
    %s10 = scalar_lea.sflag [#allocation3], 1
    %11 = vsyncpa %s10, 0
    loop: start=0, step=1, limit=10
    $region2: #{bottleneck_forward.4} parent=1 // loop_pre_header
      _
    $region3: #{bottleneck_forward.4} parent=1 // loop_header
      %s13 = sphi 0, %s17
      %p14 = scmp.ge.s32.totalorder %s13, 10
      %s23 = sphi 0, %s25
      %s26 = sphi 0, %s23
      %s27 = sphi 0, %s26
      %s43 = sphi 0, %s27
      %s47 = sphi 0, %s47
      %s49 = sphi 0, %s47
      %s50 = sphi 0, %s49
      %s64 = sphi 0, %s50
      %s70 = sphi 0, %s72
      %s73 = sphi 0, %s70
      %s74 = sphi 0, %s73
      %s90 = sphi 0, %s74
      %s96 = sphi 0, %s98
      %s99 = sphi 0, %s96
      %s100 = sphi 0, %s99
      %s116 = sphi 0, %s100
    $region4: #{bottleneck_forward.4} parent=1 // loop_header_branch
      %16 = sbr.rel (%p14) target = $region8
    $region5: #{bottleneck_forward.4} parent=1 // loop_body
      %s18 = ssub.s32 %s13, 1
      %s19 = ssub.s32 %s13, 2
      %s20 = sadd.s32 %s13, 1
      %s21 = ssub.s32 %s13, %s20
      %p22 = scmp.eq.s32.totalorder %s21, 0
      %s24 = sadd.s32 %s23, 1
      %s25 = scalar_select %p22, %s23, %s24
      %p28 = pneg %p22
      %p29 = scmp.eq.s32.totalorder %s13, 7
      %p30 = por %p28, %p29
      %p31 = scmp.ne.s32.totalorder %s23, %s26
      %p32 = scmp.eq.s32.totalorder %s13, 0
      %p33 = por %p31, %p32
      %p34 = scmp.ne.s32.totalorder %s23, %s26
      %p35 = scmp.eq.s32.totalorder %s18, 7
      %p36 = por %p34, %p35
      %p37 = scmp.ne.s32.totalorder %s26, %s27
      %p38 = scmp.eq.s32.totalorder %s18, 0
      %p39 = por %p37, %p38
      %p40 = scmp.ne.s32.totalorder %s26, %s27
      %p41 = scmp.eq.s32.totalorder %s19, 7
      %p42 = por %p40, %p41
      %p44 = scmp.ne.s32.totalorder %s27, %s43
      %p45 = scmp.eq.s32.totalorder %s19, 0
      %p46 = por %p44, %p45
      %s48 = sadd.s32 %s47, 1
      %p51 = scmp.eq.s32.totalorder %s13, 7
      %p52 = scmp.ne.s32.totalorder %s47, %s49
      %p53 = scmp.eq.s32.totalorder %s13, 0
      %p54 = por %p52, %p53
      %p55 = scmp.ne.s32.totalorder %s47, %s49
      %p56 = scmp.eq.s32.totalorder %s18, 7
      %p57 = por %p55, %p56
      %p58 = scmp.ne.s32.totalorder %s49, %s50
      %p59 = scmp.eq.s32.totalorder %s18, 0
      %p60 = por %p58, %p59
      %p61 = scmp.ne.s32.totalorder %s49, %s50
      %p62 = scmp.eq.s32.totalorder %s19, 7
      %p63 = por %p61, %p62
      %p65 = scmp.ne.s32.totalorder %s50, %s64
      %p66 = scmp.eq.s32.totalorder %s19, 0
      %p67 = por %p65, %p66
      %s68 = ssub.s32 %s13, %s20
      %p69 = scmp.eq.s32.totalorder %s68, 0
      %s71 = sadd.s32 %s70, 1
      %s72 = scalar_select %p69, %s70, %s71
      %p75 = pneg %p69
      %p76 = scmp.eq.s32.totalorder %s13, 7
      %p77 = por %p75, %p76
      %p78 = scmp.ne.s32.totalorder %s70, %s73
      %p79 = scmp.eq.s32.totalorder %s13, 0
      %p80 = por %p78, %p79
      %p81 = scmp.ne.s32.totalorder %s70, %s73
      %p82 = scmp.eq.s32.totalorder %s18, 7
      %p83 = por %p81, %p82
      %p84 = scmp.ne.s32.totalorder %s73, %s74
      %p85 = scmp.eq.s32.totalorder %s18, 0
      %p86 = por %p84, %p85
      %p87 = scmp.ne.s32.totalorder %s73, %s74
      %p88 = scmp.eq.s32.totalorder %s19, 7
      %p89 = por %p87, %p88
      %p91 = scmp.ne.s32.totalorder %s74, %s90
      %p92 = scmp.eq.s32.totalorder %s19, 0
      %p93 = por %p91, %p92
      %s94 = ssub.s32 %s13, %s20
      %p95 = scmp.eq.s32.totalorder %s94, 0
      %s97 = sadd.s32 %s96, 1
      %s98 = scalar_select %p95, %s96, %s97
      %p101 = pneg %p95
      %p102 = scmp.eq.s32.totalorder %s13, 7
      %p103 = por %p101, %p102
      %p104 = scmp.ne.s32.totalorder %s96, %s99
      %p105 = scmp.eq.s32.totalorder %s13, 0
      %p106 = por %p104, %p105
      %p107 = scmp.ne.s32.totalorder %s96, %s99
      %p108 = scmp.eq.s32.totalorder %s18, 7
      %p109 = por %p107, %p108
      %p110 = scmp.ne.s32.totalorder %s99, %s100
      %p111 = scmp.eq.s32.totalorder %s18, 0
      %p112 = por %p110, %p111
      %p113 = scmp.ne.s32.totalorder %s99, %s100
      %p114 = scmp.eq.s32.totalorder %s19, 7
      %p115 = por %p113, %p114
      %p117 = scmp.ne.s32.totalorder %s100, %s116
      %p118 = scmp.eq.s32.totalorder %s19, 0
      %p119 = por %p117, %p118
      %p120 = scmp.le.s32.totalorder 1, %s13
      %p121 = scmp.lt.s32.totalorder %s13, 9
      %p122 = pnand %p120, %p121
      %p123 = pneg %p122
      // Predicated region
      $region9: #{bottleneck_forward.4} parent=5 // pred_check
        _
      $region10: #{bottleneck_forward.4} parent=5 // pred_check_branch
        %125 = sbr.rel (%p122) target = $region12
      $region11: #{bottleneck_forward.4} parent=5 // pred_region
        %s126 = ssub.s32 %s13, 1
        // Predicated region
        $region13: #{bottleneck_forward.4} parent=11 // pred_check
          %p127 = pneg %p60
        $region14: #{bottleneck_forward.4} parent=11 // pred_check_branch
          %129 = sbr.rel (%p127) target = $region16
        $region15: #{bottleneck_forward.4} parent=11 // pred_region
          _
        $region16: #{bottleneck_forward.4} parent=11 // pred_fallthru
          _
      $region12: #{bottleneck_forward.4} parent=5 // pred_fallthru
        _
      %p130 = scmp.lt.s32.totalorder %s13, 8
      // Predicated region
      $region17: #{bottleneck_forward.4} parent=5 // pred_check
        %p131 = pneg %p130
      $region18: #{bottleneck_forward.4} parent=5 // pred_check_branch
        %133 = sbr.rel (%p131) target = $region20
      $region19: #{bottleneck_forward.4} parent=5 // pred_region
        // Predicated region
        $region21: #{bottleneck_forward.4} parent=19 // pred_check
          %p134 = pneg %p33
        $region22: #{bottleneck_forward.4} parent=19 // pred_check_branch
          %136 = sbr.rel (%p134) target = $region24
        $region23: #{bottleneck_forward.4} parent=19 // pred_region
          %s137 = sand.u32 %s23, 1
          %s138 = scalar_lea.sflag [#allocation3], %s137
          %s139 = sand.u32 %s23, 1
          %s140 = smul.addr %s139, 64
          %s141 = scalar_lea.vmem [#allocation2], %s140
          %s142 = smul.u32 8, %s13
          %s144 = ssub.s32 1024, 1024
          %145 = vsyncadd %s138, %s144
          %s146 = smul.addr %s142, 128
          %s147 = scalar_lea.hbm %s0, %s146
          %s148 = sshll.u32 %s141, 4
          %s149 = int_to_ptr.vmem [resolvable:$true] %s148
          %154 = dma.hbm_to_vmem [thread:$0]  %s147, 1024, %s149, %s138, 128, 128, 8
        $region24: #{bottleneck_forward.4} parent=19 // pred_fallthru
          _
      $region20: #{bottleneck_forward.4} parent=5 // pred_fallthru
        _
      %p155 = scmp.le.s32.totalorder 1, %s13
      %p156 = scmp.lt.s32.totalorder %s13, 9
      %p157 = pnand %p155, %p156
      %p158 = pneg %p157
      // Predicated region
      $region25: #{bottleneck_forward.4} parent=5 // pred_check
        _
      $region26: #{bottleneck_forward.4} parent=5 // pred_check_branch
        %160 = sbr.rel (%p157) target = $region28
      $region27: #{bottleneck_forward.4} parent=5 // pred_region
        %s161 = ssub.s32 %s13, 1
        %s162 = sand.u32 %s26, 1
        %s163 = scalar_lea.sflag [#allocation3], %s162
        %s164 = sand.u32 %s26, 1
        %s165 = smul.addr %s164, 64
        %s166 = scalar_lea.vmem [#allocation2], %s165
        // Predicated region
        $region29: #{bottleneck_forward.4} parent=27 // pred_check
          %p167 = pneg %p39
        $region30: #{bottleneck_forward.4} parent=27 // pred_check_branch
          %169 = sbr.rel (%p167) target = $region32
        $region31: #{bottleneck_forward.4} parent=27 // pred_region
          %170 = dma.done %s163, 1024
        $region32: #{bottleneck_forward.4} parent=27 // pred_fallthru
          _
        %s171 = sand.u32 %s26, 1
        %s172 = scalar_lea.sflag [#allocation3], %s171
        %s173 = sand.u32 %s26, 1
        %s174 = smul.addr %s173, 64
        %s175 = scalar_lea.vmem [#allocation2], %s174
        %p176 = pneg %p39
        %p177 = pneg %p36
        %p178 = pneg %p60
        %p179 = pneg %p57
        %p180 = pneg %p86
        %p181 = pneg %p83
        %s182 = smul.u32 8, %s18
        %p183 = scmp.lt.s32.totalorder %s182, 63
        %s184 = scalar_select %p183, %s182, 63
        %s185 = smul.addr %s184, 4
        %s186 = scalar_lea.vmem %s2, %s185
        %p187 = pneg %p112
        %p188 = pneg %p109
        %p189 = scmp.lt.s32.totalorder %s18, 7
        %s190 = scalar_select %p189, %s18, 7
        %s191 = smul.addr %s190, 2
        %s192 = scalar_lea.vmem %s3, %s191
        %s193 = smul.u32 8, %s18
        %s194 = smul.u32 8, %s18
        %p195 = scmp.lt.s32.totalorder %s194, 63
        %s196 = scalar_select %p195, %s194, 63
        %s197 = smul.addr %s196, 4
        %s198 = scalar_lea.vmem %s2, %s197
        %s199 = smul.u32 8, %s18
        %p200 = scmp.lt.s32.totalorder %s18, 7
        %s201 = scalar_select %p200, %s18, 7
        %s202 = smul.addr %s201, 2
        %s203 = scalar_lea.vmem %s3, %s202
        %v205 = vld [vmem:[%s166] sm:$0xff]
        %v206 = vld [vmem:[%s166 + $0x8] sm:$0xff]
        %v207 = vld [vmem:[%s166 + $0x10] sm:$0xff]
        %v208 = vld [vmem:[%s166 + $0x18] sm:$0xff]
        %v209 = vld [vmem:[%s166 + $0x20] sm:$0xff]
        %v210 = vld [vmem:[%s166 + $0x28] sm:$0xff]
        %v211 = vld [vmem:[%s166 + $0x30] sm:$0xff]
        %v212 = vld [vmem:[%s166 + $0x38] sm:$0xff]
        %v213 = vpack.c.bf16 %v206, %v205
        %v214 = vpack.c.bf16 %v208, %v207
        %v215 = vpack.c.bf16 %v210, %v209
        %v216 = vpack.c.bf16 %v212, %v211
        %v217 = vld [vmem:[%s1] sm:$0xf]
        %v218 = vld [vmem:[%s1 + $0x4] sm:$0xf]
        %v219 = vld [vmem:[%s1 + $0x8] sm:$0xf]
        %v220 = vld [vmem:[%s1 + $0xc] sm:$0xf]
        %v221 = vld [vmem:[%s1 + $0x10] sm:$0xf]
        %v222 = vld [vmem:[%s1 + $0x14] sm:$0xf]
        %v223 = vld [vmem:[%s1 + $0x18] sm:$0xf]
        %v224 = vld [vmem:[%s1 + $0x1c] sm:$0xf]
        %v225 = vld [vmem:[%s1 + $0x20] sm:$0xf]
        %v226 = vld [vmem:[%s1 + $0x24] sm:$0xf]
        %v227 = vld [vmem:[%s1 + $0x28] sm:$0xf]
        %v228 = vld [vmem:[%s1 + $0x2c] sm:$0xf]
        %v229 = vld [vmem:[%s1 + $0x30] sm:$0xf]
        %v230 = vld [vmem:[%s1 + $0x34] sm:$0xf]
        %v231 = vld [vmem:[%s1 + $0x38] sm:$0xf]
        %v232 = vld [vmem:[%s1 + $0x3c] sm:$0xf]
        %v249 = vunpack.c.l.b16 %v217
        %v250 = vunpack.c.l.b16 %v218
        %v251 = vunpack.c.l.b16 %v219
        %v252 = vunpack.c.l.b16 %v220
        %v253 = vunpack.c.l.b16 %v221
        %v254 = vunpack.c.l.b16 %v222
        %v255 = vunpack.c.l.b16 %v223
        %v256 = vunpack.c.l.b16 %v224
        %v257 = vunpack.c.l.b16 %v225
        %v258 = vunpack.c.l.b16 %v226
        %v259 = vunpack.c.l.b16 %v227
        %v260 = vunpack.c.l.b16 %v228
        %v261 = vunpack.c.l.b16 %v229
        %v262 = vunpack.c.l.b16 %v230
        %v263 = vunpack.c.l.b16 %v231
        %v264 = vunpack.c.l.b16 %v232
        %v265 = vpack.c.b16 %v250, %v249
        %v266 = vpack.c.b16 %v252, %v251
        %v267 = vpack.c.b16 %v254, %v253
        %v268 = vpack.c.b16 %v256, %v255
        %v269 = vpack.c.b16 %v258, %v257
        %v270 = vpack.c.b16 %v260, %v259
        %v271 = vpack.c.b16 %v262, %v261
        %v272 = vpack.c.b16 %v264, %v263
        %281 = vmatprep.subr.bf16.mxu0 0
        %282 = vmatpush1.bf16.msra.mxu0 %v265
        %283 = vmatprep.subr.bf16.mxu0 0
        %284 = vmatpush1.bf16.msra.mxu0 %v266
        %285 = vmatprep.subr.bf16.mxu0 0
        %286 = vmatpush1.bf16.msra.mxu0 %v267
        %287 = vmatprep.subr.bf16.mxu0 0
        %288 = vmatpush1.bf16.msra.mxu0 %v268
        %289 = vmatprep.subr.bf16.mxu0 0
        %290 = vmatpush1.bf16.msra.mxu0 %v269
        %291 = vmatprep.subr.bf16.mxu0 0
        %292 = vmatpush1.bf16.msra.mxu0 %v270
        %293 = vmatprep.subr.bf16.mxu0 0
        %294 = vmatpush1.bf16.msra.mxu0 %v271
        %295 = vmatprep.subr.bf16.mxu0 0
        %296 = vmatpush1.bf16.msra.mxu0 %v272
        %297 = vmatprep.subr.bf16.mxu0 0
        %298 = vmatpush1.bf16.msra.mxu0 0
        %299 = vmatprep.subr.bf16.mxu0 0
        %300 = vmatpush1.bf16.msra.mxu0 0
        %301 = vmatprep.subr.bf16.mxu0 0
        %302 = vmatpush1.bf16.msra.mxu0 0
        %303 = vmatprep.subr.bf16.mxu0 0
        %304 = vmatpush1.bf16.msra.mxu0 0
        %305 = vmatprep.subr.bf16.mxu0 0
        %306 = vmatpush1.bf16.msra.mxu0 0
        %307 = vmatprep.subr.bf16.mxu0 0
        %308 = vmatpush1.bf16.msra.mxu0 0
        %309 = vmatprep.subr.bf16.mxu0 0
        %310 = vmatpush1.bf16.msra.mxu0 0
        %311 = vmatprep.subr.bf16.mxu0 0
        %312 = vmatpush1.bf16.msra.mxu0 0
        %313 = vmatprep.mubr.bf16.mxu0 0
        %314 = vmatmul.mubr.bf16.gmra.mrb[0].mxu0 %v213
        %v315 = vpop.f32.mrb[0].mxu0
        %v316 = vadd.f32 0.0, %v315
        %v317 = vpop.f32.mrb[0].mxu0
        %v318 = vpop.f32.mrb[0].mxu0
        %v319 = vadd.f32 0.0, %v318
        %v320 = vpop.f32.mrb[0].mxu0
        %321 = vmatprep.mubr.bf16.mxu0 0
        %322 = vmatmul.mubr.bf16.gmra.mrb[0].mxu0 %v214
        %v323 = vpop.f32.mrb[0].mxu0
        %v324 = vadd.f32 0.0, %v323
        %v325 = vpop.f32.mrb[0].mxu0
        %v326 = vpop.f32.mrb[0].mxu0
        %v327 = vadd.f32 0.0, %v326
        %v328 = vpop.f32.mrb[0].mxu0
        %329 = vmatprep.mubr.bf16.mxu0 0
        %330 = vmatmul.mubr.bf16.gmra.mrb[0].mxu0 %v215
        %v331 = vpop.f32.mrb[0].mxu0
        %v332 = vadd.f32 0.0, %v331
        %v333 = vpop.f32.mrb[0].mxu0
        %v334 = vpop.f32.mrb[0].mxu0
        %v335 = vadd.f32 0.0, %v334
        %v336 = vpop.f32.mrb[0].mxu0
        %337 = vmatprep.mubr.bf16.mxu0 0
        %338 = vmatmul.mubr.bf16.gmra.mrb[0].mxu0 %v216
        %v339 = vpop.f32.mrb[0].mxu0
        %v340 = vadd.f32 0.0, %v339
        %v341 = vpop.f32.mrb[0].mxu0
        %v342 = vpop.f32.mrb[0].mxu0
        %v343 = vadd.f32 0.0, %v342
        %v344 = vpop.f32.mrb[0].mxu0
        %345 = vdwg.mxu0
        %v346 = vpack.c.bf16 %v319, %v316
        %v347 = vpack.c.bf16 %v327, %v324
        %v348 = vpack.c.bf16 %v335, %v332
        %v349 = vpack.c.bf16 %v343, %v340
        %v354 = vunpack.c.l.b16 %v346
        %v355 = vunpack.c.h.b16 %v346
        %v356 = vunpack.c.l.b16 %v347
        %v357 = vunpack.c.h.b16 %v347
        %v358 = vunpack.c.l.b16 %v348
        %v359 = vunpack.c.h.b16 %v348
        %v360 = vunpack.c.l.b16 %v349
        %v361 = vunpack.c.h.b16 %v349
        %v362 = vpack.c.b16 %v354, %v354
        %v363 = vpack.c.b16 %v355, %v355
        %v364 = vpack.c.b16 %v356, %v356
        %v365 = vpack.c.b16 %v357, %v357
        %v366 = vpack.c.b16 %v358, %v358
        %v367 = vpack.c.b16 %v359, %v359
        %v368 = vpack.c.b16 %v360, %v360
        %v369 = vpack.c.b16 %v361, %v361
        %378 = vst [vmem:[%s198] sm:$0xf] %v362
        %379 = vst [vmem:[%s198 + $0x4] sm:$0xf] %v363
        %380 = vst [vmem:[%s198 + $0x8] sm:$0xf] %v364
        %381 = vst [vmem:[%s198 + $0xc] sm:$0xf] %v365
        %382 = vst [vmem:[%s198 + $0x10] sm:$0xf] %v366
        %383 = vst [vmem:[%s198 + $0x14] sm:$0xf] %v367
        %384 = vst [vmem:[%s198 + $0x18] sm:$0xf] %v368
        %385 = vst [vmem:[%s198 + $0x1c] sm:$0xf] %v369
        %v386 = vadd.f32 %v316, %v319
        %v387 = vadd.f32 %v386, %v324
        %v388 = vadd.f32 %v387, %v327
        %v389 = vadd.f32 %v388, %v332
        %v390 = vadd.f32 %v389, %v335
        %v391 = vadd.f32 %v390, %v340
        %v392 = vadd.f32 %v391, %v343
        %v393 = vrot.slane %v392, 4
        %v394 = vadd.f32 %v392, %v393
        %v395 = vrot.slane %v394, 2
        %v396 = vadd.f32 %v394, %v395
        %v397 = vrot.slane %v396, 1
        %v398 = vadd.f32 %v396, %v397
        %399 = vst [vmem:[%s203] sm:$0x1] %v398
        %v400 = vmul.f32 %v316, %v316
        %v401 = vmul.f32 %v319, %v319
        %v402 = vmul.f32 %v324, %v324
        %v403 = vmul.f32 %v327, %v327
        %v404 = vmul.f32 %v332, %v332
        %v405 = vmul.f32 %v335, %v335
        %v406 = vmul.f32 %v340, %v340
        %v407 = vmul.f32 %v343, %v343
        %v408 = vadd.f32 %v400, %v401
        %v409 = vadd.f32 %v408, %v402
        %v410 = vadd.f32 %v409, %v403
        %v411 = vadd.f32 %v410, %v404
        %v412 = vadd.f32 %v411, %v405
        %v413 = vadd.f32 %v412, %v406
        %v414 = vadd.f32 %v413, %v407
        %v415 = vrot.slane %v414, 4
        %v416 = vadd.f32 %v414, %v415
        %v417 = vrot.slane %v416, 2
        %v418 = vadd.f32 %v416, %v417
        %v419 = vrot.slane %v418, 1
        %v420 = vadd.f32 %v418, %v419
        %421 = vst [vmem:[%s203 + $0x1] sm:$0x1] %v420
        %s422 = smul.u32 8, %s18
        %p423 = scmp.lt.s32.totalorder %s422, 63
        %s424 = scalar_select %p423, %s422, 63
        %s425 = smul.addr %s424, 4
        %s426 = scalar_lea.vmem %s2, %s425
        %p427 = scmp.lt.s32.totalorder %s18, 7
        %s428 = scalar_select %p427, %s18, 7
        %s429 = smul.addr %s428, 2
        %s430 = scalar_lea.vmem %s3, %s429
        // Predicated region
        $region33: #{bottleneck_forward.4} parent=27 // pred_check
          %p431 = pneg %p83
        $region34: #{bottleneck_forward.4} parent=27 // pred_check_branch
          %433 = sbr.rel (%p431) target = $region36
        $region35: #{bottleneck_forward.4} parent=27 // pred_region
          %s434 = smul.u32 8, %s18
        $region36: #{bottleneck_forward.4} parent=27 // pred_fallthru
          _
        // Predicated region
        $region37: #{bottleneck_forward.4} parent=27 // pred_check
          %p435 = pneg %p109
        $region38: #{bottleneck_forward.4} parent=27 // pred_check_branch
          %437 = sbr.rel (%p435) target = $region40
        $region39: #{bottleneck_forward.4} parent=27 // pred_region
          _
        $region40: #{bottleneck_forward.4} parent=27 // pred_fallthru
          _
      $region28: #{bottleneck_forward.4} parent=5 // pred_fallthru
        _
      %p438 = scmp.le.s32.totalorder 2, %s13
      // Predicated region
      $region41: #{bottleneck_forward.4} parent=5 // pred_check
        %p439 = pneg %p438
      $region42: #{bottleneck_forward.4} parent=5 // pred_check_branch
        %441 = sbr.rel (%p439) target = $region44
      $region43: #{bottleneck_forward.4} parent=5 // pred_region
        %s442 = ssub.s32 %s13, 2
        // Predicated region
        $region45: #{bottleneck_forward.4} parent=43 // pred_check
          %p443 = pneg %p89
        $region46: #{bottleneck_forward.4} parent=43 // pred_check_branch
          %445 = sbr.rel (%p443) target = $region48
        $region47: #{bottleneck_forward.4} parent=43 // pred_region
          %s446 = smul.u32 8, %s19
          %p447 = scmp.lt.s32.totalorder %s446, 63
          %s448 = scalar_select %p447, %s446, 63
          %s449 = smul.addr %s448, 4
          %s450 = scalar_lea.vmem %s2, %s449
        $region48: #{bottleneck_forward.4} parent=43 // pred_fallthru
          _
        // Predicated region
        $region49: #{bottleneck_forward.4} parent=43 // pred_check
          %p451 = pneg %p115
        $region50: #{bottleneck_forward.4} parent=43 // pred_check_branch
          %453 = sbr.rel (%p451) target = $region52
        $region51: #{bottleneck_forward.4} parent=43 // pred_region
          %p454 = scmp.lt.s32.totalorder %s19, 7
          %s455 = scalar_select %p454, %s19, 7
          %s456 = smul.addr %s455, 2
          %s457 = scalar_lea.vmem %s3, %s456
        $region52: #{bottleneck_forward.4} parent=43 // pred_fallthru
          _
      $region44: #{bottleneck_forward.4} parent=5 // pred_fallthru
        _
    $region6: #{bottleneck_forward.4} parent=1 // loop_footer
      %s17 = sadd.s32 1, %s13
    $region7: #{bottleneck_forward.4} parent=1 // loop_footer_branch
      %12 = sbr.rel target = $region3
    $region8: #{bottleneck_forward.4} parent=1 // loop_exit
      _
    %458 = vsyncpa [#allocation3], 1
    %s459 = scalar_lea.sflag [#allocation3], 1
    %460 = vsyncpa %s459, 1

// kernel: bottleneck_forward.6
$region0: #{bottleneck_forward.6}
  #allocation0 [shape = 'u32[]', space=smem, size = 0x4, offset = 0x4, fixed_abs, tag = 'smem constant byte address 0x4 - core index']
  #allocation1 [shape = 'u32[144,128]{1,0:T(1,128)}', space=vmem, size = 0x12000, scoped, tag = 'internal scratch']
  %s0 = inlined_call_operand.vmem [shape: bf16[512,128], index: 0, kind: input, shape index: {}]
  %s1 = inlined_call_operand.vmem [shape: f32[1,128], index: 1, kind: input, shape index: {}]
  %s2 = inlined_call_operand.vmem [shape: f32[1,128], index: 2, kind: input, shape index: {}]
  %s3 = inlined_call_operand.vmem [shape: bf16[128,128], index: 3, kind: input, shape index: {}]
  %s4 = inlined_call_operand.vmem [shape: bf16[512,128], index: 4, kind: output, shape index: {0}]
  %s5 = inlined_call_operand.vmem [shape: f32[8,2,128], index: 5, kind: output, shape index: {1}]
  %6 = xla_tuple %s4, %s5
  %s7 = sld [smem:[#allocation0]]
  $region57: #{bottleneck_forward.6} parent=0
    _
  %s9 = ssub.s32 1, %s7
  %s10 = scalar_select 0, %s9, %s7
  loop: start=0, step=1, limit=10
  $region2: #{bottleneck_forward.6} parent=0 // loop_pre_header
    _
  $region3: #{bottleneck_forward.6} parent=0 // loop_header
    %s12 = sphi 0, %s16
    %p13 = scmp.ge.s32.totalorder %s12, 10
    %s22 = sphi 0, %s24
    %s25 = sphi 0, %s22
    %s26 = sphi 0, %s25
    %s42 = sphi 0, %s26
    %s46 = sphi 0, %s46
    %s48 = sphi 0, %s46
    %s49 = sphi 0, %s48
    %s63 = sphi 0, %s49
    %s67 = sphi 0, %s67
    %s69 = sphi 0, %s67
    %s70 = sphi 0, %s69
    %s84 = sphi 0, %s70
    %s88 = sphi 0, %s88
    %s90 = sphi 0, %s88
    %s91 = sphi 0, %s90
    %s105 = sphi 0, %s91
    %s111 = sphi 0, %s113
    %s114 = sphi 0, %s111
    %s115 = sphi 0, %s114
    %s131 = sphi 0, %s115
    %s137 = sphi 0, %s139
    %s140 = sphi 0, %s137
    %s141 = sphi 0, %s140
    %s157 = sphi 0, %s141
  $region4: #{bottleneck_forward.6} parent=0 // loop_header_branch
    %15 = sbr.rel (%p13) target = $region8
  $region5: #{bottleneck_forward.6} parent=0 // loop_body
    %s17 = ssub.s32 %s12, 1
    %s18 = ssub.s32 %s12, 2
    %s19 = sadd.s32 %s12, 1
    %s20 = ssub.s32 %s12, %s19
    %p21 = scmp.eq.s32.totalorder %s20, 0
    %s23 = sadd.s32 %s22, 1
    %s24 = scalar_select %p21, %s22, %s23
    %p27 = pneg %p21
    %p28 = scmp.eq.s32.totalorder %s12, 7
    %p29 = por %p27, %p28
    %p30 = scmp.ne.s32.totalorder %s22, %s25
    %p31 = scmp.eq.s32.totalorder %s12, 0
    %p32 = por %p30, %p31
    %p33 = scmp.ne.s32.totalorder %s22, %s25
    %p34 = scmp.eq.s32.totalorder %s17, 7
    %p35 = por %p33, %p34
    %p36 = scmp.ne.s32.totalorder %s25, %s26
    %p37 = scmp.eq.s32.totalorder %s17, 0
    %p38 = por %p36, %p37
    %p39 = scmp.ne.s32.totalorder %s25, %s26
    %p40 = scmp.eq.s32.totalorder %s18, 7
    %p41 = por %p39, %p40
    %p43 = scmp.ne.s32.totalorder %s26, %s42
    %p44 = scmp.eq.s32.totalorder %s18, 0
    %p45 = por %p43, %p44
    %s47 = sadd.s32 %s46, 1
    %p50 = scmp.eq.s32.totalorder %s12, 7
    %p51 = scmp.ne.s32.totalorder %s46, %s48
    %p52 = scmp.eq.s32.totalorder %s12, 0
    %p53 = por %p51, %p52
    %p54 = scmp.ne.s32.totalorder %s46, %s48
    %p55 = scmp.eq.s32.totalorder %s17, 7
    %p56 = por %p54, %p55
    %p57 = scmp.ne.s32.totalorder %s48, %s49
    %p58 = scmp.eq.s32.totalorder %s17, 0
    %p59 = por %p57, %p58
    %p60 = scmp.ne.s32.totalorder %s48, %s49
    %p61 = scmp.eq.s32.totalorder %s18, 7
    %p62 = por %p60, %p61
    %p64 = scmp.ne.s32.totalorder %s49, %s63
    %p65 = scmp.eq.s32.totalorder %s18, 0
    %p66 = por %p64, %p65
    %s68 = sadd.s32 %s67, 1
    %p71 = scmp.eq.s32.totalorder %s12, 7
    %p72 = scmp.ne.s32.totalorder %s67, %s69
    %p73 = scmp.eq.s32.totalorder %s12, 0
    %p74 = por %p72, %p73
    %p75 = scmp.ne.s32.totalorder %s67, %s69
    %p76 = scmp.eq.s32.totalorder %s17, 7
    %p77 = por %p75, %p76
    %p78 = scmp.ne.s32.totalorder %s69, %s70
    %p79 = scmp.eq.s32.totalorder %s17, 0
    %p80 = por %p78, %p79
    %p81 = scmp.ne.s32.totalorder %s69, %s70
    %p82 = scmp.eq.s32.totalorder %s18, 7
    %p83 = por %p81, %p82
    %p85 = scmp.ne.s32.totalorder %s70, %s84
    %p86 = scmp.eq.s32.totalorder %s18, 0
    %p87 = por %p85, %p86
    %s89 = sadd.s32 %s88, 1
    %p92 = scmp.eq.s32.totalorder %s12, 7
    %p93 = scmp.ne.s32.totalorder %s88, %s90
    %p94 = scmp.eq.s32.totalorder %s12, 0
    %p95 = por %p93, %p94
    %p96 = scmp.ne.s32.totalorder %s88, %s90
    %p97 = scmp.eq.s32.totalorder %s17, 7
    %p98 = por %p96, %p97
    %p99 = scmp.ne.s32.totalorder %s90, %s91
    %p100 = scmp.eq.s32.totalorder %s17, 0
    %p101 = por %p99, %p100
    %p102 = scmp.ne.s32.totalorder %s90, %s91
    %p103 = scmp.eq.s32.totalorder %s18, 7
    %p104 = por %p102, %p103
    %p106 = scmp.ne.s32.totalorder %s91, %s105
    %p107 = scmp.eq.s32.totalorder %s18, 0
    %p108 = por %p106, %p107
    %s109 = ssub.s32 %s12, %s19
    %p110 = scmp.eq.s32.totalorder %s109, 0
    %s112 = sadd.s32 %s111, 1
    %s113 = scalar_select %p110, %s111, %s112
    %p116 = pneg %p110
    %p117 = scmp.eq.s32.totalorder %s12, 7
    %p118 = por %p116, %p117
    %p119 = scmp.ne.s32.totalorder %s111, %s114
    %p120 = scmp.eq.s32.totalorder %s12, 0
    %p121 = por %p119, %p120
    %p122 = scmp.ne.s32.totalorder %s111, %s114
    %p123 = scmp.eq.s32.totalorder %s17, 7
    %p124 = por %p122, %p123
    %p125 = scmp.ne.s32.totalorder %s114, %s115
    %p126 = scmp.eq.s32.totalorder %s17, 0
    %p127 = por %p125, %p126
    %p128 = scmp.ne.s32.totalorder %s114, %s115
    %p129 = scmp.eq.s32.totalorder %s18, 7
    %p130 = por %p128, %p129
    %p132 = scmp.ne.s32.totalorder %s115, %s131
    %p133 = scmp.eq.s32.totalorder %s18, 0
    %p134 = por %p132, %p133
    %s135 = ssub.s32 %s12, %s19
    %p136 = scmp.eq.s32.totalorder %s135, 0
    %s138 = sadd.s32 %s137, 1
    %s139 = scalar_select %p136, %s137, %s138
    %p142 = pneg %p136
    %p143 = scmp.eq.s32.totalorder %s12, 7
    %p144 = por %p142, %p143
    %p145 = scmp.ne.s32.totalorder %s137, %s140
    %p146 = scmp.eq.s32.totalorder %s12, 0
    %p147 = por %p145, %p146
    %p148 = scmp.ne.s32.totalorder %s137, %s140
    %p149 = scmp.eq.s32.totalorder %s17, 7
    %p150 = por %p148, %p149
    %p151 = scmp.ne.s32.totalorder %s140, %s141
    %p152 = scmp.eq.s32.totalorder %s17, 0
    %p153 = por %p151, %p152
    %p154 = scmp.ne.s32.totalorder %s140, %s141
    %p155 = scmp.eq.s32.totalorder %s18, 7
    %p156 = por %p154, %p155
    %p158 = scmp.ne.s32.totalorder %s141, %s157
    %p159 = scmp.eq.s32.totalorder %s18, 0
    %p160 = por %p158, %p159
    %p161 = scmp.le.s32.totalorder 1, %s12
    %p162 = scmp.lt.s32.totalorder %s12, 9
    %p163 = pnand %p161, %p162
    %p164 = pneg %p163
    // Predicated region
    $region9: #{bottleneck_forward.6} parent=5 // pred_check
      _
    $region10: #{bottleneck_forward.6} parent=5 // pred_check_branch
      %166 = sbr.rel (%p163) target = $region12
    $region11: #{bottleneck_forward.6} parent=5 // pred_region
      %s167 = ssub.s32 %s12, 1
      // Predicated region
      $region13: #{bottleneck_forward.6} parent=11 // pred_check
        %p168 = pneg %p59
      $region14: #{bottleneck_forward.6} parent=11 // pred_check_branch
        %170 = sbr.rel (%p168) target = $region16
      $region15: #{bottleneck_forward.6} parent=11 // pred_region
        _
      $region16: #{bottleneck_forward.6} parent=11 // pred_fallthru
        _
      // Predicated region
      $region17: #{bottleneck_forward.6} parent=11 // pred_check
        %p171 = pneg %p80
      $region18: #{bottleneck_forward.6} parent=11 // pred_check_branch
        %173 = sbr.rel (%p171) target = $region20
      $region19: #{bottleneck_forward.6} parent=11 // pred_region
        _
      $region20: #{bottleneck_forward.6} parent=11 // pred_fallthru
        _
      // Predicated region
      $region21: #{bottleneck_forward.6} parent=11 // pred_check
        %p174 = pneg %p101
      $region22: #{bottleneck_forward.6} parent=11 // pred_check_branch
        %176 = sbr.rel (%p174) target = $region24
      $region23: #{bottleneck_forward.6} parent=11 // pred_region
        _
      $region24: #{bottleneck_forward.6} parent=11 // pred_fallthru
        _
    $region12: #{bottleneck_forward.6} parent=5 // pred_fallthru
      _
    %p177 = scmp.lt.s32.totalorder %s12, 8
    // Predicated region
    $region25: #{bottleneck_forward.6} parent=5 // pred_check
      %p178 = pneg %p177
    $region26: #{bottleneck_forward.6} parent=5 // pred_check_branch
      %180 = sbr.rel (%p178) target = $region28
    $region27: #{bottleneck_forward.6} parent=5 // pred_region
      // Predicated region
      $region29: #{bottleneck_forward.6} parent=27 // pred_check
        %p181 = pneg %p32
      $region30: #{bottleneck_forward.6} parent=27 // pred_check_branch
        %183 = sbr.rel (%p181) target = $region32
      $region31: #{bottleneck_forward.6} parent=27 // pred_region
        %s184 = smul.u32 8, %s12
        %p185 = scmp.lt.s32.totalorder %s184, 63
        %s186 = scalar_select %p185, %s184, 63
        %s187 = smul.addr %s186, 4
        %s188 = scalar_lea.vmem %s0, %s187
        %s189 = smul.u32 8, %s12
      $region32: #{bottleneck_forward.6} parent=27 // pred_fallthru
        _
    $region28: #{bottleneck_forward.6} parent=5 // pred_fallthru
      _
    %p190 = scmp.le.s32.totalorder 1, %s12
    %p191 = scmp.lt.s32.totalorder %s12, 9
    %p192 = pnand %p190, %p191
    %p193 = pneg %p192
    // Predicated region
    $region33: #{bottleneck_forward.6} parent=5 // pred_check
      _
    $region34: #{bottleneck_forward.6} parent=5 // pred_check_branch
      %195 = sbr.rel (%p192) target = $region36
    $region35: #{bottleneck_forward.6} parent=5 // pred_region
      %s196 = ssub.s32 %s12, 1
      %s197 = smul.u32 8, %s17
      %p198 = scmp.lt.s32.totalorder %s197, 63
      %s199 = scalar_select %p198, %s197, 63
      %s200 = smul.addr %s199, 4
      %s201 = scalar_lea.vmem %s0, %s200
      %p202 = pneg %p38
      %p203 = pneg %p35
      %p204 = pneg %p59
      %p205 = pneg %p56
      %p206 = pneg %p80
      %p207 = pneg %p77
      %p208 = pneg %p101
      %p209 = pneg %p98
      %p210 = pneg %p127
      %p211 = pneg %p124
      %s212 = smul.u32 8, %s17
      %p213 = scmp.lt.s32.totalorder %s212, 63
      %s214 = scalar_select %p213, %s212, 63
      %s215 = smul.addr %s214, 4
      %s216 = scalar_lea.vmem %s4, %s215
      %p217 = pneg %p153
      %p218 = pneg %p150
      %p219 = scmp.lt.s32.totalorder %s17, 7
      %s220 = scalar_select %p219, %s17, 7
      %s221 = smul.addr %s220, 2
      %s222 = scalar_lea.vmem %s5, %s221
      %s223 = smul.u32 8, %s17
      %p224 = scmp.lt.s32.totalorder %s223, 63
      %s225 = scalar_select %p224, %s223, 63
      %s226 = smul.addr %s225, 4
      %s227 = scalar_lea.vmem %s0, %s226
      %s228 = smul.u32 8, %s17
      %s229 = smul.u32 8, %s17
      %p230 = scmp.lt.s32.totalorder %s229, 63
      %s231 = scalar_select %p230, %s229, 63
      %s232 = smul.addr %s231, 4
      %s233 = scalar_lea.vmem %s4, %s232
      %s234 = smul.u32 8, %s17
      %p235 = scmp.lt.s32.totalorder %s17, 7
      %s236 = scalar_select %p235, %s17, 7
      %s237 = smul.addr %s236, 2
      %s238 = scalar_lea.vmem %s5, %s237
      %v240 = vld [vmem:[%s227] sm:$0xf]
      %v241 = vld [vmem:[%s227 + $0x4] sm:$0xf]
      %v242 = vld [vmem:[%s227 + $0x8] sm:$0xf]
      %v243 = vld [vmem:[%s227 + $0xc] sm:$0xf]
      %v244 = vld [vmem:[%s227 + $0x10] sm:$0xf]
      %v245 = vld [vmem:[%s227 + $0x14] sm:$0xf]
      %v246 = vld [vmem:[%s227 + $0x18] sm:$0xf]
      %v247 = vld [vmem:[%s227 + $0x1c] sm:$0xf]
      %v248 = vunpack.c.l.bf16 %v240
      %v249 = vunpack.c.l.bf16 %v241
      %v250 = vunpack.c.l.bf16 %v242
      %v251 = vunpack.c.l.bf16 %v243
      %v252 = vunpack.c.l.bf16 %v244
      %v253 = vunpack.c.l.bf16 %v245
      %v254 = vunpack.c.l.bf16 %v246
      %v255 = vunpack.c.l.bf16 %v247
      %v256 = vld [vmem:[%s1] sm:$0x1]
      %v258 = vlaneseq
      %v259 = vshrl.u32 %v258, 7
      %v260 = vsub.s32 0, %v259
      %v261 = vrot.slane %v256, %v260
      %v263 = vmul.f32 %v248, %v261
      %v264 = vmul.f32 %v249, %v261
      %v265 = vmul.f32 %v250, %v261
      %v266 = vmul.f32 %v251, %v261
      %v267 = vmul.f32 %v252, %v261
      %v268 = vmul.f32 %v253, %v261
      %v269 = vmul.f32 %v254, %v261
      %v270 = vmul.f32 %v255, %v261
      %v271 = vld [vmem:[%s2] sm:$0x1]
      %v273 = vlaneseq
      %v274 = vshrl.u32 %v273, 7
      %v275 = vsub.s32 0, %v274
      %v276 = vrot.slane %v271, %v275
      %v278 = vadd.f32 %v263, %v276
      %v279 = vadd.f32 %v264, %v276
      %v280 = vadd.f32 %v265, %v276
      %v281 = vadd.f32 %v266, %v276
      %v282 = vadd.f32 %v267, %v276
      %v283 = vadd.f32 %v268, %v276
      %v284 = vadd.f32 %v269, %v276
      %v285 = vadd.f32 %v270, %v276
      %v286 = vmax.f32 %v278, 0.0
      %v287 = vmax.f32 %v279, 0.0
      %v288 = vmax.f32 %v280, 0.0
      %v289 = vmax.f32 %v281, 0.0
      %v290 = vmax.f32 %v282, 0.0
      %v291 = vmax.f32 %v283, 0.0
      %v292 = vmax.f32 %v284, 0.0
      %v293 = vmax.f32 %v285, 0.0
      %v294 = vpack.c.bf16 %v287, %v286
      %v295 = vpack.c.bf16 %v289, %v288
      %v296 = vpack.c.bf16 %v291, %v290
      %v297 = vpack.c.bf16 %v293, %v292
      %v298 = vld [vmem:[%s3] sm:$0xf]
      %v299 = vld [vmem:[%s3 + $0x4] sm:$0xf]
      %v300 = vld [vmem:[%s3 + $0x8] sm:$0xf]
      %v301 = vld [vmem:[%s3 + $0xc] sm:$0xf]
      %v302 = vld [vmem:[%s3 + $0x10] sm:$0xf]
      %v303 = vld [vmem:[%s3 + $0x14] sm:$0xf]
      %v304 = vld [vmem:[%s3 + $0x18] sm:$0xf]
      %v305 = vld [vmem:[%s3 + $0x1c] sm:$0xf]
      %v306 = vld [vmem:[%s3 + $0x20] sm:$0xf]
      %v307 = vld [vmem:[%s3 + $0x24] sm:$0xf]
      %v308 = vld [vmem:[%s3 + $0x28] sm:$0xf]
      %v309 = vld [vmem:[%s3 + $0x2c] sm:$0xf]
      %v310 = vld [vmem:[%s3 + $0x30] sm:$0xf]
      %v311 = vld [vmem:[%s3 + $0x34] sm:$0xf]
      %v312 = vld [vmem:[%s3 + $0x38] sm:$0xf]
      %v313 = vld [vmem:[%s3 + $0x3c] sm:$0xf]
      %v330 = vunpack.c.l.b16 %v298
      %v331 = vunpack.c.l.b16 %v299
      %v332 = vunpack.c.l.b16 %v300
      %v333 = vunpack.c.l.b16 %v301
      %v334 = vunpack.c.l.b16 %v302
      %v335 = vunpack.c.l.b16 %v303
      %v336 = vunpack.c.l.b16 %v304
      %v337 = vunpack.c.l.b16 %v305
      %v338 = vunpack.c.l.b16 %v306
      %v339 = vunpack.c.l.b16 %v307
      %v340 = vunpack.c.l.b16 %v308
      %v341 = vunpack.c.l.b16 %v309
      %v342 = vunpack.c.l.b16 %v310
      %v343 = vunpack.c.l.b16 %v311
      %v344 = vunpack.c.l.b16 %v312
      %v345 = vunpack.c.l.b16 %v313
      %v346 = vpack.c.b16 %v331, %v330
      %v347 = vpack.c.b16 %v333, %v332
      %v348 = vpack.c.b16 %v335, %v334
      %v349 = vpack.c.b16 %v337, %v336
      %v350 = vpack.c.b16 %v339, %v338
      %v351 = vpack.c.b16 %v341, %v340
      %v352 = vpack.c.b16 %v343, %v342
      %v353 = vpack.c.b16 %v345, %v344
      %362 = vmatprep.subr.bf16.mxu0 0
      %363 = vmatpush1.bf16.msra.mxu0 %v346
      %364 = vmatprep.subr.bf16.mxu0 0
      %365 = vmatpush1.bf16.msra.mxu0 %v347
      %366 = vmatprep.subr.bf16.mxu0 0
      %367 = vmatpush1.bf16.msra.mxu0 %v348
      %368 = vmatprep.subr.bf16.mxu0 0
      %369 = vmatpush1.bf16.msra.mxu0 %v349
      %370 = vmatprep.subr.bf16.mxu0 0
      %371 = vmatpush1.bf16.msra.mxu0 %v350
      %372 = vmatprep.subr.bf16.mxu0 0
      %373 = vmatpush1.bf16.msra.mxu0 %v351
      %374 = vmatprep.subr.bf16.mxu0 0
      %375 = vmatpush1.bf16.msra.mxu0 %v352
      %376 = vmatprep.subr.bf16.mxu0 0
      %377 = vmatpush1.bf16.msra.mxu0 %v353
      %378 = vmatprep.subr.bf16.mxu0 0
      %379 = vmatpush1.bf16.msra.mxu0 0
      %380 = vmatprep.subr.bf16.mxu0 0
      %381 = vmatpush1.bf16.msra.mxu0 0
      %382 = vmatprep.subr.bf16.mxu0 0
      %383 = vmatpush1.bf16.msra.mxu0 0
      %384 = vmatprep.subr.bf16.mxu0 0
      %385 = vmatpush1.bf16.msra.mxu0 0
      %386 = vmatprep.subr.bf16.mxu0 0
      %387 = vmatpush1.bf16.msra.mxu0 0
      %388 = vmatprep.subr.bf16.mxu0 0
      %389 = vmatpush1.bf16.msra.mxu0 0
      %390 = vmatprep.subr.bf16.mxu0 0
      %391 = vmatpush1.bf16.msra.mxu0 0
      %392 = vmatprep.subr.bf16.mxu0 0
      %393 = vmatpush1.bf16.msra.mxu0 0
      %394 = vmatprep.mubr.bf16.mxu0 0
      %395 = vmatmul.mubr.bf16.gmra.mrb[0].mxu0 %v294
      %v396 = vpop.f32.mrb[0].mxu0
      %v397 = vadd.f32 0.0, %v396
      %v398 = vpop.f32.mrb[0].mxu0
      %v399 = vpop.f32.mrb[0].mxu0
      %v400 = vadd.f32 0.0, %v399
      %v401 = vpop.f32.mrb[0].mxu0
      %402 = vmatprep.mubr.bf16.mxu0 0
      %403 = vmatmul.mubr.bf16.gmra.mrb[0].mxu0 %v295
      %v404 = vpop.f32.mrb[0].mxu0
      %v405 = vadd.f32 0.0, %v404
      %v406 = vpop.f32.mrb[0].mxu0
      %v407 = vpop.f32.mrb[0].mxu0
      %v408 = vadd.f32 0.0, %v407
      %v409 = vpop.f32.mrb[0].mxu0
      %410 = vmatprep.mubr.bf16.mxu0 0
      %411 = vmatmul.mubr.bf16.gmra.mrb[0].mxu0 %v296
      %v412 = vpop.f32.mrb[0].mxu0
      %v413 = vadd.f32 0.0, %v412
      %v414 = vpop.f32.mrb[0].mxu0
      %v415 = vpop.f32.mrb[0].mxu0
      %v416 = vadd.f32 0.0, %v415
      %v417 = vpop.f32.mrb[0].mxu0
      %418 = vmatprep.mubr.bf16.mxu0 0
      %419 = vmatmul.mubr.bf16.gmra.mrb[0].mxu0 %v297
      %v420 = vpop.f32.mrb[0].mxu0
      %v421 = vadd.f32 0.0, %v420
      %v422 = vpop.f32.mrb[0].mxu0
      %v423 = vpop.f32.mrb[0].mxu0
      %v424 = vadd.f32 0.0, %v423
      %v425 = vpop.f32.mrb[0].mxu0
      %426 = vdwg.mxu0
      %v427 = vpack.c.bf16 %v400, %v397
      %v428 = vpack.c.bf16 %v408, %v405
      %v429 = vpack.c.bf16 %v416, %v413
      %v430 = vpack.c.bf16 %v424, %v421
      %v435 = vunpack.c.l.b16 %v427
      %v436 = vunpack.c.h.b16 %v427
      %v437 = vunpack.c.l.b16 %v428
      %v438 = vunpack.c.h.b16 %v428
      %v439 = vunpack.c.l.b16 %v429
      %v440 = vunpack.c.h.b16 %v429
      %v441 = vunpack.c.l.b16 %v430
      %v442 = vunpack.c.h.b16 %v430
      %v443 = vpack.c.b16 %v435, %v435
      %v444 = vpack.c.b16 %v436, %v436
      %v445 = vpack.c.b16 %v437, %v437
      %v446 = vpack.c.b16 %v438, %v438
      %v447 = vpack.c.b16 %v439, %v439
      %v448 = vpack.c.b16 %v440, %v440
      %v449 = vpack.c.b16 %v441, %v441
      %v450 = vpack.c.b16 %v442, %v442
      %459 = vst [vmem:[%s233] sm:$0xf] %v443
      %460 = vst [vmem:[%s233 + $0x4] sm:$0xf] %v444
      %461 = vst [vmem:[%s233 + $0x8] sm:$0xf] %v445
      %462 = vst [vmem:[%s233 + $0xc] sm:$0xf] %v446
      %463 = vst [vmem:[%s233 + $0x10] sm:$0xf] %v447
      %464 = vst [vmem:[%s233 + $0x14] sm:$0xf] %v448
      %465 = vst [vmem:[%s233 + $0x18] sm:$0xf] %v449
      %466 = vst [vmem:[%s233 + $0x1c] sm:$0xf] %v450
      %v467 = vadd.f32 %v397, %v400
      %v468 = vadd.f32 %v467, %v405
      %v469 = vadd.f32 %v468, %v408
      %v470 = vadd.f32 %v469, %v413
      %v471 = vadd.f32 %v470, %v416
      %v472 = vadd.f32 %v471, %v421
      %v473 = vadd.f32 %v472, %v424
      %v474 = vrot.slane %v473, 4
      %v475 = vadd.f32 %v473, %v474
      %v476 = vrot.slane %v475, 2
      %v477 = vadd.f32 %v475, %v476
      %v478 = vrot.slane %v477, 1
      %v479 = vadd.f32 %v477, %v478
      %480 = vst [vmem:[%s238] sm:$0x1] %v479
      %v481 = vmul.f32 %v397, %v397
      %v482 = vmul.f32 %v400, %v400
      %v483 = vmul.f32 %v405, %v405
      %v484 = vmul.f32 %v408, %v408
      %v485 = vmul.f32 %v413, %v413
      %v486 = vmul.f32 %v416, %v416
      %v487 = vmul.f32 %v421, %v421
      %v488 = vmul.f32 %v424, %v424
      %v489 = vadd.f32 %v481, %v482
      %v490 = vadd.f32 %v489, %v483
      %v491 = vadd.f32 %v490, %v484
      %v492 = vadd.f32 %v491, %v485
      %v493 = vadd.f32 %v492, %v486
      %v494 = vadd.f32 %v493, %v487
      %v495 = vadd.f32 %v494, %v488
      %v496 = vrot.slane %v495, 4
      %v497 = vadd.f32 %v495, %v496
      %v498 = vrot.slane %v497, 2
      %v499 = vadd.f32 %v497, %v498
      %v500 = vrot.slane %v499, 1
      %v501 = vadd.f32 %v499, %v500
      %502 = vst [vmem:[%s238 + $0x1] sm:$0x1] %v501
      %s503 = smul.u32 8, %s17
      %p504 = scmp.lt.s32.totalorder %s503, 63
      %s505 = scalar_select %p504, %s503, 63
      %s506 = smul.addr %s505, 4
      %s507 = scalar_lea.vmem %s4, %s506
      %p508 = scmp.lt.s32.totalorder %s17, 7
      %s509 = scalar_select %p508, %s17, 7
      %s510 = smul.addr %s509, 2
      %s511 = scalar_lea.vmem %s5, %s510
      // Predicated region
      $region37: #{bottleneck_forward.6} parent=35 // pred_check
        %p512 = pneg %p124
      $region38: #{bottleneck_forward.6} parent=35 // pred_check_branch
        %514 = sbr.rel (%p512) target = $region40
      $region39: #{bottleneck_forward.6} parent=35 // pred_region
        %s515 = smul.u32 8, %s17
      $region40: #{bottleneck_forward.6} parent=35 // pred_fallthru
        _
      // Predicated region
      $region41: #{bottleneck_forward.6} parent=35 // pred_check
        %p516 = pneg %p150
      $region42: #{bottleneck_forward.6} parent=35 // pred_check_branch
        %518 = sbr.rel (%p516) target = $region44
      $region43: #{bottleneck_forward.6} parent=35 // pred_region
        _
      $region44: #{bottleneck_forward.6} parent=35 // pred_fallthru
        _
    $region36: #{bottleneck_forward.6} parent=5 // pred_fallthru
      _
    %p519 = scmp.le.s32.totalorder 2, %s12
    // Predicated region
    $region45: #{bottleneck_forward.6} parent=5 // pred_check
      %p520 = pneg %p519
    $region46: #{bottleneck_forward.6} parent=5 // pred_check_branch
      %522 = sbr.rel (%p520) target = $region48
    $region47: #{bottleneck_forward.6} parent=5 // pred_region
      %s523 = ssub.s32 %s12, 2
      // Predicated region
      $region49: #{bottleneck_forward.6} parent=47 // pred_check
        %p524 = pneg %p130
      $region50: #{bottleneck_forward.6} parent=47 // pred_check_branch
        %526 = sbr.rel (%p524) target = $region52
      $region51: #{bottleneck_forward.6} parent=47 // pred_region
        %s527 = smul.u32 8, %s18
        %p528 = scmp.lt.s32.totalorder %s527, 63
        %s529 = scalar_select %p528, %s527, 63
        %s530 = smul.addr %s529, 4
        %s531 = scalar_lea.vmem %s4, %s530
      $region52: #{bottleneck_forward.6} parent=47 // pred_fallthru
        _
      // Predicated region
      $region53: #{bottleneck_forward.6} parent=47 // pred_check
        %p532 = pneg %p156
      $region54: #{bottleneck_forward.6} parent=47 // pred_check_branch
        %534 = sbr.rel (%p532) target = $region56
      $region55: #{bottleneck_forward.6} parent=47 // pred_region
        %p535 = scmp.lt.s32.totalorder %s18, 7
        %s536 = scalar_select %p535, %s18, 7
        %s537 = smul.addr %s536, 2
        %s538 = scalar_lea.vmem %s5, %s537
      $region56: #{bottleneck_forward.6} parent=47 // pred_fallthru
        _
    $region48: #{bottleneck_forward.6} parent=5 // pred_fallthru
      _
  $region6: #{bottleneck_forward.6} parent=0 // loop_footer
    %s16 = sadd.s32 1, %s12
  $region7: #{bottleneck_forward.6} parent=0 // loop_footer_branch
    %11 = sbr.rel target = $region3
  $region8: #{bottleneck_forward.6} parent=0 // loop_exit
    _

// kernel: bottleneck_forward.7
$region0: #{bottleneck_forward.7}
  #allocation0 [shape = 'u32[]', space=smem, size = 0x4, offset = 0x4, fixed_abs, tag = 'smem constant byte address 0x4 - core index']
  #allocation1 [shape = 'u32[144,128]{1,0:T(1,128)}', space=vmem, size = 0x12000, scoped, tag = 'internal scratch']
  %s0 = inlined_call_operand.vmem [shape: bf16[512,128], index: 0, kind: input, shape index: {}]
  %s1 = inlined_call_operand.vmem [shape: f32[1,128], index: 1, kind: input, shape index: {}]
  %s2 = inlined_call_operand.vmem [shape: f32[1,128], index: 2, kind: input, shape index: {}]
  %s3 = inlined_call_operand.vmem [shape: f32[512,128], index: 3, kind: input, shape index: {}]
  %s4 = inlined_call_operand.hbm [shape: f32[512,128], index: 4, kind: output, shape index: {}]
  %s5 = sld [smem:[#allocation0]]
  $region49: #{bottleneck_forward.7} parent=0
    _
  %s7 = ssub.s32 1, %s5
  %s8 = scalar_select 0, %s7, %s5
  $region1: #{bottleneck_forward.7} parent=0
    #allocation2 [shape = 'u8[65536]{0}', space=vmem, size = 0x10000, scoped, tag = 'output window, operand 0']
    #allocation3 [shape = 's32[2]{0}', space=sflag, size = 0x8, scoped, tag = 'scoped memory for bottleneck_forward.7']
    %9 = vsyncpa [#allocation3], 0
    %s10 = scalar_lea.sflag [#allocation3], 1
    %11 = vsyncpa %s10, 0
    loop: start=0, step=1, limit=10
    $region2: #{bottleneck_forward.7} parent=1 // loop_pre_header
      _
    $region3: #{bottleneck_forward.7} parent=1 // loop_header
      %s13 = sphi 0, %s17
      %p14 = scmp.ge.s32.totalorder %s13, 10
      %s23 = sphi 0, %s25
      %s26 = sphi 0, %s23
      %s27 = sphi 0, %s26
      %s43 = sphi 0, %s27
      %s47 = sphi 0, %s47
      %s49 = sphi 0, %s47
      %s50 = sphi 0, %s49
      %s64 = sphi 0, %s50
      %s68 = sphi 0, %s68
      %s70 = sphi 0, %s68
      %s71 = sphi 0, %s70
      %s85 = sphi 0, %s71
      %s91 = sphi 0, %s93
      %s94 = sphi 0, %s91
      %s95 = sphi 0, %s94
      %s111 = sphi 0, %s95
      %s117 = sphi 0, %s119
      %s120 = sphi 0, %s117
      %s121 = sphi 0, %s120
      %s137 = sphi 0, %s121
    $region4: #{bottleneck_forward.7} parent=1 // loop_header_branch
      %16 = sbr.rel (%p14) target = $region8
    $region5: #{bottleneck_forward.7} parent=1 // loop_body
      %s18 = ssub.s32 %s13, 1
      %s19 = ssub.s32 %s13, 2
      %s20 = sadd.s32 %s13, 1
      %s21 = ssub.s32 %s13, %s20
      %p22 = scmp.eq.s32.totalorder %s21, 0
      %s24 = sadd.s32 %s23, 1
      %s25 = scalar_select %p22, %s23, %s24
      %p28 = pneg %p22
      %p29 = scmp.eq.s32.totalorder %s13, 7
      %p30 = por %p28, %p29
      %p31 = scmp.ne.s32.totalorder %s23, %s26
      %p32 = scmp.eq.s32.totalorder %s13, 0
      %p33 = por %p31, %p32
      %p34 = scmp.ne.s32.totalorder %s23, %s26
      %p35 = scmp.eq.s32.totalorder %s18, 7
      %p36 = por %p34, %p35
      %p37 = scmp.ne.s32.totalorder %s26, %s27
      %p38 = scmp.eq.s32.totalorder %s18, 0
      %p39 = por %p37, %p38
      %p40 = scmp.ne.s32.totalorder %s26, %s27
      %p41 = scmp.eq.s32.totalorder %s19, 7
      %p42 = por %p40, %p41
      %p44 = scmp.ne.s32.totalorder %s27, %s43
      %p45 = scmp.eq.s32.totalorder %s19, 0
      %p46 = por %p44, %p45
      %s48 = sadd.s32 %s47, 1
      %p51 = scmp.eq.s32.totalorder %s13, 7
      %p52 = scmp.ne.s32.totalorder %s47, %s49
      %p53 = scmp.eq.s32.totalorder %s13, 0
      %p54 = por %p52, %p53
      %p55 = scmp.ne.s32.totalorder %s47, %s49
      %p56 = scmp.eq.s32.totalorder %s18, 7
      %p57 = por %p55, %p56
      %p58 = scmp.ne.s32.totalorder %s49, %s50
      %p59 = scmp.eq.s32.totalorder %s18, 0
      %p60 = por %p58, %p59
      %p61 = scmp.ne.s32.totalorder %s49, %s50
      %p62 = scmp.eq.s32.totalorder %s19, 7
      %p63 = por %p61, %p62
      %p65 = scmp.ne.s32.totalorder %s50, %s64
      %p66 = scmp.eq.s32.totalorder %s19, 0
      %p67 = por %p65, %p66
      %s69 = sadd.s32 %s68, 1
      %p72 = scmp.eq.s32.totalorder %s13, 7
      %p73 = scmp.ne.s32.totalorder %s68, %s70
      %p74 = scmp.eq.s32.totalorder %s13, 0
      %p75 = por %p73, %p74
      %p76 = scmp.ne.s32.totalorder %s68, %s70
      %p77 = scmp.eq.s32.totalorder %s18, 7
      %p78 = por %p76, %p77
      %p79 = scmp.ne.s32.totalorder %s70, %s71
      %p80 = scmp.eq.s32.totalorder %s18, 0
      %p81 = por %p79, %p80
      %p82 = scmp.ne.s32.totalorder %s70, %s71
      %p83 = scmp.eq.s32.totalorder %s19, 7
      %p84 = por %p82, %p83
      %p86 = scmp.ne.s32.totalorder %s71, %s85
      %p87 = scmp.eq.s32.totalorder %s19, 0
      %p88 = por %p86, %p87
      %s89 = ssub.s32 %s13, %s20
      %p90 = scmp.eq.s32.totalorder %s89, 0
      %s92 = sadd.s32 %s91, 1
      %s93 = scalar_select %p90, %s91, %s92
      %p96 = pneg %p90
      %p97 = scmp.eq.s32.totalorder %s13, 7
      %p98 = por %p96, %p97
      %p99 = scmp.ne.s32.totalorder %s91, %s94
      %p100 = scmp.eq.s32.totalorder %s13, 0
      %p101 = por %p99, %p100
      %p102 = scmp.ne.s32.totalorder %s91, %s94
      %p103 = scmp.eq.s32.totalorder %s18, 7
      %p104 = por %p102, %p103
      %p105 = scmp.ne.s32.totalorder %s94, %s95
      %p106 = scmp.eq.s32.totalorder %s18, 0
      %p107 = por %p105, %p106
      %p108 = scmp.ne.s32.totalorder %s94, %s95
      %p109 = scmp.eq.s32.totalorder %s19, 7
      %p110 = por %p108, %p109
      %p112 = scmp.ne.s32.totalorder %s95, %s111
      %p113 = scmp.eq.s32.totalorder %s19, 0
      %p114 = por %p112, %p113
      %s115 = ssub.s32 %s13, %s20
      %p116 = scmp.eq.s32.totalorder %s115, 0
      %s118 = sadd.s32 %s117, 1
      %s119 = scalar_select %p116, %s117, %s118
      %p122 = pneg %p116
      %p123 = scmp.eq.s32.totalorder %s13, 7
      %p124 = por %p122, %p123
      %p125 = scmp.ne.s32.totalorder %s117, %s120
      %p126 = scmp.eq.s32.totalorder %s13, 0
      %p127 = por %p125, %p126
      %p128 = scmp.ne.s32.totalorder %s117, %s120
      %p129 = scmp.eq.s32.totalorder %s18, 7
      %p130 = por %p128, %p129
      %p131 = scmp.ne.s32.totalorder %s120, %s121
      %p132 = scmp.eq.s32.totalorder %s18, 0
      %p133 = por %p131, %p132
      %p134 = scmp.ne.s32.totalorder %s120, %s121
      %p135 = scmp.eq.s32.totalorder %s19, 7
      %p136 = por %p134, %p135
      %p138 = scmp.ne.s32.totalorder %s121, %s137
      %p139 = scmp.eq.s32.totalorder %s19, 0
      %p140 = por %p138, %p139
      %p141 = scmp.le.s32.totalorder 1, %s13
      %p142 = scmp.lt.s32.totalorder %s13, 9
      %p143 = pnand %p141, %p142
      %p144 = pneg %p143
      // Predicated region
      $region9: #{bottleneck_forward.7} parent=5 // pred_check
        _
      $region10: #{bottleneck_forward.7} parent=5 // pred_check_branch
        %146 = sbr.rel (%p143) target = $region12
      $region11: #{bottleneck_forward.7} parent=5 // pred_region
        %s147 = ssub.s32 %s13, 1
        // Predicated region
        $region13: #{bottleneck_forward.7} parent=11 // pred_check
          %p148 = pneg %p60
        $region14: #{bottleneck_forward.7} parent=11 // pred_check_branch
          %150 = sbr.rel (%p148) target = $region16
        $region15: #{bottleneck_forward.7} parent=11 // pred_region
          _
        $region16: #{bottleneck_forward.7} parent=11 // pred_fallthru
          _
        // Predicated region
        $region17: #{bottleneck_forward.7} parent=11 // pred_check
          %p151 = pneg %p81
        $region18: #{bottleneck_forward.7} parent=11 // pred_check_branch
          %153 = sbr.rel (%p151) target = $region20
        $region19: #{bottleneck_forward.7} parent=11 // pred_region
          _
        $region20: #{bottleneck_forward.7} parent=11 // pred_fallthru
          _
      $region12: #{bottleneck_forward.7} parent=5 // pred_fallthru
        _
      %p154 = scmp.lt.s32.totalorder %s13, 8
      // Predicated region
      $region21: #{bottleneck_forward.7} parent=5 // pred_check
        %p155 = pneg %p154
      $region22: #{bottleneck_forward.7} parent=5 // pred_check_branch
        %157 = sbr.rel (%p155) target = $region24
      $region23: #{bottleneck_forward.7} parent=5 // pred_region
        // Predicated region
        $region25: #{bottleneck_forward.7} parent=23 // pred_check
          %p158 = pneg %p33
        $region26: #{bottleneck_forward.7} parent=23 // pred_check_branch
          %160 = sbr.rel (%p158) target = $region28
        $region27: #{bottleneck_forward.7} parent=23 // pred_region
          %s161 = smul.u32 8, %s13
          %p162 = scmp.lt.s32.totalorder %s161, 63
          %s163 = scalar_select %p162, %s161, 63
          %s164 = smul.addr %s163, 4
          %s165 = scalar_lea.vmem %s0, %s164
          %s166 = smul.u32 8, %s13
        $region28: #{bottleneck_forward.7} parent=23 // pred_fallthru
          _
        // Predicated region
        $region29: #{bottleneck_forward.7} parent=23 // pred_check
          %p167 = pneg %p101
        $region30: #{bottleneck_forward.7} parent=23 // pred_check_branch
          %169 = sbr.rel (%p167) target = $region32
        $region31: #{bottleneck_forward.7} parent=23 // pred_region
          %s170 = smul.u32 8, %s13
          %p171 = scmp.lt.s32.totalorder %s170, 63
          %s172 = scalar_select %p171, %s170, 63
          %s173 = smul.addr %s172, 8
          %s174 = scalar_lea.vmem %s3, %s173
          %s175 = smul.u32 8, %s13
        $region32: #{bottleneck_forward.7} parent=23 // pred_fallthru
          _
      $region24: #{bottleneck_forward.7} parent=5 // pred_fallthru
        _
      %p176 = scmp.le.s32.totalorder 1, %s13
      %p177 = scmp.lt.s32.totalorder %s13, 9
      %p178 = pnand %p176, %p177
      %p179 = pneg %p178
      // Predicated region
      $region33: #{bottleneck_forward.7} parent=5 // pred_check
        _
      $region34: #{bottleneck_forward.7} parent=5 // pred_check_branch
        %181 = sbr.rel (%p178) target = $region36
      $region35: #{bottleneck_forward.7} parent=5 // pred_region
        %s182 = ssub.s32 %s13, 1
        %s183 = smul.u32 8, %s18
        %p184 = scmp.lt.s32.totalorder %s183, 63
        %s185 = scalar_select %p184, %s183, 63
        %s186 = smul.addr %s185, 4
        %s187 = scalar_lea.vmem %s0, %s186
        %p188 = pneg %p39
        %p189 = pneg %p36
        %p190 = pneg %p60
        %p191 = pneg %p57
        %p192 = pneg %p81
        %p193 = pneg %p78
        %s194 = smul.u32 8, %s18
        %p195 = scmp.lt.s32.totalorder %s194, 63
        %s196 = scalar_select %p195, %s194, 63
        %s197 = smul.addr %s196, 8
        %s198 = scalar_lea.vmem %s3, %s197
        %p199 = pneg %p107
        %p200 = pneg %p104
        %p201 = pneg %p133
        %p202 = pneg %p130
        %s203 = sand.u32 %s120, 1
        %s204 = scalar_lea.sflag [#allocation3], %s203
        %s205 = sand.u32 %s120, 1
        %s206 = smul.addr %s205, 64
        %s207 = scalar_lea.vmem [#allocation2], %s206
        %s208 = smul.u32 8, %s18
        %p209 = scmp.lt.s32.totalorder %s208, 63
        %s210 = scalar_select %p209, %s208, 63
        %s211 = smul.addr %s210, 4
        %s212 = scalar_lea.vmem %s0, %s211
        %s213 = smul.u32 8, %s18
        %s214 = smul.u32 8, %s18
        %p215 = scmp.lt.s32.totalorder %s214, 63
        %s216 = scalar_select %p215, %s214, 63
        %s217 = smul.addr %s216, 8
        %s218 = scalar_lea.vmem %s3, %s217
        %s219 = smul.u32 8, %s18
        %s220 = smul.u32 8, %s18
        %v221 = vld [vmem:[%s212] sm:$0xf]
        %v222 = vld [vmem:[%s212 + $0x4] sm:$0xf]
        %v223 = vld [vmem:[%s212 + $0x8] sm:$0xf]
        %v224 = vld [vmem:[%s212 + $0xc] sm:$0xf]
        %v225 = vld [vmem:[%s212 + $0x10] sm:$0xf]
        %v226 = vld [vmem:[%s212 + $0x14] sm:$0xf]
        %v227 = vld [vmem:[%s212 + $0x18] sm:$0xf]
        %v228 = vld [vmem:[%s212 + $0x1c] sm:$0xf]
        %v229 = vunpack.c.l.bf16 %v221
        %v230 = vunpack.c.l.bf16 %v222
        %v231 = vunpack.c.l.bf16 %v223
        %v232 = vunpack.c.l.bf16 %v224
        %v233 = vunpack.c.l.bf16 %v225
        %v234 = vunpack.c.l.bf16 %v226
        %v235 = vunpack.c.l.bf16 %v227
        %v236 = vunpack.c.l.bf16 %v228
        %v237 = vld [vmem:[%s1] sm:$0x1]
        %v239 = vlaneseq
        %v240 = vshrl.u32 %v239, 7
        %v241 = vsub.s32 0, %v240
        %v242 = vrot.slane %v237, %v241
        %v244 = vmul.f32 %v229, %v242
        %v245 = vmul.f32 %v230, %v242
        %v246 = vmul.f32 %v231, %v242
        %v247 = vmul.f32 %v232, %v242
        %v248 = vmul.f32 %v233, %v242
        %v249 = vmul.f32 %v234, %v242
        %v250 = vmul.f32 %v235, %v242
        %v251 = vmul.f32 %v236, %v242
        %v252 = vld [vmem:[%s2] sm:$0x1]
        %v254 = vlaneseq
        %v255 = vshrl.u32 %v254, 7
        %v256 = vsub.s32 0, %v255
        %v257 = vrot.slane %v252, %v256
        %v259 = vadd.f32 %v244, %v257
        %v260 = vadd.f32 %v245, %v257
        %v261 = vadd.f32 %v246, %v257
        %v262 = vadd.f32 %v247, %v257
        %v263 = vadd.f32 %v248, %v257
        %v264 = vadd.f32 %v249, %v257
        %v265 = vadd.f32 %v250, %v257
        %v266 = vadd.f32 %v251, %v257
        %v267 = vld [vmem:[%s218] sm:$0xff]
        %v268 = vld [vmem:[%s218 + $0x8] sm:$0xff]
        %v269 = vld [vmem:[%s218 + $0x10] sm:$0xff]
        %v270 = vld [vmem:[%s218 + $0x18] sm:$0xff]
        %v271 = vld [vmem:[%s218 + $0x20] sm:$0xff]
        %v272 = vld [vmem:[%s218 + $0x28] sm:$0xff]
        %v273 = vld [vmem:[%s218 + $0x30] sm:$0xff]
        %v274 = vld [vmem:[%s218 + $0x38] sm:$0xff]
        %v275 = vadd.f32 %v259, %v267
        %v276 = vadd.f32 %v260, %v268
        %v277 = vadd.f32 %v261, %v269
        %v278 = vadd.f32 %v262, %v270
        %v279 = vadd.f32 %v263, %v271
        %v280 = vadd.f32 %v264, %v272
        %v281 = vadd.f32 %v265, %v273
        %v282 = vadd.f32 %v266, %v274
        %v283 = vmax.f32 %v275, 0.0
        %v284 = vmax.f32 %v276, 0.0
        %v285 = vmax.f32 %v277, 0.0
        %v286 = vmax.f32 %v278, 0.0
        %v287 = vmax.f32 %v279, 0.0
        %v288 = vmax.f32 %v280, 0.0
        %v289 = vmax.f32 %v281, 0.0
        %v290 = vmax.f32 %v282, 0.0
        %291 = vst [vmem:[%s207] sm:$0xff] %v283
        %292 = vst [vmem:[%s207 + $0x8] sm:$0xff] %v284
        %293 = vst [vmem:[%s207 + $0x10] sm:$0xff] %v285
        %294 = vst [vmem:[%s207 + $0x18] sm:$0xff] %v286
        %295 = vst [vmem:[%s207 + $0x20] sm:$0xff] %v287
        %296 = vst [vmem:[%s207 + $0x28] sm:$0xff] %v288
        %297 = vst [vmem:[%s207 + $0x30] sm:$0xff] %v289
        %298 = vst [vmem:[%s207 + $0x38] sm:$0xff] %v290
        %s299 = sand.u32 %s120, 1
        %s300 = scalar_lea.sflag [#allocation3], %s299
        %s301 = sand.u32 %s120, 1
        %s302 = smul.addr %s301, 64
        %s303 = scalar_lea.vmem [#allocation2], %s302
        // Predicated region
        $region37: #{bottleneck_forward.7} parent=35 // pred_check
          %p304 = pneg %p130
        $region38: #{bottleneck_forward.7} parent=35 // pred_check_branch
          %306 = sbr.rel (%p304) target = $region40
        $region39: #{bottleneck_forward.7} parent=35 // pred_region
          %s307 = smul.u32 8, %s18
          %s309 = ssub.s32 1024, 1024
          %310 = vsyncadd %s300, %s309
          %s311 = smul.addr %s307, 128
          %s312 = scalar_lea.hbm %s4, %s311
          %s313 = sshll.u32 %s303, 4
          %s314 = int_to_ptr.vmem [resolvable:$true] %s313
          %319 = dma.vmem_to_hbm [thread:$0]  %s314, 1024, %s312, %s300, 128, 128, 8
        $region40: #{bottleneck_forward.7} parent=35 // pred_fallthru
          _
      $region36: #{bottleneck_forward.7} parent=5 // pred_fallthru
        _
      %p320 = scmp.le.s32.totalorder 2, %s13
      // Predicated region
      $region41: #{bottleneck_forward.7} parent=5 // pred_check
        %p321 = pneg %p320
      $region42: #{bottleneck_forward.7} parent=5 // pred_check_branch
        %323 = sbr.rel (%p321) target = $region44
      $region43: #{bottleneck_forward.7} parent=5 // pred_region
        %s324 = ssub.s32 %s13, 2
        // Predicated region
        $region45: #{bottleneck_forward.7} parent=43 // pred_check
          %p325 = pneg %p136
        $region46: #{bottleneck_forward.7} parent=43 // pred_check_branch
          %327 = sbr.rel (%p325) target = $region48
        $region47: #{bottleneck_forward.7} parent=43 // pred_region
          %s328 = sand.u32 %s121, 1
          %s329 = scalar_lea.sflag [#allocation3], %s328
          %s330 = sand.u32 %s121, 1
          %s331 = smul.addr %s330, 64
          %s332 = scalar_lea.vmem [#allocation2], %s331
          %333 = dma.done %s329, 1024
        $region48: #{bottleneck_forward.7} parent=43 // pred_fallthru
          _
      $region44: #{bottleneck_forward.7} parent=5 // pred_fallthru
        _
    $region6: #{bottleneck_forward.7} parent=1 // loop_footer
      %s17 = sadd.s32 1, %s13
    $region7: #{bottleneck_forward.7} parent=1 // loop_footer_branch
      %12 = sbr.rel target = $region3
    $region8: #{bottleneck_forward.7} parent=1 // loop_exit
      _
    %334 = vsyncpa [#allocation3], 1
    %s335 = scalar_lea.sflag [#allocation3], 1
    %336 = vsyncpa %s335, 1

// kernel: bottleneck_forward.5
$region0: #{bottleneck_forward.5}
  #allocation0 [shape = 'u32[]', space=smem, size = 0x4, offset = 0x4, fixed_abs, tag = 'smem constant byte address 0x4 - core index']
  #allocation1 [shape = 'u32[144,128]{1,0:T(1,128)}', space=vmem, size = 0x12000, scoped, tag = 'internal scratch']
  #allocation2 [shape = 'bf16[324,384]{1,0:T(8,128)(2,1)}', space=vmem, size = 0x3d800, scoped, tag = 'scratch operand']
  %s0 = inlined_call_operand.vmem [shape: bf16[2,256,128], index: 0, kind: input, shape index: {}]
  %s1 = inlined_call_operand.vmem [shape: f32[1,128], index: 1, kind: input, shape index: {}]
  %s2 = inlined_call_operand.vmem [shape: f32[1,128], index: 2, kind: input, shape index: {}]
  %s3 = inlined_call_operand.vmem [shape: bf16[3,384,128], index: 3, kind: input, shape index: {}]
  %s4 = inlined_call_operand.vmem [shape: bf16[2,256,128], index: 4, kind: output, shape index: {0}]
  %s5 = inlined_call_operand.vmem [shape: f32[2,2,128], index: 5, kind: output, shape index: {1}]
  %6 = xla_tuple %s4, %s5
  %s7 = sld [smem:[#allocation0]]
  $region57: #{bottleneck_forward.5} parent=0
    _
  %s9 = ssub.s32 1, %s7
  %s10 = scalar_select 0, %s9, %s7
  loop: start=0, step=1, limit=4
  $region2: #{bottleneck_forward.5} parent=0 // loop_pre_header
    _
  $region3: #{bottleneck_forward.5} parent=0 // loop_header
    %s12 = sphi 0, %s16
    %p13 = scmp.ge.s32.totalorder %s12, 4
    %s22 = sphi 0, %s24
    %s25 = sphi 0, %s22
    %s26 = sphi 0, %s25
    %s42 = sphi 0, %s26
    %s46 = sphi 0, %s46
    %s48 = sphi 0, %s46
    %s49 = sphi 0, %s48
    %s63 = sphi 0, %s49
    %s67 = sphi 0, %s67
    %s69 = sphi 0, %s67
    %s70 = sphi 0, %s69
    %s84 = sphi 0, %s70
    %s88 = sphi 0, %s88
    %s90 = sphi 0, %s88
    %s91 = sphi 0, %s90
    %s105 = sphi 0, %s91
    %s111 = sphi 0, %s113
    %s114 = sphi 0, %s111
    %s115 = sphi 0, %s114
    %s131 = sphi 0, %s115
    %s137 = sphi 0, %s139
    %s140 = sphi 0, %s137
    %s141 = sphi 0, %s140
    %s157 = sphi 0, %s141
  $region4: #{bottleneck_forward.5} parent=0 // loop_header_branch
    %15 = sbr.rel (%p13) target = $region8
  $region5: #{bottleneck_forward.5} parent=0 // loop_body
    %s17 = ssub.s32 %s12, 1
    %s18 = ssub.s32 %s12, 2
    %s19 = sadd.s32 %s12, 1
    %s20 = ssub.s32 %s12, %s19
    %p21 = scmp.eq.s32.totalorder %s20, 0
    %s23 = sadd.s32 %s22, 1
    %s24 = scalar_select %p21, %s22, %s23
    %p27 = pneg %p21
    %p28 = scmp.eq.s32.totalorder %s12, 1
    %p29 = por %p27, %p28
    %p30 = scmp.ne.s32.totalorder %s22, %s25
    %p31 = scmp.eq.s32.totalorder %s12, 0
    %p32 = por %p30, %p31
    %p33 = scmp.ne.s32.totalorder %s22, %s25
    %p34 = scmp.eq.s32.totalorder %s17, 1
    %p35 = por %p33, %p34
    %p36 = scmp.ne.s32.totalorder %s25, %s26
    %p37 = scmp.eq.s32.totalorder %s17, 0
    %p38 = por %p36, %p37
    %p39 = scmp.ne.s32.totalorder %s25, %s26
    %p40 = scmp.eq.s32.totalorder %s18, 1
    %p41 = por %p39, %p40
    %p43 = scmp.ne.s32.totalorder %s26, %s42
    %p44 = scmp.eq.s32.totalorder %s18, 0
    %p45 = por %p43, %p44
    %s47 = sadd.s32 %s46, 1
    %p50 = scmp.eq.s32.totalorder %s12, 1
    %p51 = scmp.ne.s32.totalorder %s46, %s48
    %p52 = scmp.eq.s32.totalorder %s12, 0
    %p53 = por %p51, %p52
    %p54 = scmp.ne.s32.totalorder %s46, %s48
    %p55 = scmp.eq.s32.totalorder %s17, 1
    %p56 = por %p54, %p55
    %p57 = scmp.ne.s32.totalorder %s48, %s49
    %p58 = scmp.eq.s32.totalorder %s17, 0
    %p59 = por %p57, %p58
    %p60 = scmp.ne.s32.totalorder %s48, %s49
    %p61 = scmp.eq.s32.totalorder %s18, 1
    %p62 = por %p60, %p61
    %p64 = scmp.ne.s32.totalorder %s49, %s63
    %p65 = scmp.eq.s32.totalorder %s18, 0
    %p66 = por %p64, %p65
    %s68 = sadd.s32 %s67, 1
    %p71 = scmp.eq.s32.totalorder %s12, 1
    %p72 = scmp.ne.s32.totalorder %s67, %s69
    %p73 = scmp.eq.s32.totalorder %s12, 0
    %p74 = por %p72, %p73
    %p75 = scmp.ne.s32.totalorder %s67, %s69
    %p76 = scmp.eq.s32.totalorder %s17, 1
    %p77 = por %p75, %p76
    %p78 = scmp.ne.s32.totalorder %s69, %s70
    %p79 = scmp.eq.s32.totalorder %s17, 0
    %p80 = por %p78, %p79
    %p81 = scmp.ne.s32.totalorder %s69, %s70
    %p82 = scmp.eq.s32.totalorder %s18, 1
    %p83 = por %p81, %p82
    %p85 = scmp.ne.s32.totalorder %s70, %s84
    %p86 = scmp.eq.s32.totalorder %s18, 0
    %p87 = por %p85, %p86
    %s89 = sadd.s32 %s88, 1
    %p92 = scmp.eq.s32.totalorder %s12, 1
    %p93 = scmp.ne.s32.totalorder %s88, %s90
    %p94 = scmp.eq.s32.totalorder %s12, 0
    %p95 = por %p93, %p94
    %p96 = scmp.ne.s32.totalorder %s88, %s90
    %p97 = scmp.eq.s32.totalorder %s17, 1
    %p98 = por %p96, %p97
    %p99 = scmp.ne.s32.totalorder %s90, %s91
    %p100 = scmp.eq.s32.totalorder %s17, 0
    %p101 = por %p99, %p100
    %p102 = scmp.ne.s32.totalorder %s90, %s91
    %p103 = scmp.eq.s32.totalorder %s18, 1
    %p104 = por %p102, %p103
    %p106 = scmp.ne.s32.totalorder %s91, %s105
    %p107 = scmp.eq.s32.totalorder %s18, 0
    %p108 = por %p106, %p107
    %s109 = ssub.s32 %s12, %s19
    %p110 = scmp.eq.s32.totalorder %s109, 0
    %s112 = sadd.s32 %s111, 1
    %s113 = scalar_select %p110, %s111, %s112
    %p116 = pneg %p110
    %p117 = scmp.eq.s32.totalorder %s12, 1
    %p118 = por %p116, %p117
    %p119 = scmp.ne.s32.totalorder %s111, %s114
    %p120 = scmp.eq.s32.totalorder %s12, 0
    %p121 = por %p119, %p120
    %p122 = scmp.ne.s32.totalorder %s111, %s114
    %p123 = scmp.eq.s32.totalorder %s17, 1
    %p124 = por %p122, %p123
    %p125 = scmp.ne.s32.totalorder %s114, %s115
    %p126 = scmp.eq.s32.totalorder %s17, 0
    %p127 = por %p125, %p126
    %p128 = scmp.ne.s32.totalorder %s114, %s115
    %p129 = scmp.eq.s32.totalorder %s18, 1
    %p130 = por %p128, %p129
    %p132 = scmp.ne.s32.totalorder %s115, %s131
    %p133 = scmp.eq.s32.totalorder %s18, 0
    %p134 = por %p132, %p133
    %s135 = ssub.s32 %s12, %s19
    %p136 = scmp.eq.s32.totalorder %s135, 0
    %s138 = sadd.s32 %s137, 1
    %s139 = scalar_select %p136, %s137, %s138
    %p142 = pneg %p136
    %p143 = scmp.eq.s32.totalorder %s12, 1
    %p144 = por %p142, %p143
    %p145 = scmp.ne.s32.totalorder %s137, %s140
    %p146 = scmp.eq.s32.totalorder %s12, 0
    %p147 = por %p145, %p146
    %p148 = scmp.ne.s32.totalorder %s137, %s140
    %p149 = scmp.eq.s32.totalorder %s17, 1
    %p150 = por %p148, %p149
    %p151 = scmp.ne.s32.totalorder %s140, %s141
    %p152 = scmp.eq.s32.totalorder %s17, 0
    %p153 = por %p151, %p152
    %p154 = scmp.ne.s32.totalorder %s140, %s141
    %p155 = scmp.eq.s32.totalorder %s18, 1
    %p156 = por %p154, %p155
    %p158 = scmp.ne.s32.totalorder %s141, %s157
    %p159 = scmp.eq.s32.totalorder %s18, 0
    %p160 = por %p158, %p159
    %p161 = scmp.le.s32.totalorder 1, %s12
    %p162 = scmp.lt.s32.totalorder %s12, 3
    %p163 = pnand %p161, %p162
    %p164 = pneg %p163
    // Predicated region
    $region9: #{bottleneck_forward.5} parent=5 // pred_check
      _
    $region10: #{bottleneck_forward.5} parent=5 // pred_check_branch
      %166 = sbr.rel (%p163) target = $region12
    $region11: #{bottleneck_forward.5} parent=5 // pred_region
      %s167 = ssub.s32 %s12, 1
      // Predicated region
      $region13: #{bottleneck_forward.5} parent=11 // pred_check
        %p168 = pneg %p59
      $region14: #{bottleneck_forward.5} parent=11 // pred_check_branch
        %170 = sbr.rel (%p168) target = $region16
      $region15: #{bottleneck_forward.5} parent=11 // pred_region
        _
      $region16: #{bottleneck_forward.5} parent=11 // pred_fallthru
        _
      // Predicated region
      $region17: #{bottleneck_forward.5} parent=11 // pred_check
        %p171 = pneg %p80
      $region18: #{bottleneck_forward.5} parent=11 // pred_check_branch
        %173 = sbr.rel (%p171) target = $region20
      $region19: #{bottleneck_forward.5} parent=11 // pred_region
        _
      $region20: #{bottleneck_forward.5} parent=11 // pred_fallthru
        _
      // Predicated region
      $region21: #{bottleneck_forward.5} parent=11 // pred_check
        %p174 = pneg %p101
      $region22: #{bottleneck_forward.5} parent=11 // pred_check_branch
        %176 = sbr.rel (%p174) target = $region24
      $region23: #{bottleneck_forward.5} parent=11 // pred_region
        _
      $region24: #{bottleneck_forward.5} parent=11 // pred_fallthru
        _
    $region12: #{bottleneck_forward.5} parent=5 // pred_fallthru
      _
    %p177 = scmp.lt.s32.totalorder %s12, 2
    // Predicated region
    $region25: #{bottleneck_forward.5} parent=5 // pred_check
      %p178 = pneg %p177
    $region26: #{bottleneck_forward.5} parent=5 // pred_check_branch
      %180 = sbr.rel (%p178) target = $region28
    $region27: #{bottleneck_forward.5} parent=5 // pred_region
      // Predicated region
      $region29: #{bottleneck_forward.5} parent=27 // pred_check
        %p181 = pneg %p32
      $region30: #{bottleneck_forward.5} parent=27 // pred_check_branch
        %183 = sbr.rel (%p181) target = $region32
      $region31: #{bottleneck_forward.5} parent=27 // pred_region
        %p184 = scmp.lt.s32.totalorder %s12, 1
        %s185 = scalar_select %p184, %s12, 1
        %s186 = smul.addr %s185, 32
        %s187 = smul.addr %s186, 4
        %s188 = scalar_lea.vmem %s0, %s187
      $region32: #{bottleneck_forward.5} parent=27 // pred_fallthru
        _
    $region28: #{bottleneck_forward.5} parent=5 // pred_fallthru
      _
    %p189 = scmp.le.s32.totalorder 1, %s12
    %p190 = scmp.lt.s32.totalorder %s12, 3
    %p191 = pnand %p189, %p190
    %p192 = pneg %p191
    // Predicated region
    $region33: #{bottleneck_forward.5} parent=5 // pred_check
      _
    $region34: #{bottleneck_forward.5} parent=5 // pred_check_branch
      %194 = sbr.rel (%p191) target = $region36
    $region35: #{bottleneck_forward.5} parent=5 // pred_region
      %s195 = ssub.s32 %s12, 1
      %p196 = scmp.lt.s32.totalorder %s17, 1
      %s197 = scalar_select %p196, %s17, 1
      %s198 = smul.addr %s197, 32
      %s199 = smul.addr %s198, 4
      %s200 = scalar_lea.vmem %s0, %s199
      %p201 = pneg %p38
      %p202 = pneg %p35
      %p203 = pneg %p59
      %p204 = pneg %p56
      %p205 = pneg %p80
      %p206 = pneg %p77
      %p207 = pneg %p101
      %p208 = pneg %p98
      %p209 = pneg %p127
      %p210 = pneg %p124
      %p211 = scmp.lt.s32.totalorder %s17, 1
      %s212 = scalar_select %p211, %s17, 1
      %s213 = smul.addr %s212, 32
      %s214 = smul.addr %s213, 4
      %s215 = scalar_lea.vmem %s4, %s214
      %p216 = pneg %p153
      %p217 = pneg %p150
      %p218 = scmp.lt.s32.totalorder %s17, 1
      %s219 = scalar_select %p218, %s17, 1
      %s220 = smul.addr %s219, 2
      %s221 = scalar_lea.vmem %s5, %s220
      %p222 = scmp.lt.s32.totalorder %s17, 1
      %s223 = scalar_select %p222, %s17, 1
      %s224 = smul.addr %s223, 32
      %s225 = smul.addr %s224, 4
      %s226 = scalar_lea.vmem %s0, %s225
      %p227 = scmp.lt.s32.totalorder %s17, 1
      %s228 = scalar_select %p227, %s17, 1
      %s229 = smul.addr %s228, 32
      %s230 = smul.addr %s229, 4
      %s231 = scalar_lea.vmem %s4, %s230
      %p232 = scmp.lt.s32.totalorder %s17, 1
      %s233 = scalar_select %p232, %s17, 1
      %s234 = smul.addr %s233, 2
      %s235 = scalar_lea.vmem %s5, %s234
      %v237 = vld [vmem:[%s226] sm:$0xf]
      %v238 = vld [vmem:[%s226 + $0x4] sm:$0xf]
      %v239 = vld [vmem:[%s226 + $0x8] sm:$0xf]
      %v240 = vld [vmem:[%s226 + $0xc] sm:$0xf]
      %v241 = vld [vmem:[%s226 + $0x10] sm:$0xf]
      %v242 = vld [vmem:[%s226 + $0x14] sm:$0xf]
      %v243 = vld [vmem:[%s226 + $0x18] sm:$0xf]
      %v244 = vld [vmem:[%s226 + $0x1c] sm:$0xf]
      %v245 = vld [vmem:[%s226 + $0x20] sm:$0xf]
      %v246 = vld [vmem:[%s226 + $0x24] sm:$0xf]
      %v247 = vld [vmem:[%s226 + $0x28] sm:$0xf]
      %v248 = vld [vmem:[%s226 + $0x2c] sm:$0xf]
      %v249 = vld [vmem:[%s226 + $0x30] sm:$0xf]
      %v250 = vld [vmem:[%s226 + $0x34] sm:$0xf]
      %v251 = vld [vmem:[%s226 + $0x38] sm:$0xf]
      %v252 = vld [vmem:[%s226 + $0x3c] sm:$0xf]
      %v253 = vld [vmem:[%s226 + $0x40] sm:$0xf]
      %v254 = vld [vmem:[%s226 + $0x44] sm:$0xf]
      %v255 = vld [vmem:[%s226 + $0x48] sm:$0xf]
      %v256 = vld [vmem:[%s226 + $0x4c] sm:$0xf]
      %v257 = vld [vmem:[%s226 + $0x50] sm:$0xf]
      %v258 = vld [vmem:[%s226 + $0x54] sm:$0xf]
      %v259 = vld [vmem:[%s226 + $0x58] sm:$0xf]
      %v260 = vld [vmem:[%s226 + $0x5c] sm:$0xf]
      %v261 = vld [vmem:[%s226 + $0x60] sm:$0xf]
      %v262 = vld [vmem:[%s226 + $0x64] sm:$0xf]
      %v263 = vld [vmem:[%s226 + $0x68] sm:$0xf]
      %v264 = vld [vmem:[%s226 + $0x6c] sm:$0xf]
      %v265 = vld [vmem:[%s226 + $0x70] sm:$0xf]
      %v266 = vld [vmem:[%s226 + $0x74] sm:$0xf]
      %v267 = vld [vmem:[%s226 + $0x78] sm:$0xf]
      %v268 = vld [vmem:[%s226 + $0x7c] sm:$0xf]
      %v269 = vunpack.c.l.bf16 %v237
      %v270 = vunpack.c.l.bf16 %v238
      %v271 = vunpack.c.l.bf16 %v239
      %v272 = vunpack.c.l.bf16 %v240
      %v273 = vunpack.c.l.bf16 %v241
      %v274 = vunpack.c.l.bf16 %v242
      %v275 = vunpack.c.l.bf16 %v243
      %v276 = vunpack.c.l.bf16 %v244
      %v277 = vunpack.c.l.bf16 %v245
      %v278 = vunpack.c.l.bf16 %v246
      %v279 = vunpack.c.l.bf16 %v247
      %v280 = vunpack.c.l.bf16 %v248
      %v281 = vunpack.c.l.bf16 %v249
      %v282 = vunpack.c.l.bf16 %v250
      %v283 = vunpack.c.l.bf16 %v251
      %v284 = vunpack.c.l.bf16 %v252
      %v285 = vunpack.c.l.bf16 %v253
      %v286 = vunpack.c.l.bf16 %v254
      %v287 = vunpack.c.l.bf16 %v255
      %v288 = vunpack.c.l.bf16 %v256
      %v289 = vunpack.c.l.bf16 %v257
      %v290 = vunpack.c.l.bf16 %v258
      %v291 = vunpack.c.l.bf16 %v259
      %v292 = vunpack.c.l.bf16 %v260
      %v293 = vunpack.c.l.bf16 %v261
      %v294 = vunpack.c.l.bf16 %v262
      %v295 = vunpack.c.l.bf16 %v263
      %v296 = vunpack.c.l.bf16 %v264
      %v297 = vunpack.c.l.bf16 %v265
      %v298 = vunpack.c.l.bf16 %v266
      %v299 = vunpack.c.l.bf16 %v267
      %v300 = vunpack.c.l.bf16 %v268
      %v301 = vld [vmem:[%s1] sm:$0x1]
      %v303 = vlaneseq
      %v304 = vshrl.u32 %v303, 7
      %v305 = vsub.s32 0, %v304
      %v306 = vrot.slane %v301, %v305
      %v308 = vmul.f32 %v269, %v306
      %v309 = vmul.f32 %v270, %v306
      %v310 = vmul.f32 %v271, %v306
      %v311 = vmul.f32 %v272, %v306
      %v312 = vmul.f32 %v273, %v306
      %v313 = vmul.f32 %v274, %v306
      %v314 = vmul.f32 %v275, %v306
      %v315 = vmul.f32 %v276, %v306
      %v316 = vmul.f32 %v277, %v306
      %v317 = vmul.f32 %v278, %v306
      %v318 = vmul.f32 %v279, %v306
      %v319 = vmul.f32 %v280, %v306
      %v320 = vmul.f32 %v281, %v306
      %v321 = vmul.f32 %v282, %v306
      %v322 = vmul.f32 %v283, %v306
      %v323 = vmul.f32 %v284, %v306
      %v324 = vmul.f32 %v285, %v306
      %v325 = vmul.f32 %v286, %v306
      %v326 = vmul.f32 %v287, %v306
      %v327 = vmul.f32 %v288, %v306
      %v328 = vmul.f32 %v289, %v306
      %v329 = vmul.f32 %v290, %v306
      %v330 = vmul.f32 %v291, %v306
      %v331 = vmul.f32 %v292, %v306
      %v332 = vmul.f32 %v293, %v306
      %v333 = vmul.f32 %v294, %v306
      %v334 = vmul.f32 %v295, %v306
      %v335 = vmul.f32 %v296, %v306
      %v336 = vmul.f32 %v297, %v306
      %v337 = vmul.f32 %v298, %v306
      %v338 = vmul.f32 %v299, %v306
      %v339 = vmul.f32 %v300, %v306
      %v340 = vld [vmem:[%s2] sm:$0x1]
      %v342 = vlaneseq
      %v343 = vshrl.u32 %v342, 7
      %v344 = vsub.s32 0, %v343
      %v345 = vrot.slane %v340, %v344
      %v347 = vadd.f32 %v308, %v345
      %v348 = vadd.f32 %v309, %v345
      %v349 = vadd.f32 %v310, %v345
      %v350 = vadd.f32 %v311, %v345
      %v351 = vadd.f32 %v312, %v345
      %v352 = vadd.f32 %v313, %v345
      %v353 = vadd.f32 %v314, %v345
      %v354 = vadd.f32 %v315, %v345
      %v355 = vadd.f32 %v316, %v345
      %v356 = vadd.f32 %v317, %v345
      %v357 = vadd.f32 %v318, %v345
      %v358 = vadd.f32 %v319, %v345
      %v359 = vadd.f32 %v320, %v345
      %v360 = vadd.f32 %v321, %v345
      %v361 = vadd.f32 %v322, %v345
      %v362 = vadd.f32 %v323, %v345
      %v363 = vadd.f32 %v324, %v345
      %v364 = vadd.f32 %v325, %v345
      %v365 = vadd.f32 %v326, %v345
      %v366 = vadd.f32 %v327, %v345
      %v367 = vadd.f32 %v328, %v345
      %v368 = vadd.f32 %v329, %v345
      %v369 = vadd.f32 %v330, %v345
      %v370 = vadd.f32 %v331, %v345
      %v371 = vadd.f32 %v332, %v345
      %v372 = vadd.f32 %v333, %v345
      %v373 = vadd.f32 %v334, %v345
      %v374 = vadd.f32 %v335, %v345
      %v375 = vadd.f32 %v336, %v345
      %v376 = vadd.f32 %v337, %v345
      %v377 = vadd.f32 %v338, %v345
      %v378 = vadd.f32 %v339, %v345
      %v379 = vmax.f32 %v347, 0.0
      %v380 = vmax.f32 %v348, 0.0
      %v381 = vmax.f32 %v349, 0.0
      %v382 = vmax.f32 %v350, 0.0
      %v383 = vmax.f32 %v351, 0.0
      %v384 = vmax.f32 %v352, 0.0
      %v385 = vmax.f32 %v353, 0.0
      %v386 = vmax.f32 %v354, 0.0
      %v387 = vmax.f32 %v355, 0.0
      %v388 = vmax.f32 %v356, 0.0
      %v389 = vmax.f32 %v357, 0.0
      %v390 = vmax.f32 %v358, 0.0
      %v391 = vmax.f32 %v359, 0.0
      %v392 = vmax.f32 %v360, 0.0
      %v393 = vmax.f32 %v361, 0.0
      %v394 = vmax.f32 %v362, 0.0
      %v395 = vmax.f32 %v363, 0.0
      %v396 = vmax.f32 %v364, 0.0
      %v397 = vmax.f32 %v365, 0.0
      %v398 = vmax.f32 %v366, 0.0
      %v399 = vmax.f32 %v367, 0.0
      %v400 = vmax.f32 %v368, 0.0
      %v401 = vmax.f32 %v369, 0.0
      %v402 = vmax.f32 %v370, 0.0
      %v403 = vmax.f32 %v371, 0.0
      %v404 = vmax.f32 %v372, 0.0
      %v405 = vmax.f32 %v373, 0.0
      %v406 = vmax.f32 %v374, 0.0
      %v407 = vmax.f32 %v375, 0.0
      %v408 = vmax.f32 %v376, 0.0
      %v409 = vmax.f32 %v377, 0.0
      %v410 = vmax.f32 %v378, 0.0
      %v411 = vpack.c.bf16 %v380, %v379
      %v412 = vpack.c.bf16 %v382, %v381
      %v413 = vpack.c.bf16 %v384, %v383
      %v414 = vpack.c.bf16 %v386, %v385
      %v415 = vpack.c.bf16 %v388, %v387
      %v416 = vpack.c.bf16 %v390, %v389
      %v417 = vpack.c.bf16 %v392, %v391
      %v418 = vpack.c.bf16 %v394, %v393
      %v419 = vpack.c.bf16 %v396, %v395
      %v420 = vpack.c.bf16 %v398, %v397
      %v421 = vpack.c.bf16 %v400, %v399
      %v422 = vpack.c.bf16 %v402, %v401
      %v423 = vpack.c.bf16 %v404, %v403
      %v424 = vpack.c.bf16 %v406, %v405
      %v425 = vpack.c.bf16 %v408, %v407
      %v426 = vpack.c.bf16 %v410, %v409
      %427 = vst [vmem:[#allocation2] sm:$0xff] 0
      %428 = vst [vmem:[#allocation2 + $0x8] sm:$0xf] 0
      %429 = vst [vmem:[#allocation2 + $0xc] sm:$0xff] 0
      %430 = vst [vmem:[#allocation2 + $0x14] sm:$0xf] 0
      %431 = vst [vmem:[#allocation2 + $0x18] sm:$0x11] 0
      %432 = vst [vmem:[#allocation2 + $0x20] sm:$0x1] 0
      %433 = vst [vmem:[#allocation2 + $0x1c8] sm:$0xee] 0
      %434 = vst [vmem:[#allocation2 + $0x1d0] sm:$0xe] 0
      %435 = vst [vmem:[#allocation2 + $0x1d4] sm:$0xff] 0
      %436 = vst [vmem:[#allocation2 + $0x1dc] sm:$0xf] 0
      %437 = vst [vmem:[#allocation2 + $0x1e0] sm:$0x33] 0
      %438 = vst [vmem:[#allocation2 + $0x1e8] sm:$0x3] 0
      %v440 = vunpack.c.l.b16 %v411
      %v441 = vunpack.c.h.b16 %v411
      %v442 = vpack.c.b16 %v440, %v440
      %v443 = vpack.c.b16 %v441, %v441
      %vm444 = vsmask.f32 1280
      %vm445 = vsmask.f32 5392
      %vm446 = vmor %vm444, %vm445
      %v448 = vshrl.u32 %v442, 16
      %v450 = vrot.slane %v448, 6
      %v451 = vshll.u32 %v442, 16
      %v453 = vrot.slane %v451, 7
      %v454 = vor.u32 %v450, %v453
      %v455 = vrot.slane %v454, 4
      %v457 = vshrl.u32 %v443, 16
      %v459 = vrot.slane %v457, 6
      %v460 = vshll.u32 %v443, 16
      %v462 = vrot.slane %v460, 7
      %v463 = vor.u32 %v459, %v462
      %v464 = vsel %vm446, %v455, %v463
      %v465 = vrot.slane %v463, 4
      %vm469 = vcmask 1043457
      %vm470 = vsmask.f32 7942
      %vm471 = vmand %vm469, %vm470
      %v472 = vld [vmem:[#allocation2 + $0x18] sm:$0xe]
      %v473 = vsel %vm471, %v454, %v472
      %474 = vst [vmem:[#allocation2 + $0x18] sm:$0xe] %v473
      %475 = vst [vmem:[#allocation2 + $0x24] sm:$0xf] %v464
      %vm476 = vcmask 1041408
      %vm477 = vmand %vm476, %vm444
      %v478 = vld [vmem:[#allocation2 + $0x30] sm:$0x3]
      %v479 = vsel %vm477, %v465, %v478
      %480 = vst [vmem:[#allocation2 + $0x30] sm:$0x3] %v479
      %vm481 = vcmask 1040384
      %vm482 = vcmask 1044484
      %vm483 = vmor %vm481, %vm482
      %v484 = vrot.slane %v442, 7
      %v485 = vrot.slane %v484, 4
      %v486 = vrot.slane %v443, 7
      %v487 = vsel %vm483, %v485, %v486
      %v488 = vrot.slane %v486, 4
      %492 = vst [vmem:[#allocation2 + $0x1c] sm:$0xe] %v484
      %493 = vst [vmem:[#allocation2 + $0x28] sm:$0xf] %v487
      %494 = vst [vmem:[#allocation2 + $0x34] sm:$0x1] %v488
      %vm495 = vsmask.f32 256
      %vm496 = vsmask.f32 4368
      %vm497 = vmor %vm495, %vm496
      %v498 = vrot.slane %v448, 7
      %v499 = vor.u32 %v498, %v451
      %v500 = vrot.slane %v498, 4
      %v501 = vrot.slane %v457, 7
      %v502 = vor.u32 %v501, %v460
      %v503 = vsel %vm497, %v500, %v502
      %v504 = vrot.slane %v501, 4
      %vm508 = vcmask 1043456
      %vm509 = vsmask.f32 7938
      %vm510 = vmand %vm508, %vm509
      %v511 = vld [vmem:[#allocation2 + $0x20] sm:$0xf]
      %v512 = vsel %vm510, %v499, %v511
      %513 = vst [vmem:[#allocation2 + $0x20] sm:$0xf] %v512
      %514 = vst [vmem:[#allocation2 + $0x2c] sm:$0xf] %v503
      %vm515 = vmand %vm481, %vm495
      %v516 = vld [vmem:[#allocation2 + $0x38] sm:$0x1]
      %v517 = vsel %vm515, %v504, %v516
      %518 = vst [vmem:[#allocation2 + $0x38] sm:$0x1] %v517
      %vm519 = vcmask 1041409
      %vm520 = vmand %vm519, %vm444
      %v521 = vld [vmem:[#allocation2 + $0x18] sm:$0x2]
      %v522 = vsel %vm520, 0, %v521
      %523 = vst [vmem:[#allocation2 + $0x18] sm:$0x2] %v522
      %vm524 = vmand %vm481, %vm509
      %v525 = vld [vmem:[#allocation2 + $0x38] sm:$0x1]
      %v526 = vsel %vm524, 0, %v525
      %527 = vst [vmem:[#allocation2 + $0x38] sm:$0x1] %v526
      %v529 = vunpack.c.l.b16 %v412
      %v530 = vunpack.c.h.b16 %v412
      %v531 = vpack.c.b16 %v529, %v529
      %v532 = vpack.c.b16 %v530, %v530
      %vm533 = vsmask.f32 2304
      %vm534 = vsmask.f32 6416
      %vm535 = vmor %vm533, %vm534
      %v537 = vshrl.u32 %v531, 16
      %v539 = vrot.slane %v537, 5
      %v540 = vshll.u32 %v531, 16
      %v542 = vrot.slane %v540, 6
      %v543 = vor.u32 %v539, %v542
      %v544 = vrot.slane %v543, 4
      %v546 = vshrl.u32 %v532, 16
      %v548 = vrot.slane %v546, 5
      %v549 = vshll.u32 %v532, 16
      %v551 = vrot.slane %v549, 6
      %v552 = vor.u32 %v548, %v551
      %v553 = vsel %vm535, %v544, %v552
      %v554 = vrot.slane %v552, 4
      %vm558 = vcmask 1043458
      %vm559 = vsmask.f32 7946
      %vm560 = vmand %vm558, %vm559
      %v561 = vld [vmem:[#allocation2 + $0x30] sm:$0xc]
      %v562 = vsel %vm560, %v543, %v561
      %563 = vst [vmem:[#allocation2 + $0x30] sm:$0xc] %v562
      %564 = vst [vmem:[#allocation2 + $0x3c] sm:$0xf] %v553
      %vm565 = vcmask 1042432
      %vm566 = vmand %vm565, %vm533
      %v567 = vld [vmem:[#allocation2 + $0x48] sm:$0x7]
      %v568 = vsel %vm566, %v554, %v567
      %569 = vst [vmem:[#allocation2 + $0x48] sm:$0x7] %v568
      %vm570 = vcmask 1045508
      %vm571 = vmor %vm476, %vm570
      %v572 = vrot.slane %v531, 6
      %v573 = vrot.slane %v572, 4
      %v574 = vrot.slane %v532, 6
      %v575 = vsel %vm571, %v573, %v574
      %v576 = vrot.slane %v574, 4
      %580 = vst [vmem:[#allocation2 + $0x34] sm:$0xc] %v572
      %581 = vst [vmem:[#allocation2 + $0x40] sm:$0xf] %v575
      %582 = vst [vmem:[#allocation2 + $0x4c] sm:$0x3] %v576
      %v583 = vrot.slane %v537, 6
      %v584 = vrot.slane %v540, 7
      %v585 = vor.u32 %v583, %v584
      %v586 = vrot.slane %v585, 4
      %v587 = vrot.slane %v546, 6
      %v588 = vrot.slane %v549, 7
      %v589 = vor.u32 %v587, %v588
      %v590 = vsel %vm446, %v586, %v589
      %v591 = vrot.slane %v589, 4
      %v595 = vld [vmem:[#allocation2 + $0x38] sm:$0xe]
      %v596 = vsel %vm471, %v585, %v595
      %597 = vst [vmem:[#allocation2 + $0x38] sm:$0xe] %v596
      %598 = vst [vmem:[#allocation2 + $0x44] sm:$0xf] %v590
      %v599 = vld [vmem:[#allocation2 + $0x50] sm:$0x3]
      %v600 = vsel %vm477, %v591, %v599
      %601 = vst [vmem:[#allocation2 + $0x50] sm:$0x3] %v600
      %vm602 = vcmask 1042434
      %vm603 = vmand %vm602, %vm533
      %v604 = vld [vmem:[#allocation2 + $0x30] sm:$0x4]
      %v605 = vsel %vm603, 0, %v604
      %606 = vst [vmem:[#allocation2 + $0x30] sm:$0x4] %v605
      %vm607 = vmand %vm519, %vm470
      %v608 = vld [vmem:[#allocation2 + $0x50] sm:$0x2]
      %v609 = vsel %vm607, 0, %v608
      %610 = vst [vmem:[#allocation2 + $0x50] sm:$0x2] %v609
      %v612 = vunpack.c.l.b16 %v413
      %v613 = vunpack.c.h.b16 %v413
      %v614 = vpack.c.b16 %v612, %v612
      %v615 = vpack.c.b16 %v613, %v613
      %vm616 = vsmask.f32 3328
      %vm617 = vsmask.f32 7440
      %vm618 = vmor %vm616, %vm617
      %v620 = vshll.u32 %v614, 16
      %v622 = vrot.slane %v620, 5
      %v623 = vshrl.u32 %v614, 16
      %v625 = vrot.slane %v623, 4
      %v626 = vor.u32 %v625, %v622
      %v627 = vrot.slane %v626, 4
      %v629 = vshll.u32 %v615, 16
      %v631 = vrot.slane %v629, 5
      %v632 = vsel %vm618, %v627, %v631
      %v633 = vshrl.u32 %v615, 16
      %v635 = vrot.slane %v633, 4
      %v636 = vor.u32 %v635, %v631
      %v637 = vrot.slane %v636, 4
      %vm641 = vcmask 1043459
      %vm642 = vsmask.f32 7950
      %vm643 = vmand %vm641, %vm642
      %v644 = vld [vmem:[#allocation2 + $0x48] sm:$0x8]
      %v645 = vsel %vm643, %v622, %v644
      %646 = vst [vmem:[#allocation2 + $0x48] sm:$0x8] %v645
      %647 = vst [vmem:[#allocation2 + $0x54] sm:$0xf] %v632
      %vm648 = vmand %vm508, %vm616
      %v649 = vld [vmem:[#allocation2 + $0x60] sm:$0xf]
      %v650 = vsel %vm648, %v637, %v649
      %651 = vst [vmem:[#allocation2 + $0x60] sm:$0xf] %v650
      %vm652 = vcmask 1046532
      %vm653 = vmor %vm565, %vm652
      %v654 = vrot.slane %v614, 5
      %v655 = vrot.slane %v654, 4
      %v656 = vrot.slane %v615, 5
      %v657 = vsel %vm653, %v655, %v656
      %v658 = vrot.slane %v656, 4
      %662 = vst [vmem:[#allocation2 + $0x4c] sm:$0x8] %v654
      %663 = vst [vmem:[#allocation2 + $0x58] sm:$0xf] %v657
      %664 = vst [vmem:[#allocation2 + $0x64] sm:$0x7] %v658
      %v665 = vrot.slane %v623, 5
      %v666 = vrot.slane %v620, 6
      %v667 = vor.u32 %v665, %v666
      %v668 = vrot.slane %v667, 4
      %v669 = vrot.slane %v633, 5
      %v670 = vrot.slane %v629, 6
      %v671 = vor.u32 %v669, %v670
      %v672 = vsel %vm535, %v668, %v671
      %v673 = vrot.slane %v671, 4
      %v677 = vld [vmem:[#allocation2 + $0x50] sm:$0xc]
      %v678 = vsel %vm560, %v667, %v677
      %679 = vst [vmem:[#allocation2 + $0x50] sm:$0xc] %v678
      %680 = vst [vmem:[#allocation2 + $0x5c] sm:$0xf] %v672
      %v681 = vld [vmem:[#allocation2 + $0x68] sm:$0x7]
      %v682 = vsel %vm566, %v673, %v681
      %683 = vst [vmem:[#allocation2 + $0x68] sm:$0x7] %v682
      %vm684 = vmand %vm641, %vm616
      %v685 = vld [vmem:[#allocation2 + $0x48] sm:$0x8]
      %v686 = vsel %vm684, 0, %v685
      %687 = vst [vmem:[#allocation2 + $0x48] sm:$0x8] %v686
      %vm688 = vmand %vm602, %vm559
      %v689 = vld [vmem:[#allocation2 + $0x68] sm:$0x4]
      %v690 = vsel %vm688, 0, %v689
      %691 = vst [vmem:[#allocation2 + $0x68] sm:$0x4] %v690
      %v693 = vunpack.c.l.b16 %v414
      %v694 = vunpack.c.h.b16 %v414
      %v695 = vpack.c.b16 %v693, %v693
      %v696 = vpack.c.b16 %v694, %v694
      %v698 = vshrl.u32 %v695, 16
      %v700 = vrot.slane %v698, 7
      %v701 = vshll.u32 %v695, 16
      %v703 = vor.u32 %v700, %v701
      %v704 = vrot.slane %v700, 4
      %v706 = vshrl.u32 %v696, 16
      %v708 = vrot.slane %v706, 7
      %v709 = vshll.u32 %v696, 16
      %v711 = vor.u32 %v708, %v709
      %v712 = vsel %vm497, %v704, %v711
      %v713 = vrot.slane %v708, 4
      %v717 = vld [vmem:[#allocation2 + $0x6c] sm:$0xf]
      %v718 = vsel %vm510, %v703, %v717
      %719 = vst [vmem:[#allocation2 + $0x6c] sm:$0xf] %v718
      %720 = vst [vmem:[#allocation2 + $0x78] sm:$0xf] %v712
      %v721 = vld [vmem:[#allocation2 + $0x84] sm:$0x1]
      %v722 = vsel %vm515, %v713, %v721
      %723 = vst [vmem:[#allocation2 + $0x84] sm:$0x1] %v722
      %726 = vst [vmem:[#allocation2 + $0x70] sm:$0xf] %v695
      %727 = vst [vmem:[#allocation2 + $0x7c] sm:$0xf] %v696
      %v728 = vrot.slane %v701, 5
      %v729 = vrot.slane %v698, 4
      %v730 = vor.u32 %v729, %v728
      %v731 = vrot.slane %v730, 4
      %v732 = vrot.slane %v709, 5
      %v733 = vsel %vm618, %v731, %v732
      %v734 = vrot.slane %v706, 4
      %v735 = vor.u32 %v734, %v732
      %v736 = vrot.slane %v735, 4
      %v740 = vld [vmem:[#allocation2 + $0x68] sm:$0x8]
      %v741 = vsel %vm643, %v728, %v740
      %742 = vst [vmem:[#allocation2 + $0x68] sm:$0x8] %v741
      %743 = vst [vmem:[#allocation2 + $0x74] sm:$0xf] %v733
      %v744 = vld [vmem:[#allocation2 + $0x80] sm:$0xf]
      %v745 = vsel %vm648, %v736, %v744
      %746 = vst [vmem:[#allocation2 + $0x80] sm:$0xf] %v745
      %v747 = vld [vmem:[#allocation2 + $0x6c] sm:$0x1]
      %v748 = vsel %vm515, 0, %v747
      %749 = vst [vmem:[#allocation2 + $0x6c] sm:$0x1] %v748
      %v750 = vld [vmem:[#allocation2 + $0x80] sm:$0x8]
      %v751 = vsel %vm643, 0, %v750
      %752 = vst [vmem:[#allocation2 + $0x80] sm:$0x8] %v751
      %v754 = vunpack.c.l.b16 %v415
      %v755 = vunpack.c.h.b16 %v415
      %v756 = vpack.c.b16 %v754, %v754
      %v757 = vpack.c.b16 %v755, %v755
      %v759 = vshrl.u32 %v756, 16
      %v761 = vrot.slane %v759, 6
      %v762 = vshll.u32 %v756, 16
      %v764 = vrot.slane %v762, 7
      %v765 = vor.u32 %v761, %v764
      %v766 = vrot.slane %v765, 4
      %v768 = vshrl.u32 %v757, 16
      %v770 = vrot.slane %v768, 6
      %v771 = vshll.u32 %v757, 16
      %v773 = vrot.slane %v771, 7
      %v774 = vor.u32 %v770, %v773
      %v775 = vsel %vm446, %v766, %v774
      %v776 = vrot.slane %v774, 4
      %v780 = vld [vmem:[#allocation2 + $0x84] sm:$0xe]
      %v781 = vsel %vm471, %v765, %v780
      %782 = vst [vmem:[#allocation2 + $0x84] sm:$0xe] %v781
      %783 = vst [vmem:[#allocation2 + $0x90] sm:$0xf] %v775
      %v784 = vld [vmem:[#allocation2 + $0x9c] sm:$0x3]
      %v785 = vsel %vm477, %v776, %v784
      %786 = vst [vmem:[#allocation2 + $0x9c] sm:$0x3] %v785
      %v787 = vrot.slane %v756, 7
      %v788 = vrot.slane %v787, 4
      %v789 = vrot.slane %v757, 7
      %v790 = vsel %vm483, %v788, %v789
      %v791 = vrot.slane %v789, 4
      %795 = vst [vmem:[#allocation2 + $0x88] sm:$0xe] %v787
      %796 = vst [vmem:[#allocation2 + $0x94] sm:$0xf] %v790
      %797 = vst [vmem:[#allocation2 + $0xa0] sm:$0x1] %v791
      %v798 = vrot.slane %v759, 7
      %v799 = vor.u32 %v798, %v762
      %v800 = vrot.slane %v798, 4
      %v801 = vrot.slane %v768, 7
      %v802 = vor.u32 %v801, %v771
      %v803 = vsel %vm497, %v800, %v802
      %v804 = vrot.slane %v801, 4
      %v808 = vld [vmem:[#allocation2 + $0x8c] sm:$0xf]
      %v809 = vsel %vm510, %v799, %v808
      %810 = vst [vmem:[#allocation2 + $0x8c] sm:$0xf] %v809
      %811 = vst [vmem:[#allocation2 + $0x98] sm:$0xf] %v803
      %v812 = vld [vmem:[#allocation2 + $0xa4] sm:$0x1]
      %v813 = vsel %vm515, %v804, %v812
      %814 = vst [vmem:[#allocation2 + $0xa4] sm:$0x1] %v813
      %v815 = vld [vmem:[#allocation2 + $0x84] sm:$0x2]
      %v816 = vsel %vm520, 0, %v815
      %817 = vst [vmem:[#allocation2 + $0x84] sm:$0x2] %v816
      %v818 = vld [vmem:[#allocation2 + $0xa4] sm:$0x1]
      %v819 = vsel %vm524, 0, %v818
      %820 = vst [vmem:[#allocation2 + $0xa4] sm:$0x1] %v819
      %v822 = vunpack.c.l.b16 %v416
      %v823 = vunpack.c.h.b16 %v416
      %v824 = vpack.c.b16 %v822, %v822
      %v825 = vpack.c.b16 %v823, %v823
      %v827 = vshrl.u32 %v824, 16
      %v829 = vrot.slane %v827, 5
      %v830 = vshll.u32 %v824, 16
      %v832 = vrot.slane %v830, 6
      %v833 = vor.u32 %v829, %v832
      %v834 = vrot.slane %v833, 4
      %v836 = vshrl.u32 %v825, 16
      %v838 = vrot.slane %v836, 5
      %v839 = vshll.u32 %v825, 16
      %v841 = vrot.slane %v839, 6
      %v842 = vor.u32 %v838, %v841
      %v843 = vsel %vm535, %v834, %v842
      %v844 = vrot.slane %v842, 4
      %v848 = vld [vmem:[#allocation2 + $0x9c] sm:$0xc]
      %v849 = vsel %vm560, %v833, %v848
      %850 = vst [vmem:[#allocation2 + $0x9c] sm:$0xc] %v849
      %851 = vst [vmem:[#allocation2 + $0xa8] sm:$0xf] %v843
      %v852 = vld [vmem:[#allocation2 + $0xb4] sm:$0x7]
      %v853 = vsel %vm566, %v844, %v852
      %854 = vst [vmem:[#allocation2 + $0xb4] sm:$0x7] %v853
      %v855 = vrot.slane %v824, 6
      %v856 = vrot.slane %v855, 4
      %v857 = vrot.slane %v825, 6
      %v858 = vsel %vm571, %v856, %v857
      %v859 = vrot.slane %v857, 4
      %863 = vst [vmem:[#allocation2 + $0xa0] sm:$0xc] %v855
      %864 = vst [vmem:[#allocation2 + $0xac] sm:$0xf] %v858
      %865 = vst [vmem:[#allocation2 + $0xb8] sm:$0x3] %v859
      %v866 = vrot.slane %v827, 6
      %v867 = vrot.slane %v830, 7
      %v868 = vor.u32 %v866, %v867
      %v869 = vrot.slane %v868, 4
      %v870 = vrot.slane %v836, 6
      %v871 = vrot.slane %v839, 7
      %v872 = vor.u32 %v870, %v871
      %v873 = vsel %vm446, %v869, %v872
      %v874 = vrot.slane %v872, 4
      %v878 = vld [vmem:[#allocation2 + $0xa4] sm:$0xe]
      %v879 = vsel %vm471, %v868, %v878
      %880 = vst [vmem:[#allocation2 + $0xa4] sm:$0xe] %v879
      %881 = vst [vmem:[#allocation2 + $0xb0] sm:$0xf] %v873
      %v882 = vld [vmem:[#allocation2 + $0xbc] sm:$0x3]
      %v883 = vsel %vm477, %v874, %v882
      %884 = vst [vmem:[#allocation2 + $0xbc] sm:$0x3] %v883
      %v885 = vld [vmem:[#allocation2 + $0x9c] sm:$0x4]
      %v886 = vsel %vm603, 0, %v885
      %887 = vst [vmem:[#allocation2 + $0x9c] sm:$0x4] %v886
      %v888 = vld [vmem:[#allocation2 + $0xbc] sm:$0x2]
      %v889 = vsel %vm607, 0, %v888
      %890 = vst [vmem:[#allocation2 + $0xbc] sm:$0x2] %v889
      %v892 = vunpack.c.l.b16 %v417
      %v893 = vunpack.c.h.b16 %v417
      %v894 = vpack.c.b16 %v892, %v892
      %v895 = vpack.c.b16 %v893, %v893
      %v897 = vshll.u32 %v894, 16
      %v899 = vrot.slane %v897, 5
      %v900 = vshrl.u32 %v894, 16
      %v902 = vrot.slane %v900, 4
      %v903 = vor.u32 %v902, %v899
      %v904 = vrot.slane %v903, 4
      %v906 = vshll.u32 %v895, 16
      %v908 = vrot.slane %v906, 5
      %v909 = vsel %vm618, %v904, %v908
      %v910 = vshrl.u32 %v895, 16
      %v912 = vrot.slane %v910, 4
      %v913 = vor.u32 %v912, %v908
      %v914 = vrot.slane %v913, 4
      %v918 = vld [vmem:[#allocation2 + $0xb4] sm:$0x8]
      %v919 = vsel %vm643, %v899, %v918
      %920 = vst [vmem:[#allocation2 + $0xb4] sm:$0x8] %v919
      %921 = vst [vmem:[#allocation2 + $0xc0] sm:$0xf] %v909
      %v922 = vld [vmem:[#allocation2 + $0xcc] sm:$0xf]
      %v923 = vsel %vm648, %v914, %v922
      %924 = vst [vmem:[#allocation2 + $0xcc] sm:$0xf] %v923
      %v925 = vrot.slane %v894, 5
      %v926 = vrot.slane %v925, 4
      %v927 = vrot.slane %v895, 5
      %v928 = vsel %vm653, %v926, %v927
      %v929 = vrot.slane %v927, 4
      %933 = vst [vmem:[#allocation2 + $0xb8] sm:$0x8] %v925
      %934 = vst [vmem:[#allocation2 + $0xc4] sm:$0xf] %v928
      %935 = vst [vmem:[#allocation2 + $0xd0] sm:$0x7] %v929
      %v936 = vrot.slane %v900, 5
      %v937 = vrot.slane %v897, 6
      %v938 = vor.u32 %v936, %v937
      %v939 = vrot.slane %v938, 4
      %v940 = vrot.slane %v910, 5
      %v941 = vrot.slane %v906, 6
      %v942 = vor.u32 %v940, %v941
      %v943 = vsel %vm535, %v939, %v942
      %v944 = vrot.slane %v942, 4
      %v948 = vld [vmem:[#allocation2 + $0xbc] sm:$0xc]
      %v949 = vsel %vm560, %v938, %v948
      %950 = vst [vmem:[#allocation2 + $0xbc] sm:$0xc] %v949
      %951 = vst [vmem:[#allocation2 + $0xc8] sm:$0xf] %v943
      %v952 = vld [vmem:[#allocation2 + $0xd4] sm:$0x7]
      %v953 = vsel %vm566, %v944, %v952
      %954 = vst [vmem:[#allocation2 + $0xd4] sm:$0x7] %v953
      %v955 = vld [vmem:[#allocation2 + $0xb4] sm:$0x8]
      %v956 = vsel %vm684, 0, %v955
      %957 = vst [vmem:[#allocation2 + $0xb4] sm:$0x8] %v956
      %v958 = vld [vmem:[#allocation2 + $0xd4] sm:$0x4]
      %v959 = vsel %vm688, 0, %v958
      %960 = vst [vmem:[#allocation2 + $0xd4] sm:$0x4] %v959
      %v962 = vunpack.c.l.b16 %v418
      %v963 = vunpack.c.h.b16 %v418
      %v964 = vpack.c.b16 %v962, %v962
      %v965 = vpack.c.b16 %v963, %v963
      %v967 = vshrl.u32 %v964, 16
      %v969 = vrot.slane %v967, 7
      %v970 = vshll.u32 %v964, 16
      %v972 = vor.u32 %v969, %v970
      %v973 = vrot.slane %v969, 4
      %v975 = vshrl.u32 %v965, 16
      %v977 = vrot.slane %v975, 7
      %v978 = vshll.u32 %v965, 16
      %v980 = vor.u32 %v977, %v978
      %v981 = vsel %vm497, %v973, %v980
      %v982 = vrot.slane %v977, 4
      %v986 = vld [vmem:[#allocation2 + $0xd8] sm:$0xf]
      %v987 = vsel %vm510, %v972, %v986
      %988 = vst [vmem:[#allocation2 + $0xd8] sm:$0xf] %v987
      %989 = vst [vmem:[#allocation2 + $0xe4] sm:$0xf] %v981
      %v990 = vld [vmem:[#allocation2 + $0xf0] sm:$0x1]
      %v991 = vsel %vm515, %v982, %v990
      %992 = vst [vmem:[#allocation2 + $0xf0] sm:$0x1] %v991
      %995 = vst [vmem:[#allocation2 + $0xdc] sm:$0xf] %v964
      %996 = vst [vmem:[#allocation2 + $0xe8] sm:$0xf] %v965
      %v997 = vrot.slane %v970, 5
      %v998 = vrot.slane %v967, 4
      %v999 = vor.u32 %v998, %v997
      %v1000 = vrot.slane %v999, 4
      %v1001 = vrot.slane %v978, 5
      %v1002 = vsel %vm618, %v1000, %v1001
      %v1003 = vrot.slane %v975, 4
      %v1004 = vor.u32 %v1003, %v1001
      %v1005 = vrot.slane %v1004, 4
      %v1009 = vld [vmem:[#allocation2 + $0xd4] sm:$0x8]
      %v1010 = vsel %vm643, %v997, %v1009
      %1011 = vst [vmem:[#allocation2 + $0xd4] sm:$0x8] %v1010
      %1012 = vst [vmem:[#allocation2 + $0xe0] sm:$0xf] %v1002
      %v1013 = vld [vmem:[#allocation2 + $0xec] sm:$0xf]
      %v1014 = vsel %vm648, %v1005, %v1013
      %1015 = vst [vmem:[#allocation2 + $0xec] sm:$0xf] %v1014
      %v1016 = vld [vmem:[#allocation2 + $0xd8] sm:$0x1]
      %v1017 = vsel %vm515, 0, %v1016
      %1018 = vst [vmem:[#allocation2 + $0xd8] sm:$0x1] %v1017
      %v1019 = vld [vmem:[#allocation2 + $0xec] sm:$0x8]
      %v1020 = vsel %vm643, 0, %v1019
      %1021 = vst [vmem:[#allocation2 + $0xec] sm:$0x8] %v1020
      %v1023 = vunpack.c.l.b16 %v419
      %v1024 = vunpack.c.h.b16 %v419
      %v1025 = vpack.c.b16 %v1023, %v1023
      %v1026 = vpack.c.b16 %v1024, %v1024
      %v1028 = vshrl.u32 %v1025, 16
      %v1030 = vrot.slane %v1028, 6
      %v1031 = vshll.u32 %v1025, 16
      %v1033 = vrot.slane %v1031, 7
      %v1034 = vor.u32 %v1030, %v1033
      %v1035 = vrot.slane %v1034, 4
      %v1037 = vshrl.u32 %v1026, 16
      %v1039 = vrot.slane %v1037, 6
      %v1040 = vshll.u32 %v1026, 16
      %v1042 = vrot.slane %v1040, 7
      %v1043 = vor.u32 %v1039, %v1042
      %v1044 = vsel %vm446, %v1035, %v1043
      %v1045 = vrot.slane %v1043, 4
      %v1049 = vld [vmem:[#allocation2 + $0xf0] sm:$0xe]
      %v1050 = vsel %vm471, %v1034, %v1049
      %1051 = vst [vmem:[#allocation2 + $0xf0] sm:$0xe] %v1050
      %1052 = vst [vmem:[#allocation2 + $0xfc] sm:$0xf] %v1044
      %v1053 = vld [vmem:[#allocation2 + $0x108] sm:$0x3]
      %v1054 = vsel %vm477, %v1045, %v1053
      %1055 = vst [vmem:[#allocation2 + $0x108] sm:$0x3] %v1054
      %v1056 = vrot.slane %v1025, 7
      %v1057 = vrot.slane %v1056, 4
      %v1058 = vrot.slane %v1026, 7
      %v1059 = vsel %vm483, %v1057, %v1058
      %v1060 = vrot.slane %v1058, 4
      %1064 = vst [vmem:[#allocation2 + $0xf4] sm:$0xe] %v1056
      %1065 = vst [vmem:[#allocation2 + $0x100] sm:$0xf] %v1059
      %1066 = vst [vmem:[#allocation2 + $0x10c] sm:$0x1] %v1060
      %v1067 = vrot.slane %v1028, 7
      %v1068 = vor.u32 %v1067, %v1031
      %v1069 = vrot.slane %v1067, 4
      %v1070 = vrot.slane %v1037, 7
      %v1071 = vor.u32 %v1070, %v1040
      %v1072 = vsel %vm497, %v1069, %v1071
      %v1073 = vrot.slane %v1070, 4
      %v1077 = vld [vmem:[#allocation2 + $0xf8] sm:$0xf]
      %v1078 = vsel %vm510, %v1068, %v1077
      %1079 = vst [vmem:[#allocation2 + $0xf8] sm:$0xf] %v1078
      %1080 = vst [vmem:[#allocation2 + $0x104] sm:$0xf] %v1072
      %v1081 = vld [vmem:[#allocation2 + $0x110] sm:$0x1]
      %v1082 = vsel %vm515, %v1073, %v1081
      %1083 = vst [vmem:[#allocation2 + $0x110] sm:$0x1] %v1082
      %v1084 = vld [vmem:[#allocation2 + $0xf0] sm:$0x2]
      %v1085 = vsel %vm520, 0, %v1084
      %1086 = vst [vmem:[#allocation2 + $0xf0] sm:$0x2] %v1085
      %v1087 = vld [vmem:[#allocation2 + $0x110] sm:$0x1]
      %v1088 = vsel %vm524, 0, %v1087
      %1089 = vst [vmem:[#allocation2 + $0x110] sm:$0x1] %v1088
      %v1091 = vunpack.c.l.b16 %v420
      %v1092 = vunpack.c.h.b16 %v420
      %v1093 = vpack.c.b16 %v1091, %v1091
      %v1094 = vpack.c.b16 %v1092, %v1092
      %v1096 = vshrl.u32 %v1093, 16
      %v1098 = vrot.slane %v1096, 5
      %v1099 = vshll.u32 %v1093, 16
      %v1101 = vrot.slane %v1099, 6
      %v1102 = vor.u32 %v1098, %v1101
      %v1103 = vrot.slane %v1102, 4
      %v1105 = vshrl.u32 %v1094, 16
      %v1107 = vrot.slane %v1105, 5
      %v1108 = vshll.u32 %v1094, 16
      %v1110 = vrot.slane %v1108, 6
      %v1111 = vor.u32 %v1107, %v1110
      %v1112 = vsel %vm535, %v1103, %v1111
      %v1113 = vrot.slane %v1111, 4
      %v1117 = vld [vmem:[#allocation2 + $0x108] sm:$0xc]
      %v1118 = vsel %vm560, %v1102, %v1117
      %1119 = vst [vmem:[#allocation2 + $0x108] sm:$0xc] %v1118
      %1120 = vst [vmem:[#allocation2 + $0x114] sm:$0xf] %v1112
      %v1121 = vld [vmem:[#allocation2 + $0x120] sm:$0x7]
      %v1122 = vsel %vm566, %v1113, %v1121
      %1123 = vst [vmem:[#allocation2 + $0x120] sm:$0x7] %v1122
      %v1124 = vrot.slane %v1093, 6
      %v1125 = vrot.slane %v1124, 4
      %v1126 = vrot.slane %v1094, 6
      %v1127 = vsel %vm571, %v1125, %v1126
      %v1128 = vrot.slane %v1126, 4
      %1132 = vst [vmem:[#allocation2 + $0x10c] sm:$0xc] %v1124
      %1133 = vst [vmem:[#allocation2 + $0x118] sm:$0xf] %v1127
      %1134 = vst [vmem:[#allocation2 + $0x124] sm:$0x3] %v1128
      %v1135 = vrot.slane %v1096, 6
      %v1136 = vrot.slane %v1099, 7
      %v1137 = vor.u32 %v1135, %v1136
      %v1138 = vrot.slane %v1137, 4
      %v1139 = vrot.slane %v1105, 6
      %v1140 = vrot.slane %v1108, 7
      %v1141 = vor.u32 %v1139, %v1140
      %v1142 = vsel %vm446, %v1138, %v1141
      %v1143 = vrot.slane %v1141, 4
      %v1147 = vld [vmem:[#allocation2 + $0x110] sm:$0xe]
      %v1148 = vsel %vm471, %v1137, %v1147
      %1149 = vst [vmem:[#allocation2 + $0x110] sm:$0xe] %v1148
      %1150 = vst [vmem:[#allocation2 + $0x11c] sm:$0xf] %v1142
      %v1151 = vld [vmem:[#allocation2 + $0x128] sm:$0x3]
      %v1152 = vsel %vm477, %v1143, %v1151
      %1153 = vst [vmem:[#allocation2 + $0x128] sm:$0x3] %v1152
      %v1154 = vld [vmem:[#allocation2 + $0x108] sm:$0x4]
      %v1155 = vsel %vm603, 0, %v1154
      %1156 = vst [vmem:[#allocation2 + $0x108] sm:$0x4] %v1155
      %v1157 = vld [vmem:[#allocation2 + $0x128] sm:$0x2]
      %v1158 = vsel %vm607, 0, %v1157
      %1159 = vst [vmem:[#allocation2 + $0x128] sm:$0x2] %v1158
      %v1161 = vunpack.c.l.b16 %v421
      %v1162 = vunpack.c.h.b16 %v421
      %v1163 = vpack.c.b16 %v1161, %v1161
      %v1164 = vpack.c.b16 %v1162, %v1162
      %v1166 = vshll.u32 %v1163, 16
      %v1168 = vrot.slane %v1166, 5
      %v1169 = vshrl.u32 %v1163, 16
      %v1171 = vrot.slane %v1169, 4
      %v1172 = vor.u32 %v1171, %v1168
      %v1173 = vrot.slane %v1172, 4
      %v1175 = vshll.u32 %v1164, 16
      %v1177 = vrot.slane %v1175, 5
      %v1178 = vsel %vm618, %v1173, %v1177
      %v1179 = vshrl.u32 %v1164, 16
      %v1181 = vrot.slane %v1179, 4
      %v1182 = vor.u32 %v1181, %v1177
      %v1183 = vrot.slane %v1182, 4
      %v1187 = vld [vmem:[#allocation2 + $0x120] sm:$0x8]
      %v1188 = vsel %vm643, %v1168, %v1187
      %1189 = vst [vmem:[#allocation2 + $0x120] sm:$0x8] %v1188
      %1190 = vst [vmem:[#allocation2 + $0x12c] sm:$0xf] %v1178
      %v1191 = vld [vmem:[#allocation2 + $0x138] sm:$0xf]
      %v1192 = vsel %vm648, %v1183, %v1191
      %1193 = vst [vmem:[#allocation2 + $0x138] sm:$0xf] %v1192
      %v1194 = vrot.slane %v1163, 5
      %v1195 = vrot.slane %v1194, 4
      %v1196 = vrot.slane %v1164, 5
      %v1197 = vsel %vm653, %v1195, %v1196
      %v1198 = vrot.slane %v1196, 4
      %1202 = vst [vmem:[#allocation2 + $0x124] sm:$0x8] %v1194
      %1203 = vst [vmem:[#allocation2 + $0x130] sm:$0xf] %v1197
      %1204 = vst [vmem:[#allocation2 + $0x13c] sm:$0x7] %v1198
      %v1205 = vrot.slane %v1169, 5
      %v1206 = vrot.slane %v1166, 6
      %v1207 = vor.u32 %v1205, %v1206
      %v1208 = vrot.slane %v1207, 4
      %v1209 = vrot.slane %v1179, 5
      %v1210 = vrot.slane %v1175, 6
      %v1211 = vor.u32 %v1209, %v1210
      %v1212 = vsel %vm535, %v1208, %v1211
      %v1213 = vrot.slane %v1211, 4
      %v1217 = vld [vmem:[#allocation2 + $0x128] sm:$0xc]
      %v1218 = vsel %vm560, %v1207, %v1217
      %1219 = vst [vmem:[#allocation2 + $0x128] sm:$0xc] %v1218
      %1220 = vst [vmem:[#allocation2 + $0x134] sm:$0xf] %v1212
      %v1221 = vld [vmem:[#allocation2 + $0x140] sm:$0x7]
      %v1222 = vsel %vm566, %v1213, %v1221
      %1223 = vst [vmem:[#allocation2 + $0x140] sm:$0x7] %v1222
      %v1224 = vld [vmem:[#allocation2 + $0x120] sm:$0x8]
      %v1225 = vsel %vm684, 0, %v1224
      %1226 = vst [vmem:[#allocation2 + $0x120] sm:$0x8] %v1225
      %v1227 = vld [vmem:[#allocation2 + $0x140] sm:$0x4]
      %v1228 = vsel %vm688, 0, %v1227
      %1229 = vst [vmem:[#allocation2 + $0x140] sm:$0x4] %v1228
      %v1231 = vunpack.c.l.b16 %v422
      %v1232 = vunpack.c.h.b16 %v422
      %v1233 = vpack.c.b16 %v1231, %v1231
      %v1234 = vpack.c.b16 %v1232, %v1232
      %v1236 = vshrl.u32 %v1233, 16
      %v1238 = vrot.slane %v1236, 7
      %v1239 = vshll.u32 %v1233, 16
      %v1241 = vor.u32 %v1238, %v1239
      %v1242 = vrot.slane %v1238, 4
      %v1244 = vshrl.u32 %v1234, 16
      %v1246 = vrot.slane %v1244, 7
      %v1247 = vshll.u32 %v1234, 16
      %v1249 = vor.u32 %v1246, %v1247
      %v1250 = vsel %vm497, %v1242, %v1249
      %v1251 = vrot.slane %v1246, 4
      %v1255 = vld [vmem:[#allocation2 + $0x144] sm:$0xf]
      %v1256 = vsel %vm510, %v1241, %v1255
      %1257 = vst [vmem:[#allocation2 + $0x144] sm:$0xf] %v1256
      %1258 = vst [vmem:[#allocation2 + $0x150] sm:$0xf] %v1250
      %v1259 = vld [vmem:[#allocation2 + $0x15c] sm:$0x1]
      %v1260 = vsel %vm515, %v1251, %v1259
      %1261 = vst [vmem:[#allocation2 + $0x15c] sm:$0x1] %v1260
      %1264 = vst [vmem:[#allocation2 + $0x148] sm:$0xf] %v1233
      %1265 = vst [vmem:[#allocation2 + $0x154] sm:$0xf] %v1234
      %v1266 = vrot.slane %v1239, 5
      %v1267 = vrot.slane %v1236, 4
      %v1268 = vor.u32 %v1267, %v1266
      %v1269 = vrot.slane %v1268, 4
      %v1270 = vrot.slane %v1247, 5
      %v1271 = vsel %vm618, %v1269, %v1270
      %v1272 = vrot.slane %v1244, 4
      %v1273 = vor.u32 %v1272, %v1270
      %v1274 = vrot.slane %v1273, 4
      %v1278 = vld [vmem:[#allocation2 + $0x140] sm:$0x8]
      %v1279 = vsel %vm643, %v1266, %v1278
      %1280 = vst [vmem:[#allocation2 + $0x140] sm:$0x8] %v1279
      %1281 = vst [vmem:[#allocation2 + $0x14c] sm:$0xf] %v1271
      %v1282 = vld [vmem:[#allocation2 + $0x158] sm:$0xf]
      %v1283 = vsel %vm648, %v1274, %v1282
      %1284 = vst [vmem:[#allocation2 + $0x158] sm:$0xf] %v1283
      %v1285 = vld [vmem:[#allocation2 + $0x144] sm:$0x1]
      %v1286 = vsel %vm515, 0, %v1285
      %1287 = vst [vmem:[#allocation2 + $0x144] sm:$0x1] %v1286
      %v1288 = vld [vmem:[#allocation2 + $0x158] sm:$0x8]
      %v1289 = vsel %vm643, 0, %v1288
      %1290 = vst [vmem:[#allocation2 + $0x158] sm:$0x8] %v1289
      %v1292 = vunpack.c.l.b16 %v423
      %v1293 = vunpack.c.h.b16 %v423
      %v1294 = vpack.c.b16 %v1292, %v1292
      %v1295 = vpack.c.b16 %v1293, %v1293
      %v1297 = vshrl.u32 %v1294, 16
      %v1299 = vrot.slane %v1297, 6
      %v1300 = vshll.u32 %v1294, 16
      %v1302 = vrot.slane %v1300, 7
      %v1303 = vor.u32 %v1299, %v1302
      %v1304 = vrot.slane %v1303, 4
      %v1306 = vshrl.u32 %v1295, 16
      %v1308 = vrot.slane %v1306, 6
      %v1309 = vshll.u32 %v1295, 16
      %v1311 = vrot.slane %v1309, 7
      %v1312 = vor.u32 %v1308, %v1311
      %v1313 = vsel %vm446, %v1304, %v1312
      %v1314 = vrot.slane %v1312, 4
      %v1318 = vld [vmem:[#allocation2 + $0x15c] sm:$0xe]
      %v1319 = vsel %vm471, %v1303, %v1318
      %1320 = vst [vmem:[#allocation2 + $0x15c] sm:$0xe] %v1319
      %1321 = vst [vmem:[#allocation2 + $0x168] sm:$0xf] %v1313
      %v1322 = vld [vmem:[#allocation2 + $0x174] sm:$0x3]
      %v1323 = vsel %vm477, %v1314, %v1322
      %1324 = vst [vmem:[#allocation2 + $0x174] sm:$0x3] %v1323
      %v1325 = vrot.slane %v1294, 7
      %v1326 = vrot.slane %v1325, 4
      %v1327 = vrot.slane %v1295, 7
      %v1328 = vsel %vm483, %v1326, %v1327
      %v1329 = vrot.slane %v1327, 4
      %1333 = vst [vmem:[#allocation2 + $0x160] sm:$0xe] %v1325
      %1334 = vst [vmem:[#allocation2 + $0x16c] sm:$0xf] %v1328
      %1335 = vst [vmem:[#allocation2 + $0x178] sm:$0x1] %v1329
      %v1336 = vrot.slane %v1297, 7
      %v1337 = vor.u32 %v1336, %v1300
      %v1338 = vrot.slane %v1336, 4
      %v1339 = vrot.slane %v1306, 7
      %v1340 = vor.u32 %v1339, %v1309
      %v1341 = vsel %vm497, %v1338, %v1340
      %v1342 = vrot.slane %v1339, 4
      %v1346 = vld [vmem:[#allocation2 + $0x164] sm:$0xf]
      %v1347 = vsel %vm510, %v1337, %v1346
      %1348 = vst [vmem:[#allocation2 + $0x164] sm:$0xf] %v1347
      %1349 = vst [vmem:[#allocation2 + $0x170] sm:$0xf] %v1341
      %v1350 = vld [vmem:[#allocation2 + $0x17c] sm:$0x1]
      %v1351 = vsel %vm515, %v1342, %v1350
      %1352 = vst [vmem:[#allocation2 + $0x17c] sm:$0x1] %v1351
      %v1353 = vld [vmem:[#allocation2 + $0x15c] sm:$0x2]
      %v1354 = vsel %vm520, 0, %v1353
      %1355 = vst [vmem:[#allocation2 + $0x15c] sm:$0x2] %v1354
      %v1356 = vld [vmem:[#allocation2 + $0x17c] sm:$0x1]
      %v1357 = vsel %vm524, 0, %v1356
      %1358 = vst [vmem:[#allocation2 + $0x17c] sm:$0x1] %v1357
      %v1360 = vunpack.c.l.b16 %v424
      %v1361 = vunpack.c.h.b16 %v424
      %v1362 = vpack.c.b16 %v1360, %v1360
      %v1363 = vpack.c.b16 %v1361, %v1361
      %v1365 = vshrl.u32 %v1362, 16
      %v1367 = vrot.slane %v1365, 5
      %v1368 = vshll.u32 %v1362, 16
      %v1370 = vrot.slane %v1368, 6
      %v1371 = vor.u32 %v1367, %v1370
      %v1372 = vrot.slane %v1371, 4
      %v1374 = vshrl.u32 %v1363, 16
      %v1376 = vrot.slane %v1374, 5
      %v1377 = vshll.u32 %v1363, 16
      %v1379 = vrot.slane %v1377, 6
      %v1380 = vor.u32 %v1376, %v1379
      %v1381 = vsel %vm535, %v1372, %v1380
      %v1382 = vrot.slane %v1380, 4
      %v1386 = vld [vmem:[#allocation2 + $0x174] sm:$0xc]
      %v1387 = vsel %vm560, %v1371, %v1386
      %1388 = vst [vmem:[#allocation2 + $0x174] sm:$0xc] %v1387
      %1389 = vst [vmem:[#allocation2 + $0x180] sm:$0xf] %v1381
      %v1390 = vld [vmem:[#allocation2 + $0x18c] sm:$0x7]
      %v1391 = vsel %vm566, %v1382, %v1390
      %1392 = vst [vmem:[#allocation2 + $0x18c] sm:$0x7] %v1391
      %v1393 = vrot.slane %v1362, 6
      %v1394 = vrot.slane %v1393, 4
      %v1395 = vrot.slane %v1363, 6
      %v1396 = vsel %vm571, %v1394, %v1395
      %v1397 = vrot.slane %v1395, 4
      %1401 = vst [vmem:[#allocation2 + $0x178] sm:$0xc] %v1393
      %1402 = vst [vmem:[#allocation2 + $0x184] sm:$0xf] %v1396
      %1403 = vst [vmem:[#allocation2 + $0x190] sm:$0x3] %v1397
      %v1404 = vrot.slane %v1365, 6
      %v1405 = vrot.slane %v1368, 7
      %v1406 = vor.u32 %v1404, %v1405
      %v1407 = vrot.slane %v1406, 4
      %v1408 = vrot.slane %v1374, 6
      %v1409 = vrot.slane %v1377, 7
      %v1410 = vor.u32 %v1408, %v1409
      %v1411 = vsel %vm446, %v1407, %v1410
      %v1412 = vrot.slane %v1410, 4
      %v1416 = vld [vmem:[#allocation2 + $0x17c] sm:$0xe]
      %v1417 = vsel %vm471, %v1406, %v1416
      %1418 = vst [vmem:[#allocation2 + $0x17c] sm:$0xe] %v1417
      %1419 = vst [vmem:[#allocation2 + $0x188] sm:$0xf] %v1411
      %v1420 = vld [vmem:[#allocation2 + $0x194] sm:$0x3]
      %v1421 = vsel %vm477, %v1412, %v1420
      %1422 = vst [vmem:[#allocation2 + $0x194] sm:$0x3] %v1421
      %v1423 = vld [vmem:[#allocation2 + $0x174] sm:$0x4]
      %v1424 = vsel %vm603, 0, %v1423
      %1425 = vst [vmem:[#allocation2 + $0x174] sm:$0x4] %v1424
      %v1426 = vld [vmem:[#allocation2 + $0x194] sm:$0x2]
      %v1427 = vsel %vm607, 0, %v1426
      %1428 = vst [vmem:[#allocation2 + $0x194] sm:$0x2] %v1427
      %v1430 = vunpack.c.l.b16 %v425
      %v1431 = vunpack.c.h.b16 %v425
      %v1432 = vpack.c.b16 %v1430, %v1430
      %v1433 = vpack.c.b16 %v1431, %v1431
      %v1435 = vshll.u32 %v1432, 16
      %v1437 = vrot.slane %v1435, 5
      %v1438 = vshrl.u32 %v1432, 16
      %v1440 = vrot.slane %v1438, 4
      %v1441 = vor.u32 %v1440, %v1437
      %v1442 = vrot.slane %v1441, 4
      %v1444 = vshll.u32 %v1433, 16
      %v1446 = vrot.slane %v1444, 5
      %v1447 = vsel %vm618, %v1442, %v1446
      %v1448 = vshrl.u32 %v1433, 16
      %v1450 = vrot.slane %v1448, 4
      %v1451 = vor.u32 %v1450, %v1446
      %v1452 = vrot.slane %v1451, 4
      %v1456 = vld [vmem:[#allocation2 + $0x18c] sm:$0x8]
      %v1457 = vsel %vm643, %v1437, %v1456
      %1458 = vst [vmem:[#allocation2 + $0x18c] sm:$0x8] %v1457
      %1459 = vst [vmem:[#allocation2 + $0x198] sm:$0xf] %v1447
      %v1460 = vld [vmem:[#allocation2 + $0x1a4] sm:$0xf]
      %v1461 = vsel %vm648, %v1452, %v1460
      %1462 = vst [vmem:[#allocation2 + $0x1a4] sm:$0xf] %v1461
      %v1463 = vrot.slane %v1432, 5
      %v1464 = vrot.slane %v1463, 4
      %v1465 = vrot.slane %v1433, 5
      %v1466 = vsel %vm653, %v1464, %v1465
      %v1467 = vrot.slane %v1465, 4
      %1471 = vst [vmem:[#allocation2 + $0x190] sm:$0x8] %v1463
      %1472 = vst [vmem:[#allocation2 + $0x19c] sm:$0xf] %v1466
      %1473 = vst [vmem:[#allocation2 + $0x1a8] sm:$0x7] %v1467
      %v1474 = vrot.slane %v1438, 5
      %v1475 = vrot.slane %v1435, 6
      %v1476 = vor.u32 %v1474, %v1475
      %v1477 = vrot.slane %v1476, 4
      %v1478 = vrot.slane %v1448, 5
      %v1479 = vrot.slane %v1444, 6
      %v1480 = vor.u32 %v1478, %v1479
      %v1481 = vsel %vm535, %v1477, %v1480
      %v1482 = vrot.slane %v1480, 4
      %v1486 = vld [vmem:[#allocation2 + $0x194] sm:$0xc]
      %v1487 = vsel %vm560, %v1476, %v1486
      %1488 = vst [vmem:[#allocation2 + $0x194] sm:$0xc] %v1487
      %1489 = vst [vmem:[#allocation2 + $0x1a0] sm:$0xf] %v1481
      %v1490 = vld [vmem:[#allocation2 + $0x1ac] sm:$0x7]
      %v1491 = vsel %vm566, %v1482, %v1490
      %1492 = vst [vmem:[#allocation2 + $0x1ac] sm:$0x7] %v1491
      %v1493 = vld [vmem:[#allocation2 + $0x18c] sm:$0x8]
      %v1494 = vsel %vm684, 0, %v1493
      %1495 = vst [vmem:[#allocation2 + $0x18c] sm:$0x8] %v1494
      %v1496 = vld [vmem:[#allocation2 + $0x1ac] sm:$0x4]
      %v1497 = vsel %vm688, 0, %v1496
      %1498 = vst [vmem:[#allocation2 + $0x1ac] sm:$0x4] %v1497
      %v1500 = vunpack.c.l.b16 %v426
      %v1501 = vunpack.c.h.b16 %v426
      %v1502 = vpack.c.b16 %v1500, %v1500
      %v1503 = vpack.c.b16 %v1501, %v1501
      %v1505 = vshrl.u32 %v1502, 16
      %v1507 = vrot.slane %v1505, 7
      %v1508 = vshll.u32 %v1502, 16
      %v1510 = vor.u32 %v1507, %v1508
      %v1511 = vrot.slane %v1507, 4
      %v1513 = vshrl.u32 %v1503, 16
      %v1515 = vrot.slane %v1513, 7
      %v1516 = vshll.u32 %v1503, 16
      %v1518 = vor.u32 %v1515, %v1516
      %v1519 = vsel %vm497, %v1511, %v1518
      %v1520 = vrot.slane %v1515, 4
      %v1524 = vld [vmem:[#allocation2 + $0x1b0] sm:$0xf]
      %v1525 = vsel %vm510, %v1510, %v1524
      %1526 = vst [vmem:[#allocation2 + $0x1b0] sm:$0xf] %v1525
      %1527 = vst [vmem:[#allocation2 + $0x1bc] sm:$0xf] %v1519
      %v1528 = vld [vmem:[#allocation2 + $0x1c8] sm:$0x1]
      %v1529 = vsel %vm515, %v1520, %v1528
      %1530 = vst [vmem:[#allocation2 + $0x1c8] sm:$0x1] %v1529
      %1533 = vst [vmem:[#allocation2 + $0x1b4] sm:$0xf] %v1502
      %1534 = vst [vmem:[#allocation2 + $0x1c0] sm:$0xf] %v1503
      %v1535 = vrot.slane %v1508, 5
      %v1536 = vrot.slane %v1505, 4
      %v1537 = vor.u32 %v1536, %v1535
      %v1538 = vrot.slane %v1537, 4
      %v1539 = vrot.slane %v1516, 5
      %v1540 = vsel %vm618, %v1538, %v1539
      %v1541 = vrot.slane %v1513, 4
      %v1542 = vor.u32 %v1541, %v1539
      %v1543 = vrot.slane %v1542, 4
      %v1547 = vld [vmem:[#allocation2 + $0x1ac] sm:$0x8]
      %v1548 = vsel %vm643, %v1535, %v1547
      %1549 = vst [vmem:[#allocation2 + $0x1ac] sm:$0x8] %v1548
      %1550 = vst [vmem:[#allocation2 + $0x1b8] sm:$0xf] %v1540
      %v1551 = vld [vmem:[#allocation2 + $0x1c4] sm:$0xf]
      %v1552 = vsel %vm648, %v1543, %v1551
      %1553 = vst [vmem:[#allocation2 + $0x1c4] sm:$0xf] %v1552
      %v1554 = vld [vmem:[#allocation2 + $0x1b0] sm:$0x1]
      %v1555 = vsel %vm515, 0, %v1554
      %1556 = vst [vmem:[#allocation2 + $0x1b0] sm:$0x1] %v1555
      %v1557 = vld [vmem:[#allocation2 + $0x1c4] sm:$0x8]
      %v1558 = vsel %vm643, 0, %v1557
      %1559 = vst [vmem:[#allocation2 + $0x1c4] sm:$0x8] %v1558
      %v1560 = vld [vmem:[#allocation2] sm:$0xff]
      %v1561 = vld [vmem:[#allocation2 + $0x8] sm:$0xf]
      %v1562 = vld [vmem:[#allocation2 + $0xc] sm:$0xff]
      %v1563 = vld [vmem:[#allocation2 + $0x14] sm:$0xf]
      %v1564 = vld [vmem:[#allocation2 + $0x18] sm:$0xff]
      %v1565 = vld [vmem:[#allocation2 + $0x20] sm:$0xf]
      %v1566 = vld [vmem:[#allocation2 + $0x24] sm:$0xff]
      %v1567 = vld [vmem:[#allocation2 + $0x2c] sm:$0xf]
      %v1568 = vld [vmem:[#allocation2 + $0x30] sm:$0xff]
      %v1569 = vld [vmem:[#allocation2 + $0x38] sm:$0xf]
      %v1570 = vld [vmem:[#allocation2 + $0x3c] sm:$0xff]
      %v1571 = vld [vmem:[#allocation2 + $0x44] sm:$0xf]
      %v1572 = vld [vmem:[#allocation2 + $0x48] sm:$0xff]
      %v1573 = vld [vmem:[#allocation2 + $0x50] sm:$0xf]
      %v1574 = vld [vmem:[#allocation2 + $0x54] sm:$0xff]
      %v1575 = vld [vmem:[#allocation2 + $0x5c] sm:$0xf]
      %v1576 = vld [vmem:[#allocation2 + $0x60] sm:$0xff]
      %v1577 = vld [vmem:[#allocation2 + $0x68] sm:$0xf]
      %v1578 = vld [vmem:[#allocation2 + $0x6c] sm:$0xff]
      %v1579 = vld [vmem:[#allocation2 + $0x74] sm:$0xf]
      %v1580 = vld [vmem:[#allocation2 + $0x78] sm:$0xff]
      %v1581 = vld [vmem:[#allocation2 + $0x80] sm:$0xf]
      %v1582 = vld [vmem:[#allocation2 + $0x84] sm:$0xff]
      %v1583 = vld [vmem:[#allocation2 + $0x8c] sm:$0xf]
      %v1584 = vld [vmem:[#allocation2 + $0x90] sm:$0xff]
      %v1585 = vld [vmem:[#allocation2 + $0x98] sm:$0xf]
      %v1586 = vld [vmem:[#allocation2 + $0x9c] sm:$0xff]
      %v1587 = vld [vmem:[#allocation2 + $0xa4] sm:$0xf]
      %v1588 = vld [vmem:[#allocation2 + $0xa8] sm:$0xff]
      %v1589 = vld [vmem:[#allocation2 + $0xb0] sm:$0xf]
      %v1590 = vld [vmem:[#allocation2 + $0xb4] sm:$0xff]
      %v1591 = vld [vmem:[#allocation2 + $0xbc] sm:$0xf]
      %v1592 = vld [vmem:[#allocation2 + $0xc0] sm:$0xff]
      %v1593 = vld [vmem:[#allocation2 + $0xc8] sm:$0xf]
      %v1594 = vld [vmem:[#allocation2 + $0xcc] sm:$0xff]
      %v1595 = vld [vmem:[#allocation2 + $0xd4] sm:$0xf]
      %v1596 = vld [vmem:[#allocation2 + $0xd8] sm:$0xff]
      %v1597 = vld [vmem:[#allocation2 + $0xe0] sm:$0xf]
      %v1598 = vld [vmem:[#allocation2 + $0xe4] sm:$0xff]
      %v1599 = vld [vmem:[#allocation2 + $0xec] sm:$0xf]
      %v1600 = vld [vmem:[#allocation2 + $0xf0] sm:$0xff]
      %v1601 = vld [vmem:[#allocation2 + $0xf8] sm:$0xf]
      %v1602 = vld [vmem:[#allocation2 + $0xfc] sm:$0xff]
      %v1603 = vld [vmem:[#allocation2 + $0x104] sm:$0xf]
      %v1604 = vld [vmem:[#allocation2 + $0x108] sm:$0xff]
      %v1605 = vld [vmem:[#allocation2 + $0x110] sm:$0xf]
      %v1606 = vld [vmem:[#allocation2 + $0x114] sm:$0xff]
      %v1607 = vld [vmem:[#allocation2 + $0x11c] sm:$0xf]
      %v1608 = vld [vmem:[#allocation2 + $0x120] sm:$0xff]
      %v1609 = vld [vmem:[#allocation2 + $0x128] sm:$0xf]
      %v1610 = vld [vmem:[#allocation2 + $0x12c] sm:$0xff]
      %v1611 = vld [vmem:[#allocation2 + $0x134] sm:$0xf]
      %v1612 = vld [vmem:[#allocation2 + $0x138] sm:$0xff]
      %v1613 = vld [vmem:[#allocation2 + $0x140] sm:$0xf]
      %v1614 = vld [vmem:[#allocation2 + $0x144] sm:$0xff]
      %v1615 = vld [vmem:[#allocation2 + $0x14c] sm:$0xf]
      %v1616 = vld [vmem:[#allocation2 + $0x150] sm:$0xff]
      %v1617 = vld [vmem:[#allocation2 + $0x158] sm:$0xf]
      %v1618 = vld [vmem:[#allocation2 + $0x15c] sm:$0xff]
      %v1619 = vld [vmem:[#allocation2 + $0x164] sm:$0xf]
      %v1620 = vld [vmem:[#allocation2 + $0x168] sm:$0xff]
      %v1621 = vld [vmem:[#allocation2 + $0x170] sm:$0xf]
      %v1622 = vld [vmem:[#allocation2 + $0x174] sm:$0xff]
      %v1623 = vld [vmem:[#allocation2 + $0x17c] sm:$0xf]
      %v1624 = vld [vmem:[#allocation2 + $0x180] sm:$0xff]
      %v1625 = vld [vmem:[#allocation2 + $0x188] sm:$0xf]
      %v1626 = vld [vmem:[#allocation2 + $0x18c] sm:$0xff]
      %v1627 = vld [vmem:[#allocation2 + $0x194] sm:$0xf]
      %v1628 = vld [vmem:[#allocation2 + $0x198] sm:$0xff]
      %v1629 = vld [vmem:[#allocation2 + $0x1a0] sm:$0xf]
      %v1630 = vld [vmem:[#allocation2 + $0x1a4] sm:$0xff]
      %v1631 = vld [vmem:[#allocation2 + $0x1ac] sm:$0xf]
      %v1632 = vld [vmem:[%s3] sm:$0xf]
      %v1633 = vld [vmem:[%s3 + $0x4] sm:$0xf]
      %v1634 = vld [vmem:[%s3 + $0x8] sm:$0xf]
      %v1635 = vld [vmem:[%s3 + $0xc] sm:$0xf]
      %v1636 = vld [vmem:[%s3 + $0x10] sm:$0xf]
      %v1637 = vld [vmem:[%s3 + $0x14] sm:$0xf]
      %v1638 = vld [vmem:[%s3 + $0x18] sm:$0xf]
      %v1639 = vld [vmem:[%s3 + $0x1c] sm:$0xf]
      %v1640 = vld [vmem:[%s3 + $0x20] sm:$0xf]
      %v1641 = vld [vmem:[%s3 + $0x24] sm:$0xf]
      %v1642 = vld [vmem:[%s3 + $0x28] sm:$0xf]
      %v1643 = vld [vmem:[%s3 + $0x2c] sm:$0xf]
      %v1644 = vld [vmem:[%s3 + $0x30] sm:$0xf]
      %v1645 = vld [vmem:[%s3 + $0x34] sm:$0xf]
      %v1646 = vld [vmem:[%s3 + $0x38] sm:$0xf]
      %v1647 = vld [vmem:[%s3 + $0x3c] sm:$0xf]
      %v1648 = vld [vmem:[%s3 + $0x40] sm:$0xf]
      %v1649 = vld [vmem:[%s3 + $0x44] sm:$0xf]
      %v1650 = vld [vmem:[%s3 + $0x48] sm:$0xf]
      %v1651 = vld [vmem:[%s3 + $0x4c] sm:$0xf]
      %v1652 = vld [vmem:[%s3 + $0x50] sm:$0xf]
      %v1653 = vld [vmem:[%s3 + $0x54] sm:$0xf]
      %v1654 = vld [vmem:[%s3 + $0x58] sm:$0xf]
      %v1655 = vld [vmem:[%s3 + $0x5c] sm:$0xf]
      %v1656 = vld [vmem:[%s3 + $0x60] sm:$0xf]
      %v1657 = vld [vmem:[%s3 + $0x64] sm:$0xf]
      %v1658 = vld [vmem:[%s3 + $0x68] sm:$0xf]
      %v1659 = vld [vmem:[%s3 + $0x6c] sm:$0xf]
      %v1660 = vld [vmem:[%s3 + $0x70] sm:$0xf]
      %v1661 = vld [vmem:[%s3 + $0x74] sm:$0xf]
      %v1662 = vld [vmem:[%s3 + $0x78] sm:$0xf]
      %v1663 = vld [vmem:[%s3 + $0x7c] sm:$0xf]
      %v1664 = vld [vmem:[%s3 + $0x80] sm:$0xf]
      %v1665 = vld [vmem:[%s3 + $0x84] sm:$0xf]
      %v1666 = vld [vmem:[%s3 + $0x88] sm:$0xf]
      %v1667 = vld [vmem:[%s3 + $0x8c] sm:$0xf]
      %v1668 = vld [vmem:[%s3 + $0x90] sm:$0xf]
      %v1669 = vld [vmem:[%s3 + $0x94] sm:$0xf]
      %v1670 = vld [vmem:[%s3 + $0x98] sm:$0xf]
      %v1671 = vld [vmem:[%s3 + $0x9c] sm:$0xf]
      %v1672 = vld [vmem:[%s3 + $0xa0] sm:$0xf]
      %v1673 = vld [vmem:[%s3 + $0xa4] sm:$0xf]
      %v1674 = vld [vmem:[%s3 + $0xa8] sm:$0xf]
      %v1675 = vld [vmem:[%s3 + $0xac] sm:$0xf]
      %v1676 = vld [vmem:[%s3 + $0xb0] sm:$0xf]
      %v1677 = vld [vmem:[%s3 + $0xb4] sm:$0xf]
      %v1678 = vld [vmem:[%s3 + $0xb8] sm:$0xf]
      %v1679 = vld [vmem:[%s3 + $0xbc] sm:$0xf]
      %v1680 = vld [vmem:[#allocation2 + $0x18] sm:$0xee]
      %v1681 = vld [vmem:[#allocation2 + $0x20] sm:$0xe]
      %v1682 = vld [vmem:[#allocation2 + $0x1b0] sm:$0xff]
      %v1683 = vld [vmem:[#allocation2 + $0x1b8] sm:$0xf]
      %v1684 = vld [vmem:[#allocation2 + $0x1bc] sm:$0xff]
      %v1685 = vld [vmem:[#allocation2 + $0x1c4] sm:$0xf]
      %v1686 = vld [vmem:[#allocation2 + $0x1c8] sm:$0x11]
      %v1687 = vld [vmem:[#allocation2 + $0x1d0] sm:$0x1]
      %s1688 = scalar_lea.vmem %s3, 192
      %v1689 = vld [vmem:[%s1688] sm:$0xf]
      %v1690 = vld [vmem:[%s1688 + $0x4] sm:$0xf]
      %v1691 = vld [vmem:[%s1688 + $0x8] sm:$0xf]
      %v1692 = vld [vmem:[%s1688 + $0xc] sm:$0xf]
      %v1693 = vld [vmem:[%s1688 + $0x10] sm:$0xf]
      %v1694 = vld [vmem:[%s1688 + $0x14] sm:$0xf]
      %v1695 = vld [vmem:[%s1688 + $0x18] sm:$0xf]
      %v1696 = vld [vmem:[%s1688 + $0x1c] sm:$0xf]
      %v1697 = vld [vmem:[%s1688 + $0x20] sm:$0xf]
      %v1698 = vld [vmem:[%s1688 + $0x24] sm:$0xf]
      %v1699 = vld [vmem:[%s1688 + $0x28] sm:$0xf]
      %v1700 = vld [vmem:[%s1688 + $0x2c] sm:$0xf]
      %v1701 = vld [vmem:[%s1688 + $0x30] sm:$0xf]
      %v1702 = vld [vmem:[%s1688 + $0x34] sm:$0xf]
      %v1703 = vld [vmem:[%s1688 + $0x38] sm:$0xf]
      %v1704 = vld [vmem:[%s1688 + $0x3c] sm:$0xf]
      %v1705 = vld [vmem:[%s1688 + $0x40] sm:$0xf]
      %v1706 = vld [vmem:[%s1688 + $0x44] sm:$0xf]
      %v1707 = vld [vmem:[%s1688 + $0x48] sm:$0xf]
      %v1708 = vld [vmem:[%s1688 + $0x4c] sm:$0xf]
      %v1709 = vld [vmem:[%s1688 + $0x50] sm:$0xf]
      %v1710 = vld [vmem:[%s1688 + $0x54] sm:$0xf]
      %v1711 = vld [vmem:[%s1688 + $0x58] sm:$0xf]
      %v1712 = vld [vmem:[%s1688 + $0x5c] sm:$0xf]
      %v1713 = vld [vmem:[%s1688 + $0x60] sm:$0xf]
      %v1714 = vld [vmem:[%s1688 + $0x64] sm:$0xf]
      %v1715 = vld [vmem:[%s1688 + $0x68] sm:$0xf]
      %v1716 = vld [vmem:[%s1688 + $0x6c] sm:$0xf]
      %v1717 = vld [vmem:[%s1688 + $0x70] sm:$0xf]
      %v1718 = vld [vmem:[%s1688 + $0x74] sm:$0xf]
      %v1719 = vld [vmem:[%s1688 + $0x78] sm:$0xf]
      %v1720 = vld [vmem:[%s1688 + $0x7c] sm:$0xf]
      %v1721 = vld [vmem:[%s1688 + $0x80] sm:$0xf]
      %v1722 = vld [vmem:[%s1688 + $0x84] sm:$0xf]
      %v1723 = vld [vmem:[%s1688 + $0x88] sm:$0xf]
      %v1724 = vld [vmem:[%s1688 + $0x8c] sm:$0xf]
      %v1725 = vld [vmem:[%s1688 + $0x90] sm:$0xf]
      %v1726 = vld [vmem:[%s1688 + $0x94] sm:$0xf]
      %v1727 = vld [vmem:[%s1688 + $0x98] sm:$0xf]
      %v1728 = vld [vmem:[%s1688 + $0x9c] sm:$0xf]
      %v1729 = vld [vmem:[%s1688 + $0xa0] sm:$0xf]
      %v1730 = vld [vmem:[%s1688 + $0xa4] sm:$0xf]
      %v1731 = vld [vmem:[%s1688 + $0xa8] sm:$0xf]
      %v1732 = vld [vmem:[%s1688 + $0xac] sm:$0xf]
      %v1733 = vld [vmem:[%s1688 + $0xb0] sm:$0xf]
      %v1734 = vld [vmem:[%s1688 + $0xb4] sm:$0xf]
      %v1735 = vld [vmem:[%s1688 + $0xb8] sm:$0xf]
      %v1736 = vld [vmem:[%s1688 + $0xbc] sm:$0xf]
      %v1811 = vunpack.c.l.b16 %v1680
      %v1812 = vunpack.c.h.b16 %v1680
      %v1813 = vunpack.c.l.b16 %v1681
      %v1814 = vunpack.c.l.b16 %v1566
      %v1815 = vunpack.c.h.b16 %v1566
      %v1816 = vunpack.c.l.b16 %v1567
      %v1817 = vunpack.c.l.b16 %v1568
      %v1818 = vunpack.c.h.b16 %v1568
      %v1819 = vunpack.c.l.b16 %v1569
      %v1820 = vunpack.c.l.b16 %v1570
      %v1821 = vunpack.c.h.b16 %v1570
      %v1822 = vunpack.c.l.b16 %v1571
      %v1823 = vunpack.c.l.b16 %v1572
      %v1824 = vunpack.c.h.b16 %v1572
      %v1825 = vunpack.c.l.b16 %v1573
      %v1826 = vunpack.c.l.b16 %v1574
      %v1827 = vunpack.c.h.b16 %v1574
      %v1828 = vunpack.c.l.b16 %v1575
      %v1829 = vunpack.c.l.b16 %v1576
      %v1830 = vunpack.c.h.b16 %v1576
      %v1831 = vunpack.c.l.b16 %v1577
      %v1832 = vunpack.c.l.b16 %v1578
      %v1833 = vunpack.c.h.b16 %v1578
      %v1834 = vunpack.c.l.b16 %v1579
      %v1835 = vunpack.c.l.b16 %v1580
      %v1836 = vunpack.c.h.b16 %v1580
      %v1837 = vunpack.c.l.b16 %v1581
      %v1838 = vunpack.c.l.b16 %v1582
      %v1839 = vunpack.c.h.b16 %v1582
      %v1840 = vunpack.c.l.b16 %v1583
      %v1841 = vunpack.c.l.b16 %v1584
      %v1842 = vunpack.c.h.b16 %v1584
      %v1843 = vunpack.c.l.b16 %v1585
      %v1844 = vunpack.c.l.b16 %v1586
      %v1845 = vunpack.c.h.b16 %v1586
      %v1846 = vunpack.c.l.b16 %v1587
      %v1847 = vunpack.c.l.b16 %v1588
      %v1848 = vunpack.c.h.b16 %v1588
      %v1849 = vunpack.c.l.b16 %v1589
      %v1850 = vunpack.c.l.b16 %v1590
      %v1851 = vunpack.c.h.b16 %v1590
      %v1852 = vunpack.c.l.b16 %v1591
      %v1853 = vunpack.c.l.b16 %v1592
      %v1854 = vunpack.c.h.b16 %v1592
      %v1855 = vunpack.c.l.b16 %v1593
      %v1856 = vunpack.c.l.b16 %v1594
      %v1857 = vunpack.c.h.b16 %v1594
      %v1858 = vunpack.c.l.b16 %v1595
      %v1859 = vunpack.c.l.b16 %v1596
      %v1860 = vunpack.c.h.b16 %v1596
      %v1861 = vunpack.c.l.b16 %v1597
      %v1862 = vunpack.c.l.b16 %v1598
      %v1863 = vunpack.c.h.b16 %v1598
      %v1864 = vunpack.c.l.b16 %v1599
      %v1865 = vunpack.c.l.b16 %v1600
      %v1866 = vunpack.c.h.b16 %v1600
      %v1867 = vunpack.c.l.b16 %v1601
      %v1868 = vunpack.c.l.b16 %v1602
      %v1869 = vunpack.c.h.b16 %v1602
      %v1870 = vunpack.c.l.b16 %v1603
      %v1871 = vunpack.c.l.b16 %v1604
      %v1872 = vunpack.c.h.b16 %v1604
      %v1873 = vunpack.c.l.b16 %v1605
      %v1874 = vunpack.c.l.b16 %v1606
      %v1875 = vunpack.c.h.b16 %v1606
      %v1876 = vunpack.c.l.b16 %v1607
      %v1877 = vunpack.c.l.b16 %v1608
      %v1878 = vunpack.c.h.b16 %v1608
      %v1879 = vunpack.c.l.b16 %v1609
      %v1880 = vunpack.c.l.b16 %v1610
      %v1881 = vunpack.c.h.b16 %v1610
      %v1882 = vunpack.c.l.b16 %v1611
      %v1883 = vunpack.c.l.b16 %v1612
      %v1884 = vunpack.c.h.b16 %v1612
      %v1885 = vunpack.c.l.b16 %v1613
      %v1886 = vunpack.c.l.b16 %v1614
      %v1887 = vunpack.c.h.b16 %v1614
      %v1888 = vunpack.c.l.b16 %v1615
      %v1889 = vunpack.c.l.b16 %v1616
      %v1890 = vunpack.c.h.b16 %v1616
      %v1891 = vunpack.c.l.b16 %v1617
      %v1892 = vunpack.c.l.b16 %v1618
      %v1893 = vunpack.c.h.b16 %v1618
      %v1894 = vunpack.c.l.b16 %v1619
      %v1895 = vunpack.c.l.b16 %v1620
      %v1896 = vunpack.c.h.b16 %v1620
      %v1897 = vunpack.c.l.b16 %v1621
      %v1898 = vunpack.c.l.b16 %v1622
      %v1899 = vunpack.c.h.b16 %v1622
      %v1900 = vunpack.c.l.b16 %v1623
      %v1901 = vunpack.c.l.b16 %v1624
      %v1902 = vunpack.c.h.b16 %v1624
      %v1903 = vunpack.c.l.b16 %v1625
      %v1904 = vunpack.c.l.b16 %v1626
      %v1905 = vunpack.c.h.b16 %v1626
      %v1906 = vunpack.c.l.b16 %v1627
      %v1907 = vunpack.c.l.b16 %v1628
      %v1908 = vunpack.c.h.b16 %v1628
      %v1909 = vunpack.c.l.b16 %v1629
      %v1910 = vunpack.c.l.b16 %v1630
      %v1911 = vunpack.c.h.b16 %v1630
      %v1912 = vunpack.c.l.b16 %v1631
      %v1913 = vunpack.c.l.b16 %v1682
      %v1914 = vunpack.c.h.b16 %v1682
      %v1915 = vunpack.c.l.b16 %v1683
      %v1916 = vunpack.c.l.b16 %v1684
      %v1917 = vunpack.c.h.b16 %v1684
      %v1918 = vunpack.c.l.b16 %v1685
      %v1919 = vunpack.c.l.b16 %v1686
      %v1920 = vunpack.c.h.b16 %v1686
      %v1921 = vunpack.c.l.b16 %v1687
      %v1922 = vpack.c.b16 %v1814, %v1811
      %v1923 = vpack.c.b16 %v1815, %v1812
      %v1924 = vpack.c.b16 %v1816, %v1813
      %v1925 = vpack.c.b16 %v1820, %v1817
      %v1926 = vpack.c.b16 %v1821, %v1818
      %v1927 = vpack.c.b16 %v1822, %v1819
      %v1928 = vpack.c.b16 %v1826, %v1823
      %v1929 = vpack.c.b16 %v1827, %v1824
      %v1930 = vpack.c.b16 %v1828, %v1825
      %v1931 = vpack.c.b16 %v1832, %v1829
      %v1932 = vpack.c.b16 %v1833, %v1830
      %v1933 = vpack.c.b16 %v1834, %v1831
      %v1934 = vpack.c.b16 %v1838, %v1835
      %v1935 = vpack.c.b16 %v1839, %v1836
      %v1936 = vpack.c.b16 %v1840, %v1837
      %v1937 = vpack.c.b16 %v1844, %v1841
      %v1938 = vpack.c.b16 %v1845, %v1842
      %v1939 = vpack.c.b16 %v1846, %v1843
      %v1940 = vpack.c.b16 %v1850, %v1847
      %v1941 = vpack.c.b16 %v1851, %v1848
      %v1942 = vpack.c.b16 %v1852, %v1849
      %v1943 = vpack.c.b16 %v1856, %v1853
      %v1944 = vpack.c.b16 %v1857, %v1854
      %v1945 = vpack.c.b16 %v1858, %v1855
      %v1946 = vpack.c.b16 %v1862, %v1859
      %v1947 = vpack.c.b16 %v1863, %v1860
      %v1948 = vpack.c.b16 %v1864, %v1861
      %v1949 = vpack.c.b16 %v1868, %v1865
      %v1950 = vpack.c.b16 %v1869, %v1866
      %v1951 = vpack.c.b16 %v1870, %v1867
      %v1952 = vpack.c.b16 %v1874, %v1871
      %v1953 = vpack.c.b16 %v1875, %v1872
      %v1954 = vpack.c.b16 %v1876, %v1873
      %v1955 = vpack.c.b16 %v1880, %v1877
      %v1956 = vpack.c.b16 %v1881, %v1878
      %v1957 = vpack.c.b16 %v1882, %v1879
      %v1958 = vpack.c.b16 %v1886, %v1883
      %v1959 = vpack.c.b16 %v1887, %v1884
      %v1960 = vpack.c.b16 %v1888, %v1885
      %v1961 = vpack.c.b16 %v1892, %v1889
      %v1962 = vpack.c.b16 %v1893, %v1890
      %v1963 = vpack.c.b16 %v1894, %v1891
      %v1964 = vpack.c.b16 %v1898, %v1895
      %v1965 = vpack.c.b16 %v1899, %v1896
      %v1966 = vpack.c.b16 %v1900, %v1897
      %v1967 = vpack.c.b16 %v1904, %v1901
      %v1968 = vpack.c.b16 %v1905, %v1902
      %v1969 = vpack.c.b16 %v1906, %v1903
      %v1970 = vpack.c.b16 %v1910, %v1907
      %v1971 = vpack.c.b16 %v1911, %v1908
      %v1972 = vpack.c.b16 %v1912, %v1909
      %v1973 = vpack.c.b16 %v1916, %v1913
      %v1974 = vpack.c.b16 %v1917, %v1914
      %v1975 = vpack.c.b16 %v1918, %v1915
      %v1976 = vpack.c.b16 %v1919, %v1919
      %v1977 = vpack.c.b16 %v1920, %v1920
      %v1978 = vpack.c.b16 %v1921, %v1921
      %vm1979 = vcmask 1046528
      %v1980 = vrot.slane %v1922, 1
      %v1981 = vrot.slane %v1925, 1
      %v1982 = vsel %vm1979, %v1980, %v1981
      %v1983 = vrot.slane %v1923, 1
      %v1984 = vrot.slane %v1926, 1
      %v1985 = vsel %vm1979, %v1983, %v1984
      %v1986 = vrot.slane %v1924, 1
      %v1987 = vrot.slane %v1927, 1
      %v1988 = vsel %vm1979, %v1986, %v1987
      %v1989 = vrot.slane %v1928, 1
      %v1990 = vsel %vm1979, %v1981, %v1989
      %v1991 = vrot.slane %v1929, 1
      %v1992 = vsel %vm1979, %v1984, %v1991
      %v1993 = vrot.slane %v1930, 1
      %v1994 = vsel %vm1979, %v1987, %v1993
      %v1995 = vrot.slane %v1931, 1
      %v1996 = vsel %vm1979, %v1989, %v1995
      %v1997 = vrot.slane %v1932, 1
      %v1998 = vsel %vm1979, %v1991, %v1997
      %v1999 = vrot.slane %v1933, 1
      %v2000 = vsel %vm1979, %v1993, %v1999
      %v2001 = vrot.slane %v1934, 1
      %v2002 = vsel %vm1979, %v1995, %v2001
      %v2003 = vrot.slane %v1935, 1
      %v2004 = vsel %vm1979, %v1997, %v2003
      %v2005 = vrot.slane %v1936, 1
      %v2006 = vsel %vm1979, %v1999, %v2005
      %v2007 = vrot.slane %v1937, 1
      %v2008 = vsel %vm1979, %v2001, %v2007
      %v2009 = vrot.slane %v1938, 1
      %v2010 = vsel %vm1979, %v2003, %v2009
      %v2011 = vrot.slane %v1939, 1
      %v2012 = vsel %vm1979, %v2005, %v2011
      %v2013 = vrot.slane %v1940, 1
      %v2014 = vsel %vm1979, %v2007, %v2013
      %v2015 = vrot.slane %v1941, 1
      %v2016 = vsel %vm1979, %v2009, %v2015
      %v2017 = vrot.slane %v1942, 1
      %v2018 = vsel %vm1979, %v2011, %v2017
      %v2019 = vrot.slane %v1943, 1
      %v2020 = vsel %vm1979, %v2013, %v2019
      %v2021 = vrot.slane %v1944, 1
      %v2022 = vsel %vm1979, %v2015, %v2021
      %v2023 = vrot.slane %v1945, 1
      %v2024 = vsel %vm1979, %v2017, %v2023
      %v2025 = vrot.slane %v1946, 1
      %v2026 = vsel %vm1979, %v2019, %v2025
      %v2027 = vrot.slane %v1947, 1
      %v2028 = vsel %vm1979, %v2021, %v2027
      %v2029 = vrot.slane %v1948, 1
      %v2030 = vsel %vm1979, %v2023, %v2029
      %v2031 = vrot.slane %v1949, 1
      %v2032 = vsel %vm1979, %v2025, %v2031
      %v2033 = vrot.slane %v1950, 1
      %v2034 = vsel %vm1979, %v2027, %v2033
      %v2035 = vrot.slane %v1951, 1
      %v2036 = vsel %vm1979, %v2029, %v2035
      %v2037 = vrot.slane %v1952, 1
      %v2038 = vsel %vm1979, %v2031, %v2037
      %v2039 = vrot.slane %v1953, 1
      %v2040 = vsel %vm1979, %v2033, %v2039
      %v2041 = vrot.slane %v1954, 1
      %v2042 = vsel %vm1979, %v2035, %v2041
      %v2043 = vrot.slane %v1955, 1
      %v2044 = vsel %vm1979, %v2037, %v2043
      %v2045 = vrot.slane %v1956, 1
      %v2046 = vsel %vm1979, %v2039, %v2045
      %v2047 = vrot.slane %v1957, 1
      %v2048 = vsel %vm1979, %v2041, %v2047
      %v2049 = vrot.slane %v1958, 1
      %v2050 = vsel %vm1979, %v2043, %v2049
      %v2051 = vrot.slane %v1959, 1
      %v2052 = vsel %vm1979, %v2045, %v2051
      %v2053 = vrot.slane %v1960, 1
      %v2054 = vsel %vm1979, %v2047, %v2053
      %v2055 = vrot.slane %v1961, 1
      %v2056 = vsel %vm1979, %v2049, %v2055
      %v2057 = vrot.slane %v1962, 1
      %v2058 = vsel %vm1979, %v2051, %v2057
      %v2059 = vrot.slane %v1963, 1
      %v2060 = vsel %vm1979, %v2053, %v2059
      %v2061 = vrot.slane %v1964, 1
      %v2062 = vsel %vm1979, %v2055, %v2061
      %v2063 = vrot.slane %v1965, 1
      %v2064 = vsel %vm1979, %v2057, %v2063
      %v2065 = vrot.slane %v1966, 1
      %v2066 = vsel %vm1979, %v2059, %v2065
      %v2067 = vrot.slane %v1967, 1
      %v2068 = vsel %vm1979, %v2061, %v2067
      %v2069 = vrot.slane %v1968, 1
      %v2070 = vsel %vm1979, %v2063, %v2069
      %v2071 = vrot.slane %v1969, 1
      %v2072 = vsel %vm1979, %v2065, %v2071
      %v2073 = vrot.slane %v1970, 1
      %v2074 = vsel %vm1979, %v2067, %v2073
      %v2075 = vrot.slane %v1971, 1
      %v2076 = vsel %vm1979, %v2069, %v2075
      %v2077 = vrot.slane %v1972, 1
      %v2078 = vsel %vm1979, %v2071, %v2077
      %v2079 = vrot.slane %v1973, 1
      %v2080 = vsel %vm1979, %v2073, %v2079
      %v2081 = vrot.slane %v1974, 1
      %v2082 = vsel %vm1979, %v2075, %v2081
      %v2083 = vrot.slane %v1975, 1
      %v2084 = vsel %vm1979, %v2077, %v2083
      %v2085 = vrot.slane %v1976, 1
      %v2086 = vsel %vm1979, %v2079, %v2085
      %v2087 = vrot.slane %v1977, 1
      %v2088 = vsel %vm1979, %v2081, %v2087
      %v2089 = vrot.slane %v1978, 1
      %v2090 = vsel %vm1979, %v2083, %v2089
      %v2193 = vunpack.c.l.b16 %v1689
      %v2194 = vunpack.c.l.b16 %v1690
      %v2195 = vunpack.c.l.b16 %v1691
      %v2196 = vunpack.c.l.b16 %v1692
      %v2197 = vunpack.c.l.b16 %v1693
      %v2198 = vunpack.c.l.b16 %v1694
      %v2199 = vunpack.c.l.b16 %v1695
      %v2200 = vunpack.c.l.b16 %v1696
      %v2201 = vunpack.c.l.b16 %v1697
      %v2202 = vunpack.c.l.b16 %v1698
      %v2203 = vunpack.c.l.b16 %v1699
      %v2204 = vunpack.c.l.b16 %v1700
      %v2205 = vunpack.c.l.b16 %v1701
      %v2206 = vunpack.c.l.b16 %v1702
      %v2207 = vunpack.c.l.b16 %v1703
      %v2208 = vunpack.c.l.b16 %v1704
      %v2209 = vunpack.c.l.b16 %v1705
      %v2210 = vunpack.c.l.b16 %v1706
      %v2211 = vunpack.c.l.b16 %v1707
      %v2212 = vunpack.c.l.b16 %v1708
      %v2213 = vunpack.c.l.b16 %v1709
      %v2214 = vunpack.c.l.b16 %v1710
      %v2215 = vunpack.c.l.b16 %v1711
      %v2216 = vunpack.c.l.b16 %v1712
      %v2217 = vunpack.c.l.b16 %v1713
      %v2218 = vunpack.c.l.b16 %v1714
      %v2219 = vunpack.c.l.b16 %v1715
      %v2220 = vunpack.c.l.b16 %v1716
      %v2221 = vunpack.c.l.b16 %v1717
      %v2222 = vunpack.c.l.b16 %v1718
      %v2223 = vunpack.c.l.b16 %v1719
      %v2224 = vunpack.c.l.b16 %v1720
      %v2225 = vunpack.c.l.b16 %v1721
      %v2226 = vunpack.c.l.b16 %v1722
      %v2227 = vunpack.c.l.b16 %v1723
      %v2228 = vunpack.c.l.b16 %v1724
      %v2229 = vunpack.c.l.b16 %v1725
      %v2230 = vunpack.c.l.b16 %v1726
      %v2231 = vunpack.c.l.b16 %v1727
      %v2232 = vunpack.c.l.b16 %v1728
      %v2233 = vunpack.c.l.b16 %v1729
      %v2234 = vunpack.c.l.b16 %v1730
      %v2235 = vunpack.c.l.b16 %v1731
      %v2236 = vunpack.c.l.b16 %v1732
      %v2237 = vunpack.c.l.b16 %v1733
      %v2238 = vunpack.c.l.b16 %v1734
      %v2239 = vunpack.c.l.b16 %v1735
      %v2240 = vunpack.c.l.b16 %v1736
      %v2241 = vpack.c.b16 %v2194, %v2193
      %v2242 = vpack.c.b16 %v2196, %v2195
      %v2243 = vpack.c.b16 %v2198, %v2197
      %v2244 = vpack.c.b16 %v2200, %v2199
      %v2245 = vpack.c.b16 %v2202, %v2201
      %v2246 = vpack.c.b16 %v2204, %v2203
      %v2247 = vpack.c.b16 %v2206, %v2205
      %v2248 = vpack.c.b16 %v2208, %v2207
      %v2249 = vpack.c.b16 %v2210, %v2209
      %v2250 = vpack.c.b16 %v2212, %v2211
      %v2251 = vpack.c.b16 %v2214, %v2213
      %v2252 = vpack.c.b16 %v2216, %v2215
      %v2253 = vpack.c.b16 %v2218, %v2217
      %v2254 = vpack.c.b16 %v2220, %v2219
      %v2255 = vpack.c.b16 %v2222, %v2221
      %v2256 = vpack.c.b16 %v2224, %v2223
      %v2257 = vpack.c.b16 %v2226, %v2225
      %v2258 = vpack.c.b16 %v2228, %v2227
      %v2259 = vpack.c.b16 %v2230, %v2229
      %v2260 = vpack.c.b16 %v2232, %v2231
      %v2261 = vpack.c.b16 %v2234, %v2233
      %v2262 = vpack.c.b16 %v2236, %v2235
      %v2263 = vpack.c.b16 %v2238, %v2237
      %v2264 = vpack.c.b16 %v2240, %v2239
      %2289 = vmatprep.subr.bf16.mxu0 0
      %2290 = vmatpush1.bf16.msra.mxu0 %v2241
      %2291 = vmatprep.subr.bf16.mxu0 0
      %2292 = vmatpush1.bf16.msra.mxu0 %v2242
      %2293 = vmatprep.subr.bf16.mxu0 0
      %2294 = vmatpush1.bf16.msra.mxu0 %v2243
      %2295 = vmatprep.subr.bf16.mxu0 0
      %2296 = vmatpush1.bf16.msra.mxu0 %v2244
      %2297 = vmatprep.subr.bf16.mxu0 0
      %2298 = vmatpush1.bf16.msra.mxu0 %v2245
      %2299 = vmatprep.subr.bf16.mxu0 0
      %2300 = vmatpush1.bf16.msra.mxu0 %v2246
      %2301 = vmatprep.subr.bf16.mxu0 0
      %2302 = vmatpush1.bf16.msra.mxu0 %v2247
      %2303 = vmatprep.subr.bf16.mxu0 0
      %2304 = vmatpush1.bf16.msra.mxu0 %v2248
      %2305 = vmatprep.subr.bf16.mxu0 0
      %2306 = vmatpush1.bf16.msra.mxu0 %v2249
      %2307 = vmatprep.subr.bf16.mxu0 0
      %2308 = vmatpush1.bf16.msra.mxu0 %v2250
      %2309 = vmatprep.subr.bf16.mxu0 0
      %2310 = vmatpush1.bf16.msra.mxu0 %v2251
      %2311 = vmatprep.subr.bf16.mxu0 0
      %2312 = vmatpush1.bf16.msra.mxu0 %v2252
      %2313 = vmatprep.subr.bf16.mxu0 0
      %2314 = vmatpush1.bf16.msra.mxu0 %v2253
      %2315 = vmatprep.subr.bf16.mxu0 0
      %2316 = vmatpush1.bf16.msra.mxu0 %v2254
      %2317 = vmatprep.subr.bf16.mxu0 0
      %2318 = vmatpush1.bf16.msra.mxu0 %v2255
      %2319 = vmatprep.subr.bf16.mxu0 0
      %2320 = vmatpush1.bf16.msra.mxu0 %v2256
      %2321 = vmatprep.mubr.bf16.mxu0 %v1985
      %2322 = vmatmul.mubr.bf16.gmra.mrb[0].mxu0 %v1982
      %v2323 = vpop.f32.mrb[0].mxu0
      %v2324 = vadd.f32 0.0, %v2323
      %v2325 = vpop.f32.mrb[0].mxu0
      %v2326 = vpop.f32.mrb[0].mxu0
      %v2327 = vadd.f32 0.0, %v2326
      %v2328 = vpop.f32.mrb[0].mxu0
      %2329 = vmatprep.mubr.bf16.mxu0 %v1992
      %2330 = vmatmul.mubr.bf16.gmra.mrb[0].mxu0 %v1990
      %v2331 = vpop.f32.mrb[0].mxu0
      %v2332 = vadd.f32 0.0, %v2331
      %v2333 = vpop.f32.mrb[0].mxu0
      %v2334 = vpop.f32.mrb[0].mxu0
      %v2335 = vadd.f32 0.0, %v2334
      %v2336 = vpop.f32.mrb[0].mxu0
      %2337 = vmatprep.mubr.bf16.mxu0 %v1998
      %2338 = vmatmul.mubr.bf16.gmra.mrb[0].mxu0 %v1996
      %v2339 = vpop.f32.mrb[0].mxu0
      %v2340 = vadd.f32 0.0, %v2339
      %v2341 = vpop.f32.mrb[0].mxu0
      %v2342 = vpop.f32.mrb[0].mxu0
      %v2343 = vadd.f32 0.0, %v2342
      %v2344 = vpop.f32.mrb[0].mxu0
      %2345 = vmatprep.mubr.bf16.mxu0 %v2004
      %2346 = vmatmul.mubr.bf16.gmra.mrb[0].mxu0 %v2002
      %v2347 = vpop.f32.mrb[0].mxu0
      %v2348 = vadd.f32 0.0, %v2347
      %v2349 = vpop.f32.mrb[0].mxu0
      %v2350 = vpop.f32.mrb[0].mxu0
      %v2351 = vadd.f32 0.0, %v2350
      %v2352 = vpop.f32.mrb[0].mxu0
      %2353 = vmatprep.mubr.bf16.mxu0 %v2010
      %2354 = vmatmul.mubr.bf16.gmra.mrb[0].mxu0 %v2008
      %v2355 = vpop.f32.mrb[0].mxu0
      %v2356 = vadd.f32 0.0, %v2355
      %v2357 = vpop.f32.mrb[0].mxu0
      %v2358 = vpop.f32.mrb[0].mxu0
      %v2359 = vadd.f32 0.0, %v2358
      %v2360 = vpop.f32.mrb[0].mxu0
      %2361 = vmatprep.mubr.bf16.mxu0 %v2016
      %2362 = vmatmul.mubr.bf16.gmra.mrb[0].mxu0 %v2014
      %v2363 = vpop.f32.mrb[0].mxu0
      %v2364 = vadd.f32 0.0, %v2363
      %v2365 = vpop.f32.mrb[0].mxu0
      %v2366 = vpop.f32.mrb[0].mxu0
      %v2367 = vadd.f32 0.0, %v2366
      %v2368 = vpop.f32.mrb[0].mxu0
      %2369 = vmatprep.mubr.bf16.mxu0 %v2022
      %2370 = vmatmul.mubr.bf16.gmra.mrb[0].mxu0 %v2020
      %v2371 = vpop.f32.mrb[0].mxu0
      %v2372 = vadd.f32 0.0, %v2371
      %v2373 = vpop.f32.mrb[0].mxu0
      %v2374 = vpop.f32.mrb[0].mxu0
      %v2375 = vadd.f32 0.0, %v2374
      %v2376 = vpop.f32.mrb[0].mxu0
      %2377 = vmatprep.mubr.bf16.mxu0 %v2028
      %2378 = vmatmul.mubr.bf16.gmra.mrb[0].mxu0 %v2026
      %v2379 = vpop.f32.mrb[0].mxu0
      %v2380 = vadd.f32 0.0, %v2379
      %v2381 = vpop.f32.mrb[0].mxu0
      %v2382 = vpop.f32.mrb[0].mxu0
      %v2383 = vadd.f32 0.0, %v2382
      %v2384 = vpop.f32.mrb[0].mxu0
      %2385 = vmatprep.mubr.bf16.mxu0 %v2034
      %2386 = vmatmul.mubr.bf16.gmra.mrb[0].mxu0 %v2032
      %v2387 = vpop.f32.mrb[0].mxu0
      %v2388 = vadd.f32 0.0, %v2387
      %v2389 = vpop.f32.mrb[0].mxu0
      %v2390 = vpop.f32.mrb[0].mxu0
      %v2391 = vadd.f32 0.0, %v2390
      %v2392 = vpop.f32.mrb[0].mxu0
      %2393 = vmatprep.mubr.bf16.mxu0 %v2040
      %2394 = vmatmul.mubr.bf16.gmra.mrb[0].mxu0 %v2038
      %v2395 = vpop.f32.mrb[0].mxu0
      %v2396 = vadd.f32 0.0, %v2395
      %v2397 = vpop.f32.mrb[0].mxu0
      %v2398 = vpop.f32.mrb[0].mxu0
      %v2399 = vadd.f32 0.0, %v2398
      %v2400 = vpop.f32.mrb[0].mxu0
      %2401 = vmatprep.mubr.bf16.mxu0 %v2046
      %2402 = vmatmul.mubr.bf16.gmra.mrb[0].mxu0 %v2044
      %v2403 = vpop.f32.mrb[0].mxu0
      %v2404 = vadd.f32 0.0, %v2403
      %v2405 = vpop.f32.mrb[0].mxu0
      %v2406 = vpop.f32.mrb[0].mxu0
      %v2407 = vadd.f32 0.0, %v2406
      %v2408 = vpop.f32.mrb[0].mxu0
      %2409 = vmatprep.mubr.bf16.mxu0 %v2052
      %2410 = vmatmul.mubr.bf16.gmra.mrb[0].mxu0 %v2050
      %v2411 = vpop.f32.mrb[0].mxu0
      %v2412 = vadd.f32 0.0, %v2411
      %v2413 = vpop.f32.mrb[0].mxu0
      %v2414 = vpop.f32.mrb[0].mxu0
      %v2415 = vadd.f32 0.0, %v2414
      %v2416 = vpop.f32.mrb[0].mxu0
      %2417 = vmatprep.mubr.bf16.mxu0 %v2058
      %2418 = vmatmul.mubr.bf16.gmra.mrb[0].mxu0 %v2056
      %v2419 = vpop.f32.mrb[0].mxu0
      %v2420 = vadd.f32 0.0, %v2419
      %v2421 = vpop.f32.mrb[0].mxu0
      %v2422 = vpop.f32.mrb[0].mxu0
      %v2423 = vadd.f32 0.0, %v2422
      %v2424 = vpop.f32.mrb[0].mxu0
      %2425 = vmatprep.mubr.bf16.mxu0 %v2064
      %2426 = vmatmul.mubr.bf16.gmra.mrb[0].mxu0 %v2062
      %v2427 = vpop.f32.mrb[0].mxu0
      %v2428 = vadd.f32 0.0, %v2427
      %v2429 = vpop.f32.mrb[0].mxu0
      %v2430 = vpop.f32.mrb[0].mxu0
      %v2431 = vadd.f32 0.0, %v2430
      %v2432 = vpop.f32.mrb[0].mxu0
      %2433 = vmatprep.mubr.bf16.mxu0 %v2070
      %2434 = vmatmul.mubr.bf16.gmra.mrb[0].mxu0 %v2068
      %v2435 = vpop.f32.mrb[0].mxu0
      %v2436 = vadd.f32 0.0, %v2435
      %v2437 = vpop.f32.mrb[0].mxu0
      %v2438 = vpop.f32.mrb[0].mxu0
      %v2439 = vadd.f32 0.0, %v2438
      %v2440 = vpop.f32.mrb[0].mxu0
      %2441 = vmatprep.mubr.bf16.mxu0 %v2076
      %2442 = vmatmul.mubr.bf16.gmra.mrb[0].mxu0 %v2074
      %v2443 = vpop.f32.mrb[0].mxu0
      %v2444 = vadd.f32 0.0, %v2443
      %v2445 = vpop.f32.mrb[0].mxu0
      %v2446 = vpop.f32.mrb[0].mxu0
      %v2447 = vadd.f32 0.0, %v2446
      %v2448 = vpop.f32.mrb[0].mxu0
      %2449 = vmatprep.mubr.bf16.mxu0 %v2082
      %2450 = vmatmul.mubr.bf16.gmra.mrb[0].mxu0 %v2080
      %v2451 = vpop.f32.mrb[0].mxu0
      %v2452 = vadd.f32 0.0, %v2451
      %v2453 = vpop.f32.mrb[0].mxu0
      %v2454 = vpop.f32.mrb[0].mxu0
      %v2455 = vadd.f32 0.0, %v2454
      %v2456 = vpop.f32.mrb[0].mxu0
      %2457 = vmatprep.mubr.bf16.mxu0 %v2088
      %2458 = vmatmul.mubr.bf16.gmra.mrb[0].mxu0 %v2086
      %v2459 = vpop.f32.mrb[0].mxu0
      %v2460 = vadd.f32 0.0, %v2459
      %v2461 = vpop.f32.mrb[0].mxu0
      %v2462 = vpop.f32.mrb[0].mxu0
      %v2463 = vadd.f32 0.0, %v2462
      %v2464 = vpop.f32.mrb[0].mxu0
      %2465 = vdwg.mxu0
      %2466 = vmatprep.subr.bf16.mxu0 0
      %2467 = vmatpush1.bf16.msra.mxu0 %v2257
      %2468 = vmatprep.subr.bf16.mxu0 0
      %2469 = vmatpush1.bf16.msra.mxu0 %v2258
      %2470 = vmatprep.subr.bf16.mxu0 0
      %2471 = vmatpush1.bf16.msra.mxu0 %v2259
      %2472 = vmatprep.subr.bf16.mxu0 0
      %2473 = vmatpush1.bf16.msra.mxu0 %v2260
      %2474 = vmatprep.subr.bf16.mxu0 0
      %2475 = vmatpush1.bf16.msra.mxu0 %v2261
      %2476 = vmatprep.subr.bf16.mxu0 0
      %2477 = vmatpush1.bf16.msra.mxu0 %v2262
      %2478 = vmatprep.subr.bf16.mxu0 0
      %2479 = vmatpush1.bf16.msra.mxu0 %v2263
      %2480 = vmatprep.subr.bf16.mxu0 0
      %2481 = vmatpush1.bf16.msra.mxu0 %v2264
      %2482 = vmatprep.subr.bf16.mxu0 0
      %2483 = vmatpush1.bf16.msra.mxu0 0
      %2484 = vmatprep.subr.bf16.mxu0 0
      %2485 = vmatpush1.bf16.msra.mxu0 0
      %2486 = vmatprep.subr.bf16.mxu0 0
      %2487 = vmatpush1.bf16.msra.mxu0 0
      %2488 = vmatprep.subr.bf16.mxu0 0
      %2489 = vmatpush1.bf16.msra.mxu0 0
      %2490 = vmatprep.subr.bf16.mxu0 0
      %2491 = vmatpush1.bf16.msra.mxu0 0
      %2492 = vmatprep.subr.bf16.mxu0 0
      %2493 = vmatpush1.bf16.msra.mxu0 0
      %2494 = vmatprep.subr.bf16.mxu0 0
      %2495 = vmatpush1.bf16.msra.mxu0 0
      %2496 = vmatprep.subr.bf16.mxu0 0
      %2497 = vmatpush1.bf16.msra.mxu0 0
      %2498 = vmatprep.mubr.bf16.mxu0 0
      %2499 = vmatmul.mubr.bf16.gmra.mrb[0].mxu0 %v1988
      %v2500 = vpop.f32.mrb[0].mxu0
      %v2501 = vadd.f32 %v2324, %v2500
      %v2502 = vpop.f32.mrb[0].mxu0
      %v2503 = vpop.f32.mrb[0].mxu0
      %v2504 = vadd.f32 %v2327, %v2503
      %v2505 = vpop.f32.mrb[0].mxu0
      %2506 = vmatprep.mubr.bf16.mxu0 0
      %2507 = vmatmul.mubr.bf16.gmra.mrb[0].mxu0 %v1994
      %v2508 = vpop.f32.mrb[0].mxu0
      %v2509 = vadd.f32 %v2332, %v2508
      %v2510 = vpop.f32.mrb[0].mxu0
      %v2511 = vpop.f32.mrb[0].mxu0
      %v2512 = vadd.f32 %v2335, %v2511
      %v2513 = vpop.f32.mrb[0].mxu0
      %2514 = vmatprep.mubr.bf16.mxu0 0
      %2515 = vmatmul.mubr.bf16.gmra.mrb[0].mxu0 %v2000
      %v2516 = vpop.f32.mrb[0].mxu0
      %v2517 = vadd.f32 %v2340, %v2516
      %v2518 = vpop.f32.mrb[0].mxu0
      %v2519 = vpop.f32.mrb[0].mxu0
      %v2520 = vadd.f32 %v2343, %v2519
      %v2521 = vpop.f32.mrb[0].mxu0
      %2522 = vmatprep.mubr.bf16.mxu0 0
      %2523 = vmatmul.mubr.bf16.gmra.mrb[0].mxu0 %v2006
      %v2524 = vpop.f32.mrb[0].mxu0
      %v2525 = vadd.f32 %v2348, %v2524
      %v2526 = vpop.f32.mrb[0].mxu0
      %v2527 = vpop.f32.mrb[0].mxu0
      %v2528 = vadd.f32 %v2351, %v2527
      %v2529 = vpop.f32.mrb[0].mxu0
      %2530 = vmatprep.mubr.bf16.mxu0 0
      %2531 = vmatmul.mubr.bf16.gmra.mrb[0].mxu0 %v2012
      %v2532 = vpop.f32.mrb[0].mxu0
      %v2533 = vadd.f32 %v2356, %v2532
      %v2534 = vpop.f32.mrb[0].mxu0
      %v2535 = vpop.f32.mrb[0].mxu0
      %v2536 = vadd.f32 %v2359, %v2535
      %v2537 = vpop.f32.mrb[0].mxu0
      %2538 = vmatprep.mubr.bf16.mxu0 0
      %2539 = vmatmul.mubr.bf16.gmra.mrb[0].mxu0 %v2018
      %v2540 = vpop.f32.mrb[0].mxu0
      %v2541 = vadd.f32 %v2364, %v2540
      %v2542 = vpop.f32.mrb[0].mxu0
      %v2543 = vpop.f32.mrb[0].mxu0
      %v2544 = vadd.f32 %v2367, %v2543
      %v2545 = vpop.f32.mrb[0].mxu0
      %2546 = vmatprep.mubr.bf16.mxu0 0
      %2547 = vmatmul.mubr.bf16.gmra.mrb[0].mxu0 %v2024
      %v2548 = vpop.f32.mrb[0].mxu0
      %v2549 = vadd.f32 %v2372, %v2548
      %v2550 = vpop.f32.mrb[0].mxu0
      %v2551 = vpop.f32.mrb[0].mxu0
      %v2552 = vadd.f32 %v2375, %v2551
      %v2553 = vpop.f32.mrb[0].mxu0
      %2554 = vmatprep.mubr.bf16.mxu0 0
      %2555 = vmatmul.mubr.bf16.gmra.mrb[0].mxu0 %v2030
      %v2556 = vpop.f32.mrb[0].mxu0
      %v2557 = vadd.f32 %v2380, %v2556
      %v2558 = vpop.f32.mrb[0].mxu0
      %v2559 = vpop.f32.mrb[0].mxu0
      %v2560 = vadd.f32 %v2383, %v2559
      %v2561 = vpop.f32.mrb[0].mxu0
      %2562 = vmatprep.mubr.bf16.mxu0 0
      %2563 = vmatmul.mubr.bf16.gmra.mrb[0].mxu0 %v2036
      %v2564 = vpop.f32.mrb[0].mxu0
      %v2565 = vadd.f32 %v2388, %v2564
      %v2566 = vpop.f32.mrb[0].mxu0
      %v2567 = vpop.f32.mrb[0].mxu0
      %v2568 = vadd.f32 %v2391, %v2567
      %v2569 = vpop.f32.mrb[0].mxu0
      %2570 = vmatprep.mubr.bf16.mxu0 0
      %2571 = vmatmul.mubr.bf16.gmra.mrb[0].mxu0 %v2042
      %v2572 = vpop.f32.mrb[0].mxu0
      %v2573 = vadd.f32 %v2396, %v2572
      %v2574 = vpop.f32.mrb[0].mxu0
      %v2575 = vpop.f32.mrb[0].mxu0
      %v2576 = vadd.f32 %v2399, %v2575
      %v2577 = vpop.f32.mrb[0].mxu0
      %2578 = vmatprep.mubr.bf16.mxu0 0
      %2579 = vmatmul.mubr.bf16.gmra.mrb[0].mxu0 %v2048
      %v2580 = vpop.f32.mrb[0].mxu0
      %v2581 = vadd.f32 %v2404, %v2580
      %v2582 = vpop.f32.mrb[0].mxu0
      %v2583 = vpop.f32.mrb[0].mxu0
      %v2584 = vadd.f32 %v2407, %v2583
      %v2585 = vpop.f32.mrb[0].mxu0
      %2586 = vmatprep.mubr.bf16.mxu0 0
      %2587 = vmatmul.mubr.bf16.gmra.mrb[0].mxu0 %v2054
      %v2588 = vpop.f32.mrb[0].mxu0
      %v2589 = vadd.f32 %v2412, %v2588
      %v2590 = vpop.f32.mrb[0].mxu0
      %v2591 = vpop.f32.mrb[0].mxu0
      %v2592 = vadd.f32 %v2415, %v2591
      %v2593 = vpop.f32.mrb[0].mxu0
      %2594 = vmatprep.mubr.bf16.mxu0 0
      %2595 = vmatmul.mubr.bf16.gmra.mrb[0].mxu0 %v2060
      %v2596 = vpop.f32.mrb[0].mxu0
      %v2597 = vadd.f32 %v2420, %v2596
      %v2598 = vpop.f32.mrb[0].mxu0
      %v2599 = vpop.f32.mrb[0].mxu0
      %v2600 = vadd.f32 %v2423, %v2599
      %v2601 = vpop.f32.mrb[0].mxu0
      %2602 = vmatprep.mubr.bf16.mxu0 0
      %2603 = vmatmul.mubr.bf16.gmra.mrb[0].mxu0 %v2066
      %v2604 = vpop.f32.mrb[0].mxu0
      %v2605 = vadd.f32 %v2428, %v2604
      %v2606 = vpop.f32.mrb[0].mxu0
      %v2607 = vpop.f32.mrb[0].mxu0
      %v2608 = vadd.f32 %v2431, %v2607
      %v2609 = vpop.f32.mrb[0].mxu0
      %2610 = vmatprep.mubr.bf16.mxu0 0
      %2611 = vmatmul.mubr.bf16.gmra.mrb[0].mxu0 %v2072
      %v2612 = vpop.f32.mrb[0].mxu0
      %v2613 = vadd.f32 %v2436, %v2612
      %v2614 = vpop.f32.mrb[0].mxu0
      %v2615 = vpop.f32.mrb[0].mxu0
      %v2616 = vadd.f32 %v2439, %v2615
      %v2617 = vpop.f32.mrb[0].mxu0
      %2618 = vmatprep.mubr.bf16.mxu0 0
      %2619 = vmatmul.mubr.bf16.gmra.mrb[0].mxu0 %v2078
      %v2620 = vpop.f32.mrb[0].mxu0
      %v2621 = vadd.f32 %v2444, %v2620
      %v2622 = vpop.f32.mrb[0].mxu0
      %v2623 = vpop.f32.mrb[0].mxu0
      %v2624 = vadd.f32 %v2447, %v2623
      %v2625 = vpop.f32.mrb[0].mxu0
      %2626 = vmatprep.mubr.bf16.mxu0 0
      %2627 = vmatmul.mubr.bf16.gmra.mrb[0].mxu0 %v2084
      %v2628 = vpop.f32.mrb[0].mxu0
      %v2629 = vadd.f32 %v2452, %v2628
      %v2630 = vpop.f32.mrb[0].mxu0
      %v2631 = vpop.f32.mrb[0].mxu0
      %v2632 = vadd.f32 %v2455, %v2631
      %v2633 = vpop.f32.mrb[0].mxu0
      %2634 = vmatprep.mubr.bf16.mxu0 0
      %2635 = vmatmul.mubr.bf16.gmra.mrb[0].mxu0 %v2090
      %v2636 = vpop.f32.mrb[0].mxu0
      %v2637 = vadd.f32 %v2460, %v2636
      %v2638 = vpop.f32.mrb[0].mxu0
      %v2639 = vpop.f32.mrb[0].mxu0
      %v2640 = vadd.f32 %v2463, %v2639
      %v2641 = vpop.f32.mrb[0].mxu0
      %2642 = vdwg.mxu0
      %v2649 = vunpack.c.l.b16 %v1560
      %v2650 = vunpack.c.h.b16 %v1560
      %v2651 = vunpack.c.l.b16 %v1561
      %v2652 = vunpack.c.l.b16 %v1562
      %v2653 = vunpack.c.h.b16 %v1562
      %v2654 = vunpack.c.l.b16 %v1563
      %v2655 = vunpack.c.l.b16 %v1564
      %v2656 = vunpack.c.h.b16 %v1564
      %v2657 = vunpack.c.l.b16 %v1565
      %v2658 = vpack.c.b16 %v2652, %v2649
      %v2659 = vpack.c.b16 %v2653, %v2650
      %v2660 = vpack.c.b16 %v2654, %v2651
      %v2661 = vpack.c.b16 %v1814, %v2655
      %v2662 = vpack.c.b16 %v1815, %v2656
      %v2663 = vpack.c.b16 %v1816, %v2657
      %v2766 = vunpack.c.l.b16 %v1632
      %v2767 = vunpack.c.l.b16 %v1633
      %v2768 = vunpack.c.l.b16 %v1634
      %v2769 = vunpack.c.l.b16 %v1635
      %v2770 = vunpack.c.l.b16 %v1636
      %v2771 = vunpack.c.l.b16 %v1637
      %v2772 = vunpack.c.l.b16 %v1638
      %v2773 = vunpack.c.l.b16 %v1639
      %v2774 = vunpack.c.l.b16 %v1640
      %v2775 = vunpack.c.l.b16 %v1641
      %v2776 = vunpack.c.l.b16 %v1642
      %v2777 = vunpack.c.l.b16 %v1643
      %v2778 = vunpack.c.l.b16 %v1644
      %v2779 = vunpack.c.l.b16 %v1645
      %v2780 = vunpack.c.l.b16 %v1646
      %v2781 = vunpack.c.l.b16 %v1647
      %v2782 = vunpack.c.l.b16 %v1648
      %v2783 = vunpack.c.l.b16 %v1649
      %v2784 = vunpack.c.l.b16 %v1650
      %v2785 = vunpack.c.l.b16 %v1651
      %v2786 = vunpack.c.l.b16 %v1652
      %v2787 = vunpack.c.l.b16 %v1653
      %v2788 = vunpack.c.l.b16 %v1654
      %v2789 = vunpack.c.l.b16 %v1655
      %v2790 = vunpack.c.l.b16 %v1656
      %v2791 = vunpack.c.l.b16 %v1657
      %v2792 = vunpack.c.l.b16 %v1658
      %v2793 = vunpack.c.l.b16 %v1659
      %v2794 = vunpack.c.l.b16 %v1660
      %v2795 = vunpack.c.l.b16 %v1661
      %v2796 = vunpack.c.l.b16 %v1662
      %v2797 = vunpack.c.l.b16 %v1663
      %v2798 = vunpack.c.l.b16 %v1664
      %v2799 = vunpack.c.l.b16 %v1665
      %v2800 = vunpack.c.l.b16 %v1666
      %v2801 = vunpack.c.l.b16 %v1667
      %v2802 = vunpack.c.l.b16 %v1668
      %v2803 = vunpack.c.l.b16 %v1669
      %v2804 = vunpack.c.l.b16 %v1670
      %v2805 = vunpack.c.l.b16 %v1671
      %v2806 = vunpack.c.l.b16 %v1672
      %v2807 = vunpack.c.l.b16 %v1673
      %v2808 = vunpack.c.l.b16 %v1674
      %v2809 = vunpack.c.l.b16 %v1675
      %v2810 = vunpack.c.l.b16 %v1676
      %v2811 = vunpack.c.l.b16 %v1677
      %v2812 = vunpack.c.l.b16 %v1678
      %v2813 = vunpack.c.l.b16 %v1679
      %v2814 = vpack.c.b16 %v2767, %v2766
      %v2815 = vpack.c.b16 %v2769, %v2768
      %v2816 = vpack.c.b16 %v2771, %v2770
      %v2817 = vpack.c.b16 %v2773, %v2772
      %v2818 = vpack.c.b16 %v2775, %v2774
      %v2819 = vpack.c.b16 %v2777, %v2776
      %v2820 = vpack.c.b16 %v2779, %v2778
      %v2821 = vpack.c.b16 %v2781, %v2780
      %v2822 = vpack.c.b16 %v2783, %v2782
      %v2823 = vpack.c.b16 %v2785, %v2784
      %v2824 = vpack.c.b16 %v2787, %v2786
      %v2825 = vpack.c.b16 %v2789, %v2788
      %v2826 = vpack.c.b16 %v2791, %v2790
      %v2827 = vpack.c.b16 %v2793, %v2792
      %v2828 = vpack.c.b16 %v2795, %v2794
      %v2829 = vpack.c.b16 %v2797, %v2796
      %v2830 = vpack.c.b16 %v2799, %v2798
      %v2831 = vpack.c.b16 %v2801, %v2800
      %v2832 = vpack.c.b16 %v2803, %v2802
      %v2833 = vpack.c.b16 %v2805, %v2804
      %v2834 = vpack.c.b16 %v2807, %v2806
      %v2835 = vpack.c.b16 %v2809, %v2808
      %v2836 = vpack.c.b16 %v2811, %v2810
      %v2837 = vpack.c.b16 %v2813, %v2812
      %2862 = vmatprep.subr.bf16.mxu0 0
      %2863 = vmatpush1.bf16.msra.mxu0 %v2814
      %2864 = vmatprep.subr.bf16.mxu0 0
      %2865 = vmatpush1.bf16.msra.mxu0 %v2815
      %2866 = vmatprep.subr.bf16.mxu0 0
      %2867 = vmatpush1.bf16.msra.mxu0 %v2816
      %2868 = vmatprep.subr.bf16.mxu0 0
      %2869 = vmatpush1.bf16.msra.mxu0 %v2817
      %2870 = vmatprep.subr.bf16.mxu0 0
      %2871 = vmatpush1.bf16.msra.mxu0 %v2818
      %2872 = vmatprep.subr.bf16.mxu0 0
      %2873 = vmatpush1.bf16.msra.mxu0 %v2819
      %2874 = vmatprep.subr.bf16.mxu0 0
      %2875 = vmatpush1.bf16.msra.mxu0 %v2820
      %2876 = vmatprep.subr.bf16.mxu0 0
      %2877 = vmatpush1.bf16.msra.mxu0 %v2821
      %2878 = vmatprep.subr.bf16.mxu0 0
      %2879 = vmatpush1.bf16.msra.mxu0 %v2822
      %2880 = vmatprep.subr.bf16.mxu0 0
      %2881 = vmatpush1.bf16.msra.mxu0 %v2823
      %2882 = vmatprep.subr.bf16.mxu0 0
      %2883 = vmatpush1.bf16.msra.mxu0 %v2824
      %2884 = vmatprep.subr.bf16.mxu0 0
      %2885 = vmatpush1.bf16.msra.mxu0 %v2825
      %2886 = vmatprep.subr.bf16.mxu0 0
      %2887 = vmatpush1.bf16.msra.mxu0 %v2826
      %2888 = vmatprep.subr.bf16.mxu0 0
      %2889 = vmatpush1.bf16.msra.mxu0 %v2827
      %2890 = vmatprep.subr.bf16.mxu0 0
      %2891 = vmatpush1.bf16.msra.mxu0 %v2828
      %2892 = vmatprep.subr.bf16.mxu0 0
      %2893 = vmatpush1.bf16.msra.mxu0 %v2829
      %2894 = vmatprep.mubr.bf16.mxu0 %v2659
      %2895 = vmatmul.mubr.bf16.gmra.mrb[0].mxu0 %v2658
      %v2896 = vpop.f32.mrb[0].mxu0
      %v2897 = vadd.f32 %v2501, %v2896
      %v2898 = vpop.f32.mrb[0].mxu0
      %v2899 = vpop.f32.mrb[0].mxu0
      %v2900 = vadd.f32 %v2504, %v2899
      %v2901 = vpop.f32.mrb[0].mxu0
      %2902 = vmatprep.mubr.bf16.mxu0 %v2662
      %2903 = vmatmul.mubr.bf16.gmra.mrb[0].mxu0 %v2661
      %v2904 = vpop.f32.mrb[0].mxu0
      %v2905 = vadd.f32 %v2509, %v2904
      %v2906 = vpop.f32.mrb[0].mxu0
      %v2907 = vpop.f32.mrb[0].mxu0
      %v2908 = vadd.f32 %v2512, %v2907
      %v2909 = vpop.f32.mrb[0].mxu0
      %2910 = vmatprep.mubr.bf16.mxu0 %v1926
      %2911 = vmatmul.mubr.bf16.gmra.mrb[0].mxu0 %v1925
      %v2912 = vpop.f32.mrb[0].mxu0
      %v2913 = vadd.f32 %v2517, %v2912
      %v2914 = vpop.f32.mrb[0].mxu0
      %v2915 = vpop.f32.mrb[0].mxu0
      %v2916 = vadd.f32 %v2520, %v2915
      %v2917 = vpop.f32.mrb[0].mxu0
      %2918 = vmatprep.mubr.bf16.mxu0 %v1929
      %2919 = vmatmul.mubr.bf16.gmra.mrb[0].mxu0 %v1928
      %v2920 = vpop.f32.mrb[0].mxu0
      %v2921 = vadd.f32 %v2525, %v2920
      %v2922 = vpop.f32.mrb[0].mxu0
      %v2923 = vpop.f32.mrb[0].mxu0
      %v2924 = vadd.f32 %v2528, %v2923
      %v2925 = vpop.f32.mrb[0].mxu0
      %2926 = vmatprep.mubr.bf16.mxu0 %v1932
      %2927 = vmatmul.mubr.bf16.gmra.mrb[0].mxu0 %v1931
      %v2928 = vpop.f32.mrb[0].mxu0
      %v2929 = vadd.f32 %v2533, %v2928
      %v2930 = vpop.f32.mrb[0].mxu0
      %v2931 = vpop.f32.mrb[0].mxu0
      %v2932 = vadd.f32 %v2536, %v2931
      %v2933 = vpop.f32.mrb[0].mxu0
      %2934 = vmatprep.mubr.bf16.mxu0 %v1935
      %2935 = vmatmul.mubr.bf16.gmra.mrb[0].mxu0 %v1934
      %v2936 = vpop.f32.mrb[0].mxu0
      %v2937 = vadd.f32 %v2541, %v2936
      %v2938 = vpop.f32.mrb[0].mxu0
      %v2939 = vpop.f32.mrb[0].mxu0
      %v2940 = vadd.f32 %v2544, %v2939
      %v2941 = vpop.f32.mrb[0].mxu0
      %2942 = vmatprep.mubr.bf16.mxu0 %v1938
      %2943 = vmatmul.mubr.bf16.gmra.mrb[0].mxu0 %v1937
      %v2944 = vpop.f32.mrb[0].mxu0
      %v2945 = vadd.f32 %v2549, %v2944
      %v2946 = vpop.f32.mrb[0].mxu0
      %v2947 = vpop.f32.mrb[0].mxu0
      %v2948 = vadd.f32 %v2552, %v2947
      %v2949 = vpop.f32.mrb[0].mxu0
      %2950 = vmatprep.mubr.bf16.mxu0 %v1941
      %2951 = vmatmul.mubr.bf16.gmra.mrb[0].mxu0 %v1940
      %v2952 = vpop.f32.mrb[0].mxu0
      %v2953 = vadd.f32 %v2557, %v2952
      %v2954 = vpop.f32.mrb[0].mxu0
      %v2955 = vpop.f32.mrb[0].mxu0
      %v2956 = vadd.f32 %v2560, %v2955
      %v2957 = vpop.f32.mrb[0].mxu0
      %2958 = vmatprep.mubr.bf16.mxu0 %v1944
      %2959 = vmatmul.mubr.bf16.gmra.mrb[0].mxu0 %v1943
      %v2960 = vpop.f32.mrb[0].mxu0
      %v2961 = vadd.f32 %v2565, %v2960
      %v2962 = vpop.f32.mrb[0].mxu0
      %v2963 = vpop.f32.mrb[0].mxu0
      %v2964 = vadd.f32 %v2568, %v2963
      %v2965 = vpop.f32.mrb[0].mxu0
      %2966 = vmatprep.mubr.bf16.mxu0 %v1947
      %2967 = vmatmul.mubr.bf16.gmra.mrb[0].mxu0 %v1946
      %v2968 = vpop.f32.mrb[0].mxu0
      %v2969 = vadd.f32 %v2573, %v2968
      %v2970 = vpop.f32.mrb[0].mxu0
      %v2971 = vpop.f32.mrb[0].mxu0
      %v2972 = vadd.f32 %v2576, %v2971
      %v2973 = vpop.f32.mrb[0].mxu0
      %2974 = vmatprep.mubr.bf16.mxu0 %v1950
      %2975 = vmatmul.mubr.bf16.gmra.mrb[0].mxu0 %v1949
      %v2976 = vpop.f32.mrb[0].mxu0
      %v2977 = vadd.f32 %v2581, %v2976
      %v2978 = vpop.f32.mrb[0].mxu0
      %v2979 = vpop.f32.mrb[0].mxu0
      %v2980 = vadd.f32 %v2584, %v2979
      %v2981 = vpop.f32.mrb[0].mxu0
      %2982 = vmatprep.mubr.bf16.mxu0 %v1953
      %2983 = vmatmul.mubr.bf16.gmra.mrb[0].mxu0 %v1952
      %v2984 = vpop.f32.mrb[0].mxu0
      %v2985 = vadd.f32 %v2589, %v2984
      %v2986 = vpop.f32.mrb[0].mxu0
      %v2987 = vpop.f32.mrb[0].mxu0
      %v2988 = vadd.f32 %v2592, %v2987
      %v2989 = vpop.f32.mrb[0].mxu0
      %2990 = vmatprep.mubr.bf16.mxu0 %v1956
      %2991 = vmatmul.mubr.bf16.gmra.mrb[0].mxu0 %v1955
      %v2992 = vpop.f32.mrb[0].mxu0
      %v2993 = vadd.f32 %v2597, %v2992
      %v2994 = vpop.f32.mrb[0].mxu0
      %v2995 = vpop.f32.mrb[0].mxu0
      %v2996 = vadd.f32 %v2600, %v2995
      %v2997 = vpop.f32.mrb[0].mxu0
      %2998 = vmatprep.mubr.bf16.mxu0 %v1959
      %2999 = vmatmul.mubr.bf16.gmra.mrb[0].mxu0 %v1958
      %v3000 = vpop.f32.mrb[0].mxu0
      %v3001 = vadd.f32 %v2605, %v3000
      %v3002 = vpop.f32.mrb[0].mxu0
      %v3003 = vpop.f32.mrb[0].mxu0
      %v3004 = vadd.f32 %v2608, %v3003
      %v3005 = vpop.f32.mrb[0].mxu0
      %3006 = vmatprep.mubr.bf16.mxu0 %v1962
      %3007 = vmatmul.mubr.bf16.gmra.mrb[0].mxu0 %v1961
      %v3008 = vpop.f32.mrb[0].mxu0
      %v3009 = vadd.f32 %v2613, %v3008
      %v3010 = vpop.f32.mrb[0].mxu0
      %v3011 = vpop.f32.mrb[0].mxu0
      %v3012 = vadd.f32 %v2616, %v3011
      %v3013 = vpop.f32.mrb[0].mxu0
      %3014 = vmatprep.mubr.bf16.mxu0 %v1965
      %3015 = vmatmul.mubr.bf16.gmra.mrb[0].mxu0 %v1964
      %v3016 = vpop.f32.mrb[0].mxu0
      %v3017 = vadd.f32 %v2621, %v3016
      %v3018 = vpop.f32.mrb[0].mxu0
      %v3019 = vpop.f32.mrb[0].mxu0
      %v3020 = vadd.f32 %v2624, %v3019
      %v3021 = vpop.f32.mrb[0].mxu0
      %3022 = vmatprep.mubr.bf16.mxu0 %v1968
      %3023 = vmatmul.mubr.bf16.gmra.mrb[0].mxu0 %v1967
      %v3024 = vpop.f32.mrb[0].mxu0
      %v3025 = vadd.f32 %v2629, %v3024
      %v3026 = vpop.f32.mrb[0].mxu0
      %v3027 = vpop.f32.mrb[0].mxu0
      %v3028 = vadd.f32 %v2632, %v3027
      %v3029 = vpop.f32.mrb[0].mxu0
      %3030 = vmatprep.mubr.bf16.mxu0 %v1971
      %3031 = vmatmul.mubr.bf16.gmra.mrb[0].mxu0 %v1970
      %v3032 = vpop.f32.mrb[0].mxu0
      %v3033 = vadd.f32 %v2637, %v3032
      %v3034 = vpop.f32.mrb[0].mxu0
      %v3035 = vpop.f32.mrb[0].mxu0
      %v3036 = vadd.f32 %v2640, %v3035
      %v3037 = vpop.f32.mrb[0].mxu0
      %3038 = vdwg.mxu0
      %3039 = vmatprep.subr.bf16.mxu0 0
      %3040 = vmatpush1.bf16.msra.mxu0 %v2830
      %3041 = vmatprep.subr.bf16.mxu0 0
      %3042 = vmatpush1.bf16.msra.mxu0 %v2831
      %3043 = vmatprep.subr.bf16.mxu0 0
      %3044 = vmatpush1.bf16.msra.mxu0 %v2832
      %3045 = vmatprep.subr.bf16.mxu0 0
      %3046 = vmatpush1.bf16.msra.mxu0 %v2833
      %3047 = vmatprep.subr.bf16.mxu0 0
      %3048 = vmatpush1.bf16.msra.mxu0 %v2834
      %3049 = vmatprep.subr.bf16.mxu0 0
      %3050 = vmatpush1.bf16.msra.mxu0 %v2835
      %3051 = vmatprep.subr.bf16.mxu0 0
      %3052 = vmatpush1.bf16.msra.mxu0 %v2836
      %3053 = vmatprep.subr.bf16.mxu0 0
      %3054 = vmatpush1.bf16.msra.mxu0 %v2837
      %3055 = vmatprep.subr.bf16.mxu0 0
      %3056 = vmatpush1.bf16.msra.mxu0 0
      %3057 = vmatprep.subr.bf16.mxu0 0
      %3058 = vmatpush1.bf16.msra.mxu0 0
      %3059 = vmatprep.subr.bf16.mxu0 0
      %3060 = vmatpush1.bf16.msra.mxu0 0
      %3061 = vmatprep.subr.bf16.mxu0 0
      %3062 = vmatpush1.bf16.msra.mxu0 0
      %3063 = vmatprep.subr.bf16.mxu0 0
      %3064 = vmatpush1.bf16.msra.mxu0 0
      %3065 = vmatprep.subr.bf16.mxu0 0
      %3066 = vmatpush1.bf16.msra.mxu0 0
      %3067 = vmatprep.subr.bf16.mxu0 0
      %3068 = vmatpush1.bf16.msra.mxu0 0
      %3069 = vmatprep.subr.bf16.mxu0 0
      %3070 = vmatpush1.bf16.msra.mxu0 0
      %3071 = vmatprep.mubr.bf16.mxu0 0
      %3072 = vmatmul.mubr.bf16.gmra.mrb[0].mxu0 %v2660
      %v3073 = vpop.f32.mrb[0].mxu0
      %v3074 = vadd.f32 %v2897, %v3073
      %v3075 = vpop.f32.mrb[0].mxu0
      %v3076 = vpop.f32.mrb[0].mxu0
      %v3077 = vadd.f32 %v2900, %v3076
      %v3078 = vpop.f32.mrb[0].mxu0
      %3079 = vmatprep.mubr.bf16.mxu0 0
      %3080 = vmatmul.mubr.bf16.gmra.mrb[0].mxu0 %v2663
      %v3081 = vpop.f32.mrb[0].mxu0
      %v3082 = vadd.f32 %v2905, %v3081
      %v3083 = vpop.f32.mrb[0].mxu0
      %v3084 = vpop.f32.mrb[0].mxu0
      %v3085 = vadd.f32 %v2908, %v3084
      %v3086 = vpop.f32.mrb[0].mxu0
      %3087 = vmatprep.mubr.bf16.mxu0 0
      %3088 = vmatmul.mubr.bf16.gmra.mrb[0].mxu0 %v1927
      %v3089 = vpop.f32.mrb[0].mxu0
      %v3090 = vadd.f32 %v2913, %v3089
      %v3091 = vpop.f32.mrb[0].mxu0
      %v3092 = vpop.f32.mrb[0].mxu0
      %v3093 = vadd.f32 %v2916, %v3092
      %v3094 = vpop.f32.mrb[0].mxu0
      %3095 = vmatprep.mubr.bf16.mxu0 0
      %3096 = vmatmul.mubr.bf16.gmra.mrb[0].mxu0 %v1930
      %v3097 = vpop.f32.mrb[0].mxu0
      %v3098 = vadd.f32 %v2921, %v3097
      %v3099 = vpop.f32.mrb[0].mxu0
      %v3100 = vpop.f32.mrb[0].mxu0
      %v3101 = vadd.f32 %v2924, %v3100
      %v3102 = vpop.f32.mrb[0].mxu0
      %3103 = vmatprep.mubr.bf16.mxu0 0
      %3104 = vmatmul.mubr.bf16.gmra.mrb[0].mxu0 %v1933
      %v3105 = vpop.f32.mrb[0].mxu0
      %v3106 = vadd.f32 %v2929, %v3105
      %v3107 = vpop.f32.mrb[0].mxu0
      %v3108 = vpop.f32.mrb[0].mxu0
      %v3109 = vadd.f32 %v2932, %v3108
      %v3110 = vpop.f32.mrb[0].mxu0
      %3111 = vmatprep.mubr.bf16.mxu0 0
      %3112 = vmatmul.mubr.bf16.gmra.mrb[0].mxu0 %v1936
      %v3113 = vpop.f32.mrb[0].mxu0
      %v3114 = vadd.f32 %v2937, %v3113
      %v3115 = vpop.f32.mrb[0].mxu0
      %v3116 = vpop.f32.mrb[0].mxu0
      %v3117 = vadd.f32 %v2940, %v3116
      %v3118 = vpop.f32.mrb[0].mxu0
      %3119 = vmatprep.mubr.bf16.mxu0 0
      %3120 = vmatmul.mubr.bf16.gmra.mrb[0].mxu0 %v1939
      %v3121 = vpop.f32.mrb[0].mxu0
      %v3122 = vadd.f32 %v2945, %v3121
      %v3123 = vpop.f32.mrb[0].mxu0
      %v3124 = vpop.f32.mrb[0].mxu0
      %v3125 = vadd.f32 %v2948, %v3124
      %v3126 = vpop.f32.mrb[0].mxu0
      %3127 = vmatprep.mubr.bf16.mxu0 0
      %3128 = vmatmul.mubr.bf16.gmra.mrb[0].mxu0 %v1942
      %v3129 = vpop.f32.mrb[0].mxu0
      %v3130 = vadd.f32 %v2953, %v3129
      %v3131 = vpop.f32.mrb[0].mxu0
      %v3132 = vpop.f32.mrb[0].mxu0
      %v3133 = vadd.f32 %v2956, %v3132
      %v3134 = vpop.f32.mrb[0].mxu0
      %3135 = vmatprep.mubr.bf16.mxu0 0
      %3136 = vmatmul.mubr.bf16.gmra.mrb[0].mxu0 %v1945
      %v3137 = vpop.f32.mrb[0].mxu0
      %v3138 = vadd.f32 %v2961, %v3137
      %v3139 = vpop.f32.mrb[0].mxu0
      %v3140 = vpop.f32.mrb[0].mxu0
      %v3141 = vadd.f32 %v2964, %v3140
      %v3142 = vpop.f32.mrb[0].mxu0
      %3143 = vmatprep.mubr.bf16.mxu0 0
      %3144 = vmatmul.mubr.bf16.gmra.mrb[0].mxu0 %v1948
      %v3145 = vpop.f32.mrb[0].mxu0
      %v3146 = vadd.f32 %v2969, %v3145
      %v3147 = vpop.f32.mrb[0].mxu0
      %v3148 = vpop.f32.mrb[0].mxu0
      %v3149 = vadd.f32 %v2972, %v3148
      %v3150 = vpop.f32.mrb[0].mxu0
      %3151 = vmatprep.mubr.bf16.mxu0 0
      %3152 = vmatmul.mubr.bf16.gmra.mrb[0].mxu0 %v1951
      %v3153 = vpop.f32.mrb[0].mxu0
      %v3154 = vadd.f32 %v2977, %v3153
      %v3155 = vpop.f32.mrb[0].mxu0
      %v3156 = vpop.f32.mrb[0].mxu0
      %v3157 = vadd.f32 %v2980, %v3156
      %v3158 = vpop.f32.mrb[0].mxu0
      %3159 = vmatprep.mubr.bf16.mxu0 0
      %3160 = vmatmul.mubr.bf16.gmra.mrb[0].mxu0 %v1954
      %v3161 = vpop.f32.mrb[0].mxu0
      %v3162 = vadd.f32 %v2985, %v3161
      %v3163 = vpop.f32.mrb[0].mxu0
      %v3164 = vpop.f32.mrb[0].mxu0
      %v3165 = vadd.f32 %v2988, %v3164
      %v3166 = vpop.f32.mrb[0].mxu0
      %3167 = vmatprep.mubr.bf16.mxu0 0
      %3168 = vmatmul.mubr.bf16.gmra.mrb[0].mxu0 %v1957
      %v3169 = vpop.f32.mrb[0].mxu0
      %v3170 = vadd.f32 %v2993, %v3169
      %v3171 = vpop.f32.mrb[0].mxu0
      %v3172 = vpop.f32.mrb[0].mxu0
      %v3173 = vadd.f32 %v2996, %v3172
      %v3174 = vpop.f32.mrb[0].mxu0
      %3175 = vmatprep.mubr.bf16.mxu0 0
      %3176 = vmatmul.mubr.bf16.gmra.mrb[0].mxu0 %v1960
      %v3177 = vpop.f32.mrb[0].mxu0
      %v3178 = vadd.f32 %v3001, %v3177
      %v3179 = vpop.f32.mrb[0].mxu0
      %v3180 = vpop.f32.mrb[0].mxu0
      %v3181 = vadd.f32 %v3004, %v3180
      %v3182 = vpop.f32.mrb[0].mxu0
      %3183 = vmatprep.mubr.bf16.mxu0 0
      %3184 = vmatmul.mubr.bf16.gmra.mrb[0].mxu0 %v1963
      %v3185 = vpop.f32.mrb[0].mxu0
      %v3186 = vadd.f32 %v3009, %v3185
      %v3187 = vpop.f32.mrb[0].mxu0
      %v3188 = vpop.f32.mrb[0].mxu0
      %v3189 = vadd.f32 %v3012, %v3188
      %v3190 = vpop.f32.mrb[0].mxu0
      %3191 = vmatprep.mubr.bf16.mxu0 0
      %3192 = vmatmul.mubr.bf16.gmra.mrb[0].mxu0 %v1966
      %v3193 = vpop.f32.mrb[0].mxu0
      %v3194 = vadd.f32 %v3017, %v3193
      %v3195 = vpop.f32.mrb[0].mxu0
      %v3196 = vpop.f32.mrb[0].mxu0
      %v3197 = vadd.f32 %v3020, %v3196
      %v3198 = vpop.f32.mrb[0].mxu0
      %3199 = vmatprep.mubr.bf16.mxu0 0
      %3200 = vmatmul.mubr.bf16.gmra.mrb[0].mxu0 %v1969
      %v3201 = vpop.f32.mrb[0].mxu0
      %v3202 = vadd.f32 %v3025, %v3201
      %v3203 = vpop.f32.mrb[0].mxu0
      %v3204 = vpop.f32.mrb[0].mxu0
      %v3205 = vadd.f32 %v3028, %v3204
      %v3206 = vpop.f32.mrb[0].mxu0
      %3207 = vmatprep.mubr.bf16.mxu0 0
      %3208 = vmatmul.mubr.bf16.gmra.mrb[0].mxu0 %v1972
      %v3209 = vpop.f32.mrb[0].mxu0
      %v3210 = vadd.f32 %v3033, %v3209
      %v3211 = vpop.f32.mrb[0].mxu0
      %v3212 = vpop.f32.mrb[0].mxu0
      %v3213 = vadd.f32 %v3036, %v3212
      %v3214 = vpop.f32.mrb[0].mxu0
      %3215 = vdwg.mxu0
      %v3216 = vld [vmem:[#allocation2 + $0x30] sm:$0xcc]
      %v3217 = vld [vmem:[#allocation2 + $0x38] sm:$0xc]
      %v3218 = vld [vmem:[#allocation2 + $0x3c] sm:$0xff]
      %v3219 = vld [vmem:[#allocation2 + $0x44] sm:$0xf]
      %v3220 = vld [vmem:[#allocation2 + $0x48] sm:$0xff]
      %v3221 = vld [vmem:[#allocation2 + $0x50] sm:$0xf]
      %v3222 = vld [vmem:[#allocation2 + $0x54] sm:$0xff]
      %v3223 = vld [vmem:[#allocation2 + $0x5c] sm:$0xf]
      %v3224 = vld [vmem:[#allocation2 + $0x60] sm:$0xff]
      %v3225 = vld [vmem:[#allocation2 + $0x68] sm:$0xf]
      %v3226 = vld [vmem:[#allocation2 + $0x6c] sm:$0xff]
      %v3227 = vld [vmem:[#allocation2 + $0x74] sm:$0xf]
      %v3228 = vld [vmem:[#allocation2 + $0x78] sm:$0xff]
      %v3229 = vld [vmem:[#allocation2 + $0x80] sm:$0xf]
      %v3230 = vld [vmem:[#allocation2 + $0x84] sm:$0xff]
      %v3231 = vld [vmem:[#allocation2 + $0x8c] sm:$0xf]
      %v3232 = vld [vmem:[#allocation2 + $0x90] sm:$0xff]
      %v3233 = vld [vmem:[#allocation2 + $0x98] sm:$0xf]
      %v3234 = vld [vmem:[#allocation2 + $0x9c] sm:$0xff]
      %v3235 = vld [vmem:[#allocation2 + $0xa4] sm:$0xf]
      %v3236 = vld [vmem:[#allocation2 + $0xa8] sm:$0xff]
      %v3237 = vld [vmem:[#allocation2 + $0xb0] sm:$0xf]
      %v3238 = vld [vmem:[#allocation2 + $0xb4] sm:$0xff]
      %v3239 = vld [vmem:[#allocation2 + $0xbc] sm:$0xf]
      %v3240 = vld [vmem:[#allocation2 + $0xc0] sm:$0xff]
      %v3241 = vld [vmem:[#allocation2 + $0xc8] sm:$0xf]
      %v3242 = vld [vmem:[#allocation2 + $0xcc] sm:$0xff]
      %v3243 = vld [vmem:[#allocation2 + $0xd4] sm:$0xf]
      %v3244 = vld [vmem:[#allocation2 + $0xd8] sm:$0xff]
      %v3245 = vld [vmem:[#allocation2 + $0xe0] sm:$0xf]
      %v3246 = vld [vmem:[#allocation2 + $0xe4] sm:$0xff]
      %v3247 = vld [vmem:[#allocation2 + $0xec] sm:$0xf]
      %v3248 = vld [vmem:[#allocation2 + $0xf0] sm:$0xff]
      %v3249 = vld [vmem:[#allocation2 + $0xf8] sm:$0xf]
      %v3250 = vld [vmem:[#allocation2 + $0xfc] sm:$0xff]
      %v3251 = vld [vmem:[#allocation2 + $0x104] sm:$0xf]
      %v3252 = vld [vmem:[#allocation2 + $0x108] sm:$0xff]
      %v3253 = vld [vmem:[#allocation2 + $0x110] sm:$0xf]
      %v3254 = vld [vmem:[#allocation2 + $0x114] sm:$0xff]
      %v3255 = vld [vmem:[#allocation2 + $0x11c] sm:$0xf]
      %v3256 = vld [vmem:[#allocation2 + $0x120] sm:$0xff]
      %v3257 = vld [vmem:[#allocation2 + $0x128] sm:$0xf]
      %v3258 = vld [vmem:[#allocation2 + $0x12c] sm:$0xff]
      %v3259 = vld [vmem:[#allocation2 + $0x134] sm:$0xf]
      %v3260 = vld [vmem:[#allocation2 + $0x138] sm:$0xff]
      %v3261 = vld [vmem:[#allocation2 + $0x140] sm:$0xf]
      %v3262 = vld [vmem:[#allocation2 + $0x144] sm:$0xff]
      %v3263 = vld [vmem:[#allocation2 + $0x14c] sm:$0xf]
      %v3264 = vld [vmem:[#allocation2 + $0x150] sm:$0xff]
      %v3265 = vld [vmem:[#allocation2 + $0x158] sm:$0xf]
      %v3266 = vld [vmem:[#allocation2 + $0x15c] sm:$0xff]
      %v3267 = vld [vmem:[#allocation2 + $0x164] sm:$0xf]
      %v3268 = vld [vmem:[#allocation2 + $0x168] sm:$0xff]
      %v3269 = vld [vmem:[#allocation2 + $0x170] sm:$0xf]
      %v3270 = vld [vmem:[#allocation2 + $0x174] sm:$0xff]
      %v3271 = vld [vmem:[#allocation2 + $0x17c] sm:$0xf]
      %v3272 = vld [vmem:[#allocation2 + $0x180] sm:$0xff]
      %v3273 = vld [vmem:[#allocation2 + $0x188] sm:$0xf]
      %v3274 = vld [vmem:[#allocation2 + $0x18c] sm:$0xff]
      %v3275 = vld [vmem:[#allocation2 + $0x194] sm:$0xf]
      %v3276 = vld [vmem:[#allocation2 + $0x198] sm:$0xff]
      %v3277 = vld [vmem:[#allocation2 + $0x1a0] sm:$0xf]
      %v3278 = vld [vmem:[#allocation2 + $0x1a4] sm:$0xff]
      %v3279 = vld [vmem:[#allocation2 + $0x1ac] sm:$0xf]
      %v3280 = vld [vmem:[#allocation2 + $0x1b0] sm:$0xff]
      %v3281 = vld [vmem:[#allocation2 + $0x1b8] sm:$0xf]
      %v3282 = vld [vmem:[#allocation2 + $0x1bc] sm:$0xff]
      %v3283 = vld [vmem:[#allocation2 + $0x1c4] sm:$0xf]
      %v3284 = vld [vmem:[#allocation2 + $0x1c8] sm:$0xff]
      %v3285 = vld [vmem:[#allocation2 + $0x1d0] sm:$0xf]
      %v3286 = vld [vmem:[#allocation2 + $0x1d4] sm:$0xff]
      %v3287 = vld [vmem:[#allocation2 + $0x1dc] sm:$0xf]
      %v3288 = vld [vmem:[#allocation2 + $0x1e0] sm:$0x33]
      %v3289 = vld [vmem:[#allocation2 + $0x1e8] sm:$0x3]
      %s3290 = scalar_lea.vmem %s3, 384
      %v3291 = vld [vmem:[%s3290] sm:$0xf]
      %v3292 = vld [vmem:[%s3290 + $0x4] sm:$0xf]
      %v3293 = vld [vmem:[%s3290 + $0x8] sm:$0xf]
      %v3294 = vld [vmem:[%s3290 + $0xc] sm:$0xf]
      %v3295 = vld [vmem:[%s3290 + $0x10] sm:$0xf]
      %v3296 = vld [vmem:[%s3290 + $0x14] sm:$0xf]
      %v3297 = vld [vmem:[%s3290 + $0x18] sm:$0xf]
      %v3298 = vld [vmem:[%s3290 + $0x1c] sm:$0xf]
      %v3299 = vld [vmem:[%s3290 + $0x20] sm:$0xf]
      %v3300 = vld [vmem:[%s3290 + $0x24] sm:$0xf]
      %v3301 = vld [vmem:[%s3290 + $0x28] sm:$0xf]
      %v3302 = vld [vmem:[%s3290 + $0x2c] sm:$0xf]
      %v3303 = vld [vmem:[%s3290 + $0x30] sm:$0xf]
      %v3304 = vld [vmem:[%s3290 + $0x34] sm:$0xf]
      %v3305 = vld [vmem:[%s3290 + $0x38] sm:$0xf]
      %v3306 = vld [vmem:[%s3290 + $0x3c] sm:$0xf]
      %v3307 = vld [vmem:[%s3290 + $0x40] sm:$0xf]
      %v3308 = vld [vmem:[%s3290 + $0x44] sm:$0xf]
      %v3309 = vld [vmem:[%s3290 + $0x48] sm:$0xf]
      %v3310 = vld [vmem:[%s3290 + $0x4c] sm:$0xf]
      %v3311 = vld [vmem:[%s3290 + $0x50] sm:$0xf]
      %v3312 = vld [vmem:[%s3290 + $0x54] sm:$0xf]
      %v3313 = vld [vmem:[%s3290 + $0x58] sm:$0xf]
      %v3314 = vld [vmem:[%s3290 + $0x5c] sm:$0xf]
      %v3315 = vld [vmem:[%s3290 + $0x60] sm:$0xf]
      %v3316 = vld [vmem:[%s3290 + $0x64] sm:$0xf]
      %v3317 = vld [vmem:[%s3290 + $0x68] sm:$0xf]
      %v3318 = vld [vmem:[%s3290 + $0x6c] sm:$0xf]
      %v3319 = vld [vmem:[%s3290 + $0x70] sm:$0xf]
      %v3320 = vld [vmem:[%s3290 + $0x74] sm:$0xf]
      %v3321 = vld [vmem:[%s3290 + $0x78] sm:$0xf]
      %v3322 = vld [vmem:[%s3290 + $0x7c] sm:$0xf]
      %v3323 = vld [vmem:[%s3290 + $0x80] sm:$0xf]
      %v3324 = vld [vmem:[%s3290 + $0x84] sm:$0xf]
      %v3325 = vld [vmem:[%s3290 + $0x88] sm:$0xf]
      %v3326 = vld [vmem:[%s3290 + $0x8c] sm:$0xf]
      %v3327 = vld [vmem:[%s3290 + $0x90] sm:$0xf]
      %v3328 = vld [vmem:[%s3290 + $0x94] sm:$0xf]
      %v3329 = vld [vmem:[%s3290 + $0x98] sm:$0xf]
      %v3330 = vld [vmem:[%s3290 + $0x9c] sm:$0xf]
      %v3331 = vld [vmem:[%s3290 + $0xa0] sm:$0xf]
      %v3332 = vld [vmem:[%s3290 + $0xa4] sm:$0xf]
      %v3333 = vld [vmem:[%s3290 + $0xa8] sm:$0xf]
      %v3334 = vld [vmem:[%s3290 + $0xac] sm:$0xf]
      %v3335 = vld [vmem:[%s3290 + $0xb0] sm:$0xf]
      %v3336 = vld [vmem:[%s3290 + $0xb4] sm:$0xf]
      %v3337 = vld [vmem:[%s3290 + $0xb8] sm:$0xf]
      %v3338 = vld [vmem:[%s3290 + $0xbc] sm:$0xf]
      %v3413 = vunpack.c.l.b16 %v3216
      %v3414 = vunpack.c.h.b16 %v3216
      %v3415 = vunpack.c.l.b16 %v3217
      %v3416 = vunpack.c.l.b16 %v3218
      %v3417 = vunpack.c.h.b16 %v3218
      %v3418 = vunpack.c.l.b16 %v3219
      %v3419 = vunpack.c.l.b16 %v3220
      %v3420 = vunpack.c.h.b16 %v3220
      %v3421 = vunpack.c.l.b16 %v3221
      %v3422 = vunpack.c.l.b16 %v3222
      %v3423 = vunpack.c.h.b16 %v3222
      %v3424 = vunpack.c.l.b16 %v3223
      %v3425 = vunpack.c.l.b16 %v3224
      %v3426 = vunpack.c.h.b16 %v3224
      %v3427 = vunpack.c.l.b16 %v3225
      %v3428 = vunpack.c.l.b16 %v3226
      %v3429 = vunpack.c.h.b16 %v3226
      %v3430 = vunpack.c.l.b16 %v3227
      %v3431 = vunpack.c.l.b16 %v3228
      %v3432 = vunpack.c.h.b16 %v3228
      %v3433 = vunpack.c.l.b16 %v3229
      %v3434 = vunpack.c.l.b16 %v3230
      %v3435 = vunpack.c.h.b16 %v3230
      %v3436 = vunpack.c.l.b16 %v3231
      %v3437 = vunpack.c.l.b16 %v3232
      %v3438 = vunpack.c.h.b16 %v3232
      %v3439 = vunpack.c.l.b16 %v3233
      %v3440 = vunpack.c.l.b16 %v3234
      %v3441 = vunpack.c.h.b16 %v3234
      %v3442 = vunpack.c.l.b16 %v3235
      %v3443 = vunpack.c.l.b16 %v3236
      %v3444 = vunpack.c.h.b16 %v3236
      %v3445 = vunpack.c.l.b16 %v3237
      %v3446 = vunpack.c.l.b16 %v3238
      %v3447 = vunpack.c.h.b16 %v3238
      %v3448 = vunpack.c.l.b16 %v3239
      %v3449 = vunpack.c.l.b16 %v3240
      %v3450 = vunpack.c.h.b16 %v3240
      %v3451 = vunpack.c.l.b16 %v3241
      %v3452 = vunpack.c.l.b16 %v3242
      %v3453 = vunpack.c.h.b16 %v3242
      %v3454 = vunpack.c.l.b16 %v3243
      %v3455 = vunpack.c.l.b16 %v3244
      %v3456 = vunpack.c.h.b16 %v3244
      %v3457 = vunpack.c.l.b16 %v3245
      %v3458 = vunpack.c.l.b16 %v3246
      %v3459 = vunpack.c.h.b16 %v3246
      %v3460 = vunpack.c.l.b16 %v3247
      %v3461 = vunpack.c.l.b16 %v3248
      %v3462 = vunpack.c.h.b16 %v3248
      %v3463 = vunpack.c.l.b16 %v3249
      %v3464 = vunpack.c.l.b16 %v3250
      %v3465 = vunpack.c.h.b16 %v3250
      %v3466 = vunpack.c.l.b16 %v3251
      %v3467 = vunpack.c.l.b16 %v3252
      %v3468 = vunpack.c.h.b16 %v3252
      %v3469 = vunpack.c.l.b16 %v3253
      %v3470 = vunpack.c.l.b16 %v3254
      %v3471 = vunpack.c.h.b16 %v3254
      %v3472 = vunpack.c.l.b16 %v3255
      %v3473 = vunpack.c.l.b16 %v3256
      %v3474 = vunpack.c.h.b16 %v3256
      %v3475 = vunpack.c.l.b16 %v3257
      %v3476 = vunpack.c.l.b16 %v3258
      %v3477 = vunpack.c.h.b16 %v3258
      %v3478 = vunpack.c.l.b16 %v3259
      %v3479 = vunpack.c.l.b16 %v3260
      %v3480 = vunpack.c.h.b16 %v3260
      %v3481 = vunpack.c.l.b16 %v3261
      %v3482 = vunpack.c.l.b16 %v3262
      %v3483 = vunpack.c.h.b16 %v3262
      %v3484 = vunpack.c.l.b16 %v3263
      %v3485 = vunpack.c.l.b16 %v3264
      %v3486 = vunpack.c.h.b16 %v3264
      %v3487 = vunpack.c.l.b16 %v3265
      %v3488 = vunpack.c.l.b16 %v3266
      %v3489 = vunpack.c.h.b16 %v3266
      %v3490 = vunpack.c.l.b16 %v3267
      %v3491 = vunpack.c.l.b16 %v3268
      %v3492 = vunpack.c.h.b16 %v3268
      %v3493 = vunpack.c.l.b16 %v3269
      %v3494 = vunpack.c.l.b16 %v3270
      %v3495 = vunpack.c.h.b16 %v3270
      %v3496 = vunpack.c.l.b16 %v3271
      %v3497 = vunpack.c.l.b16 %v3272
      %v3498 = vunpack.c.h.b16 %v3272
      %v3499 = vunpack.c.l.b16 %v3273
      %v3500 = vunpack.c.l.b16 %v3274
      %v3501 = vunpack.c.h.b16 %v3274
      %v3502 = vunpack.c.l.b16 %v3275
      %v3503 = vunpack.c.l.b16 %v3276
      %v3504 = vunpack.c.h.b16 %v3276
      %v3505 = vunpack.c.l.b16 %v3277
      %v3506 = vunpack.c.l.b16 %v3278
      %v3507 = vunpack.c.h.b16 %v3278
      %v3508 = vunpack.c.l.b16 %v3279
      %v3509 = vunpack.c.l.b16 %v3280
      %v3510 = vunpack.c.h.b16 %v3280
      %v3511 = vunpack.c.l.b16 %v3281
      %v3512 = vunpack.c.l.b16 %v3282
      %v3513 = vunpack.c.h.b16 %v3282
      %v3514 = vunpack.c.l.b16 %v3283
      %v3515 = vunpack.c.l.b16 %v3284
      %v3516 = vunpack.c.h.b16 %v3284
      %v3517 = vunpack.c.l.b16 %v3285
      %v3518 = vunpack.c.l.b16 %v3286
      %v3519 = vunpack.c.h.b16 %v3286
      %v3520 = vunpack.c.l.b16 %v3287
      %v3521 = vunpack.c.l.b16 %v3288
      %v3522 = vunpack.c.h.b16 %v3288
      %v3523 = vunpack.c.l.b16 %v3289
      %v3524 = vpack.c.b16 %v3416, %v3413
      %v3525 = vpack.c.b16 %v3417, %v3414
      %v3526 = vpack.c.b16 %v3418, %v3415
      %v3527 = vpack.c.b16 %v3422, %v3419
      %v3528 = vpack.c.b16 %v3423, %v3420
      %v3529 = vpack.c.b16 %v3424, %v3421
      %v3530 = vpack.c.b16 %v3428, %v3425
      %v3531 = vpack.c.b16 %v3429, %v3426
      %v3532 = vpack.c.b16 %v3430, %v3427
      %v3533 = vpack.c.b16 %v3434, %v3431
      %v3534 = vpack.c.b16 %v3435, %v3432
      %v3535 = vpack.c.b16 %v3436, %v3433
      %v3536 = vpack.c.b16 %v3440, %v3437
      %v3537 = vpack.c.b16 %v3441, %v3438
      %v3538 = vpack.c.b16 %v3442, %v3439
      %v3539 = vpack.c.b16 %v3446, %v3443
      %v3540 = vpack.c.b16 %v3447, %v3444
      %v3541 = vpack.c.b16 %v3448, %v3445
      %v3542 = vpack.c.b16 %v3452, %v3449
      %v3543 = vpack.c.b16 %v3453, %v3450
      %v3544 = vpack.c.b16 %v3454, %v3451
      %v3545 = vpack.c.b16 %v3458, %v3455
      %v3546 = vpack.c.b16 %v3459, %v3456
      %v3547 = vpack.c.b16 %v3460, %v3457
      %v3548 = vpack.c.b16 %v3464, %v3461
      %v3549 = vpack.c.b16 %v3465, %v3462
      %v3550 = vpack.c.b16 %v3466, %v3463
      %v3551 = vpack.c.b16 %v3470, %v3467
      %v3552 = vpack.c.b16 %v3471, %v3468
      %v3553 = vpack.c.b16 %v3472, %v3469
      %v3554 = vpack.c.b16 %v3476, %v3473
      %v3555 = vpack.c.b16 %v3477, %v3474
      %v3556 = vpack.c.b16 %v3478, %v3475
      %v3557 = vpack.c.b16 %v3482, %v3479
      %v3558 = vpack.c.b16 %v3483, %v3480
      %v3559 = vpack.c.b16 %v3484, %v3481
      %v3560 = vpack.c.b16 %v3488, %v3485
      %v3561 = vpack.c.b16 %v3489, %v3486
      %v3562 = vpack.c.b16 %v3490, %v3487
      %v3563 = vpack.c.b16 %v3494, %v3491
      %v3564 = vpack.c.b16 %v3495, %v3492
      %v3565 = vpack.c.b16 %v3496, %v3493
      %v3566 = vpack.c.b16 %v3500, %v3497
      %v3567 = vpack.c.b16 %v3501, %v3498
      %v3568 = vpack.c.b16 %v3502, %v3499
      %v3569 = vpack.c.b16 %v3506, %v3503
      %v3570 = vpack.c.b16 %v3507, %v3504
      %v3571 = vpack.c.b16 %v3508, %v3505
      %v3572 = vpack.c.b16 %v3512, %v3509
      %v3573 = vpack.c.b16 %v3513, %v3510
      %v3574 = vpack.c.b16 %v3514, %v3511
      %v3575 = vpack.c.b16 %v3518, %v3515
      %v3576 = vpack.c.b16 %v3519, %v3516
      %v3577 = vpack.c.b16 %v3520, %v3517
      %v3578 = vpack.c.b16 %v3521, %v3521
      %v3579 = vpack.c.b16 %v3522, %v3522
      %v3580 = vpack.c.b16 %v3523, %v3523
      %vm3581 = vcmask 1045504
      %v3582 = vrot.slane %v3524, 2
      %v3583 = vrot.slane %v3527, 2
      %v3584 = vsel %vm3581, %v3582, %v3583
      %v3585 = vrot.slane %v3525, 2
      %v3586 = vrot.slane %v3528, 2
      %v3587 = vsel %vm3581, %v3585, %v3586
      %v3588 = vrot.slane %v3526, 2
      %v3589 = vrot.slane %v3529, 2
      %v3590 = vsel %vm3581, %v3588, %v3589
      %v3591 = vrot.slane %v3530, 2
      %v3592 = vsel %vm3581, %v3583, %v3591
      %v3593 = vrot.slane %v3531, 2
      %v3594 = vsel %vm3581, %v3586, %v3593
      %v3595 = vrot.slane %v3532, 2
      %v3596 = vsel %vm3581, %v3589, %v3595
      %v3597 = vrot.slane %v3533, 2
      %v3598 = vsel %vm3581, %v3591, %v3597
      %v3599 = vrot.slane %v3534, 2
      %v3600 = vsel %vm3581, %v3593, %v3599
      %v3601 = vrot.slane %v3535, 2
      %v3602 = vsel %vm3581, %v3595, %v3601
      %v3603 = vrot.slane %v3536, 2
      %v3604 = vsel %vm3581, %v3597, %v3603
      %v3605 = vrot.slane %v3537, 2
      %v3606 = vsel %vm3581, %v3599, %v3605
      %v3607 = vrot.slane %v3538, 2
      %v3608 = vsel %vm3581, %v3601, %v3607
      %v3609 = vrot.slane %v3539, 2
      %v3610 = vsel %vm3581, %v3603, %v3609
      %v3611 = vrot.slane %v3540, 2
      %v3612 = vsel %vm3581, %v3605, %v3611
      %v3613 = vrot.slane %v3541, 2
      %v3614 = vsel %vm3581, %v3607, %v3613
      %v3615 = vrot.slane %v3542, 2
      %v3616 = vsel %vm3581, %v3609, %v3615
      %v3617 = vrot.slane %v3543, 2
      %v3618 = vsel %vm3581, %v3611, %v3617
      %v3619 = vrot.slane %v3544, 2
      %v3620 = vsel %vm3581, %v3613, %v3619
      %v3621 = vrot.slane %v3545, 2
      %v3622 = vsel %vm3581, %v3615, %v3621
      %v3623 = vrot.slane %v3546, 2
      %v3624 = vsel %vm3581, %v3617, %v3623
      %v3625 = vrot.slane %v3547, 2
      %v3626 = vsel %vm3581, %v3619, %v3625
      %v3627 = vrot.slane %v3548, 2
      %v3628 = vsel %vm3581, %v3621, %v3627
      %v3629 = vrot.slane %v3549, 2
      %v3630 = vsel %vm3581, %v3623, %v3629
      %v3631 = vrot.slane %v3550, 2
      %v3632 = vsel %vm3581, %v3625, %v3631
      %v3633 = vrot.slane %v3551, 2
      %v3634 = vsel %vm3581, %v3627, %v3633
      %v3635 = vrot.slane %v3552, 2
      %v3636 = vsel %vm3581, %v3629, %v3635
      %v3637 = vrot.slane %v3553, 2
      %v3638 = vsel %vm3581, %v3631, %v3637
      %v3639 = vrot.slane %v3554, 2
      %v3640 = vsel %vm3581, %v3633, %v3639
      %v3641 = vrot.slane %v3555, 2
      %v3642 = vsel %vm3581, %v3635, %v3641
      %v3643 = vrot.slane %v3556, 2
      %v3644 = vsel %vm3581, %v3637, %v3643
      %v3645 = vrot.slane %v3557, 2
      %v3646 = vsel %vm3581, %v3639, %v3645
      %v3647 = vrot.slane %v3558, 2
      %v3648 = vsel %vm3581, %v3641, %v3647
      %v3649 = vrot.slane %v3559, 2
      %v3650 = vsel %vm3581, %v3643, %v3649
      %v3651 = vrot.slane %v3560, 2
      %v3652 = vsel %vm3581, %v3645, %v3651
      %v3653 = vrot.slane %v3561, 2
      %v3654 = vsel %vm3581, %v3647, %v3653
      %v3655 = vrot.slane %v3562, 2
      %v3656 = vsel %vm3581, %v3649, %v3655
      %v3657 = vrot.slane %v3563, 2
      %v3658 = vsel %vm3581, %v3651, %v3657
      %v3659 = vrot.slane %v3564, 2
      %v3660 = vsel %vm3581, %v3653, %v3659
      %v3661 = vrot.slane %v3565, 2
      %v3662 = vsel %vm3581, %v3655, %v3661
      %v3663 = vrot.slane %v3566, 2
      %v3664 = vsel %vm3581, %v3657, %v3663
      %v3665 = vrot.slane %v3567, 2
      %v3666 = vsel %vm3581, %v3659, %v3665
      %v3667 = vrot.slane %v3568, 2
      %v3668 = vsel %vm3581, %v3661, %v3667
      %v3669 = vrot.slane %v3569, 2
      %v3670 = vsel %vm3581, %v3663, %v3669
      %v3671 = vrot.slane %v3570, 2
      %v3672 = vsel %vm3581, %v3665, %v3671
      %v3673 = vrot.slane %v3571, 2
      %v3674 = vsel %vm3581, %v3667, %v3673
      %v3675 = vrot.slane %v3572, 2
      %v3676 = vsel %vm3581, %v3669, %v3675
      %v3677 = vrot.slane %v3573, 2
      %v3678 = vsel %vm3581, %v3671, %v3677
      %v3679 = vrot.slane %v3574, 2
      %v3680 = vsel %vm3581, %v3673, %v3679
      %v3681 = vrot.slane %v3575, 2
      %v3682 = vsel %vm3581, %v3675, %v3681
      %v3683 = vrot.slane %v3576, 2
      %v3684 = vsel %vm3581, %v3677, %v3683
      %v3685 = vrot.slane %v3577, 2
      %v3686 = vsel %vm3581, %v3679, %v3685
      %v3687 = vrot.slane %v3578, 2
      %v3688 = vsel %vm3581, %v3681, %v3687
      %v3689 = vrot.slane %v3579, 2
      %v3690 = vsel %vm3581, %v3683, %v3689
      %v3691 = vrot.slane %v3580, 2
      %v3692 = vsel %vm3581, %v3685, %v3691
      %v3795 = vunpack.c.l.b16 %v3291
      %v3796 = vunpack.c.l.b16 %v3292
      %v3797 = vunpack.c.l.b16 %v3293
      %v3798 = vunpack.c.l.b16 %v3294
      %v3799 = vunpack.c.l.b16 %v3295
      %v3800 = vunpack.c.l.b16 %v3296
      %v3801 = vunpack.c.l.b16 %v3297
      %v3802 = vunpack.c.l.b16 %v3298
      %v3803 = vunpack.c.l.b16 %v3299
      %v3804 = vunpack.c.l.b16 %v3300
      %v3805 = vunpack.c.l.b16 %v3301
      %v3806 = vunpack.c.l.b16 %v3302
      %v3807 = vunpack.c.l.b16 %v3303
      %v3808 = vunpack.c.l.b16 %v3304
      %v3809 = vunpack.c.l.b16 %v3305
      %v3810 = vunpack.c.l.b16 %v3306
      %v3811 = vunpack.c.l.b16 %v3307
      %v3812 = vunpack.c.l.b16 %v3308
      %v3813 = vunpack.c.l.b16 %v3309
      %v3814 = vunpack.c.l.b16 %v3310
      %v3815 = vunpack.c.l.b16 %v3311
      %v3816 = vunpack.c.l.b16 %v3312
      %v3817 = vunpack.c.l.b16 %v3313
      %v3818 = vunpack.c.l.b16 %v3314
      %v3819 = vunpack.c.l.b16 %v3315
      %v3820 = vunpack.c.l.b16 %v3316
      %v3821 = vunpack.c.l.b16 %v3317
      %v3822 = vunpack.c.l.b16 %v3318
      %v3823 = vunpack.c.l.b16 %v3319
      %v3824 = vunpack.c.l.b16 %v3320
      %v3825 = vunpack.c.l.b16 %v3321
      %v3826 = vunpack.c.l.b16 %v3322
      %v3827 = vunpack.c.l.b16 %v3323
      %v3828 = vunpack.c.l.b16 %v3324
      %v3829 = vunpack.c.l.b16 %v3325
      %v3830 = vunpack.c.l.b16 %v3326
      %v3831 = vunpack.c.l.b16 %v3327
      %v3832 = vunpack.c.l.b16 %v3328
      %v3833 = vunpack.c.l.b16 %v3329
      %v3834 = vunpack.c.l.b16 %v3330
      %v3835 = vunpack.c.l.b16 %v3331
      %v3836 = vunpack.c.l.b16 %v3332
      %v3837 = vunpack.c.l.b16 %v3333
      %v3838 = vunpack.c.l.b16 %v3334
      %v3839 = vunpack.c.l.b16 %v3335
      %v3840 = vunpack.c.l.b16 %v3336
      %v3841 = vunpack.c.l.b16 %v3337
      %v3842 = vunpack.c.l.b16 %v3338
      %v3843 = vpack.c.b16 %v3796, %v3795
      %v3844 = vpack.c.b16 %v3798, %v3797
      %v3845 = vpack.c.b16 %v3800, %v3799
      %v3846 = vpack.c.b16 %v3802, %v3801
      %v3847 = vpack.c.b16 %v3804, %v3803
      %v3848 = vpack.c.b16 %v3806, %v3805
      %v3849 = vpack.c.b16 %v3808, %v3807
      %v3850 = vpack.c.b16 %v3810, %v3809
      %v3851 = vpack.c.b16 %v3812, %v3811
      %v3852 = vpack.c.b16 %v3814, %v3813
      %v3853 = vpack.c.b16 %v3816, %v3815
      %v3854 = vpack.c.b16 %v3818, %v3817
      %v3855 = vpack.c.b16 %v3820, %v3819
      %v3856 = vpack.c.b16 %v3822, %v3821
      %v3857 = vpack.c.b16 %v3824, %v3823
      %v3858 = vpack.c.b16 %v3826, %v3825
      %v3859 = vpack.c.b16 %v3828, %v3827
      %v3860 = vpack.c.b16 %v3830, %v3829
      %v3861 = vpack.c.b16 %v3832, %v3831
      %v3862 = vpack.c.b16 %v3834, %v3833
      %v3863 = vpack.c.b16 %v3836, %v3835
      %v3864 = vpack.c.b16 %v3838, %v3837
      %v3865 = vpack.c.b16 %v3840, %v3839
      %v3866 = vpack.c.b16 %v3842, %v3841
      %3891 = vmatprep.subr.bf16.mxu0 0
      %3892 = vmatpush1.bf16.msra.mxu0 %v3843
      %3893 = vmatprep.subr.bf16.mxu0 0
      %3894 = vmatpush1.bf16.msra.mxu0 %v3844
      %3895 = vmatprep.subr.bf16.mxu0 0
      %3896 = vmatpush1.bf16.msra.mxu0 %v3845
      %3897 = vmatprep.subr.bf16.mxu0 0
      %3898 = vmatpush1.bf16.msra.mxu0 %v3846
      %3899 = vmatprep.subr.bf16.mxu0 0
      %3900 = vmatpush1.bf16.msra.mxu0 %v3847
      %3901 = vmatprep.subr.bf16.mxu0 0
      %3902 = vmatpush1.bf16.msra.mxu0 %v3848
      %3903 = vmatprep.subr.bf16.mxu0 0
      %3904 = vmatpush1.bf16.msra.mxu0 %v3849
      %3905 = vmatprep.subr.bf16.mxu0 0
      %3906 = vmatpush1.bf16.msra.mxu0 %v3850
      %3907 = vmatprep.subr.bf16.mxu0 0
      %3908 = vmatpush1.bf16.msra.mxu0 %v3851
      %3909 = vmatprep.subr.bf16.mxu0 0
      %3910 = vmatpush1.bf16.msra.mxu0 %v3852
      %3911 = vmatprep.subr.bf16.mxu0 0
      %3912 = vmatpush1.bf16.msra.mxu0 %v3853
      %3913 = vmatprep.subr.bf16.mxu0 0
      %3914 = vmatpush1.bf16.msra.mxu0 %v3854
      %3915 = vmatprep.subr.bf16.mxu0 0
      %3916 = vmatpush1.bf16.msra.mxu0 %v3855
      %3917 = vmatprep.subr.bf16.mxu0 0
      %3918 = vmatpush1.bf16.msra.mxu0 %v3856
      %3919 = vmatprep.subr.bf16.mxu0 0
      %3920 = vmatpush1.bf16.msra.mxu0 %v3857
      %3921 = vmatprep.subr.bf16.mxu0 0
      %3922 = vmatpush1.bf16.msra.mxu0 %v3858
      %3923 = vmatprep.mubr.bf16.mxu0 %v3587
      %3924 = vmatmul.mubr.bf16.gmra.mrb[0].mxu0 %v3584
      %v3925 = vpop.f32.mrb[0].mxu0
      %v3926 = vadd.f32 0.0, %v3925
      %v3927 = vpop.f32.mrb[0].mxu0
      %v3928 = vpop.f32.mrb[0].mxu0
      %v3929 = vadd.f32 0.0, %v3928
      %v3930 = vpop.f32.mrb[0].mxu0
      %3931 = vmatprep.mubr.bf16.mxu0 %v3594
      %3932 = vmatmul.mubr.bf16.gmra.mrb[0].mxu0 %v3592
      %v3933 = vpop.f32.mrb[0].mxu0
      %v3934 = vadd.f32 0.0, %v3933
      %v3935 = vpop.f32.mrb[0].mxu0
      %v3936 = vpop.f32.mrb[0].mxu0
      %v3937 = vadd.f32 0.0, %v3936
      %v3938 = vpop.f32.mrb[0].mxu0
      %3939 = vmatprep.mubr.bf16.mxu0 %v3600
      %3940 = vmatmul.mubr.bf16.gmra.mrb[0].mxu0 %v3598
      %v3941 = vpop.f32.mrb[0].mxu0
      %v3942 = vadd.f32 0.0, %v3941
      %v3943 = vpop.f32.mrb[0].mxu0
      %v3944 = vpop.f32.mrb[0].mxu0
      %v3945 = vadd.f32 0.0, %v3944
      %v3946 = vpop.f32.mrb[0].mxu0
      %3947 = vmatprep.mubr.bf16.mxu0 %v3606
      %3948 = vmatmul.mubr.bf16.gmra.mrb[0].mxu0 %v3604
      %v3949 = vpop.f32.mrb[0].mxu0
      %v3950 = vadd.f32 0.0, %v3949
      %v3951 = vpop.f32.mrb[0].mxu0
      %v3952 = vpop.f32.mrb[0].mxu0
      %v3953 = vadd.f32 0.0, %v3952
      %v3954 = vpop.f32.mrb[0].mxu0
      %3955 = vmatprep.mubr.bf16.mxu0 %v3612
      %3956 = vmatmul.mubr.bf16.gmra.mrb[0].mxu0 %v3610
      %v3957 = vpop.f32.mrb[0].mxu0
      %v3958 = vadd.f32 0.0, %v3957
      %v3959 = vpop.f32.mrb[0].mxu0
      %v3960 = vpop.f32.mrb[0].mxu0
      %v3961 = vadd.f32 0.0, %v3960
      %v3962 = vpop.f32.mrb[0].mxu0
      %3963 = vmatprep.mubr.bf16.mxu0 %v3618
      %3964 = vmatmul.mubr.bf16.gmra.mrb[0].mxu0 %v3616
      %v3965 = vpop.f32.mrb[0].mxu0
      %v3966 = vadd.f32 0.0, %v3965
      %v3967 = vpop.f32.mrb[0].mxu0
      %v3968 = vpop.f32.mrb[0].mxu0
      %v3969 = vadd.f32 0.0, %v3968
      %v3970 = vpop.f32.mrb[0].mxu0
      %3971 = vmatprep.mubr.bf16.mxu0 %v3624
      %3972 = vmatmul.mubr.bf16.gmra.mrb[0].mxu0 %v3622
      %v3973 = vpop.f32.mrb[0].mxu0
      %v3974 = vadd.f32 0.0, %v3973
      %v3975 = vpop.f32.mrb[0].mxu0
      %v3976 = vpop.f32.mrb[0].mxu0
      %v3977 = vadd.f32 0.0, %v3976
      %v3978 = vpop.f32.mrb[0].mxu0
      %3979 = vmatprep.mubr.bf16.mxu0 %v3630
      %3980 = vmatmul.mubr.bf16.gmra.mrb[0].mxu0 %v3628
      %v3981 = vpop.f32.mrb[0].mxu0
      %v3982 = vadd.f32 0.0, %v3981
      %v3983 = vpop.f32.mrb[0].mxu0
      %v3984 = vpop.f32.mrb[0].mxu0
      %v3985 = vadd.f32 0.0, %v3984
      %v3986 = vpop.f32.mrb[0].mxu0
      %3987 = vmatprep.mubr.bf16.mxu0 %v3636
      %3988 = vmatmul.mubr.bf16.gmra.mrb[0].mxu0 %v3634
      %v3989 = vpop.f32.mrb[0].mxu0
      %v3990 = vadd.f32 0.0, %v3989
      %v3991 = vpop.f32.mrb[0].mxu0
      %v3992 = vpop.f32.mrb[0].mxu0
      %v3993 = vadd.f32 0.0, %v3992
      %v3994 = vpop.f32.mrb[0].mxu0
      %3995 = vmatprep.mubr.bf16.mxu0 %v3642
      %3996 = vmatmul.mubr.bf16.gmra.mrb[0].mxu0 %v3640
      %v3997 = vpop.f32.mrb[0].mxu0
      %v3998 = vadd.f32 0.0, %v3997
      %v3999 = vpop.f32.mrb[0].mxu0
      %v4000 = vpop.f32.mrb[0].mxu0
      %v4001 = vadd.f32 0.0, %v4000
      %v4002 = vpop.f32.mrb[0].mxu0
      %4003 = vmatprep.mubr.bf16.mxu0 %v3648
      %4004 = vmatmul.mubr.bf16.gmra.mrb[0].mxu0 %v3646
      %v4005 = vpop.f32.mrb[0].mxu0
      %v4006 = vadd.f32 0.0, %v4005
      %v4007 = vpop.f32.mrb[0].mxu0
      %v4008 = vpop.f32.mrb[0].mxu0
      %v4009 = vadd.f32 0.0, %v4008
      %v4010 = vpop.f32.mrb[0].mxu0
      %4011 = vmatprep.mubr.bf16.mxu0 %v3654
      %4012 = vmatmul.mubr.bf16.gmra.mrb[0].mxu0 %v3652
      %v4013 = vpop.f32.mrb[0].mxu0
      %v4014 = vadd.f32 0.0, %v4013
      %v4015 = vpop.f32.mrb[0].mxu0
      %v4016 = vpop.f32.mrb[0].mxu0
      %v4017 = vadd.f32 0.0, %v4016
      %v4018 = vpop.f32.mrb[0].mxu0
      %4019 = vmatprep.mubr.bf16.mxu0 %v3660
      %4020 = vmatmul.mubr.bf16.gmra.mrb[0].mxu0 %v3658
      %v4021 = vpop.f32.mrb[0].mxu0
      %v4022 = vadd.f32 0.0, %v4021
      %v4023 = vpop.f32.mrb[0].mxu0
      %v4024 = vpop.f32.mrb[0].mxu0
      %v4025 = vadd.f32 0.0, %v4024
      %v4026 = vpop.f32.mrb[0].mxu0
      %4027 = vmatprep.mubr.bf16.mxu0 %v3666
      %4028 = vmatmul.mubr.bf16.gmra.mrb[0].mxu0 %v3664
      %v4029 = vpop.f32.mrb[0].mxu0
      %v4030 = vadd.f32 0.0, %v4029
      %v4031 = vpop.f32.mrb[0].mxu0
      %v4032 = vpop.f32.mrb[0].mxu0
      %v4033 = vadd.f32 0.0, %v4032
      %v4034 = vpop.f32.mrb[0].mxu0
      %4035 = vmatprep.mubr.bf16.mxu0 %v3672
      %4036 = vmatmul.mubr.bf16.gmra.mrb[0].mxu0 %v3670
      %v4037 = vpop.f32.mrb[0].mxu0
      %v4038 = vadd.f32 0.0, %v4037
      %v4039 = vpop.f32.mrb[0].mxu0
      %v4040 = vpop.f32.mrb[0].mxu0
      %v4041 = vadd.f32 0.0, %v4040
      %v4042 = vpop.f32.mrb[0].mxu0
      %4043 = vmatprep.mubr.bf16.mxu0 %v3678
      %4044 = vmatmul.mubr.bf16.gmra.mrb[0].mxu0 %v3676
      %v4045 = vpop.f32.mrb[0].mxu0
      %v4046 = vadd.f32 0.0, %v4045
      %v4047 = vpop.f32.mrb[0].mxu0
      %v4048 = vpop.f32.mrb[0].mxu0
      %v4049 = vadd.f32 0.0, %v4048
      %v4050 = vpop.f32.mrb[0].mxu0
      %4051 = vmatprep.mubr.bf16.mxu0 %v3684
      %4052 = vmatmul.mubr.bf16.gmra.mrb[0].mxu0 %v3682
      %v4053 = vpop.f32.mrb[0].mxu0
      %v4054 = vadd.f32 0.0, %v4053
      %v4055 = vpop.f32.mrb[0].mxu0
      %v4056 = vpop.f32.mrb[0].mxu0
      %v4057 = vadd.f32 0.0, %v4056
      %v4058 = vpop.f32.mrb[0].mxu0
      %4059 = vmatprep.mubr.bf16.mxu0 %v3690
      %4060 = vmatmul.mubr.bf16.gmra.mrb[0].mxu0 %v3688
      %v4061 = vpop.f32.mrb[0].mxu0
      %v4062 = vadd.f32 0.0, %v4061
      %v4063 = vpop.f32.mrb[0].mxu0
      %v4064 = vpop.f32.mrb[0].mxu0
      %v4065 = vadd.f32 0.0, %v4064
      %v4066 = vpop.f32.mrb[0].mxu0
      %4067 = vdwg.mxu0
      %4068 = vmatprep.subr.bf16.mxu0 0
      %4069 = vmatpush1.bf16.msra.mxu0 %v3859
      %4070 = vmatprep.subr.bf16.mxu0 0
      %4071 = vmatpush1.bf16.msra.mxu0 %v3860
      %4072 = vmatprep.subr.bf16.mxu0 0
      %4073 = vmatpush1.bf16.msra.mxu0 %v3861
      %4074 = vmatprep.subr.bf16.mxu0 0
      %4075 = vmatpush1.bf16.msra.mxu0 %v3862
      %4076 = vmatprep.subr.bf16.mxu0 0
      %4077 = vmatpush1.bf16.msra.mxu0 %v3863
      %4078 = vmatprep.subr.bf16.mxu0 0
      %4079 = vmatpush1.bf16.msra.mxu0 %v3864
      %4080 = vmatprep.subr.bf16.mxu0 0
      %4081 = vmatpush1.bf16.msra.mxu0 %v3865
      %4082 = vmatprep.subr.bf16.mxu0 0
      %4083 = vmatpush1.bf16.msra.mxu0 %v3866
      %4084 = vmatprep.subr.bf16.mxu0 0
      %4085 = vmatpush1.bf16.msra.mxu0 0
      %4086 = vmatprep.subr.bf16.mxu0 0
      %4087 = vmatpush1.bf16.msra.mxu0 0
      %4088 = vmatprep.subr.bf16.mxu0 0
      %4089 = vmatpush1.bf16.msra.mxu0 0
      %4090 = vmatprep.subr.bf16.mxu0 0
      %4091 = vmatpush1.bf16.msra.mxu0 0
      %4092 = vmatprep.subr.bf16.mxu0 0
      %4093 = vmatpush1.bf16.msra.mxu0 0
      %4094 = vmatprep.subr.bf16.mxu0 0
      %4095 = vmatpush1.bf16.msra.mxu0 0
      %4096 = vmatprep.subr.bf16.mxu0 0
      %4097 = vmatpush1.bf16.msra.mxu0 0
      %4098 = vmatprep.subr.bf16.mxu0 0
      %4099 = vmatpush1.bf16.msra.mxu0 0
      %4100 = vmatprep.mubr.bf16.mxu0 0
      %4101 = vmatmul.mubr.bf16.gmra.mrb[0].mxu0 %v3590
      %v4102 = vpop.f32.mrb[0].mxu0
      %v4103 = vadd.f32 %v3926, %v4102
      %v4104 = vpop.f32.mrb[0].mxu0
      %v4105 = vpop.f32.mrb[0].mxu0
      %v4106 = vadd.f32 %v3929, %v4105
      %v4107 = vpop.f32.mrb[0].mxu0
      %4108 = vmatprep.mubr.bf16.mxu0 0
      %4109 = vmatmul.mubr.bf16.gmra.mrb[0].mxu0 %v3596
      %v4110 = vpop.f32.mrb[0].mxu0
      %v4111 = vadd.f32 %v3934, %v4110
      %v4112 = vpop.f32.mrb[0].mxu0
      %v4113 = vpop.f32.mrb[0].mxu0
      %v4114 = vadd.f32 %v3937, %v4113
      %v4115 = vpop.f32.mrb[0].mxu0
      %4116 = vmatprep.mubr.bf16.mxu0 0
      %4117 = vmatmul.mubr.bf16.gmra.mrb[0].mxu0 %v3602
      %v4118 = vpop.f32.mrb[0].mxu0
      %v4119 = vadd.f32 %v3942, %v4118
      %v4120 = vpop.f32.mrb[0].mxu0
      %v4121 = vpop.f32.mrb[0].mxu0
      %v4122 = vadd.f32 %v3945, %v4121
      %v4123 = vpop.f32.mrb[0].mxu0
      %4124 = vmatprep.mubr.bf16.mxu0 0
      %4125 = vmatmul.mubr.bf16.gmra.mrb[0].mxu0 %v3608
      %v4126 = vpop.f32.mrb[0].mxu0
      %v4127 = vadd.f32 %v3950, %v4126
      %v4128 = vpop.f32.mrb[0].mxu0
      %v4129 = vpop.f32.mrb[0].mxu0
      %v4130 = vadd.f32 %v3953, %v4129
      %v4131 = vpop.f32.mrb[0].mxu0
      %4132 = vmatprep.mubr.bf16.mxu0 0
      %4133 = vmatmul.mubr.bf16.gmra.mrb[0].mxu0 %v3614
      %v4134 = vpop.f32.mrb[0].mxu0
      %v4135 = vadd.f32 %v3958, %v4134
      %v4136 = vpop.f32.mrb[0].mxu0
      %v4137 = vpop.f32.mrb[0].mxu0
      %v4138 = vadd.f32 %v3961, %v4137
      %v4139 = vpop.f32.mrb[0].mxu0
      %4140 = vmatprep.mubr.bf16.mxu0 0
      %4141 = vmatmul.mubr.bf16.gmra.mrb[0].mxu0 %v3620
      %v4142 = vpop.f32.mrb[0].mxu0
      %v4143 = vadd.f32 %v3966, %v4142
      %v4144 = vpop.f32.mrb[0].mxu0
      %v4145 = vpop.f32.mrb[0].mxu0
      %v4146 = vadd.f32 %v3969, %v4145
      %v4147 = vpop.f32.mrb[0].mxu0
      %4148 = vmatprep.mubr.bf16.mxu0 0
      %4149 = vmatmul.mubr.bf16.gmra.mrb[0].mxu0 %v3626
      %v4150 = vpop.f32.mrb[0].mxu0
      %v4151 = vadd.f32 %v3974, %v4150
      %v4152 = vpop.f32.mrb[0].mxu0
      %v4153 = vpop.f32.mrb[0].mxu0
      %v4154 = vadd.f32 %v3977, %v4153
      %v4155 = vpop.f32.mrb[0].mxu0
      %4156 = vmatprep.mubr.bf16.mxu0 0
      %4157 = vmatmul.mubr.bf16.gmra.mrb[0].mxu0 %v3632
      %v4158 = vpop.f32.mrb[0].mxu0
      %v4159 = vadd.f32 %v3982, %v4158
      %v4160 = vpop.f32.mrb[0].mxu0
      %v4161 = vpop.f32.mrb[0].mxu0
      %v4162 = vadd.f32 %v3985, %v4161
      %v4163 = vpop.f32.mrb[0].mxu0
      %4164 = vmatprep.mubr.bf16.mxu0 0
      %4165 = vmatmul.mubr.bf16.gmra.mrb[0].mxu0 %v3638
      %v4166 = vpop.f32.mrb[0].mxu0
      %v4167 = vadd.f32 %v3990, %v4166
      %v4168 = vpop.f32.mrb[0].mxu0
      %v4169 = vpop.f32.mrb[0].mxu0
      %v4170 = vadd.f32 %v3993, %v4169
      %v4171 = vpop.f32.mrb[0].mxu0
      %4172 = vmatprep.mubr.bf16.mxu0 0
      %4173 = vmatmul.mubr.bf16.gmra.mrb[0].mxu0 %v3644
      %v4174 = vpop.f32.mrb[0].mxu0
      %v4175 = vadd.f32 %v3998, %v4174
      %v4176 = vpop.f32.mrb[0].mxu0
      %v4177 = vpop.f32.mrb[0].mxu0
      %v4178 = vadd.f32 %v4001, %v4177
      %v4179 = vpop.f32.mrb[0].mxu0
      %4180 = vmatprep.mubr.bf16.mxu0 0
      %4181 = vmatmul.mubr.bf16.gmra.mrb[0].mxu0 %v3650
      %v4182 = vpop.f32.mrb[0].mxu0
      %v4183 = vadd.f32 %v4006, %v4182
      %v4184 = vpop.f32.mrb[0].mxu0
      %v4185 = vpop.f32.mrb[0].mxu0
      %v4186 = vadd.f32 %v4009, %v4185
      %v4187 = vpop.f32.mrb[0].mxu0
      %4188 = vmatprep.mubr.bf16.mxu0 0
      %4189 = vmatmul.mubr.bf16.gmra.mrb[0].mxu0 %v3656
      %v4190 = vpop.f32.mrb[0].mxu0
      %v4191 = vadd.f32 %v4014, %v4190
      %v4192 = vpop.f32.mrb[0].mxu0
      %v4193 = vpop.f32.mrb[0].mxu0
      %v4194 = vadd.f32 %v4017, %v4193
      %v4195 = vpop.f32.mrb[0].mxu0
      %4196 = vmatprep.mubr.bf16.mxu0 0
      %4197 = vmatmul.mubr.bf16.gmra.mrb[0].mxu0 %v3662
      %v4198 = vpop.f32.mrb[0].mxu0
      %v4199 = vadd.f32 %v4022, %v4198
      %v4200 = vpop.f32.mrb[0].mxu0
      %v4201 = vpop.f32.mrb[0].mxu0
      %v4202 = vadd.f32 %v4025, %v4201
      %v4203 = vpop.f32.mrb[0].mxu0
      %4204 = vmatprep.mubr.bf16.mxu0 0
      %4205 = vmatmul.mubr.bf16.gmra.mrb[0].mxu0 %v3668
      %v4206 = vpop.f32.mrb[0].mxu0
      %v4207 = vadd.f32 %v4030, %v4206
      %v4208 = vpop.f32.mrb[0].mxu0
      %v4209 = vpop.f32.mrb[0].mxu0
      %v4210 = vadd.f32 %v4033, %v4209
      %v4211 = vpop.f32.mrb[0].mxu0
      %4212 = vmatprep.mubr.bf16.mxu0 0
      %4213 = vmatmul.mubr.bf16.gmra.mrb[0].mxu0 %v3674
      %v4214 = vpop.f32.mrb[0].mxu0
      %v4215 = vadd.f32 %v4038, %v4214
      %v4216 = vpop.f32.mrb[0].mxu0
      %v4217 = vpop.f32.mrb[0].mxu0
      %v4218 = vadd.f32 %v4041, %v4217
      %v4219 = vpop.f32.mrb[0].mxu0
      %4220 = vmatprep.mubr.bf16.mxu0 0
      %4221 = vmatmul.mubr.bf16.gmra.mrb[0].mxu0 %v3680
      %v4222 = vpop.f32.mrb[0].mxu0
      %v4223 = vadd.f32 %v4046, %v4222
      %v4224 = vpop.f32.mrb[0].mxu0
      %v4225 = vpop.f32.mrb[0].mxu0
      %v4226 = vadd.f32 %v4049, %v4225
      %v4227 = vpop.f32.mrb[0].mxu0
      %4228 = vmatprep.mubr.bf16.mxu0 0
      %4229 = vmatmul.mubr.bf16.gmra.mrb[0].mxu0 %v3686
      %v4230 = vpop.f32.mrb[0].mxu0
      %v4231 = vadd.f32 %v4054, %v4230
      %v4232 = vpop.f32.mrb[0].mxu0
      %v4233 = vpop.f32.mrb[0].mxu0
      %v4234 = vadd.f32 %v4057, %v4233
      %v4235 = vpop.f32.mrb[0].mxu0
      %4236 = vmatprep.mubr.bf16.mxu0 0
      %4237 = vmatmul.mubr.bf16.gmra.mrb[0].mxu0 %v3692
      %v4238 = vpop.f32.mrb[0].mxu0
      %v4239 = vadd.f32 %v4062, %v4238
      %v4240 = vpop.f32.mrb[0].mxu0
      %v4241 = vpop.f32.mrb[0].mxu0
      %v4242 = vadd.f32 %v4065, %v4241
      %v4243 = vpop.f32.mrb[0].mxu0
      %4244 = vdwg.mxu0
      %v4245 = vadd.f32 %v3074, %v4103
      %v4246 = vadd.f32 %v3077, %v4106
      %v4247 = vadd.f32 %v3082, %v4111
      %v4248 = vadd.f32 %v3085, %v4114
      %v4249 = vadd.f32 %v3090, %v4119
      %v4250 = vadd.f32 %v3093, %v4122
      %v4251 = vadd.f32 %v3098, %v4127
      %v4252 = vadd.f32 %v3101, %v4130
      %v4253 = vadd.f32 %v3106, %v4135
      %v4254 = vadd.f32 %v3109, %v4138
      %v4255 = vadd.f32 %v3114, %v4143
      %v4256 = vadd.f32 %v3117, %v4146
      %v4257 = vadd.f32 %v3122, %v4151
      %v4258 = vadd.f32 %v3125, %v4154
      %v4259 = vadd.f32 %v3130, %v4159
      %v4260 = vadd.f32 %v3133, %v4162
      %v4261 = vadd.f32 %v3138, %v4167
      %v4262 = vadd.f32 %v3141, %v4170
      %v4263 = vadd.f32 %v3146, %v4175
      %v4264 = vadd.f32 %v3149, %v4178
      %v4265 = vadd.f32 %v3154, %v4183
      %v4266 = vadd.f32 %v3157, %v4186
      %v4267 = vadd.f32 %v3162, %v4191
      %v4268 = vadd.f32 %v3165, %v4194
      %v4269 = vadd.f32 %v3170, %v4199
      %v4270 = vadd.f32 %v3173, %v4202
      %v4271 = vadd.f32 %v3178, %v4207
      %v4272 = vadd.f32 %v3181, %v4210
      %v4273 = vadd.f32 %v3186, %v4215
      %v4274 = vadd.f32 %v3189, %v4218
      %v4275 = vadd.f32 %v3194, %v4223
      %v4276 = vadd.f32 %v3197, %v4226
      %v4277 = vadd.f32 %v3202, %v4231
      %v4278 = vadd.f32 %v3205, %v4234
      %v4279 = vadd.f32 %v3210, %v4239
      %v4280 = vadd.f32 %v3213, %v4242
      %v4281 = vpack.c.bf16 %v4246, %v4245
      %v4283 = vunpack.c.l.b16 %v4281
      %v4284 = vunpack.c.h.b16 %v4281
      %v4285 = vpack.c.b16 %v4283, %v4283
      %v4286 = vpack.c.b16 %v4284, %v4284
      %4289 = vst [vmem:[%s231] sm:$0xf] %v4285
      %4290 = vst [vmem:[%s231 + $0x4] sm:$0xf] %v4286
      %v4291 = vadd.f32 %v4245, %v4246
      %v4292 = vrot.slane %v4291, 4
      %v4293 = vadd.f32 %v4291, %v4292
      %v4294 = vrot.slane %v4293, 2
      %v4295 = vadd.f32 %v4293, %v4294
      %v4296 = vrot.slane %v4295, 1
      %v4297 = vadd.f32 %v4295, %v4296
      %v4298 = vadd.f32 %v4297, 0.0
      %v4299 = vmul.f32 %v4245, %v4245
      %v4300 = vmul.f32 %v4246, %v4246
      %v4301 = vadd.f32 %v4299, %v4300
      %v4302 = vrot.slane %v4301, 4
      %v4303 = vadd.f32 %v4301, %v4302
      %v4304 = vrot.slane %v4303, 2
      %v4305 = vadd.f32 %v4303, %v4304
      %v4306 = vrot.slane %v4305, 1
      %v4307 = vadd.f32 %v4305, %v4306
      %v4308 = vadd.f32 %v4307, 0.0
      %v4309 = vpack.c.bf16 %v4248, %v4247
      %v4310 = vpack.c.bf16 %v4249, %v4249
      %v4313 = vunpack.c.l.b16 %v4309
      %v4314 = vunpack.c.h.b16 %v4309
      %v4315 = vunpack.c.l.b16 %v4310
      %v4316 = vpack.c.b16 %v4313, %v4313
      %v4317 = vpack.c.b16 %v4314, %v4314
      %v4318 = vpack.c.b16 %v4315, %v4315
      %v4319 = vrot.slane %v4316, 5
      %v4320 = vrot.slane %v4319, 4
      %v4321 = vrot.slane %v4317, 5
      %v4322 = vsel %vm653, %v4320, %v4321
      %v4323 = vrot.slane %v4321, 4
      %v4324 = vrot.slane %v4318, 5
      %v4325 = vsel %vm653, %v4323, %v4324
      %4328 = vst [vmem:[%s231 + $0x8] sm:$0xf] %v4322
      %4329 = vst [vmem:[%s231 + $0xc] sm:$0xf] %v4325
      %vm4333 = vcmask 1045504
      %v4334 = vrot.slane %v4247, 2
      %v4335 = vrot.slane %v4248, 2
      %v4336 = vsel %vm4333, %v4334, %v4335
      %v4337 = vrot.slane %v4249, 2
      %v4338 = vsel %vm4333, %v4335, %v4337
      %v4341 = vadd.f32 %v4336, %v4338
      %v4342 = vrot.slane %v4341, 4
      %v4343 = vadd.f32 %v4341, %v4342
      %v4344 = vrot.slane %v4343, 2
      %v4345 = vadd.f32 %v4343, %v4344
      %v4346 = vrot.slane %v4345, 1
      %v4347 = vadd.f32 %v4345, %v4346
      %v4348 = vadd.f32 %v4298, %v4347
      %v4349 = vmul.f32 %v4247, %v4247
      %v4350 = vmul.f32 %v4248, %v4248
      %v4351 = vmul.f32 %v4249, %v4249
      %v4355 = vrot.slane %v4349, 2
      %v4356 = vrot.slane %v4350, 2
      %v4357 = vsel %vm4333, %v4355, %v4356
      %v4358 = vrot.slane %v4351, 2
      %v4359 = vsel %vm4333, %v4356, %v4358
      %v4362 = vadd.f32 %v4357, %v4359
      %v4363 = vrot.slane %v4362, 4
      %v4364 = vadd.f32 %v4362, %v4363
      %v4365 = vrot.slane %v4364, 2
      %v4366 = vadd.f32 %v4364, %v4365
      %v4367 = vrot.slane %v4366, 1
      %v4368 = vadd.f32 %v4366, %v4367
      %v4369 = vadd.f32 %v4308, %v4368
      %v4370 = vpack.c.bf16 %v4250, %v4249
      %v4371 = vpack.c.bf16 %v4251, %v4251
      %v4374 = vunpack.c.l.b16 %v4370
      %v4375 = vunpack.c.h.b16 %v4370
      %v4376 = vunpack.c.l.b16 %v4371
      %v4377 = vpack.c.b16 %v4374, %v4374
      %v4378 = vpack.c.b16 %v4375, %v4375
      %v4379 = vpack.c.b16 %v4376, %v4376
      %v4380 = vrot.slane %v4377, 6
      %v4381 = vrot.slane %v4380, 4
      %v4382 = vrot.slane %v4378, 6
      %v4383 = vsel %vm571, %v4381, %v4382
      %v4384 = vrot.slane %v4382, 4
      %v4385 = vrot.slane %v4379, 6
      %v4386 = vsel %vm571, %v4384, %v4385
      %4389 = vst [vmem:[%s231 + $0x10] sm:$0xf] %v4383
      %4390 = vst [vmem:[%s231 + $0x14] sm:$0xf] %v4386
      %vm4393 = vcmask 1043456
      %v4394 = vrot.slane %v4249, 4
      %v4395 = vrot.slane %v4250, 4
      %v4396 = vsel %vm4393, %v4394, %v4395
      %v4397 = vrot.slane %v4251, 4
      %v4398 = vsel %vm4393, %v4395, %v4397
      %v4401 = vadd.f32 %v4396, %v4398
      %v4402 = vrot.slane %v4401, 4
      %v4403 = vadd.f32 %v4401, %v4402
      %v4404 = vrot.slane %v4403, 2
      %v4405 = vadd.f32 %v4403, %v4404
      %v4406 = vrot.slane %v4405, 1
      %v4407 = vadd.f32 %v4405, %v4406
      %v4408 = vadd.f32 %v4348, %v4407
      %v4409 = vmul.f32 %v4250, %v4250
      %v4410 = vmul.f32 %v4251, %v4251
      %v4413 = vrot.slane %v4351, 4
      %v4414 = vrot.slane %v4409, 4
      %v4415 = vsel %vm4393, %v4413, %v4414
      %v4416 = vrot.slane %v4410, 4
      %v4417 = vsel %vm4393, %v4414, %v4416
      %v4420 = vadd.f32 %v4415, %v4417
      %v4421 = vrot.slane %v4420, 4
      %v4422 = vadd.f32 %v4420, %v4421
      %v4423 = vrot.slane %v4422, 2
      %v4424 = vadd.f32 %v4422, %v4423
      %v4425 = vrot.slane %v4424, 1
      %v4426 = vadd.f32 %v4424, %v4425
      %v4427 = vadd.f32 %v4369, %v4426
      %v4428 = vpack.c.bf16 %v4252, %v4251
      %v4429 = vpack.c.bf16 %v4253, %v4253
      %v4432 = vunpack.c.l.b16 %v4428
      %v4433 = vunpack.c.h.b16 %v4428
      %v4434 = vunpack.c.l.b16 %v4429
      %v4435 = vpack.c.b16 %v4432, %v4432
      %v4436 = vpack.c.b16 %v4433, %v4433
      %v4437 = vpack.c.b16 %v4434, %v4434
      %v4438 = vrot.slane %v4435, 7
      %v4439 = vrot.slane %v4438, 4
      %v4440 = vrot.slane %v4436, 7
      %v4441 = vsel %vm483, %v4439, %v4440
      %v4442 = vrot.slane %v4440, 4
      %v4443 = vrot.slane %v4437, 7
      %v4444 = vsel %vm483, %v4442, %v4443
      %4447 = vst [vmem:[%s231 + $0x18] sm:$0xf] %v4441
      %4448 = vst [vmem:[%s231 + $0x1c] sm:$0xf] %v4444
      %vm4451 = vcmask 1041408
      %v4452 = vrot.slane %v4251, 6
      %v4453 = vrot.slane %v4252, 6
      %v4454 = vsel %vm4451, %v4452, %v4453
      %v4455 = vrot.slane %v4253, 6
      %v4456 = vsel %vm4451, %v4453, %v4455
      %v4459 = vadd.f32 %v4454, %v4456
      %v4460 = vrot.slane %v4459, 4
      %v4461 = vadd.f32 %v4459, %v4460
      %v4462 = vrot.slane %v4461, 2
      %v4463 = vadd.f32 %v4461, %v4462
      %v4464 = vrot.slane %v4463, 1
      %v4465 = vadd.f32 %v4463, %v4464
      %v4466 = vadd.f32 %v4408, %v4465
      %v4467 = vmul.f32 %v4252, %v4252
      %v4468 = vmul.f32 %v4253, %v4253
      %v4471 = vrot.slane %v4410, 6
      %v4472 = vrot.slane %v4467, 6
      %v4473 = vsel %vm4451, %v4471, %v4472
      %v4474 = vrot.slane %v4468, 6
      %v4475 = vsel %vm4451, %v4472, %v4474
      %v4478 = vadd.f32 %v4473, %v4475
      %v4479 = vrot.slane %v4478, 4
      %v4480 = vadd.f32 %v4478, %v4479
      %v4481 = vrot.slane %v4480, 2
      %v4482 = vadd.f32 %v4480, %v4481
      %v4483 = vrot.slane %v4482, 1
      %v4484 = vadd.f32 %v4482, %v4483
      %v4485 = vadd.f32 %v4427, %v4484
      %v4486 = vpack.c.bf16 %v4255, %v4254
      %v4488 = vunpack.c.l.b16 %v4486
      %v4489 = vunpack.c.h.b16 %v4486
      %v4490 = vpack.c.b16 %v4488, %v4488
      %v4491 = vpack.c.b16 %v4489, %v4489
      %4494 = vst [vmem:[%s231 + $0x20] sm:$0xf] %v4490
      %4495 = vst [vmem:[%s231 + $0x24] sm:$0xf] %v4491
      %v4496 = vadd.f32 %v4254, %v4255
      %v4497 = vrot.slane %v4496, 4
      %v4498 = vadd.f32 %v4496, %v4497
      %v4499 = vrot.slane %v4498, 2
      %v4500 = vadd.f32 %v4498, %v4499
      %v4501 = vrot.slane %v4500, 1
      %v4502 = vadd.f32 %v4500, %v4501
      %v4503 = vadd.f32 %v4466, %v4502
      %v4504 = vmul.f32 %v4254, %v4254
      %v4505 = vmul.f32 %v4255, %v4255
      %v4506 = vadd.f32 %v4504, %v4505
      %v4507 = vrot.slane %v4506, 4
      %v4508 = vadd.f32 %v4506, %v4507
      %v4509 = vrot.slane %v4508, 2
      %v4510 = vadd.f32 %v4508, %v4509
      %v4511 = vrot.slane %v4510, 1
      %v4512 = vadd.f32 %v4510, %v4511
      %v4513 = vadd.f32 %v4485, %v4512
      %v4514 = vpack.c.bf16 %v4257, %v4256
      %v4515 = vpack.c.bf16 %v4258, %v4258
      %v4518 = vunpack.c.l.b16 %v4514
      %v4519 = vunpack.c.h.b16 %v4514
      %v4520 = vunpack.c.l.b16 %v4515
      %v4521 = vpack.c.b16 %v4518, %v4518
      %v4522 = vpack.c.b16 %v4519, %v4519
      %v4523 = vpack.c.b16 %v4520, %v4520
      %v4524 = vrot.slane %v4521, 5
      %v4525 = vrot.slane %v4524, 4
      %v4526 = vrot.slane %v4522, 5
      %v4527 = vsel %vm653, %v4525, %v4526
      %v4528 = vrot.slane %v4526, 4
      %v4529 = vrot.slane %v4523, 5
      %v4530 = vsel %vm653, %v4528, %v4529
      %4533 = vst [vmem:[%s231 + $0x28] sm:$0xf] %v4527
      %4534 = vst [vmem:[%s231 + $0x2c] sm:$0xf] %v4530
      %v4538 = vrot.slane %v4256, 2
      %v4539 = vrot.slane %v4257, 2
      %v4540 = vsel %vm4333, %v4538, %v4539
      %v4541 = vrot.slane %v4258, 2
      %v4542 = vsel %vm4333, %v4539, %v4541
      %v4545 = vadd.f32 %v4540, %v4542
      %v4546 = vrot.slane %v4545, 4
      %v4547 = vadd.f32 %v4545, %v4546
      %v4548 = vrot.slane %v4547, 2
      %v4549 = vadd.f32 %v4547, %v4548
      %v4550 = vrot.slane %v4549, 1
      %v4551 = vadd.f32 %v4549, %v4550
      %v4552 = vadd.f32 %v4503, %v4551
      %v4553 = vmul.f32 %v4256, %v4256
      %v4554 = vmul.f32 %v4257, %v4257
      %v4555 = vmul.f32 %v4258, %v4258
      %v4559 = vrot.slane %v4553, 2
      %v4560 = vrot.slane %v4554, 2
      %v4561 = vsel %vm4333, %v4559, %v4560
      %v4562 = vrot.slane %v4555, 2
      %v4563 = vsel %vm4333, %v4560, %v4562
      %v4566 = vadd.f32 %v4561, %v4563
      %v4567 = vrot.slane %v4566, 4
      %v4568 = vadd.f32 %v4566, %v4567
      %v4569 = vrot.slane %v4568, 2
      %v4570 = vadd.f32 %v4568, %v4569
      %v4571 = vrot.slane %v4570, 1
      %v4572 = vadd.f32 %v4570, %v4571
      %v4573 = vadd.f32 %v4513, %v4572
      %v4574 = vpack.c.bf16 %v4259, %v4258
      %v4575 = vpack.c.bf16 %v4260, %v4260
      %v4578 = vunpack.c.l.b16 %v4574
      %v4579 = vunpack.c.h.b16 %v4574
      %v4580 = vunpack.c.l.b16 %v4575
      %v4581 = vpack.c.b16 %v4578, %v4578
      %v4582 = vpack.c.b16 %v4579, %v4579
      %v4583 = vpack.c.b16 %v4580, %v4580
      %v4584 = vrot.slane %v4581, 6
      %v4585 = vrot.slane %v4584, 4
      %v4586 = vrot.slane %v4582, 6
      %v4587 = vsel %vm571, %v4585, %v4586
      %v4588 = vrot.slane %v4586, 4
      %v4589 = vrot.slane %v4583, 6
      %v4590 = vsel %vm571, %v4588, %v4589
      %4593 = vst [vmem:[%s231 + $0x30] sm:$0xf] %v4587
      %4594 = vst [vmem:[%s231 + $0x34] sm:$0xf] %v4590
      %v4597 = vrot.slane %v4258, 4
      %v4598 = vrot.slane %v4259, 4
      %v4599 = vsel %vm4393, %v4597, %v4598
      %v4600 = vrot.slane %v4260, 4
      %v4601 = vsel %vm4393, %v4598, %v4600
      %v4604 = vadd.f32 %v4599, %v4601
      %v4605 = vrot.slane %v4604, 4
      %v4606 = vadd.f32 %v4604, %v4605
      %v4607 = vrot.slane %v4606, 2
      %v4608 = vadd.f32 %v4606, %v4607
      %v4609 = vrot.slane %v4608, 1
      %v4610 = vadd.f32 %v4608, %v4609
      %v4611 = vadd.f32 %v4552, %v4610
      %v4612 = vmul.f32 %v4259, %v4259
      %v4613 = vmul.f32 %v4260, %v4260
      %v4616 = vrot.slane %v4555, 4
      %v4617 = vrot.slane %v4612, 4
      %v4618 = vsel %vm4393, %v4616, %v4617
      %v4619 = vrot.slane %v4613, 4
      %v4620 = vsel %vm4393, %v4617, %v4619
      %v4623 = vadd.f32 %v4618, %v4620
      %v4624 = vrot.slane %v4623, 4
      %v4625 = vadd.f32 %v4623, %v4624
      %v4626 = vrot.slane %v4625, 2
      %v4627 = vadd.f32 %v4625, %v4626
      %v4628 = vrot.slane %v4627, 1
      %v4629 = vadd.f32 %v4627, %v4628
      %v4630 = vadd.f32 %v4573, %v4629
      %v4631 = vpack.c.bf16 %v4261, %v4260
      %v4632 = vpack.c.bf16 %v4262, %v4262
      %v4635 = vunpack.c.l.b16 %v4631
      %v4636 = vunpack.c.h.b16 %v4631
      %v4637 = vunpack.c.l.b16 %v4632
      %v4638 = vpack.c.b16 %v4635, %v4635
      %v4639 = vpack.c.b16 %v4636, %v4636
      %v4640 = vpack.c.b16 %v4637, %v4637
      %v4641 = vrot.slane %v4638, 7
      %v4642 = vrot.slane %v4641, 4
      %v4643 = vrot.slane %v4639, 7
      %v4644 = vsel %vm483, %v4642, %v4643
      %v4645 = vrot.slane %v4643, 4
      %v4646 = vrot.slane %v4640, 7
      %v4647 = vsel %vm483, %v4645, %v4646
      %4650 = vst [vmem:[%s231 + $0x38] sm:$0xf] %v4644
      %4651 = vst [vmem:[%s231 + $0x3c] sm:$0xf] %v4647
      %v4654 = vrot.slane %v4260, 6
      %v4655 = vrot.slane %v4261, 6
      %v4656 = vsel %vm4451, %v4654, %v4655
      %v4657 = vrot.slane %v4262, 6
      %v4658 = vsel %vm4451, %v4655, %v4657
      %v4661 = vadd.f32 %v4656, %v4658
      %v4662 = vrot.slane %v4661, 4
      %v4663 = vadd.f32 %v4661, %v4662
      %v4664 = vrot.slane %v4663, 2
      %v4665 = vadd.f32 %v4663, %v4664
      %v4666 = vrot.slane %v4665, 1
      %v4667 = vadd.f32 %v4665, %v4666
      %v4668 = vadd.f32 %v4611, %v4667
      %v4669 = vmul.f32 %v4261, %v4261
      %v4670 = vmul.f32 %v4262, %v4262
      %v4673 = vrot.slane %v4613, 6
      %v4674 = vrot.slane %v4669, 6
      %v4675 = vsel %vm4451, %v4673, %v4674
      %v4676 = vrot.slane %v4670, 6
      %v4677 = vsel %vm4451, %v4674, %v4676
      %v4680 = vadd.f32 %v4675, %v4677
      %v4681 = vrot.slane %v4680, 4
      %v4682 = vadd.f32 %v4680, %v4681
      %v4683 = vrot.slane %v4682, 2
      %v4684 = vadd.f32 %v4682, %v4683
      %v4685 = vrot.slane %v4684, 1
      %v4686 = vadd.f32 %v4684, %v4685
      %v4687 = vadd.f32 %v4630, %v4686
      %v4688 = vpack.c.bf16 %v4264, %v4263
      %v4690 = vunpack.c.l.b16 %v4688
      %v4691 = vunpack.c.h.b16 %v4688
      %v4692 = vpack.c.b16 %v4690, %v4690
      %v4693 = vpack.c.b16 %v4691, %v4691
      %4696 = vst [vmem:[%s231 + $0x40] sm:$0xf] %v4692
      %4697 = vst [vmem:[%s231 + $0x44] sm:$0xf] %v4693
      %v4698 = vadd.f32 %v4263, %v4264
      %v4699 = vrot.slane %v4698, 4
      %v4700 = vadd.f32 %v4698, %v4699
      %v4701 = vrot.slane %v4700, 2
      %v4702 = vadd.f32 %v4700, %v4701
      %v4703 = vrot.slane %v4702, 1
      %v4704 = vadd.f32 %v4702, %v4703
      %v4705 = vadd.f32 %v4668, %v4704
      %v4706 = vmul.f32 %v4263, %v4263
      %v4707 = vmul.f32 %v4264, %v4264
      %v4708 = vadd.f32 %v4706, %v4707
      %v4709 = vrot.slane %v4708, 4
      %v4710 = vadd.f32 %v4708, %v4709
      %v4711 = vrot.slane %v4710, 2
      %v4712 = vadd.f32 %v4710, %v4711
      %v4713 = vrot.slane %v4712, 1
      %v4714 = vadd.f32 %v4712, %v4713
      %v4715 = vadd.f32 %v4687, %v4714
      %v4716 = vpack.c.bf16 %v4266, %v4265
      %v4717 = vpack.c.bf16 %v4267, %v4267
      %v4720 = vunpack.c.l.b16 %v4716
      %v4721 = vunpack.c.h.b16 %v4716
      %v4722 = vunpack.c.l.b16 %v4717
      %v4723 = vpack.c.b16 %v4720, %v4720
      %v4724 = vpack.c.b16 %v4721, %v4721
      %v4725 = vpack.c.b16 %v4722, %v4722
      %v4726 = vrot.slane %v4723, 5
      %v4727 = vrot.slane %v4726, 4
      %v4728 = vrot.slane %v4724, 5
      %v4729 = vsel %vm653, %v4727, %v4728
      %v4730 = vrot.slane %v4728, 4
      %v4731 = vrot.slane %v4725, 5
      %v4732 = vsel %vm653, %v4730, %v4731
      %4735 = vst [vmem:[%s231 + $0x48] sm:$0xf] %v4729
      %4736 = vst [vmem:[%s231 + $0x4c] sm:$0xf] %v4732
      %v4740 = vrot.slane %v4265, 2
      %v4741 = vrot.slane %v4266, 2
      %v4742 = vsel %vm4333, %v4740, %v4741
      %v4743 = vrot.slane %v4267, 2
      %v4744 = vsel %vm4333, %v4741, %v4743
      %v4747 = vadd.f32 %v4742, %v4744
      %v4748 = vrot.slane %v4747, 4
      %v4749 = vadd.f32 %v4747, %v4748
      %v4750 = vrot.slane %v4749, 2
      %v4751 = vadd.f32 %v4749, %v4750
      %v4752 = vrot.slane %v4751, 1
      %v4753 = vadd.f32 %v4751, %v4752
      %v4754 = vadd.f32 %v4705, %v4753
      %v4755 = vmul.f32 %v4265, %v4265
      %v4756 = vmul.f32 %v4266, %v4266
      %v4757 = vmul.f32 %v4267, %v4267
      %v4761 = vrot.slane %v4755, 2
      %v4762 = vrot.slane %v4756, 2
      %v4763 = vsel %vm4333, %v4761, %v4762
      %v4764 = vrot.slane %v4757, 2
      %v4765 = vsel %vm4333, %v4762, %v4764
      %v4768 = vadd.f32 %v4763, %v4765
      %v4769 = vrot.slane %v4768, 4
      %v4770 = vadd.f32 %v4768, %v4769
      %v4771 = vrot.slane %v4770, 2
      %v4772 = vadd.f32 %v4770, %v4771
      %v4773 = vrot.slane %v4772, 1
      %v4774 = vadd.f32 %v4772, %v4773
      %v4775 = vadd.f32 %v4715, %v4774
      %v4776 = vpack.c.bf16 %v4268, %v4267
      %v4777 = vpack.c.bf16 %v4269, %v4269
      %v4780 = vunpack.c.l.b16 %v4776
      %v4781 = vunpack.c.h.b16 %v4776
      %v4782 = vunpack.c.l.b16 %v4777
      %v4783 = vpack.c.b16 %v4780, %v4780
      %v4784 = vpack.c.b16 %v4781, %v4781
      %v4785 = vpack.c.b16 %v4782, %v4782
      %v4786 = vrot.slane %v4783, 6
      %v4787 = vrot.slane %v4786, 4
      %v4788 = vrot.slane %v4784, 6
      %v4789 = vsel %vm571, %v4787, %v4788
      %v4790 = vrot.slane %v4788, 4
      %v4791 = vrot.slane %v4785, 6
      %v4792 = vsel %vm571, %v4790, %v4791
      %4795 = vst [vmem:[%s231 + $0x50] sm:$0xf] %v4789
      %4796 = vst [vmem:[%s231 + $0x54] sm:$0xf] %v4792
      %v4799 = vrot.slane %v4267, 4
      %v4800 = vrot.slane %v4268, 4
      %v4801 = vsel %vm4393, %v4799, %v4800
      %v4802 = vrot.slane %v4269, 4
      %v4803 = vsel %vm4393, %v4800, %v4802
      %v4806 = vadd.f32 %v4801, %v4803
      %v4807 = vrot.slane %v4806, 4
      %v4808 = vadd.f32 %v4806, %v4807
      %v4809 = vrot.slane %v4808, 2
      %v4810 = vadd.f32 %v4808, %v4809
      %v4811 = vrot.slane %v4810, 1
      %v4812 = vadd.f32 %v4810, %v4811
      %v4813 = vadd.f32 %v4754, %v4812
      %v4814 = vmul.f32 %v4268, %v4268
      %v4815 = vmul.f32 %v4269, %v4269
      %v4818 = vrot.slane %v4757, 4
      %v4819 = vrot.slane %v4814, 4
      %v4820 = vsel %vm4393, %v4818, %v4819
      %v4821 = vrot.slane %v4815, 4
      %v4822 = vsel %vm4393, %v4819, %v4821
      %v4825 = vadd.f32 %v4820, %v4822
      %v4826 = vrot.slane %v4825, 4
      %v4827 = vadd.f32 %v4825, %v4826
      %v4828 = vrot.slane %v4827, 2
      %v4829 = vadd.f32 %v4827, %v4828
      %v4830 = vrot.slane %v4829, 1
      %v4831 = vadd.f32 %v4829, %v4830
      %v4832 = vadd.f32 %v4775, %v4831
      %v4833 = vpack.c.bf16 %v4270, %v4269
      %v4834 = vpack.c.bf16 %v4271, %v4271
      %v4837 = vunpack.c.l.b16 %v4833
      %v4838 = vunpack.c.h.b16 %v4833
      %v4839 = vunpack.c.l.b16 %v4834
      %v4840 = vpack.c.b16 %v4837, %v4837
      %v4841 = vpack.c.b16 %v4838, %v4838
      %v4842 = vpack.c.b16 %v4839, %v4839
      %v4843 = vrot.slane %v4840, 7
      %v4844 = vrot.slane %v4843, 4
      %v4845 = vrot.slane %v4841, 7
      %v4846 = vsel %vm483, %v4844, %v4845
      %v4847 = vrot.slane %v4845, 4
      %v4848 = vrot.slane %v4842, 7
      %v4849 = vsel %vm483, %v4847, %v4848
      %4852 = vst [vmem:[%s231 + $0x58] sm:$0xf] %v4846
      %4853 = vst [vmem:[%s231 + $0x5c] sm:$0xf] %v4849
      %v4856 = vrot.slane %v4269, 6
      %v4857 = vrot.slane %v4270, 6
      %v4858 = vsel %vm4451, %v4856, %v4857
      %v4859 = vrot.slane %v4271, 6
      %v4860 = vsel %vm4451, %v4857, %v4859
      %v4863 = vadd.f32 %v4858, %v4860
      %v4864 = vrot.slane %v4863, 4
      %v4865 = vadd.f32 %v4863, %v4864
      %v4866 = vrot.slane %v4865, 2
      %v4867 = vadd.f32 %v4865, %v4866
      %v4868 = vrot.slane %v4867, 1
      %v4869 = vadd.f32 %v4867, %v4868
      %v4870 = vadd.f32 %v4813, %v4869
      %v4871 = vmul.f32 %v4270, %v4270
      %v4872 = vmul.f32 %v4271, %v4271
      %v4875 = vrot.slane %v4815, 6
      %v4876 = vrot.slane %v4871, 6
      %v4877 = vsel %vm4451, %v4875, %v4876
      %v4878 = vrot.slane %v4872, 6
      %v4879 = vsel %vm4451, %v4876, %v4878
      %v4882 = vadd.f32 %v4877, %v4879
      %v4883 = vrot.slane %v4882, 4
      %v4884 = vadd.f32 %v4882, %v4883
      %v4885 = vrot.slane %v4884, 2
      %v4886 = vadd.f32 %v4884, %v4885
      %v4887 = vrot.slane %v4886, 1
      %v4888 = vadd.f32 %v4886, %v4887
      %v4889 = vadd.f32 %v4832, %v4888
      %v4890 = vpack.c.bf16 %v4273, %v4272
      %v4892 = vunpack.c.l.b16 %v4890
      %v4893 = vunpack.c.h.b16 %v4890
      %v4894 = vpack.c.b16 %v4892, %v4892
      %v4895 = vpack.c.b16 %v4893, %v4893
      %4898 = vst [vmem:[%s231 + $0x60] sm:$0xf] %v4894
      %4899 = vst [vmem:[%s231 + $0x64] sm:$0xf] %v4895
      %v4900 = vadd.f32 %v4272, %v4273
      %v4901 = vrot.slane %v4900, 4
      %v4902 = vadd.f32 %v4900, %v4901
      %v4903 = vrot.slane %v4902, 2
      %v4904 = vadd.f32 %v4902, %v4903
      %v4905 = vrot.slane %v4904, 1
      %v4906 = vadd.f32 %v4904, %v4905
      %v4907 = vadd.f32 %v4870, %v4906
      %v4908 = vmul.f32 %v4272, %v4272
      %v4909 = vmul.f32 %v4273, %v4273
      %v4910 = vadd.f32 %v4908, %v4909
      %v4911 = vrot.slane %v4910, 4
      %v4912 = vadd.f32 %v4910, %v4911
      %v4913 = vrot.slane %v4912, 2
      %v4914 = vadd.f32 %v4912, %v4913
      %v4915 = vrot.slane %v4914, 1
      %v4916 = vadd.f32 %v4914, %v4915
      %v4917 = vadd.f32 %v4889, %v4916
      %v4918 = vpack.c.bf16 %v4275, %v4274
      %v4919 = vpack.c.bf16 %v4276, %v4276
      %v4922 = vunpack.c.l.b16 %v4918
      %v4923 = vunpack.c.h.b16 %v4918
      %v4924 = vunpack.c.l.b16 %v4919
      %v4925 = vpack.c.b16 %v4922, %v4922
      %v4926 = vpack.c.b16 %v4923, %v4923
      %v4927 = vpack.c.b16 %v4924, %v4924
      %v4928 = vrot.slane %v4925, 5
      %v4929 = vrot.slane %v4928, 4
      %v4930 = vrot.slane %v4926, 5
      %v4931 = vsel %vm653, %v4929, %v4930
      %v4932 = vrot.slane %v4930, 4
      %v4933 = vrot.slane %v4927, 5
      %v4934 = vsel %vm653, %v4932, %v4933
      %4937 = vst [vmem:[%s231 + $0x68] sm:$0xf] %v4931
      %4938 = vst [vmem:[%s231 + $0x6c] sm:$0xf] %v4934
      %v4942 = vrot.slane %v4274, 2
      %v4943 = vrot.slane %v4275, 2
      %v4944 = vsel %vm4333, %v4942, %v4943
      %v4945 = vrot.slane %v4276, 2
      %v4946 = vsel %vm4333, %v4943, %v4945
      %v4949 = vadd.f32 %v4944, %v4946
      %v4950 = vrot.slane %v4949, 4
      %v4951 = vadd.f32 %v4949, %v4950
      %v4952 = vrot.slane %v4951, 2
      %v4953 = vadd.f32 %v4951, %v4952
      %v4954 = vrot.slane %v4953, 1
      %v4955 = vadd.f32 %v4953, %v4954
      %v4956 = vadd.f32 %v4907, %v4955
      %v4957 = vmul.f32 %v4274, %v4274
      %v4958 = vmul.f32 %v4275, %v4275
      %v4959 = vmul.f32 %v4276, %v4276
      %v4963 = vrot.slane %v4957, 2
      %v4964 = vrot.slane %v4958, 2
      %v4965 = vsel %vm4333, %v4963, %v4964
      %v4966 = vrot.slane %v4959, 2
      %v4967 = vsel %vm4333, %v4964, %v4966
      %v4970 = vadd.f32 %v4965, %v4967
      %v4971 = vrot.slane %v4970, 4
      %v4972 = vadd.f32 %v4970, %v4971
      %v4973 = vrot.slane %v4972, 2
      %v4974 = vadd.f32 %v4972, %v4973
      %v4975 = vrot.slane %v4974, 1
      %v4976 = vadd.f32 %v4974, %v4975
      %v4977 = vadd.f32 %v4917, %v4976
      %v4978 = vpack.c.bf16 %v4277, %v4276
      %v4979 = vpack.c.bf16 %v4278, %v4278
      %v4982 = vunpack.c.l.b16 %v4978
      %v4983 = vunpack.c.h.b16 %v4978
      %v4984 = vunpack.c.l.b16 %v4979
      %v4985 = vpack.c.b16 %v4982, %v4982
      %v4986 = vpack.c.b16 %v4983, %v4983
      %v4987 = vpack.c.b16 %v4984, %v4984
      %v4988 = vrot.slane %v4985, 6
      %v4989 = vrot.slane %v4988, 4
      %v4990 = vrot.slane %v4986, 6
      %v4991 = vsel %vm571, %v4989, %v4990
      %v4992 = vrot.slane %v4990, 4
      %v4993 = vrot.slane %v4987, 6
      %v4994 = vsel %vm571, %v4992, %v4993
      %4997 = vst [vmem:[%s231 + $0x70] sm:$0xf] %v4991
      %4998 = vst [vmem:[%s231 + $0x74] sm:$0xf] %v4994
      %v5001 = vrot.slane %v4276, 4
      %v5002 = vrot.slane %v4277, 4
      %v5003 = vsel %vm4393, %v5001, %v5002
      %v5004 = vrot.slane %v4278, 4
      %v5005 = vsel %vm4393, %v5002, %v5004
      %v5008 = vadd.f32 %v5003, %v5005
      %v5009 = vrot.slane %v5008, 4
      %v5010 = vadd.f32 %v5008, %v5009
      %v5011 = vrot.slane %v5010, 2
      %v5012 = vadd.f32 %v5010, %v5011
      %v5013 = vrot.slane %v5012, 1
      %v5014 = vadd.f32 %v5012, %v5013
      %v5015 = vadd.f32 %v4956, %v5014
      %v5016 = vmul.f32 %v4277, %v4277
      %v5017 = vmul.f32 %v4278, %v4278
      %v5020 = vrot.slane %v4959, 4
      %v5021 = vrot.slane %v5016, 4
      %v5022 = vsel %vm4393, %v5020, %v5021
      %v5023 = vrot.slane %v5017, 4
      %v5024 = vsel %vm4393, %v5021, %v5023
      %v5027 = vadd.f32 %v5022, %v5024
      %v5028 = vrot.slane %v5027, 4
      %v5029 = vadd.f32 %v5027, %v5028
      %v5030 = vrot.slane %v5029, 2
      %v5031 = vadd.f32 %v5029, %v5030
      %v5032 = vrot.slane %v5031, 1
      %v5033 = vadd.f32 %v5031, %v5032
      %v5034 = vadd.f32 %v4977, %v5033
      %v5035 = vpack.c.bf16 %v4279, %v4278
      %v5036 = vpack.c.bf16 %v4280, %v4280
      %v5039 = vunpack.c.l.b16 %v5035
      %v5040 = vunpack.c.h.b16 %v5035
      %v5041 = vunpack.c.l.b16 %v5036
      %v5042 = vpack.c.b16 %v5039, %v5039
      %v5043 = vpack.c.b16 %v5040, %v5040
      %v5044 = vpack.c.b16 %v5041, %v5041
      %v5045 = vrot.slane %v5042, 7
      %v5046 = vrot.slane %v5045, 4
      %v5047 = vrot.slane %v5043, 7
      %v5048 = vsel %vm483, %v5046, %v5047
      %v5049 = vrot.slane %v5047, 4
      %v5050 = vrot.slane %v5044, 7
      %v5051 = vsel %vm483, %v5049, %v5050
      %5054 = vst [vmem:[%s231 + $0x78] sm:$0xf] %v5048
      %5055 = vst [vmem:[%s231 + $0x7c] sm:$0xf] %v5051
      %v5058 = vrot.slane %v4278, 6
      %v5059 = vrot.slane %v4279, 6
      %v5060 = vsel %vm4451, %v5058, %v5059
      %v5061 = vrot.slane %v4280, 6
      %v5062 = vsel %vm4451, %v5059, %v5061
      %v5065 = vadd.f32 %v5060, %v5062
      %v5066 = vrot.slane %v5065, 4
      %v5067 = vadd.f32 %v5065, %v5066
      %v5068 = vrot.slane %v5067, 2
      %v5069 = vadd.f32 %v5067, %v5068
      %v5070 = vrot.slane %v5069, 1
      %v5071 = vadd.f32 %v5069, %v5070
      %v5072 = vadd.f32 %v5015, %v5071
      %v5073 = vmul.f32 %v4279, %v4279
      %v5074 = vmul.f32 %v4280, %v4280
      %v5077 = vrot.slane %v5017, 6
      %v5078 = vrot.slane %v5073, 6
      %v5079 = vsel %vm4451, %v5077, %v5078
      %v5080 = vrot.slane %v5074, 6
      %v5081 = vsel %vm4451, %v5078, %v5080
      %v5084 = vadd.f32 %v5079, %v5081
      %v5085 = vrot.slane %v5084, 4
      %v5086 = vadd.f32 %v5084, %v5085
      %v5087 = vrot.slane %v5086, 2
      %v5088 = vadd.f32 %v5086, %v5087
      %v5089 = vrot.slane %v5088, 1
      %v5090 = vadd.f32 %v5088, %v5089
      %v5091 = vadd.f32 %v5034, %v5090
      %5092 = vst [vmem:[%s235] sm:$0x1] %v5072
      %5093 = vst [vmem:[%s235 + $0x1] sm:$0x1] %v5091
      %p5094 = scmp.lt.s32.totalorder %s17, 1
      %s5095 = scalar_select %p5094, %s17, 1
      %s5096 = smul.addr %s5095, 32
      %s5097 = smul.addr %s5096, 4
      %s5098 = scalar_lea.vmem %s4, %s5097
      %p5099 = scmp.lt.s32.totalorder %s17, 1
      %s5100 = scalar_select %p5099, %s17, 1
      %s5101 = smul.addr %s5100, 2
      %s5102 = scalar_lea.vmem %s5, %s5101
      // Predicated region
      $region37: #{bottleneck_forward.5} parent=35 // pred_check
        %p5103 = pneg %p124
      $region38: #{bottleneck_forward.5} parent=35 // pred_check_branch
        %5105 = sbr.rel (%p5103) target = $region40
      $region39: #{bottleneck_forward.5} parent=35 // pred_region
        _
      $region40: #{bottleneck_forward.5} parent=35 // pred_fallthru
        _
      // Predicated region
      $region41: #{bottleneck_forward.5} parent=35 // pred_check
        %p5106 = pneg %p150
      $region42: #{bottleneck_forward.5} parent=35 // pred_check_branch
        %5108 = sbr.rel (%p5106) target = $region44
      $region43: #{bottleneck_forward.5} parent=35 // pred_region
        _
      $region44: #{bottleneck_forward.5} parent=35 // pred_fallthru
        _
    $region36: #{bottleneck_forward.5} parent=5 // pred_fallthru
      _
    %p5109 = scmp.le.s32.totalorder 2, %s12
    // Predicated region
    $region45: #{bottleneck_forward.5} parent=5 // pred_check
      %p5110 = pneg %p5109
    $region46: #{bottleneck_forward.5} parent=5 // pred_check_branch
      %5112 = sbr.rel (%p5110) target = $region48
    $region47: #{bottleneck_forward.5} parent=5 // pred_region
      %s5113 = ssub.s32 %s12, 2
      // Predicated region
      $region49: #{bottleneck_forward.5} parent=47 // pred_check
        %p5114 = pneg %p130
      $region50: #{bottleneck_forward.5} parent=47 // pred_check_branch
        %5116 = sbr.rel (%p5114) target = $region52
      $region51: #{bottleneck_forward.5} parent=47 // pred_region
        %p5117 = scmp.lt.s32.totalorder %s18, 1
        %s5118 = scalar_select %p5117, %s18, 1
        %s5119 = smul.addr %s5118, 32
        %s5120 = smul.addr %s5119, 4
        %s5121 = scalar_lea.vmem %s4, %s5120
      $region52: #{bottleneck_forward.5} parent=47 // pred_fallthru
        _
      // Predicated region
      $region53: #{bottleneck_forward.5} parent=47 // pred_check
        %p5122 = pneg %p156
      $region54: #{bottleneck_forward.5} parent=47 // pred_check_branch
        %5124 = sbr.rel (%p5122) target = $region56
      $region55: #{bottleneck_forward.5} parent=47 // pred_region
        %p5125 = scmp.lt.s32.totalorder %s18, 1
        %s5126 = scalar_select %p5125, %s18, 1
        %s5127 = smul.addr %s5126, 2
        %s5128 = scalar_lea.vmem %s5, %s5127
      $region56: #{bottleneck_forward.5} parent=47 // pred_fallthru
        _
    $region48: #{bottleneck_forward.5} parent=5 // pred_fallthru
      _
  $region6: #{bottleneck_forward.5} parent=0 // loop_footer
    %s16 = sadd.s32 1, %s12
  $region7: #{bottleneck_forward.5} parent=0 // loop_footer_branch
    %11 = sbr.rel target = $region3
  $region8: #{bottleneck_forward.5} parent=0 // loop_exit
    _

</llo_original>
